<compile_context>
chip_gen: v5e
topology: v5e:2x2
jax: 0.10.0
libtpu: 0.0.40
codegen_flags: <defaults>
</compile_context>

<pallas_src>
import functools

import numpy as np
import jax
import jax.numpy as jnp
from jax import lax
from jax.experimental import pallas as pl
from jax.experimental.pallas import tpu as pltpu


def _conv_ins_block(v, w_ref, b_ref, mask_ref, *, C, D, H, W, alpha, eps):
    """One ConvInsBlock: 3x3x3 conv (pad=1, stride=1) + InstanceNorm + LeakyReLU.

    v:        (C, P) f32 activations, spatial flattened on the lane axis.
    w_ref:    (27, C, C) f32 per-tap weights, tap k = (dz+1)*9+(dy+1)*3+(dx+1),
              each slice is (c_out, c_in).
    b_ref:    (C, 1) f32 bias.
    mask_ref: (27, P) f32 validity mask per tap (zero padding), read row-wise.
    """
    P = D * H * W

    # Accumulator initialised with the (lane-broadcast) bias.  (InstanceNorm
    # would cancel a per-channel constant anyway, but keep exact semantics.)
    y = jnp.broadcast_to(b_ref[...], (C, P))

    k = 0
    for dz in (-1, 0, 1):
        for dy in (-1, 0, 1):
            for dx in (-1, 0, 1):
                s = dz * H * W + dy * W + dx
                if s == 0:
                    # Center tap: no shift, mask is all-ones.
                    masked = v
                else:
                    # shifted[:, p] == v[:, p + s] at valid positions; the
                    # circularly-wrapped positions are exactly the
                    # out-of-bounds neighbours and get masked to zero.
                    shifted = pltpu.roll(v, shift=(-s) % P, axis=1)
                    masked = shifted * mask_ref[k:k + 1, :]
                y = y + jnp.dot(w_ref[k], masked,
                                preferred_element_type=jnp.float32)
                k += 1

    # InstanceNorm3d (affine=False, biased variance, eps): one pass for the
    # two cross-lane reductions, var = E[y^2] - mean^2 clamped at 0.
    inv_p = 1.0 / P
    mean = jnp.sum(y, axis=1, keepdims=True) * inv_p
    mean_sq = jnp.sum(y * y, axis=1, keepdims=True) * inv_p
    var = jnp.maximum(mean_sq - mean * mean, 0.0)
    yn = (y - mean) * lax.rsqrt(var + eps)

    # LeakyReLU(alpha), alpha in (0, 1): max(yn, alpha*yn).
    return jnp.maximum(yn, alpha * yn)


def _cconv_kernel(x_ref, mask_ref, w1_ref, b1_ref, w2_ref, b2_ref,
                  out_ref, *, C, D, H, W, alpha, eps):
    blk = functools.partial(_conv_ins_block, mask_ref=mask_ref,
                            C=C, D=D, H=H, W=W, alpha=alpha, eps=eps)
    h = blk(x_ref[...], w1_ref, b1_ref)
    h = blk(h, w2_ref, b2_ref)
    out_ref[...] = h


def _offset_masks(D, H, W):
    """(27, D*H*W) f32: validity of neighbour (z+dz, y+dy, x+dx) per tap."""
    z, y, x = np.meshgrid(np.arange(D), np.arange(H), np.arange(W),
                          indexing="ij")
    masks = []
    for dz in (-1, 0, 1):
        for dy in (-1, 0, 1):
            for dx in (-1, 0, 1):
                m = ((z + dz >= 0) & (z + dz < D)
                     & (y + dy >= 0) & (y + dy < H)
                     & (x + dx >= 0) & (x + dx < W))
                masks.append(m.reshape(-1))
    return jnp.asarray(np.stack(masks).astype(np.float32))


def cconv_pallas(float_fm, fixed_fm, d_fm, w1, b1, w2, b2,
                 alpha=0.1, eps=1e-5):
    """CConv forward: cat(channel) -> ConvInsBlock -> ConvInsBlock."""
    x = jnp.concatenate([float_fm, fixed_fm, d_fm], axis=1)  # (N, C, D, H, W)
    N, C, D, H, W = x.shape
    P = D * H * W
    x_flat = x.reshape(N, C, P)

    # (C_out, C_in, kz, ky, kx) -> (27, C_out, C_in), tap k = kz*9 + ky*3 + kx.
    w1_k = jnp.transpose(w1, (2, 3, 4, 0, 1)).reshape(27, C, C)
    w2_k = jnp.transpose(w2, (2, 3, 4, 0, 1)).reshape(27, C, C)
    b1_2d = b1.reshape(C, 1)
    b2_2d = b2.reshape(C, 1)
    mask = _offset_masks(D, H, W)  # (27, P)

    kernel = functools.partial(_cconv_kernel, C=C, D=D, H=H, W=W,
                               alpha=alpha, eps=eps)
    out_flat = pl.pallas_call(
        kernel,
        out_shape=jax.ShapeDtypeStruct((N, C, P), jnp.float32),
        grid_spec=pltpu.PrefetchScalarGridSpec(
            num_scalar_prefetch=0,
            grid=(N,),
            in_specs=[
                pl.BlockSpec((None, C, P), lambda n: (n, 0, 0)),    # x
                pl.BlockSpec((27, P), lambda n: (0, 0)),            # masks
                pl.BlockSpec((27, C, C), lambda n: (0, 0, 0)),      # w1
                pl.BlockSpec((C, 1), lambda n: (0, 0)),             # b1
                pl.BlockSpec((27, C, C), lambda n: (0, 0, 0)),      # w2
                pl.BlockSpec((C, 1), lambda n: (0, 0)),             # b2
            ],
            out_specs=pl.BlockSpec((None, C, P), lambda n: (n, 0, 0)),
        ),
        compiler_params=pltpu.CompilerParams(
            dimension_semantics=("parallel",),
            vmem_limit_bytes=32 * 1024 * 1024,
        ),
    )(x_flat, mask, w1_k, b1_2d, w2_k, b2_2d)
    return out_flat.reshape(N, C, D, H, W)


# ---------------- pure-JAX reference (independent math, for verification) ----


def cconv_ref(float_fm, fixed_fm, d_fm, w1, b1, w2, b2, alpha=0.1, eps=1e-5):
    x = jnp.concatenate([float_fm, fixed_fm, d_fm], axis=1)

    def block(x, w, b):
        y = lax.conv_general_dilated(
            x, w, window_strides=(1, 1, 1),
            padding=((1, 1), (1, 1), (1, 1)),
            dimension_numbers=("NCDHW", "OIDHW", "NCDHW"),
            precision=lax.Precision.HIGHEST)
        y = y + b[None, :, None, None, None]
        mean = jnp.mean(y, axis=(2, 3, 4), keepdims=True)
        yc = y - mean
        var = jnp.mean(yc * yc, axis=(2, 3, 4), keepdims=True)
        yn = yc / jnp.sqrt(var + eps)
        return jnp.where(yn >= 0, yn, alpha * yn)

    return block(block(x, w1, b1), w2, b2)


if __name__ == "__main__":
    key = jax.random.PRNGKey(0)
    k1, k2, k3, k4, k5, k6, k7 = jax.random.split(key, 7)

    # Each input feature map carries C/3 channels; CConv(channel=C) is built
    # so that the channel-concat of the three inputs has exactly C channels.
    N, c_each, D, H, W = 2, 4, 8, 8, 8
    C = 3 * c_each

    float_fm = jax.random.normal(k1, (N, c_each, D, H, W), jnp.float32)
    fixed_fm = jax.random.normal(k2, (N, c_each, D, H, W), jnp.float32)
    d_fm = jax.random.normal(k3, (N, c_each, D, H, W), jnp.float32)
    w1 = jax.random.normal(k4, (C, C, 3, 3, 3), jnp.float32) * 0.1
    b1 = jax.random.normal(k5, (C,), jnp.float32) * 0.1
    w2 = jax.random.normal(k6, (C, C, 3, 3, 3), jnp.float32) * 0.1
    b2 = jax.random.normal(k7, (C,), jnp.float32) * 0.1

    out = jax.block_until_ready(
        cconv_pallas(float_fm, fixed_fm, d_fm, w1, b1, w2, b2))
    ref = jax.block_until_ready(
        cconv_ref(float_fm, fixed_fm, d_fm, w1, b1, w2, b2))

    assert out.shape == (N, C, D, H, W)
    max_err = float(jnp.max(jnp.abs(out - ref)))
    assert max_err < 1e-2, f"mismatch vs reference: {max_err}"

    print("KERNEL_OK")
</pallas_src>

<mosaic_0001>
module attributes {stable_mosaic.version = 11 : i64} {
  func.func @_cconv_kernel(%arg0: i32, %arg1: memref<1x12x512xf32, #tpu.memory_space<vmem>>, %arg2: memref<27x512xf32, #tpu.memory_space<vmem>>, %arg3: memref<27x12x12xf32, #tpu.memory_space<vmem>>, %arg4: memref<12x1xf32, #tpu.memory_space<vmem>>, %arg5: memref<27x12x12xf32, #tpu.memory_space<vmem>>, %arg6: memref<12x1xf32, #tpu.memory_space<vmem>>, %arg7: memref<1x12x512xf32, #tpu.memory_space<vmem>>) attributes {dimension_semantics = [#tpu.dimension_semantics<parallel>], iteration_bounds = array<i64: 2>, scalar_prefetch = 0 : i64, scratch_operands = 0 : i64, tpu.core_type = #tpu.core_type<tc>, window_params = [{transform_indices = @transform_0, window_bounds = array<i64: 1, 12, 512>}, {pipeline_mode = #tpu.pipeline_mode<synchronous>, transform_indices = @transform_1, window_bounds = array<i64: 27, 512>}, {pipeline_mode = #tpu.pipeline_mode<synchronous>, transform_indices = @transform_2, window_bounds = array<i64: 27, 12, 12>}, {pipeline_mode = #tpu.pipeline_mode<synchronous>, transform_indices = @transform_3, window_bounds = array<i64: 12, 1>}, {pipeline_mode = #tpu.pipeline_mode<synchronous>, transform_indices = @transform_4, window_bounds = array<i64: 27, 12, 12>}, {pipeline_mode = #tpu.pipeline_mode<synchronous>, transform_indices = @transform_5, window_bounds = array<i64: 12, 1>}, {transform_indices = @transform_6, window_bounds = array<i64: 1, 12, 512>}]} {
    %c0 = arith.constant 0 : index
    %c0_0 = arith.constant 0 : index
    %c0_1 = arith.constant 0 : index
    %0 = vector.load %arg1[%c0, %c0_0, %c0_1] : memref<1x12x512xf32, #tpu.memory_space<vmem>>, vector<1x12x512xf32>
    %1 = vector.shape_cast %0 : vector<1x12x512xf32> to vector<12x512xf32>
    %c0_2 = arith.constant 0 : index
    %c0_3 = arith.constant 0 : index
    %2 = vector.load %arg4[%c0_2, %c0_3] : memref<12x1xf32, #tpu.memory_space<vmem>>, vector<12x1xf32>
    %3 = vector.shape_cast %2 : vector<12x1xf32> to vector<12x1xf32>
    %4 = vector.broadcast %3 : vector<12x1xf32> to vector<12x512xf32>
    %c73_i32 = arith.constant 73 : i32
    %5 = tpu.dynamic_rotate %1 by %c73_i32 dim 1 : vector<12x512xf32>, i32 -> vector<12x512xf32>
    %c0_4 = arith.constant 0 : index
    %c0_5 = arith.constant 0 : index
    %6 = vector.load %arg2[%c0_4, %c0_5] : memref<27x512xf32, #tpu.memory_space<vmem>>, vector<1x512xf32>
    %7 = vector.broadcast %6 : vector<1x512xf32> to vector<12x512xf32>
    %8 = arith.mulf %5, %7 : vector<12x512xf32>
    %c0_6 = arith.constant 0 : index
    %c0_7 = arith.constant 0 : index
    %c0_8 = arith.constant 0 : index
    %9 = vector.load %arg3[%c0_6, %c0_7, %c0_8] : memref<27x12x12xf32, #tpu.memory_space<vmem>>, vector<1x12x12xf32>
    %10 = vector.shape_cast %9 : vector<1x12x12xf32> to vector<12x12xf32>
    %cst = arith.constant dense<0.000000e+00> : vector<12x512xf32>
    %11 = tpu.matmul %10, %8, %cst {dimension_numbers = #tpu.dot_dimension_numbers<[1], [0], [0], [1], [0, 0, 1, 1], [], []>} : vector<12x12xf32>, vector<12x512xf32>, vector<12x512xf32> -> vector<12x512xf32>
    %12 = arith.addf %4, %11 : vector<12x512xf32>
    %c72_i32 = arith.constant 72 : i32
    %13 = tpu.dynamic_rotate %1 by %c72_i32 dim 1 : vector<12x512xf32>, i32 -> vector<12x512xf32>
    %c1 = arith.constant 1 : index
    %c0_9 = arith.constant 0 : index
    %14 = vector.load %arg2[%c1, %c0_9] : memref<27x512xf32, #tpu.memory_space<vmem>>, vector<1x512xf32>
    %15 = vector.broadcast %14 : vector<1x512xf32> to vector<12x512xf32>
    %16 = arith.mulf %13, %15 : vector<12x512xf32>
    %c1_10 = arith.constant 1 : index
    %c0_11 = arith.constant 0 : index
    %c0_12 = arith.constant 0 : index
    %17 = vector.load %arg3[%c1_10, %c0_11, %c0_12] : memref<27x12x12xf32, #tpu.memory_space<vmem>>, vector<1x12x12xf32>
    %18 = vector.shape_cast %17 : vector<1x12x12xf32> to vector<12x12xf32>
    %cst_13 = arith.constant dense<0.000000e+00> : vector<12x512xf32>
    %19 = tpu.matmul %18, %16, %cst_13 {dimension_numbers = #tpu.dot_dimension_numbers<[1], [0], [0], [1], [0, 0, 1, 1], [], []>} : vector<12x12xf32>, vector<12x512xf32>, vector<12x512xf32> -> vector<12x512xf32>
    %20 = arith.addf %12, %19 : vector<12x512xf32>
    %c71_i32 = arith.constant 71 : i32
    %21 = tpu.dynamic_rotate %1 by %c71_i32 dim 1 : vector<12x512xf32>, i32 -> vector<12x512xf32>
    %c2 = arith.constant 2 : index
    %c0_14 = arith.constant 0 : index
    %22 = vector.load %arg2[%c2, %c0_14] : memref<27x512xf32, #tpu.memory_space<vmem>>, vector<1x512xf32>
    %23 = vector.broadcast %22 : vector<1x512xf32> to vector<12x512xf32>
    %24 = arith.mulf %21, %23 : vector<12x512xf32>
    %c2_15 = arith.constant 2 : index
    %c0_16 = arith.constant 0 : index
    %c0_17 = arith.constant 0 : index
    %25 = vector.load %arg3[%c2_15, %c0_16, %c0_17] : memref<27x12x12xf32, #tpu.memory_space<vmem>>, vector<1x12x12xf32>
    %26 = vector.shape_cast %25 : vector<1x12x12xf32> to vector<12x12xf32>
    %cst_18 = arith.constant dense<0.000000e+00> : vector<12x512xf32>
    %27 = tpu.matmul %26, %24, %cst_18 {dimension_numbers = #tpu.dot_dimension_numbers<[1], [0], [0], [1], [0, 0, 1, 1], [], []>} : vector<12x12xf32>, vector<12x512xf32>, vector<12x512xf32> -> vector<12x512xf32>
    %28 = arith.addf %20, %27 : vector<12x512xf32>
    %c65_i32 = arith.constant 65 : i32
    %29 = tpu.dynamic_rotate %1 by %c65_i32 dim 1 : vector<12x512xf32>, i32 -> vector<12x512xf32>
    %c3 = arith.constant 3 : index
    %c0_19 = arith.constant 0 : index
    %30 = vector.load %arg2[%c3, %c0_19] : memref<27x512xf32, #tpu.memory_space<vmem>>, vector<1x512xf32>
    %31 = vector.broadcast %30 : vector<1x512xf32> to vector<12x512xf32>
    %32 = arith.mulf %29, %31 : vector<12x512xf32>
    %c3_20 = arith.constant 3 : index
    %c0_21 = arith.constant 0 : index
    %c0_22 = arith.constant 0 : index
    %33 = vector.load %arg3[%c3_20, %c0_21, %c0_22] : memref<27x12x12xf32, #tpu.memory_space<vmem>>, vector<1x12x12xf32>
    %34 = vector.shape_cast %33 : vector<1x12x12xf32> to vector<12x12xf32>
    %cst_23 = arith.constant dense<0.000000e+00> : vector<12x512xf32>
    %35 = tpu.matmul %34, %32, %cst_23 {dimension_numbers = #tpu.dot_dimension_numbers<[1], [0], [0], [1], [0, 0, 1, 1], [], []>} : vector<12x12xf32>, vector<12x512xf32>, vector<12x512xf32> -> vector<12x512xf32>
    %36 = arith.addf %28, %35 : vector<12x512xf32>
    %c64_i32 = arith.constant 64 : i32
    %37 = tpu.dynamic_rotate %1 by %c64_i32 dim 1 : vector<12x512xf32>, i32 -> vector<12x512xf32>
    %c4 = arith.constant 4 : index
    %c0_24 = arith.constant 0 : index
    %38 = vector.load %arg2[%c4, %c0_24] : memref<27x512xf32, #tpu.memory_space<vmem>>, vector<1x512xf32>
    %39 = vector.broadcast %38 : vector<1x512xf32> to vector<12x512xf32>
    %40 = arith.mulf %37, %39 : vector<12x512xf32>
    %c4_25 = arith.constant 4 : index
    %c0_26 = arith.constant 0 : index
    %c0_27 = arith.constant 0 : index
    %41 = vector.load %arg3[%c4_25, %c0_26, %c0_27] : memref<27x12x12xf32, #tpu.memory_space<vmem>>, vector<1x12x12xf32>
    %42 = vector.shape_cast %41 : vector<1x12x12xf32> to vector<12x12xf32>
    %cst_28 = arith.constant dense<0.000000e+00> : vector<12x512xf32>
    %43 = tpu.matmul %42, %40, %cst_28 {dimension_numbers = #tpu.dot_dimension_numbers<[1], [0], [0], [1], [0, 0, 1, 1], [], []>} : vector<12x12xf32>, vector<12x512xf32>, vector<12x512xf32> -> vector<12x512xf32>
    %44 = arith.addf %36, %43 : vector<12x512xf32>
    %c63_i32 = arith.constant 63 : i32
    %45 = tpu.dynamic_rotate %1 by %c63_i32 dim 1 : vector<12x512xf32>, i32 -> vector<12x512xf32>
    %c5 = arith.constant 5 : index
    %c0_29 = arith.constant 0 : index
    %46 = vector.load %arg2[%c5, %c0_29] : memref<27x512xf32, #tpu.memory_space<vmem>>, vector<1x512xf32>
    %47 = vector.broadcast %46 : vector<1x512xf32> to vector<12x512xf32>
    %48 = arith.mulf %45, %47 : vector<12x512xf32>
    %c5_30 = arith.constant 5 : index
    %c0_31 = arith.constant 0 : index
    %c0_32 = arith.constant 0 : index
    %49 = vector.load %arg3[%c5_30, %c0_31, %c0_32] : memref<27x12x12xf32, #tpu.memory_space<vmem>>, vector<1x12x12xf32>
    %50 = vector.shape_cast %49 : vector<1x12x12xf32> to vector<12x12xf32>
    %cst_33 = arith.constant dense<0.000000e+00> : vector<12x512xf32>
    %51 = tpu.matmul %50, %48, %cst_33 {dimension_numbers = #tpu.dot_dimension_numbers<[1], [0], [0], [1], [0, 0, 1, 1], [], []>} : vector<12x12xf32>, vector<12x512xf32>, vector<12x512xf32> -> vector<12x512xf32>
    %52 = arith.addf %44, %51 : vector<12x512xf32>
    %c57_i32 = arith.constant 57 : i32
    %53 = tpu.dynamic_rotate %1 by %c57_i32 dim 1 : vector<12x512xf32>, i32 -> vector<12x512xf32>
    %c6 = arith.constant 6 : index
    %c0_34 = arith.constant 0 : index
    %54 = vector.load %arg2[%c6, %c0_34] : memref<27x512xf32, #tpu.memory_space<vmem>>, vector<1x512xf32>
    %55 = vector.broadcast %54 : vector<1x512xf32> to vector<12x512xf32>
    %56 = arith.mulf %53, %55 : vector<12x512xf32>
    %c6_35 = arith.constant 6 : index
    %c0_36 = arith.constant 0 : index
    %c0_37 = arith.constant 0 : index
    %57 = vector.load %arg3[%c6_35, %c0_36, %c0_37] : memref<27x12x12xf32, #tpu.memory_space<vmem>>, vector<1x12x12xf32>
    %58 = vector.shape_cast %57 : vector<1x12x12xf32> to vector<12x12xf32>
    %cst_38 = arith.constant dense<0.000000e+00> : vector<12x512xf32>
    %59 = tpu.matmul %58, %56, %cst_38 {dimension_numbers = #tpu.dot_dimension_numbers<[1], [0], [0], [1], [0, 0, 1, 1], [], []>} : vector<12x12xf32>, vector<12x512xf32>, vector<12x512xf32> -> vector<12x512xf32>
    %60 = arith.addf %52, %59 : vector<12x512xf32>
    %c56_i32 = arith.constant 56 : i32
    %61 = tpu.dynamic_rotate %1 by %c56_i32 dim 1 : vector<12x512xf32>, i32 -> vector<12x512xf32>
    %c7 = arith.constant 7 : index
    %c0_39 = arith.constant 0 : index
    %62 = vector.load %arg2[%c7, %c0_39] : memref<27x512xf32, #tpu.memory_space<vmem>>, vector<1x512xf32>
    %63 = vector.broadcast %62 : vector<1x512xf32> to vector<12x512xf32>
    %64 = arith.mulf %61, %63 : vector<12x512xf32>
    %c7_40 = arith.constant 7 : index
    %c0_41 = arith.constant 0 : index
    %c0_42 = arith.constant 0 : index
    %65 = vector.load %arg3[%c7_40, %c0_41, %c0_42] : memref<27x12x12xf32, #tpu.memory_space<vmem>>, vector<1x12x12xf32>
    %66 = vector.shape_cast %65 : vector<1x12x12xf32> to vector<12x12xf32>
    %cst_43 = arith.constant dense<0.000000e+00> : vector<12x512xf32>
    %67 = tpu.matmul %66, %64, %cst_43 {dimension_numbers = #tpu.dot_dimension_numbers<[1], [0], [0], [1], [0, 0, 1, 1], [], []>} : vector<12x12xf32>, vector<12x512xf32>, vector<12x512xf32> -> vector<12x512xf32>
    %68 = arith.addf %60, %67 : vector<12x512xf32>
    %c55_i32 = arith.constant 55 : i32
    %69 = tpu.dynamic_rotate %1 by %c55_i32 dim 1 : vector<12x512xf32>, i32 -> vector<12x512xf32>
    %c8 = arith.constant 8 : index
    %c0_44 = arith.constant 0 : index
    %70 = vector.load %arg2[%c8, %c0_44] : memref<27x512xf32, #tpu.memory_space<vmem>>, vector<1x512xf32>
    %71 = vector.broadcast %70 : vector<1x512xf32> to vector<12x512xf32>
    %72 = arith.mulf %69, %71 : vector<12x512xf32>
    %c8_45 = arith.constant 8 : index
    %c0_46 = arith.constant 0 : index
    %c0_47 = arith.constant 0 : index
    %73 = vector.load %arg3[%c8_45, %c0_46, %c0_47] : memref<27x12x12xf32, #tpu.memory_space<vmem>>, vector<1x12x12xf32>
    %74 = vector.shape_cast %73 : vector<1x12x12xf32> to vector<12x12xf32>
    %cst_48 = arith.constant dense<0.000000e+00> : vector<12x512xf32>
    %75 = tpu.matmul %74, %72, %cst_48 {dimension_numbers = #tpu.dot_dimension_numbers<[1], [0], [0], [1], [0, 0, 1, 1], [], []>} : vector<12x12xf32>, vector<12x512xf32>, vector<12x512xf32> -> vector<12x512xf32>
    %76 = arith.addf %68, %75 : vector<12x512xf32>
    %c9_i32 = arith.constant 9 : i32
    %77 = tpu.dynamic_rotate %1 by %c9_i32 dim 1 : vector<12x512xf32>, i32 -> vector<12x512xf32>
    %c9 = arith.constant 9 : index
    %c0_49 = arith.constant 0 : index
    %78 = vector.load %arg2[%c9, %c0_49] : memref<27x512xf32, #tpu.memory_space<vmem>>, vector<1x512xf32>
    %79 = vector.broadcast %78 : vector<1x512xf32> to vector<12x512xf32>
    %80 = arith.mulf %77, %79 : vector<12x512xf32>
    %c9_50 = arith.constant 9 : index
    %c0_51 = arith.constant 0 : index
    %c0_52 = arith.constant 0 : index
    %81 = vector.load %arg3[%c9_50, %c0_51, %c0_52] : memref<27x12x12xf32, #tpu.memory_space<vmem>>, vector<1x12x12xf32>
    %82 = vector.shape_cast %81 : vector<1x12x12xf32> to vector<12x12xf32>
    %cst_53 = arith.constant dense<0.000000e+00> : vector<12x512xf32>
    %83 = tpu.matmul %82, %80, %cst_53 {dimension_numbers = #tpu.dot_dimension_numbers<[1], [0], [0], [1], [0, 0, 1, 1], [], []>} : vector<12x12xf32>, vector<12x512xf32>, vector<12x512xf32> -> vector<12x512xf32>
    %84 = arith.addf %76, %83 : vector<12x512xf32>
    %c8_i32 = arith.constant 8 : i32
    %85 = tpu.dynamic_rotate %1 by %c8_i32 dim 1 : vector<12x512xf32>, i32 -> vector<12x512xf32>
    %c10 = arith.constant 10 : index
    %c0_54 = arith.constant 0 : index
    %86 = vector.load %arg2[%c10, %c0_54] : memref<27x512xf32, #tpu.memory_space<vmem>>, vector<1x512xf32>
    %87 = vector.broadcast %86 : vector<1x512xf32> to vector<12x512xf32>
    %88 = arith.mulf %85, %87 : vector<12x512xf32>
    %c10_55 = arith.constant 10 : index
    %c0_56 = arith.constant 0 : index
    %c0_57 = arith.constant 0 : index
    %89 = vector.load %arg3[%c10_55, %c0_56, %c0_57] : memref<27x12x12xf32, #tpu.memory_space<vmem>>, vector<1x12x12xf32>
    %90 = vector.shape_cast %89 : vector<1x12x12xf32> to vector<12x12xf32>
    %cst_58 = arith.constant dense<0.000000e+00> : vector<12x512xf32>
    %91 = tpu.matmul %90, %88, %cst_58 {dimension_numbers = #tpu.dot_dimension_numbers<[1], [0], [0], [1], [0, 0, 1, 1], [], []>} : vector<12x12xf32>, vector<12x512xf32>, vector<12x512xf32> -> vector<12x512xf32>
    %92 = arith.addf %84, %91 : vector<12x512xf32>
    %c7_i32 = arith.constant 7 : i32
    %93 = tpu.dynamic_rotate %1 by %c7_i32 dim 1 : vector<12x512xf32>, i32 -> vector<12x512xf32>
    %c11 = arith.constant 11 : index
    %c0_59 = arith.constant 0 : index
    %94 = vector.load %arg2[%c11, %c0_59] : memref<27x512xf32, #tpu.memory_space<vmem>>, vector<1x512xf32>
    %95 = vector.broadcast %94 : vector<1x512xf32> to vector<12x512xf32>
    %96 = arith.mulf %93, %95 : vector<12x512xf32>
    %c11_60 = arith.constant 11 : index
    %c0_61 = arith.constant 0 : index
    %c0_62 = arith.constant 0 : index
    %97 = vector.load %arg3[%c11_60, %c0_61, %c0_62] : memref<27x12x12xf32, #tpu.memory_space<vmem>>, vector<1x12x12xf32>
    %98 = vector.shape_cast %97 : vector<1x12x12xf32> to vector<12x12xf32>
    %cst_63 = arith.constant dense<0.000000e+00> : vector<12x512xf32>
    %99 = tpu.matmul %98, %96, %cst_63 {dimension_numbers = #tpu.dot_dimension_numbers<[1], [0], [0], [1], [0, 0, 1, 1], [], []>} : vector<12x12xf32>, vector<12x512xf32>, vector<12x512xf32> -> vector<12x512xf32>
    %100 = arith.addf %92, %99 : vector<12x512xf32>
    %c1_i32 = arith.constant 1 : i32
    %101 = tpu.dynamic_rotate %1 by %c1_i32 dim 1 : vector<12x512xf32>, i32 -> vector<12x512xf32>
    %c12 = arith.constant 12 : index
    %c0_64 = arith.constant 0 : index
    %102 = vector.load %arg2[%c12, %c0_64] : memref<27x512xf32, #tpu.memory_space<vmem>>, vector<1x512xf32>
    %103 = vector.broadcast %102 : vector<1x512xf32> to vector<12x512xf32>
    %104 = arith.mulf %101, %103 : vector<12x512xf32>
    %c12_65 = arith.constant 12 : index
    %c0_66 = arith.constant 0 : index
    %c0_67 = arith.constant 0 : index
    %105 = vector.load %arg3[%c12_65, %c0_66, %c0_67] : memref<27x12x12xf32, #tpu.memory_space<vmem>>, vector<1x12x12xf32>
    %106 = vector.shape_cast %105 : vector<1x12x12xf32> to vector<12x12xf32>
    %cst_68 = arith.constant dense<0.000000e+00> : vector<12x512xf32>
    %107 = tpu.matmul %106, %104, %cst_68 {dimension_numbers = #tpu.dot_dimension_numbers<[1], [0], [0], [1], [0, 0, 1, 1], [], []>} : vector<12x12xf32>, vector<12x512xf32>, vector<12x512xf32> -> vector<12x512xf32>
    %108 = arith.addf %100, %107 : vector<12x512xf32>
    %c13 = arith.constant 13 : index
    %c0_69 = arith.constant 0 : index
    %c0_70 = arith.constant 0 : index
    %109 = vector.load %arg3[%c13, %c0_69, %c0_70] : memref<27x12x12xf32, #tpu.memory_space<vmem>>, vector<1x12x12xf32>
    %110 = vector.shape_cast %109 : vector<1x12x12xf32> to vector<12x12xf32>
    %cst_71 = arith.constant dense<0.000000e+00> : vector<12x512xf32>
    %111 = tpu.matmul %110, %1, %cst_71 {dimension_numbers = #tpu.dot_dimension_numbers<[1], [0], [0], [1], [0, 0, 1, 1], [], []>} : vector<12x12xf32>, vector<12x512xf32>, vector<12x512xf32> -> vector<12x512xf32>
    %112 = arith.addf %108, %111 : vector<12x512xf32>
    %c511_i32 = arith.constant 511 : i32
    %113 = tpu.dynamic_rotate %1 by %c511_i32 dim 1 : vector<12x512xf32>, i32 -> vector<12x512xf32>
    %c14 = arith.constant 14 : index
    %c0_72 = arith.constant 0 : index
    %114 = vector.load %arg2[%c14, %c0_72] : memref<27x512xf32, #tpu.memory_space<vmem>>, vector<1x512xf32>
    %115 = vector.broadcast %114 : vector<1x512xf32> to vector<12x512xf32>
    %116 = arith.mulf %113, %115 : vector<12x512xf32>
    %c14_73 = arith.constant 14 : index
    %c0_74 = arith.constant 0 : index
    %c0_75 = arith.constant 0 : index
    %117 = vector.load %arg3[%c14_73, %c0_74, %c0_75] : memref<27x12x12xf32, #tpu.memory_space<vmem>>, vector<1x12x12xf32>
    %118 = vector.shape_cast %117 : vector<1x12x12xf32> to vector<12x12xf32>
    %cst_76 = arith.constant dense<0.000000e+00> : vector<12x512xf32>
    %119 = tpu.matmul %118, %116, %cst_76 {dimension_numbers = #tpu.dot_dimension_numbers<[1], [0], [0], [1], [0, 0, 1, 1], [], []>} : vector<12x12xf32>, vector<12x512xf32>, vector<12x512xf32> -> vector<12x512xf32>
    %120 = arith.addf %112, %119 : vector<12x512xf32>
    %c505_i32 = arith.constant 505 : i32
    %121 = tpu.dynamic_rotate %1 by %c505_i32 dim 1 : vector<12x512xf32>, i32 -> vector<12x512xf32>
    %c15 = arith.constant 15 : index
    %c0_77 = arith.constant 0 : index
    %122 = vector.load %arg2[%c15, %c0_77] : memref<27x512xf32, #tpu.memory_space<vmem>>, vector<1x512xf32>
    %123 = vector.broadcast %122 : vector<1x512xf32> to vector<12x512xf32>
    %124 = arith.mulf %121, %123 : vector<12x512xf32>
    %c15_78 = arith.constant 15 : index
    %c0_79 = arith.constant 0 : index
    %c0_80 = arith.constant 0 : index
    %125 = vector.load %arg3[%c15_78, %c0_79, %c0_80] : memref<27x12x12xf32, #tpu.memory_space<vmem>>, vector<1x12x12xf32>
    %126 = vector.shape_cast %125 : vector<1x12x12xf32> to vector<12x12xf32>
    %cst_81 = arith.constant dense<0.000000e+00> : vector<12x512xf32>
    %127 = tpu.matmul %126, %124, %cst_81 {dimension_numbers = #tpu.dot_dimension_numbers<[1], [0], [0], [1], [0, 0, 1, 1], [], []>} : vector<12x12xf32>, vector<12x512xf32>, vector<12x512xf32> -> vector<12x512xf32>
    %128 = arith.addf %120, %127 : vector<12x512xf32>
    %c504_i32 = arith.constant 504 : i32
    %129 = tpu.dynamic_rotate %1 by %c504_i32 dim 1 : vector<12x512xf32>, i32 -> vector<12x512xf32>
    %c16 = arith.constant 16 : index
    %c0_82 = arith.constant 0 : index
    %130 = vector.load %arg2[%c16, %c0_82] : memref<27x512xf32, #tpu.memory_space<vmem>>, vector<1x512xf32>
    %131 = vector.broadcast %130 : vector<1x512xf32> to vector<12x512xf32>
    %132 = arith.mulf %129, %131 : vector<12x512xf32>
    %c16_83 = arith.constant 16 : index
    %c0_84 = arith.constant 0 : index
    %c0_85 = arith.constant 0 : index
    %133 = vector.load %arg3[%c16_83, %c0_84, %c0_85] : memref<27x12x12xf32, #tpu.memory_space<vmem>>, vector<1x12x12xf32>
    %134 = vector.shape_cast %133 : vector<1x12x12xf32> to vector<12x12xf32>
    %cst_86 = arith.constant dense<0.000000e+00> : vector<12x512xf32>
    %135 = tpu.matmul %134, %132, %cst_86 {dimension_numbers = #tpu.dot_dimension_numbers<[1], [0], [0], [1], [0, 0, 1, 1], [], []>} : vector<12x12xf32>, vector<12x512xf32>, vector<12x512xf32> -> vector<12x512xf32>
    %136 = arith.addf %128, %135 : vector<12x512xf32>
    %c503_i32 = arith.constant 503 : i32
    %137 = tpu.dynamic_rotate %1 by %c503_i32 dim 1 : vector<12x512xf32>, i32 -> vector<12x512xf32>
    %c17 = arith.constant 17 : index
    %c0_87 = arith.constant 0 : index
    %138 = vector.load %arg2[%c17, %c0_87] : memref<27x512xf32, #tpu.memory_space<vmem>>, vector<1x512xf32>
    %139 = vector.broadcast %138 : vector<1x512xf32> to vector<12x512xf32>
    %140 = arith.mulf %137, %139 : vector<12x512xf32>
    %c17_88 = arith.constant 17 : index
    %c0_89 = arith.constant 0 : index
    %c0_90 = arith.constant 0 : index
    %141 = vector.load %arg3[%c17_88, %c0_89, %c0_90] : memref<27x12x12xf32, #tpu.memory_space<vmem>>, vector<1x12x12xf32>
    %142 = vector.shape_cast %141 : vector<1x12x12xf32> to vector<12x12xf32>
    %cst_91 = arith.constant dense<0.000000e+00> : vector<12x512xf32>
    %143 = tpu.matmul %142, %140, %cst_91 {dimension_numbers = #tpu.dot_dimension_numbers<[1], [0], [0], [1], [0, 0, 1, 1], [], []>} : vector<12x12xf32>, vector<12x512xf32>, vector<12x512xf32> -> vector<12x512xf32>
    %144 = arith.addf %136, %143 : vector<12x512xf32>
    %c457_i32 = arith.constant 457 : i32
    %145 = tpu.dynamic_rotate %1 by %c457_i32 dim 1 : vector<12x512xf32>, i32 -> vector<12x512xf32>
    %c18 = arith.constant 18 : index
    %c0_92 = arith.constant 0 : index
    %146 = vector.load %arg2[%c18, %c0_92] : memref<27x512xf32, #tpu.memory_space<vmem>>, vector<1x512xf32>
    %147 = vector.broadcast %146 : vector<1x512xf32> to vector<12x512xf32>
    %148 = arith.mulf %145, %147 : vector<12x512xf32>
    %c18_93 = arith.constant 18 : index
    %c0_94 = arith.constant 0 : index
    %c0_95 = arith.constant 0 : index
    %149 = vector.load %arg3[%c18_93, %c0_94, %c0_95] : memref<27x12x12xf32, #tpu.memory_space<vmem>>, vector<1x12x12xf32>
    %150 = vector.shape_cast %149 : vector<1x12x12xf32> to vector<12x12xf32>
    %cst_96 = arith.constant dense<0.000000e+00> : vector<12x512xf32>
    %151 = tpu.matmul %150, %148, %cst_96 {dimension_numbers = #tpu.dot_dimension_numbers<[1], [0], [0], [1], [0, 0, 1, 1], [], []>} : vector<12x12xf32>, vector<12x512xf32>, vector<12x512xf32> -> vector<12x512xf32>
    %152 = arith.addf %144, %151 : vector<12x512xf32>
    %c456_i32 = arith.constant 456 : i32
    %153 = tpu.dynamic_rotate %1 by %c456_i32 dim 1 : vector<12x512xf32>, i32 -> vector<12x512xf32>
    %c19 = arith.constant 19 : index
    %c0_97 = arith.constant 0 : index
    %154 = vector.load %arg2[%c19, %c0_97] : memref<27x512xf32, #tpu.memory_space<vmem>>, vector<1x512xf32>
    %155 = vector.broadcast %154 : vector<1x512xf32> to vector<12x512xf32>
    %156 = arith.mulf %153, %155 : vector<12x512xf32>
    %c19_98 = arith.constant 19 : index
    %c0_99 = arith.constant 0 : index
    %c0_100 = arith.constant 0 : index
    %157 = vector.load %arg3[%c19_98, %c0_99, %c0_100] : memref<27x12x12xf32, #tpu.memory_space<vmem>>, vector<1x12x12xf32>
    %158 = vector.shape_cast %157 : vector<1x12x12xf32> to vector<12x12xf32>
    %cst_101 = arith.constant dense<0.000000e+00> : vector<12x512xf32>
    %159 = tpu.matmul %158, %156, %cst_101 {dimension_numbers = #tpu.dot_dimension_numbers<[1], [0], [0], [1], [0, 0, 1, 1], [], []>} : vector<12x12xf32>, vector<12x512xf32>, vector<12x512xf32> -> vector<12x512xf32>
    %160 = arith.addf %152, %159 : vector<12x512xf32>
    %c455_i32 = arith.constant 455 : i32
    %161 = tpu.dynamic_rotate %1 by %c455_i32 dim 1 : vector<12x512xf32>, i32 -> vector<12x512xf32>
    %c20 = arith.constant 20 : index
    %c0_102 = arith.constant 0 : index
    %162 = vector.load %arg2[%c20, %c0_102] : memref<27x512xf32, #tpu.memory_space<vmem>>, vector<1x512xf32>
    %163 = vector.broadcast %162 : vector<1x512xf32> to vector<12x512xf32>
    %164 = arith.mulf %161, %163 : vector<12x512xf32>
    %c20_103 = arith.constant 20 : index
    %c0_104 = arith.constant 0 : index
    %c0_105 = arith.constant 0 : index
    %165 = vector.load %arg3[%c20_103, %c0_104, %c0_105] : memref<27x12x12xf32, #tpu.memory_space<vmem>>, vector<1x12x12xf32>
    %166 = vector.shape_cast %165 : vector<1x12x12xf32> to vector<12x12xf32>
    %cst_106 = arith.constant dense<0.000000e+00> : vector<12x512xf32>
    %167 = tpu.matmul %166, %164, %cst_106 {dimension_numbers = #tpu.dot_dimension_numbers<[1], [0], [0], [1], [0, 0, 1, 1], [], []>} : vector<12x12xf32>, vector<12x512xf32>, vector<12x512xf32> -> vector<12x512xf32>
    %168 = arith.addf %160, %167 : vector<12x512xf32>
    %c449_i32 = arith.constant 449 : i32
    %169 = tpu.dynamic_rotate %1 by %c449_i32 dim 1 : vector<12x512xf32>, i32 -> vector<12x512xf32>
    %c21 = arith.constant 21 : index
    %c0_107 = arith.constant 0 : index
    %170 = vector.load %arg2[%c21, %c0_107] : memref<27x512xf32, #tpu.memory_space<vmem>>, vector<1x512xf32>
    %171 = vector.broadcast %170 : vector<1x512xf32> to vector<12x512xf32>
    %172 = arith.mulf %169, %171 : vector<12x512xf32>
    %c21_108 = arith.constant 21 : index
    %c0_109 = arith.constant 0 : index
    %c0_110 = arith.constant 0 : index
    %173 = vector.load %arg3[%c21_108, %c0_109, %c0_110] : memref<27x12x12xf32, #tpu.memory_space<vmem>>, vector<1x12x12xf32>
    %174 = vector.shape_cast %173 : vector<1x12x12xf32> to vector<12x12xf32>
    %cst_111 = arith.constant dense<0.000000e+00> : vector<12x512xf32>
    %175 = tpu.matmul %174, %172, %cst_111 {dimension_numbers = #tpu.dot_dimension_numbers<[1], [0], [0], [1], [0, 0, 1, 1], [], []>} : vector<12x12xf32>, vector<12x512xf32>, vector<12x512xf32> -> vector<12x512xf32>
    %176 = arith.addf %168, %175 : vector<12x512xf32>
    %c448_i32 = arith.constant 448 : i32
    %177 = tpu.dynamic_rotate %1 by %c448_i32 dim 1 : vector<12x512xf32>, i32 -> vector<12x512xf32>
    %c22 = arith.constant 22 : index
    %c0_112 = arith.constant 0 : index
    %178 = vector.load %arg2[%c22, %c0_112] : memref<27x512xf32, #tpu.memory_space<vmem>>, vector<1x512xf32>
    %179 = vector.broadcast %178 : vector<1x512xf32> to vector<12x512xf32>
    %180 = arith.mulf %177, %179 : vector<12x512xf32>
    %c22_113 = arith.constant 22 : index
    %c0_114 = arith.constant 0 : index
    %c0_115 = arith.constant 0 : index
    %181 = vector.load %arg3[%c22_113, %c0_114, %c0_115] : memref<27x12x12xf32, #tpu.memory_space<vmem>>, vector<1x12x12xf32>
    %182 = vector.shape_cast %181 : vector<1x12x12xf32> to vector<12x12xf32>
    %cst_116 = arith.constant dense<0.000000e+00> : vector<12x512xf32>
    %183 = tpu.matmul %182, %180, %cst_116 {dimension_numbers = #tpu.dot_dimension_numbers<[1], [0], [0], [1], [0, 0, 1, 1], [], []>} : vector<12x12xf32>, vector<12x512xf32>, vector<12x512xf32> -> vector<12x512xf32>
    %184 = arith.addf %176, %183 : vector<12x512xf32>
    %c447_i32 = arith.constant 447 : i32
    %185 = tpu.dynamic_rotate %1 by %c447_i32 dim 1 : vector<12x512xf32>, i32 -> vector<12x512xf32>
    %c23 = arith.constant 23 : index
    %c0_117 = arith.constant 0 : index
    %186 = vector.load %arg2[%c23, %c0_117] : memref<27x512xf32, #tpu.memory_space<vmem>>, vector<1x512xf32>
    %187 = vector.broadcast %186 : vector<1x512xf32> to vector<12x512xf32>
    %188 = arith.mulf %185, %187 : vector<12x512xf32>
    %c23_118 = arith.constant 23 : index
    %c0_119 = arith.constant 0 : index
    %c0_120 = arith.constant 0 : index
    %189 = vector.load %arg3[%c23_118, %c0_119, %c0_120] : memref<27x12x12xf32, #tpu.memory_space<vmem>>, vector<1x12x12xf32>
    %190 = vector.shape_cast %189 : vector<1x12x12xf32> to vector<12x12xf32>
    %cst_121 = arith.constant dense<0.000000e+00> : vector<12x512xf32>
    %191 = tpu.matmul %190, %188, %cst_121 {dimension_numbers = #tpu.dot_dimension_numbers<[1], [0], [0], [1], [0, 0, 1, 1], [], []>} : vector<12x12xf32>, vector<12x512xf32>, vector<12x512xf32> -> vector<12x512xf32>
    %192 = arith.addf %184, %191 : vector<12x512xf32>
    %c441_i32 = arith.constant 441 : i32
    %193 = tpu.dynamic_rotate %1 by %c441_i32 dim 1 : vector<12x512xf32>, i32 -> vector<12x512xf32>
    %c24 = arith.constant 24 : index
    %c0_122 = arith.constant 0 : index
    %194 = vector.load %arg2[%c24, %c0_122] : memref<27x512xf32, #tpu.memory_space<vmem>>, vector<1x512xf32>
    %195 = vector.broadcast %194 : vector<1x512xf32> to vector<12x512xf32>
    %196 = arith.mulf %193, %195 : vector<12x512xf32>
    %c24_123 = arith.constant 24 : index
    %c0_124 = arith.constant 0 : index
    %c0_125 = arith.constant 0 : index
    %197 = vector.load %arg3[%c24_123, %c0_124, %c0_125] : memref<27x12x12xf32, #tpu.memory_space<vmem>>, vector<1x12x12xf32>
    %198 = vector.shape_cast %197 : vector<1x12x12xf32> to vector<12x12xf32>
    %cst_126 = arith.constant dense<0.000000e+00> : vector<12x512xf32>
    %199 = tpu.matmul %198, %196, %cst_126 {dimension_numbers = #tpu.dot_dimension_numbers<[1], [0], [0], [1], [0, 0, 1, 1], [], []>} : vector<12x12xf32>, vector<12x512xf32>, vector<12x512xf32> -> vector<12x512xf32>
    %200 = arith.addf %192, %199 : vector<12x512xf32>
    %c440_i32 = arith.constant 440 : i32
    %201 = tpu.dynamic_rotate %1 by %c440_i32 dim 1 : vector<12x512xf32>, i32 -> vector<12x512xf32>
    %c25 = arith.constant 25 : index
    %c0_127 = arith.constant 0 : index
    %202 = vector.load %arg2[%c25, %c0_127] : memref<27x512xf32, #tpu.memory_space<vmem>>, vector<1x512xf32>
    %203 = vector.broadcast %202 : vector<1x512xf32> to vector<12x512xf32>
    %204 = arith.mulf %201, %203 : vector<12x512xf32>
    %c25_128 = arith.constant 25 : index
    %c0_129 = arith.constant 0 : index
    %c0_130 = arith.constant 0 : index
    %205 = vector.load %arg3[%c25_128, %c0_129, %c0_130] : memref<27x12x12xf32, #tpu.memory_space<vmem>>, vector<1x12x12xf32>
    %206 = vector.shape_cast %205 : vector<1x12x12xf32> to vector<12x12xf32>
    %cst_131 = arith.constant dense<0.000000e+00> : vector<12x512xf32>
    %207 = tpu.matmul %206, %204, %cst_131 {dimension_numbers = #tpu.dot_dimension_numbers<[1], [0], [0], [1], [0, 0, 1, 1], [], []>} : vector<12x12xf32>, vector<12x512xf32>, vector<12x512xf32> -> vector<12x512xf32>
    %208 = arith.addf %200, %207 : vector<12x512xf32>
    %c439_i32 = arith.constant 439 : i32
    %209 = tpu.dynamic_rotate %1 by %c439_i32 dim 1 : vector<12x512xf32>, i32 -> vector<12x512xf32>
    %c26 = arith.constant 26 : index
    %c0_132 = arith.constant 0 : index
    %210 = vector.load %arg2[%c26, %c0_132] : memref<27x512xf32, #tpu.memory_space<vmem>>, vector<1x512xf32>
    %211 = vector.broadcast %210 : vector<1x512xf32> to vector<12x512xf32>
    %212 = arith.mulf %209, %211 : vector<12x512xf32>
    %c26_133 = arith.constant 26 : index
    %c0_134 = arith.constant 0 : index
    %c0_135 = arith.constant 0 : index
    %213 = vector.load %arg3[%c26_133, %c0_134, %c0_135] : memref<27x12x12xf32, #tpu.memory_space<vmem>>, vector<1x12x12xf32>
    %214 = vector.shape_cast %213 : vector<1x12x12xf32> to vector<12x12xf32>
    %cst_136 = arith.constant dense<0.000000e+00> : vector<12x512xf32>
    %215 = tpu.matmul %214, %212, %cst_136 {dimension_numbers = #tpu.dot_dimension_numbers<[1], [0], [0], [1], [0, 0, 1, 1], [], []>} : vector<12x12xf32>, vector<12x512xf32>, vector<12x512xf32> -> vector<12x512xf32>
    %216 = arith.addf %208, %215 : vector<12x512xf32>
    %cst_137 = arith.constant dense<0.000000e+00> : vector<12xf32>
    %217 = vector.multi_reduction <add>, %216, %cst_137 [1] : vector<12x512xf32> to vector<12xf32>
    %218 = vector.shape_cast %217 : vector<12xf32> to vector<12x1xf32>
    %cst_138 = arith.constant 0.001953125 : f32
    %219 = vector.broadcast %cst_138 : f32 to vector<12x1xf32>
    %220 = arith.mulf %218, %219 : vector<12x1xf32>
    %221 = arith.mulf %216, %216 : vector<12x512xf32>
    %cst_139 = arith.constant dense<0.000000e+00> : vector<12xf32>
    %222 = vector.multi_reduction <add>, %221, %cst_139 [1] : vector<12x512xf32> to vector<12xf32>
    %223 = vector.shape_cast %222 : vector<12xf32> to vector<12x1xf32>
    %cst_140 = arith.constant 0.001953125 : f32
    %224 = vector.broadcast %cst_140 : f32 to vector<12x1xf32>
    %225 = arith.mulf %223, %224 : vector<12x1xf32>
    %226 = arith.mulf %220, %220 : vector<12x1xf32>
    %227 = arith.subf %225, %226 : vector<12x1xf32>
    %cst_141 = arith.constant 0.000000e+00 : f32
    %228 = vector.broadcast %cst_141 : f32 to vector<12x1xf32>
    %229 = arith.maximumf %227, %228 : vector<12x1xf32>
    %230 = vector.broadcast %220 : vector<12x1xf32> to vector<12x512xf32>
    %231 = arith.subf %216, %230 : vector<12x512xf32>
    %cst_142 = arith.constant 9.99999974E-6 : f32
    %232 = vector.broadcast %cst_142 : f32 to vector<12x1xf32>
    %233 = arith.addf %229, %232 : vector<12x1xf32>
    %234 = math.rsqrt %233 : vector<12x1xf32>
    %235 = vector.broadcast %234 : vector<12x1xf32> to vector<12x512xf32>
    %236 = arith.mulf %231, %235 : vector<12x512xf32>
    %cst_143 = arith.constant 1.000000e-01 : f32
    %237 = vector.broadcast %cst_143 : f32 to vector<12x512xf32>
    %238 = arith.mulf %237, %236 : vector<12x512xf32>
    %239 = arith.maximumf %236, %238 : vector<12x512xf32>
    %c0_144 = arith.constant 0 : index
    %c0_145 = arith.constant 0 : index
    %240 = vector.load %arg6[%c0_144, %c0_145] : memref<12x1xf32, #tpu.memory_space<vmem>>, vector<12x1xf32>
    %241 = vector.shape_cast %240 : vector<12x1xf32> to vector<12x1xf32>
    %242 = vector.broadcast %241 : vector<12x1xf32> to vector<12x512xf32>
    %c73_i32_146 = arith.constant 73 : i32
    %243 = tpu.dynamic_rotate %239 by %c73_i32_146 dim 1 : vector<12x512xf32>, i32 -> vector<12x512xf32>
    %c0_147 = arith.constant 0 : index
    %c0_148 = arith.constant 0 : index
    %244 = vector.load %arg2[%c0_147, %c0_148] : memref<27x512xf32, #tpu.memory_space<vmem>>, vector<1x512xf32>
    %245 = vector.broadcast %244 : vector<1x512xf32> to vector<12x512xf32>
    %246 = arith.mulf %243, %245 : vector<12x512xf32>
    %c0_149 = arith.constant 0 : index
    %c0_150 = arith.constant 0 : index
    %c0_151 = arith.constant 0 : index
    %247 = vector.load %arg5[%c0_149, %c0_150, %c0_151] : memref<27x12x12xf32, #tpu.memory_space<vmem>>, vector<1x12x12xf32>
    %248 = vector.shape_cast %247 : vector<1x12x12xf32> to vector<12x12xf32>
    %cst_152 = arith.constant dense<0.000000e+00> : vector<12x512xf32>
    %249 = tpu.matmul %248, %246, %cst_152 {dimension_numbers = #tpu.dot_dimension_numbers<[1], [0], [0], [1], [0, 0, 1, 1], [], []>} : vector<12x12xf32>, vector<12x512xf32>, vector<12x512xf32> -> vector<12x512xf32>
    %250 = arith.addf %242, %249 : vector<12x512xf32>
    %c72_i32_153 = arith.constant 72 : i32
    %251 = tpu.dynamic_rotate %239 by %c72_i32_153 dim 1 : vector<12x512xf32>, i32 -> vector<12x512xf32>
    %c1_154 = arith.constant 1 : index
    %c0_155 = arith.constant 0 : index
    %252 = vector.load %arg2[%c1_154, %c0_155] : memref<27x512xf32, #tpu.memory_space<vmem>>, vector<1x512xf32>
    %253 = vector.broadcast %252 : vector<1x512xf32> to vector<12x512xf32>
    %254 = arith.mulf %251, %253 : vector<12x512xf32>
    %c1_156 = arith.constant 1 : index
    %c0_157 = arith.constant 0 : index
    %c0_158 = arith.constant 0 : index
    %255 = vector.load %arg5[%c1_156, %c0_157, %c0_158] : memref<27x12x12xf32, #tpu.memory_space<vmem>>, vector<1x12x12xf32>
    %256 = vector.shape_cast %255 : vector<1x12x12xf32> to vector<12x12xf32>
    %cst_159 = arith.constant dense<0.000000e+00> : vector<12x512xf32>
    %257 = tpu.matmul %256, %254, %cst_159 {dimension_numbers = #tpu.dot_dimension_numbers<[1], [0], [0], [1], [0, 0, 1, 1], [], []>} : vector<12x12xf32>, vector<12x512xf32>, vector<12x512xf32> -> vector<12x512xf32>
    %258 = arith.addf %250, %257 : vector<12x512xf32>
    %c71_i32_160 = arith.constant 71 : i32
    %259 = tpu.dynamic_rotate %239 by %c71_i32_160 dim 1 : vector<12x512xf32>, i32 -> vector<12x512xf32>
    %c2_161 = arith.constant 2 : index
    %c0_162 = arith.constant 0 : index
    %260 = vector.load %arg2[%c2_161, %c0_162] : memref<27x512xf32, #tpu.memory_space<vmem>>, vector<1x512xf32>
    %261 = vector.broadcast %260 : vector<1x512xf32> to vector<12x512xf32>
    %262 = arith.mulf %259, %261 : vector<12x512xf32>
    %c2_163 = arith.constant 2 : index
    %c0_164 = arith.constant 0 : index
    %c0_165 = arith.constant 0 : index
    %263 = vector.load %arg5[%c2_163, %c0_164, %c0_165] : memref<27x12x12xf32, #tpu.memory_space<vmem>>, vector<1x12x12xf32>
    %264 = vector.shape_cast %263 : vector<1x12x12xf32> to vector<12x12xf32>
    %cst_166 = arith.constant dense<0.000000e+00> : vector<12x512xf32>
    %265 = tpu.matmul %264, %262, %cst_166 {dimension_numbers = #tpu.dot_dimension_numbers<[1], [0], [0], [1], [0, 0, 1, 1], [], []>} : vector<12x12xf32>, vector<12x512xf32>, vector<12x512xf32> -> vector<12x512xf32>
    %266 = arith.addf %258, %265 : vector<12x512xf32>
    %c65_i32_167 = arith.constant 65 : i32
    %267 = tpu.dynamic_rotate %239 by %c65_i32_167 dim 1 : vector<12x512xf32>, i32 -> vector<12x512xf32>
    %c3_168 = arith.constant 3 : index
    %c0_169 = arith.constant 0 : index
    %268 = vector.load %arg2[%c3_168, %c0_169] : memref<27x512xf32, #tpu.memory_space<vmem>>, vector<1x512xf32>
    %269 = vector.broadcast %268 : vector<1x512xf32> to vector<12x512xf32>
    %270 = arith.mulf %267, %269 : vector<12x512xf32>
    %c3_170 = arith.constant 3 : index
    %c0_171 = arith.constant 0 : index
    %c0_172 = arith.constant 0 : index
    %271 = vector.load %arg5[%c3_170, %c0_171, %c0_172] : memref<27x12x12xf32, #tpu.memory_space<vmem>>, vector<1x12x12xf32>
    %272 = vector.shape_cast %271 : vector<1x12x12xf32> to vector<12x12xf32>
    %cst_173 = arith.constant dense<0.000000e+00> : vector<12x512xf32>
    %273 = tpu.matmul %272, %270, %cst_173 {dimension_numbers = #tpu.dot_dimension_numbers<[1], [0], [0], [1], [0, 0, 1, 1], [], []>} : vector<12x12xf32>, vector<12x512xf32>, vector<12x512xf32> -> vector<12x512xf32>
    %274 = arith.addf %266, %273 : vector<12x512xf32>
    %c64_i32_174 = arith.constant 64 : i32
    %275 = tpu.dynamic_rotate %239 by %c64_i32_174 dim 1 : vector<12x512xf32>, i32 -> vector<12x512xf32>
    %c4_175 = arith.constant 4 : index
    %c0_176 = arith.constant 0 : index
    %276 = vector.load %arg2[%c4_175, %c0_176] : memref<27x512xf32, #tpu.memory_space<vmem>>, vector<1x512xf32>
    %277 = vector.broadcast %276 : vector<1x512xf32> to vector<12x512xf32>
    %278 = arith.mulf %275, %277 : vector<12x512xf32>
    %c4_177 = arith.constant 4 : index
    %c0_178 = arith.constant 0 : index
    %c0_179 = arith.constant 0 : index
    %279 = vector.load %arg5[%c4_177, %c0_178, %c0_179] : memref<27x12x12xf32, #tpu.memory_space<vmem>>, vector<1x12x12xf32>
    %280 = vector.shape_cast %279 : vector<1x12x12xf32> to vector<12x12xf32>
    %cst_180 = arith.constant dense<0.000000e+00> : vector<12x512xf32>
    %281 = tpu.matmul %280, %278, %cst_180 {dimension_numbers = #tpu.dot_dimension_numbers<[1], [0], [0], [1], [0, 0, 1, 1], [], []>} : vector<12x12xf32>, vector<12x512xf32>, vector<12x512xf32> -> vector<12x512xf32>
    %282 = arith.addf %274, %281 : vector<12x512xf32>
    %c63_i32_181 = arith.constant 63 : i32
    %283 = tpu.dynamic_rotate %239 by %c63_i32_181 dim 1 : vector<12x512xf32>, i32 -> vector<12x512xf32>
    %c5_182 = arith.constant 5 : index
    %c0_183 = arith.constant 0 : index
    %284 = vector.load %arg2[%c5_182, %c0_183] : memref<27x512xf32, #tpu.memory_space<vmem>>, vector<1x512xf32>
    %285 = vector.broadcast %284 : vector<1x512xf32> to vector<12x512xf32>
    %286 = arith.mulf %283, %285 : vector<12x512xf32>
    %c5_184 = arith.constant 5 : index
    %c0_185 = arith.constant 0 : index
    %c0_186 = arith.constant 0 : index
    %287 = vector.load %arg5[%c5_184, %c0_185, %c0_186] : memref<27x12x12xf32, #tpu.memory_space<vmem>>, vector<1x12x12xf32>
    %288 = vector.shape_cast %287 : vector<1x12x12xf32> to vector<12x12xf32>
    %cst_187 = arith.constant dense<0.000000e+00> : vector<12x512xf32>
    %289 = tpu.matmul %288, %286, %cst_187 {dimension_numbers = #tpu.dot_dimension_numbers<[1], [0], [0], [1], [0, 0, 1, 1], [], []>} : vector<12x12xf32>, vector<12x512xf32>, vector<12x512xf32> -> vector<12x512xf32>
    %290 = arith.addf %282, %289 : vector<12x512xf32>
    %c57_i32_188 = arith.constant 57 : i32
    %291 = tpu.dynamic_rotate %239 by %c57_i32_188 dim 1 : vector<12x512xf32>, i32 -> vector<12x512xf32>
    %c6_189 = arith.constant 6 : index
    %c0_190 = arith.constant 0 : index
    %292 = vector.load %arg2[%c6_189, %c0_190] : memref<27x512xf32, #tpu.memory_space<vmem>>, vector<1x512xf32>
    %293 = vector.broadcast %292 : vector<1x512xf32> to vector<12x512xf32>
    %294 = arith.mulf %291, %293 : vector<12x512xf32>
    %c6_191 = arith.constant 6 : index
    %c0_192 = arith.constant 0 : index
    %c0_193 = arith.constant 0 : index
    %295 = vector.load %arg5[%c6_191, %c0_192, %c0_193] : memref<27x12x12xf32, #tpu.memory_space<vmem>>, vector<1x12x12xf32>
    %296 = vector.shape_cast %295 : vector<1x12x12xf32> to vector<12x12xf32>
    %cst_194 = arith.constant dense<0.000000e+00> : vector<12x512xf32>
    %297 = tpu.matmul %296, %294, %cst_194 {dimension_numbers = #tpu.dot_dimension_numbers<[1], [0], [0], [1], [0, 0, 1, 1], [], []>} : vector<12x12xf32>, vector<12x512xf32>, vector<12x512xf32> -> vector<12x512xf32>
    %298 = arith.addf %290, %297 : vector<12x512xf32>
    %c56_i32_195 = arith.constant 56 : i32
    %299 = tpu.dynamic_rotate %239 by %c56_i32_195 dim 1 : vector<12x512xf32>, i32 -> vector<12x512xf32>
    %c7_196 = arith.constant 7 : index
    %c0_197 = arith.constant 0 : index
    %300 = vector.load %arg2[%c7_196, %c0_197] : memref<27x512xf32, #tpu.memory_space<vmem>>, vector<1x512xf32>
    %301 = vector.broadcast %300 : vector<1x512xf32> to vector<12x512xf32>
    %302 = arith.mulf %299, %301 : vector<12x512xf32>
    %c7_198 = arith.constant 7 : index
    %c0_199 = arith.constant 0 : index
    %c0_200 = arith.constant 0 : index
    %303 = vector.load %arg5[%c7_198, %c0_199, %c0_200] : memref<27x12x12xf32, #tpu.memory_space<vmem>>, vector<1x12x12xf32>
    %304 = vector.shape_cast %303 : vector<1x12x12xf32> to vector<12x12xf32>
    %cst_201 = arith.constant dense<0.000000e+00> : vector<12x512xf32>
    %305 = tpu.matmul %304, %302, %cst_201 {dimension_numbers = #tpu.dot_dimension_numbers<[1], [0], [0], [1], [0, 0, 1, 1], [], []>} : vector<12x12xf32>, vector<12x512xf32>, vector<12x512xf32> -> vector<12x512xf32>
    %306 = arith.addf %298, %305 : vector<12x512xf32>
    %c55_i32_202 = arith.constant 55 : i32
    %307 = tpu.dynamic_rotate %239 by %c55_i32_202 dim 1 : vector<12x512xf32>, i32 -> vector<12x512xf32>
    %c8_203 = arith.constant 8 : index
    %c0_204 = arith.constant 0 : index
    %308 = vector.load %arg2[%c8_203, %c0_204] : memref<27x512xf32, #tpu.memory_space<vmem>>, vector<1x512xf32>
    %309 = vector.broadcast %308 : vector<1x512xf32> to vector<12x512xf32>
    %310 = arith.mulf %307, %309 : vector<12x512xf32>
    %c8_205 = arith.constant 8 : index
    %c0_206 = arith.constant 0 : index
    %c0_207 = arith.constant 0 : index
    %311 = vector.load %arg5[%c8_205, %c0_206, %c0_207] : memref<27x12x12xf32, #tpu.memory_space<vmem>>, vector<1x12x12xf32>
    %312 = vector.shape_cast %311 : vector<1x12x12xf32> to vector<12x12xf32>
    %cst_208 = arith.constant dense<0.000000e+00> : vector<12x512xf32>
    %313 = tpu.matmul %312, %310, %cst_208 {dimension_numbers = #tpu.dot_dimension_numbers<[1], [0], [0], [1], [0, 0, 1, 1], [], []>} : vector<12x12xf32>, vector<12x512xf32>, vector<12x512xf32> -> vector<12x512xf32>
    %314 = arith.addf %306, %313 : vector<12x512xf32>
    %c9_i32_209 = arith.constant 9 : i32
    %315 = tpu.dynamic_rotate %239 by %c9_i32_209 dim 1 : vector<12x512xf32>, i32 -> vector<12x512xf32>
    %c9_210 = arith.constant 9 : index
    %c0_211 = arith.constant 0 : index
    %316 = vector.load %arg2[%c9_210, %c0_211] : memref<27x512xf32, #tpu.memory_space<vmem>>, vector<1x512xf32>
    %317 = vector.broadcast %316 : vector<1x512xf32> to vector<12x512xf32>
    %318 = arith.mulf %315, %317 : vector<12x512xf32>
    %c9_212 = arith.constant 9 : index
    %c0_213 = arith.constant 0 : index
    %c0_214 = arith.constant 0 : index
    %319 = vector.load %arg5[%c9_212, %c0_213, %c0_214] : memref<27x12x12xf32, #tpu.memory_space<vmem>>, vector<1x12x12xf32>
    %320 = vector.shape_cast %319 : vector<1x12x12xf32> to vector<12x12xf32>
    %cst_215 = arith.constant dense<0.000000e+00> : vector<12x512xf32>
    %321 = tpu.matmul %320, %318, %cst_215 {dimension_numbers = #tpu.dot_dimension_numbers<[1], [0], [0], [1], [0, 0, 1, 1], [], []>} : vector<12x12xf32>, vector<12x512xf32>, vector<12x512xf32> -> vector<12x512xf32>
    %322 = arith.addf %314, %321 : vector<12x512xf32>
    %c8_i32_216 = arith.constant 8 : i32
    %323 = tpu.dynamic_rotate %239 by %c8_i32_216 dim 1 : vector<12x512xf32>, i32 -> vector<12x512xf32>
    %c10_217 = arith.constant 10 : index
    %c0_218 = arith.constant 0 : index
    %324 = vector.load %arg2[%c10_217, %c0_218] : memref<27x512xf32, #tpu.memory_space<vmem>>, vector<1x512xf32>
    %325 = vector.broadcast %324 : vector<1x512xf32> to vector<12x512xf32>
    %326 = arith.mulf %323, %325 : vector<12x512xf32>
    %c10_219 = arith.constant 10 : index
    %c0_220 = arith.constant 0 : index
    %c0_221 = arith.constant 0 : index
    %327 = vector.load %arg5[%c10_219, %c0_220, %c0_221] : memref<27x12x12xf32, #tpu.memory_space<vmem>>, vector<1x12x12xf32>
    %328 = vector.shape_cast %327 : vector<1x12x12xf32> to vector<12x12xf32>
    %cst_222 = arith.constant dense<0.000000e+00> : vector<12x512xf32>
    %329 = tpu.matmul %328, %326, %cst_222 {dimension_numbers = #tpu.dot_dimension_numbers<[1], [0], [0], [1], [0, 0, 1, 1], [], []>} : vector<12x12xf32>, vector<12x512xf32>, vector<12x512xf32> -> vector<12x512xf32>
    %330 = arith.addf %322, %329 : vector<12x512xf32>
    %c7_i32_223 = arith.constant 7 : i32
    %331 = tpu.dynamic_rotate %239 by %c7_i32_223 dim 1 : vector<12x512xf32>, i32 -> vector<12x512xf32>
    %c11_224 = arith.constant 11 : index
    %c0_225 = arith.constant 0 : index
    %332 = vector.load %arg2[%c11_224, %c0_225] : memref<27x512xf32, #tpu.memory_space<vmem>>, vector<1x512xf32>
    %333 = vector.broadcast %332 : vector<1x512xf32> to vector<12x512xf32>
    %334 = arith.mulf %331, %333 : vector<12x512xf32>
    %c11_226 = arith.constant 11 : index
    %c0_227 = arith.constant 0 : index
    %c0_228 = arith.constant 0 : index
    %335 = vector.load %arg5[%c11_226, %c0_227, %c0_228] : memref<27x12x12xf32, #tpu.memory_space<vmem>>, vector<1x12x12xf32>
    %336 = vector.shape_cast %335 : vector<1x12x12xf32> to vector<12x12xf32>
    %cst_229 = arith.constant dense<0.000000e+00> : vector<12x512xf32>
    %337 = tpu.matmul %336, %334, %cst_229 {dimension_numbers = #tpu.dot_dimension_numbers<[1], [0], [0], [1], [0, 0, 1, 1], [], []>} : vector<12x12xf32>, vector<12x512xf32>, vector<12x512xf32> -> vector<12x512xf32>
    %338 = arith.addf %330, %337 : vector<12x512xf32>
    %c1_i32_230 = arith.constant 1 : i32
    %339 = tpu.dynamic_rotate %239 by %c1_i32_230 dim 1 : vector<12x512xf32>, i32 -> vector<12x512xf32>
    %c12_231 = arith.constant 12 : index
    %c0_232 = arith.constant 0 : index
    %340 = vector.load %arg2[%c12_231, %c0_232] : memref<27x512xf32, #tpu.memory_space<vmem>>, vector<1x512xf32>
    %341 = vector.broadcast %340 : vector<1x512xf32> to vector<12x512xf32>
    %342 = arith.mulf %339, %341 : vector<12x512xf32>
    %c12_233 = arith.constant 12 : index
    %c0_234 = arith.constant 0 : index
    %c0_235 = arith.constant 0 : index
    %343 = vector.load %arg5[%c12_233, %c0_234, %c0_235] : memref<27x12x12xf32, #tpu.memory_space<vmem>>, vector<1x12x12xf32>
    %344 = vector.shape_cast %343 : vector<1x12x12xf32> to vector<12x12xf32>
    %cst_236 = arith.constant dense<0.000000e+00> : vector<12x512xf32>
    %345 = tpu.matmul %344, %342, %cst_236 {dimension_numbers = #tpu.dot_dimension_numbers<[1], [0], [0], [1], [0, 0, 1, 1], [], []>} : vector<12x12xf32>, vector<12x512xf32>, vector<12x512xf32> -> vector<12x512xf32>
    %346 = arith.addf %338, %345 : vector<12x512xf32>
    %c13_237 = arith.constant 13 : index
    %c0_238 = arith.constant 0 : index
    %c0_239 = arith.constant 0 : index
    %347 = vector.load %arg5[%c13_237, %c0_238, %c0_239] : memref<27x12x12xf32, #tpu.memory_space<vmem>>, vector<1x12x12xf32>
    %348 = vector.shape_cast %347 : vector<1x12x12xf32> to vector<12x12xf32>
    %cst_240 = arith.constant dense<0.000000e+00> : vector<12x512xf32>
    %349 = tpu.matmul %348, %239, %cst_240 {dimension_numbers = #tpu.dot_dimension_numbers<[1], [0], [0], [1], [0, 0, 1, 1], [], []>} : vector<12x12xf32>, vector<12x512xf32>, vector<12x512xf32> -> vector<12x512xf32>
    %350 = arith.addf %346, %349 : vector<12x512xf32>
    %c511_i32_241 = arith.constant 511 : i32
    %351 = tpu.dynamic_rotate %239 by %c511_i32_241 dim 1 : vector<12x512xf32>, i32 -> vector<12x512xf32>
    %c14_242 = arith.constant 14 : index
    %c0_243 = arith.constant 0 : index
    %352 = vector.load %arg2[%c14_242, %c0_243] : memref<27x512xf32, #tpu.memory_space<vmem>>, vector<1x512xf32>
    %353 = vector.broadcast %352 : vector<1x512xf32> to vector<12x512xf32>
    %354 = arith.mulf %351, %353 : vector<12x512xf32>
    %c14_244 = arith.constant 14 : index
    %c0_245 = arith.constant 0 : index
    %c0_246 = arith.constant 0 : index
    %355 = vector.load %arg5[%c14_244, %c0_245, %c0_246] : memref<27x12x12xf32, #tpu.memory_space<vmem>>, vector<1x12x12xf32>
    %356 = vector.shape_cast %355 : vector<1x12x12xf32> to vector<12x12xf32>
    %cst_247 = arith.constant dense<0.000000e+00> : vector<12x512xf32>
    %357 = tpu.matmul %356, %354, %cst_247 {dimension_numbers = #tpu.dot_dimension_numbers<[1], [0], [0], [1], [0, 0, 1, 1], [], []>} : vector<12x12xf32>, vector<12x512xf32>, vector<12x512xf32> -> vector<12x512xf32>
    %358 = arith.addf %350, %357 : vector<12x512xf32>
    %c505_i32_248 = arith.constant 505 : i32
    %359 = tpu.dynamic_rotate %239 by %c505_i32_248 dim 1 : vector<12x512xf32>, i32 -> vector<12x512xf32>
    %c15_249 = arith.constant 15 : index
    %c0_250 = arith.constant 0 : index
    %360 = vector.load %arg2[%c15_249, %c0_250] : memref<27x512xf32, #tpu.memory_space<vmem>>, vector<1x512xf32>
    %361 = vector.broadcast %360 : vector<1x512xf32> to vector<12x512xf32>
    %362 = arith.mulf %359, %361 : vector<12x512xf32>
    %c15_251 = arith.constant 15 : index
    %c0_252 = arith.constant 0 : index
    %c0_253 = arith.constant 0 : index
    %363 = vector.load %arg5[%c15_251, %c0_252, %c0_253] : memref<27x12x12xf32, #tpu.memory_space<vmem>>, vector<1x12x12xf32>
    %364 = vector.shape_cast %363 : vector<1x12x12xf32> to vector<12x12xf32>
    %cst_254 = arith.constant dense<0.000000e+00> : vector<12x512xf32>
    %365 = tpu.matmul %364, %362, %cst_254 {dimension_numbers = #tpu.dot_dimension_numbers<[1], [0], [0], [1], [0, 0, 1, 1], [], []>} : vector<12x12xf32>, vector<12x512xf32>, vector<12x512xf32> -> vector<12x512xf32>
    %366 = arith.addf %358, %365 : vector<12x512xf32>
    %c504_i32_255 = arith.constant 504 : i32
    %367 = tpu.dynamic_rotate %239 by %c504_i32_255 dim 1 : vector<12x512xf32>, i32 -> vector<12x512xf32>
    %c16_256 = arith.constant 16 : index
    %c0_257 = arith.constant 0 : index
    %368 = vector.load %arg2[%c16_256, %c0_257] : memref<27x512xf32, #tpu.memory_space<vmem>>, vector<1x512xf32>
    %369 = vector.broadcast %368 : vector<1x512xf32> to vector<12x512xf32>
    %370 = arith.mulf %367, %369 : vector<12x512xf32>
    %c16_258 = arith.constant 16 : index
    %c0_259 = arith.constant 0 : index
    %c0_260 = arith.constant 0 : index
    %371 = vector.load %arg5[%c16_258, %c0_259, %c0_260] : memref<27x12x12xf32, #tpu.memory_space<vmem>>, vector<1x12x12xf32>
    %372 = vector.shape_cast %371 : vector<1x12x12xf32> to vector<12x12xf32>
    %cst_261 = arith.constant dense<0.000000e+00> : vector<12x512xf32>
    %373 = tpu.matmul %372, %370, %cst_261 {dimension_numbers = #tpu.dot_dimension_numbers<[1], [0], [0], [1], [0, 0, 1, 1], [], []>} : vector<12x12xf32>, vector<12x512xf32>, vector<12x512xf32> -> vector<12x512xf32>
    %374 = arith.addf %366, %373 : vector<12x512xf32>
    %c503_i32_262 = arith.constant 503 : i32
    %375 = tpu.dynamic_rotate %239 by %c503_i32_262 dim 1 : vector<12x512xf32>, i32 -> vector<12x512xf32>
    %c17_263 = arith.constant 17 : index
    %c0_264 = arith.constant 0 : index
    %376 = vector.load %arg2[%c17_263, %c0_264] : memref<27x512xf32, #tpu.memory_space<vmem>>, vector<1x512xf32>
    %377 = vector.broadcast %376 : vector<1x512xf32> to vector<12x512xf32>
    %378 = arith.mulf %375, %377 : vector<12x512xf32>
    %c17_265 = arith.constant 17 : index
    %c0_266 = arith.constant 0 : index
    %c0_267 = arith.constant 0 : index
    %379 = vector.load %arg5[%c17_265, %c0_266, %c0_267] : memref<27x12x12xf32, #tpu.memory_space<vmem>>, vector<1x12x12xf32>
    %380 = vector.shape_cast %379 : vector<1x12x12xf32> to vector<12x12xf32>
    %cst_268 = arith.constant dense<0.000000e+00> : vector<12x512xf32>
    %381 = tpu.matmul %380, %378, %cst_268 {dimension_numbers = #tpu.dot_dimension_numbers<[1], [0], [0], [1], [0, 0, 1, 1], [], []>} : vector<12x12xf32>, vector<12x512xf32>, vector<12x512xf32> -> vector<12x512xf32>
    %382 = arith.addf %374, %381 : vector<12x512xf32>
    %c457_i32_269 = arith.constant 457 : i32
    %383 = tpu.dynamic_rotate %239 by %c457_i32_269 dim 1 : vector<12x512xf32>, i32 -> vector<12x512xf32>
    %c18_270 = arith.constant 18 : index
    %c0_271 = arith.constant 0 : index
    %384 = vector.load %arg2[%c18_270, %c0_271] : memref<27x512xf32, #tpu.memory_space<vmem>>, vector<1x512xf32>
    %385 = vector.broadcast %384 : vector<1x512xf32> to vector<12x512xf32>
    %386 = arith.mulf %383, %385 : vector<12x512xf32>
    %c18_272 = arith.constant 18 : index
    %c0_273 = arith.constant 0 : index
    %c0_274 = arith.constant 0 : index
    %387 = vector.load %arg5[%c18_272, %c0_273, %c0_274] : memref<27x12x12xf32, #tpu.memory_space<vmem>>, vector<1x12x12xf32>
    %388 = vector.shape_cast %387 : vector<1x12x12xf32> to vector<12x12xf32>
    %cst_275 = arith.constant dense<0.000000e+00> : vector<12x512xf32>
    %389 = tpu.matmul %388, %386, %cst_275 {dimension_numbers = #tpu.dot_dimension_numbers<[1], [0], [0], [1], [0, 0, 1, 1], [], []>} : vector<12x12xf32>, vector<12x512xf32>, vector<12x512xf32> -> vector<12x512xf32>
    %390 = arith.addf %382, %389 : vector<12x512xf32>
    %c456_i32_276 = arith.constant 456 : i32
    %391 = tpu.dynamic_rotate %239 by %c456_i32_276 dim 1 : vector<12x512xf32>, i32 -> vector<12x512xf32>
    %c19_277 = arith.constant 19 : index
    %c0_278 = arith.constant 0 : index
    %392 = vector.load %arg2[%c19_277, %c0_278] : memref<27x512xf32, #tpu.memory_space<vmem>>, vector<1x512xf32>
    %393 = vector.broadcast %392 : vector<1x512xf32> to vector<12x512xf32>
    %394 = arith.mulf %391, %393 : vector<12x512xf32>
    %c19_279 = arith.constant 19 : index
    %c0_280 = arith.constant 0 : index
    %c0_281 = arith.constant 0 : index
    %395 = vector.load %arg5[%c19_279, %c0_280, %c0_281] : memref<27x12x12xf32, #tpu.memory_space<vmem>>, vector<1x12x12xf32>
    %396 = vector.shape_cast %395 : vector<1x12x12xf32> to vector<12x12xf32>
    %cst_282 = arith.constant dense<0.000000e+00> : vector<12x512xf32>
    %397 = tpu.matmul %396, %394, %cst_282 {dimension_numbers = #tpu.dot_dimension_numbers<[1], [0], [0], [1], [0, 0, 1, 1], [], []>} : vector<12x12xf32>, vector<12x512xf32>, vector<12x512xf32> -> vector<12x512xf32>
    %398 = arith.addf %390, %397 : vector<12x512xf32>
    %c455_i32_283 = arith.constant 455 : i32
    %399 = tpu.dynamic_rotate %239 by %c455_i32_283 dim 1 : vector<12x512xf32>, i32 -> vector<12x512xf32>
    %c20_284 = arith.constant 20 : index
    %c0_285 = arith.constant 0 : index
    %400 = vector.load %arg2[%c20_284, %c0_285] : memref<27x512xf32, #tpu.memory_space<vmem>>, vector<1x512xf32>
    %401 = vector.broadcast %400 : vector<1x512xf32> to vector<12x512xf32>
    %402 = arith.mulf %399, %401 : vector<12x512xf32>
    %c20_286 = arith.constant 20 : index
    %c0_287 = arith.constant 0 : index
    %c0_288 = arith.constant 0 : index
    %403 = vector.load %arg5[%c20_286, %c0_287, %c0_288] : memref<27x12x12xf32, #tpu.memory_space<vmem>>, vector<1x12x12xf32>
    %404 = vector.shape_cast %403 : vector<1x12x12xf32> to vector<12x12xf32>
    %cst_289 = arith.constant dense<0.000000e+00> : vector<12x512xf32>
    %405 = tpu.matmul %404, %402, %cst_289 {dimension_numbers = #tpu.dot_dimension_numbers<[1], [0], [0], [1], [0, 0, 1, 1], [], []>} : vector<12x12xf32>, vector<12x512xf32>, vector<12x512xf32> -> vector<12x512xf32>
    %406 = arith.addf %398, %405 : vector<12x512xf32>
    %c449_i32_290 = arith.constant 449 : i32
    %407 = tpu.dynamic_rotate %239 by %c449_i32_290 dim 1 : vector<12x512xf32>, i32 -> vector<12x512xf32>
    %c21_291 = arith.constant 21 : index
    %c0_292 = arith.constant 0 : index
    %408 = vector.load %arg2[%c21_291, %c0_292] : memref<27x512xf32, #tpu.memory_space<vmem>>, vector<1x512xf32>
    %409 = vector.broadcast %408 : vector<1x512xf32> to vector<12x512xf32>
    %410 = arith.mulf %407, %409 : vector<12x512xf32>
    %c21_293 = arith.constant 21 : index
    %c0_294 = arith.constant 0 : index
    %c0_295 = arith.constant 0 : index
    %411 = vector.load %arg5[%c21_293, %c0_294, %c0_295] : memref<27x12x12xf32, #tpu.memory_space<vmem>>, vector<1x12x12xf32>
    %412 = vector.shape_cast %411 : vector<1x12x12xf32> to vector<12x12xf32>
    %cst_296 = arith.constant dense<0.000000e+00> : vector<12x512xf32>
    %413 = tpu.matmul %412, %410, %cst_296 {dimension_numbers = #tpu.dot_dimension_numbers<[1], [0], [0], [1], [0, 0, 1, 1], [], []>} : vector<12x12xf32>, vector<12x512xf32>, vector<12x512xf32> -> vector<12x512xf32>
    %414 = arith.addf %406, %413 : vector<12x512xf32>
    %c448_i32_297 = arith.constant 448 : i32
    %415 = tpu.dynamic_rotate %239 by %c448_i32_297 dim 1 : vector<12x512xf32>, i32 -> vector<12x512xf32>
    %c22_298 = arith.constant 22 : index
    %c0_299 = arith.constant 0 : index
    %416 = vector.load %arg2[%c22_298, %c0_299] : memref<27x512xf32, #tpu.memory_space<vmem>>, vector<1x512xf32>
    %417 = vector.broadcast %416 : vector<1x512xf32> to vector<12x512xf32>
    %418 = arith.mulf %415, %417 : vector<12x512xf32>
    %c22_300 = arith.constant 22 : index
    %c0_301 = arith.constant 0 : index
    %c0_302 = arith.constant 0 : index
    %419 = vector.load %arg5[%c22_300, %c0_301, %c0_302] : memref<27x12x12xf32, #tpu.memory_space<vmem>>, vector<1x12x12xf32>
    %420 = vector.shape_cast %419 : vector<1x12x12xf32> to vector<12x12xf32>
    %cst_303 = arith.constant dense<0.000000e+00> : vector<12x512xf32>
    %421 = tpu.matmul %420, %418, %cst_303 {dimension_numbers = #tpu.dot_dimension_numbers<[1], [0], [0], [1], [0, 0, 1, 1], [], []>} : vector<12x12xf32>, vector<12x512xf32>, vector<12x512xf32> -> vector<12x512xf32>
    %422 = arith.addf %414, %421 : vector<12x512xf32>
    %c447_i32_304 = arith.constant 447 : i32
    %423 = tpu.dynamic_rotate %239 by %c447_i32_304 dim 1 : vector<12x512xf32>, i32 -> vector<12x512xf32>
    %c23_305 = arith.constant 23 : index
    %c0_306 = arith.constant 0 : index
    %424 = vector.load %arg2[%c23_305, %c0_306] : memref<27x512xf32, #tpu.memory_space<vmem>>, vector<1x512xf32>
    %425 = vector.broadcast %424 : vector<1x512xf32> to vector<12x512xf32>
    %426 = arith.mulf %423, %425 : vector<12x512xf32>
    %c23_307 = arith.constant 23 : index
    %c0_308 = arith.constant 0 : index
    %c0_309 = arith.constant 0 : index
    %427 = vector.load %arg5[%c23_307, %c0_308, %c0_309] : memref<27x12x12xf32, #tpu.memory_space<vmem>>, vector<1x12x12xf32>
    %428 = vector.shape_cast %427 : vector<1x12x12xf32> to vector<12x12xf32>
    %cst_310 = arith.constant dense<0.000000e+00> : vector<12x512xf32>
    %429 = tpu.matmul %428, %426, %cst_310 {dimension_numbers = #tpu.dot_dimension_numbers<[1], [0], [0], [1], [0, 0, 1, 1], [], []>} : vector<12x12xf32>, vector<12x512xf32>, vector<12x512xf32> -> vector<12x512xf32>
    %430 = arith.addf %422, %429 : vector<12x512xf32>
    %c441_i32_311 = arith.constant 441 : i32
    %431 = tpu.dynamic_rotate %239 by %c441_i32_311 dim 1 : vector<12x512xf32>, i32 -> vector<12x512xf32>
    %c24_312 = arith.constant 24 : index
    %c0_313 = arith.constant 0 : index
    %432 = vector.load %arg2[%c24_312, %c0_313] : memref<27x512xf32, #tpu.memory_space<vmem>>, vector<1x512xf32>
    %433 = vector.broadcast %432 : vector<1x512xf32> to vector<12x512xf32>
    %434 = arith.mulf %431, %433 : vector<12x512xf32>
    %c24_314 = arith.constant 24 : index
    %c0_315 = arith.constant 0 : index
    %c0_316 = arith.constant 0 : index
    %435 = vector.load %arg5[%c24_314, %c0_315, %c0_316] : memref<27x12x12xf32, #tpu.memory_space<vmem>>, vector<1x12x12xf32>
    %436 = vector.shape_cast %435 : vector<1x12x12xf32> to vector<12x12xf32>
    %cst_317 = arith.constant dense<0.000000e+00> : vector<12x512xf32>
    %437 = tpu.matmul %436, %434, %cst_317 {dimension_numbers = #tpu.dot_dimension_numbers<[1], [0], [0], [1], [0, 0, 1, 1], [], []>} : vector<12x12xf32>, vector<12x512xf32>, vector<12x512xf32> -> vector<12x512xf32>
    %438 = arith.addf %430, %437 : vector<12x512xf32>
    %c440_i32_318 = arith.constant 440 : i32
    %439 = tpu.dynamic_rotate %239 by %c440_i32_318 dim 1 : vector<12x512xf32>, i32 -> vector<12x512xf32>
    %c25_319 = arith.constant 25 : index
    %c0_320 = arith.constant 0 : index
    %440 = vector.load %arg2[%c25_319, %c0_320] : memref<27x512xf32, #tpu.memory_space<vmem>>, vector<1x512xf32>
    %441 = vector.broadcast %440 : vector<1x512xf32> to vector<12x512xf32>
    %442 = arith.mulf %439, %441 : vector<12x512xf32>
    %c25_321 = arith.constant 25 : index
    %c0_322 = arith.constant 0 : index
    %c0_323 = arith.constant 0 : index
    %443 = vector.load %arg5[%c25_321, %c0_322, %c0_323] : memref<27x12x12xf32, #tpu.memory_space<vmem>>, vector<1x12x12xf32>
    %444 = vector.shape_cast %443 : vector<1x12x12xf32> to vector<12x12xf32>
    %cst_324 = arith.constant dense<0.000000e+00> : vector<12x512xf32>
    %445 = tpu.matmul %444, %442, %cst_324 {dimension_numbers = #tpu.dot_dimension_numbers<[1], [0], [0], [1], [0, 0, 1, 1], [], []>} : vector<12x12xf32>, vector<12x512xf32>, vector<12x512xf32> -> vector<12x512xf32>
    %446 = arith.addf %438, %445 : vector<12x512xf32>
    %c439_i32_325 = arith.constant 439 : i32
    %447 = tpu.dynamic_rotate %239 by %c439_i32_325 dim 1 : vector<12x512xf32>, i32 -> vector<12x512xf32>
    %c26_326 = arith.constant 26 : index
    %c0_327 = arith.constant 0 : index
    %448 = vector.load %arg2[%c26_326, %c0_327] : memref<27x512xf32, #tpu.memory_space<vmem>>, vector<1x512xf32>
    %449 = vector.broadcast %448 : vector<1x512xf32> to vector<12x512xf32>
    %450 = arith.mulf %447, %449 : vector<12x512xf32>
    %c26_328 = arith.constant 26 : index
    %c0_329 = arith.constant 0 : index
    %c0_330 = arith.constant 0 : index
    %451 = vector.load %arg5[%c26_328, %c0_329, %c0_330] : memref<27x12x12xf32, #tpu.memory_space<vmem>>, vector<1x12x12xf32>
    %452 = vector.shape_cast %451 : vector<1x12x12xf32> to vector<12x12xf32>
    %cst_331 = arith.constant dense<0.000000e+00> : vector<12x512xf32>
    %453 = tpu.matmul %452, %450, %cst_331 {dimension_numbers = #tpu.dot_dimension_numbers<[1], [0], [0], [1], [0, 0, 1, 1], [], []>} : vector<12x12xf32>, vector<12x512xf32>, vector<12x512xf32> -> vector<12x512xf32>
    %454 = arith.addf %446, %453 : vector<12x512xf32>
    %cst_332 = arith.constant dense<0.000000e+00> : vector<12xf32>
    %455 = vector.multi_reduction <add>, %454, %cst_332 [1] : vector<12x512xf32> to vector<12xf32>
    %456 = vector.shape_cast %455 : vector<12xf32> to vector<12x1xf32>
    %cst_333 = arith.constant 0.001953125 : f32
    %457 = vector.broadcast %cst_333 : f32 to vector<12x1xf32>
    %458 = arith.mulf %456, %457 : vector<12x1xf32>
    %459 = arith.mulf %454, %454 : vector<12x512xf32>
    %cst_334 = arith.constant dense<0.000000e+00> : vector<12xf32>
    %460 = vector.multi_reduction <add>, %459, %cst_334 [1] : vector<12x512xf32> to vector<12xf32>
    %461 = vector.shape_cast %460 : vector<12xf32> to vector<12x1xf32>
    %cst_335 = arith.constant 0.001953125 : f32
    %462 = vector.broadcast %cst_335 : f32 to vector<12x1xf32>
    %463 = arith.mulf %461, %462 : vector<12x1xf32>
    %464 = arith.mulf %458, %458 : vector<12x1xf32>
    %465 = arith.subf %463, %464 : vector<12x1xf32>
    %cst_336 = arith.constant 0.000000e+00 : f32
    %466 = vector.broadcast %cst_336 : f32 to vector<12x1xf32>
    %467 = arith.maximumf %465, %466 : vector<12x1xf32>
    %468 = vector.broadcast %458 : vector<12x1xf32> to vector<12x512xf32>
    %469 = arith.subf %454, %468 : vector<12x512xf32>
    %cst_337 = arith.constant 9.99999974E-6 : f32
    %470 = vector.broadcast %cst_337 : f32 to vector<12x1xf32>
    %471 = arith.addf %467, %470 : vector<12x1xf32>
    %472 = math.rsqrt %471 : vector<12x1xf32>
    %473 = vector.broadcast %472 : vector<12x1xf32> to vector<12x512xf32>
    %474 = arith.mulf %469, %473 : vector<12x512xf32>
    %cst_338 = arith.constant 1.000000e-01 : f32
    %475 = vector.broadcast %cst_338 : f32 to vector<12x512xf32>
    %476 = arith.mulf %475, %474 : vector<12x512xf32>
    %477 = arith.maximumf %474, %476 : vector<12x512xf32>
    %c0_339 = arith.constant 0 : index
    %c0_340 = arith.constant 0 : index
    %c0_341 = arith.constant 0 : index
    %478 = vector.load %arg7[%c0_339, %c0_340, %c0_341] : memref<1x12x512xf32, #tpu.memory_space<vmem>>, vector<1x12x512xf32>
    %479 = vector.shape_cast %478 : vector<1x12x512xf32> to vector<12x512xf32>
    %480 = vector.shape_cast %477 : vector<12x512xf32> to vector<1x12x512xf32>
    tpu.vector_store %arg7[%c0_339, %c0_340, %c0_341], %480 {strides = array<i32>} : memref<1x12x512xf32, #tpu.memory_space<vmem>>, vector<1x12x512xf32>,
    return
  }
  func.func @transform_0(%arg0: i32) -> (i32, i32, i32) {
    %c0_i32 = arith.constant 0 : i32
    %c0_i32_0 = arith.constant 0 : i32
    %c0_i32_1 = arith.constant 0 : i32
    return %arg0, %c0_i32, %c0_i32_0 : i32, i32, i32
  }
  func.func @transform_1(%arg0: i32) -> (i32, i32) {
    %c0_i32 = arith.constant 0 : i32
    %c0_i32_0 = arith.constant 0 : i32
    %c0_i32_1 = arith.constant 0 : i32
    return %c0_i32, %c0_i32_0 : i32, i32
  }
  func.func @transform_2(%arg0: i32) -> (i32, i32, i32) {
    %c0_i32 = arith.constant 0 : i32
    %c0_i32_0 = arith.constant 0 : i32
    %c0_i32_1 = arith.constant 0 : i32
    %c0_i32_2 = arith.constant 0 : i32
    return %c0_i32, %c0_i32_0, %c0_i32_1 : i32, i32, i32
  }
  func.func @transform_3(%arg0: i32) -> (i32, i32) {
    %c0_i32 = arith.constant 0 : i32
    %c0_i32_0 = arith.constant 0 : i32
    %c0_i32_1 = arith.constant 0 : i32
    return %c0_i32, %c0_i32_0 : i32, i32
  }
  func.func @transform_4(%arg0: i32) -> (i32, i32, i32) {
    %c0_i32 = arith.constant 0 : i32
    %c0_i32_0 = arith.constant 0 : i32
    %c0_i32_1 = arith.constant 0 : i32
    %c0_i32_2 = arith.constant 0 : i32
    return %c0_i32, %c0_i32_0, %c0_i32_1 : i32, i32, i32
  }
  func.func @transform_5(%arg0: i32) -> (i32, i32) {
    %c0_i32 = arith.constant 0 : i32
    %c0_i32_0 = arith.constant 0 : i32
    %c0_i32_1 = arith.constant 0 : i32
    return %c0_i32, %c0_i32_0 : i32, i32
  }
  func.func @transform_6(%arg0: i32) -> (i32, i32, i32) {
    %c0_i32 = arith.constant 0 : i32
    %c0_i32_0 = arith.constant 0 : i32
    %c0_i32_1 = arith.constant 0 : i32
    return %arg0, %c0_i32, %c0_i32_0 : i32, i32, i32
  }
}

</mosaic_0001>

<llo_original>
// kernel: tpu_custom_call.1
$region0: #{tpu_custom_call.1}
  #allocation0 [shape = 'u32[]', space=smem, size = 0x4, offset = 0x4, fixed_abs, tag = 'smem constant byte address 0x4 - core index']
  #allocation1 [shape = 'u32[72,128]{1,0:T(1,128)}', space=vmem, size = 0x9000, scoped, tag = 'internal scratch']
  %s0 = inlined_call_operand.vmem [shape: f32[2,12,512], index: 0, kind: input, shape index: {}]
  %s1 = inlined_call_operand.vmem [shape: f32[27,512], index: 1, kind: input, shape index: {}]
  %s2 = inlined_call_operand.vmem [shape: f32[27,12,12], index: 2, kind: input, shape index: {}]
  %s3 = inlined_call_operand.vmem [shape: f32[12,1], index: 3, kind: input, shape index: {}]
  %s4 = inlined_call_operand.vmem [shape: f32[27,12,12], index: 4, kind: input, shape index: {}]
  %s5 = inlined_call_operand.vmem [shape: f32[12,1], index: 5, kind: input, shape index: {}]
  %s6 = inlined_call_operand.vmem [shape: f32[2,12,512], index: 6, kind: output, shape index: {}]
  %s7 = sld [smem:[#allocation0]]
  $region57: #{tpu_custom_call.1} parent=0
    _
  %s9 = ssub.s32 1, %s7
  %s10 = scalar_select 0, %s9, %s7
  loop: start=0, step=1, limit=4
  $region2: #{tpu_custom_call.1} parent=0 // loop_pre_header
    _
  $region3: #{tpu_custom_call.1} parent=0 // loop_header
    %s12 = sphi 0, %s16
    %p13 = scmp.ge.s32.totalorder %s12, 4
    %s22 = sphi 0, %s24
    %s25 = sphi 0, %s22
    %s26 = sphi 0, %s25
    %s42 = sphi 0, %s26
    %s46 = sphi 0, %s46
    %s48 = sphi 0, %s46
    %s49 = sphi 0, %s48
    %s63 = sphi 0, %s49
    %s67 = sphi 0, %s67
    %s69 = sphi 0, %s67
    %s70 = sphi 0, %s69
    %s84 = sphi 0, %s70
    %s88 = sphi 0, %s88
    %s90 = sphi 0, %s88
    %s91 = sphi 0, %s90
    %s105 = sphi 0, %s91
    %s109 = sphi 0, %s109
    %s111 = sphi 0, %s109
    %s112 = sphi 0, %s111
    %s126 = sphi 0, %s112
    %s130 = sphi 0, %s130
    %s132 = sphi 0, %s130
    %s133 = sphi 0, %s132
    %s147 = sphi 0, %s133
    %s153 = sphi 0, %s155
    %s156 = sphi 0, %s153
    %s157 = sphi 0, %s156
    %s173 = sphi 0, %s157
  $region4: #{tpu_custom_call.1} parent=0 // loop_header_branch
    %15 = sbr.rel (%p13) target = $region8
  $region5: #{tpu_custom_call.1} parent=0 // loop_body
    %s17 = ssub.s32 %s12, 1
    %s18 = ssub.s32 %s12, 2
    %s19 = sadd.s32 %s12, 1
    %s20 = ssub.s32 %s12, %s19
    %p21 = scmp.eq.s32.totalorder %s20, 0
    %s23 = sadd.s32 %s22, 1
    %s24 = scalar_select %p21, %s22, %s23
    %p27 = pneg %p21
    %p28 = scmp.eq.s32.totalorder %s12, 1
    %p29 = por %p27, %p28
    %p30 = scmp.ne.s32.totalorder %s22, %s25
    %p31 = scmp.eq.s32.totalorder %s12, 0
    %p32 = por %p30, %p31
    %p33 = scmp.ne.s32.totalorder %s22, %s25
    %p34 = scmp.eq.s32.totalorder %s17, 1
    %p35 = por %p33, %p34
    %p36 = scmp.ne.s32.totalorder %s25, %s26
    %p37 = scmp.eq.s32.totalorder %s17, 0
    %p38 = por %p36, %p37
    %p39 = scmp.ne.s32.totalorder %s25, %s26
    %p40 = scmp.eq.s32.totalorder %s18, 1
    %p41 = por %p39, %p40
    %p43 = scmp.ne.s32.totalorder %s26, %s42
    %p44 = scmp.eq.s32.totalorder %s18, 0
    %p45 = por %p43, %p44
    %s47 = sadd.s32 %s46, 1
    %p50 = scmp.eq.s32.totalorder %s12, 1
    %p51 = scmp.ne.s32.totalorder %s46, %s48
    %p52 = scmp.eq.s32.totalorder %s12, 0
    %p53 = por %p51, %p52
    %p54 = scmp.ne.s32.totalorder %s46, %s48
    %p55 = scmp.eq.s32.totalorder %s17, 1
    %p56 = por %p54, %p55
    %p57 = scmp.ne.s32.totalorder %s48, %s49
    %p58 = scmp.eq.s32.totalorder %s17, 0
    %p59 = por %p57, %p58
    %p60 = scmp.ne.s32.totalorder %s48, %s49
    %p61 = scmp.eq.s32.totalorder %s18, 1
    %p62 = por %p60, %p61
    %p64 = scmp.ne.s32.totalorder %s49, %s63
    %p65 = scmp.eq.s32.totalorder %s18, 0
    %p66 = por %p64, %p65
    %s68 = sadd.s32 %s67, 1
    %p71 = scmp.eq.s32.totalorder %s12, 1
    %p72 = scmp.ne.s32.totalorder %s67, %s69
    %p73 = scmp.eq.s32.totalorder %s12, 0
    %p74 = por %p72, %p73
    %p75 = scmp.ne.s32.totalorder %s67, %s69
    %p76 = scmp.eq.s32.totalorder %s17, 1
    %p77 = por %p75, %p76
    %p78 = scmp.ne.s32.totalorder %s69, %s70
    %p79 = scmp.eq.s32.totalorder %s17, 0
    %p80 = por %p78, %p79
    %p81 = scmp.ne.s32.totalorder %s69, %s70
    %p82 = scmp.eq.s32.totalorder %s18, 1
    %p83 = por %p81, %p82
    %p85 = scmp.ne.s32.totalorder %s70, %s84
    %p86 = scmp.eq.s32.totalorder %s18, 0
    %p87 = por %p85, %p86
    %s89 = sadd.s32 %s88, 1
    %p92 = scmp.eq.s32.totalorder %s12, 1
    %p93 = scmp.ne.s32.totalorder %s88, %s90
    %p94 = scmp.eq.s32.totalorder %s12, 0
    %p95 = por %p93, %p94
    %p96 = scmp.ne.s32.totalorder %s88, %s90
    %p97 = scmp.eq.s32.totalorder %s17, 1
    %p98 = por %p96, %p97
    %p99 = scmp.ne.s32.totalorder %s90, %s91
    %p100 = scmp.eq.s32.totalorder %s17, 0
    %p101 = por %p99, %p100
    %p102 = scmp.ne.s32.totalorder %s90, %s91
    %p103 = scmp.eq.s32.totalorder %s18, 1
    %p104 = por %p102, %p103
    %p106 = scmp.ne.s32.totalorder %s91, %s105
    %p107 = scmp.eq.s32.totalorder %s18, 0
    %p108 = por %p106, %p107
    %s110 = sadd.s32 %s109, 1
    %p113 = scmp.eq.s32.totalorder %s12, 1
    %p114 = scmp.ne.s32.totalorder %s109, %s111
    %p115 = scmp.eq.s32.totalorder %s12, 0
    %p116 = por %p114, %p115
    %p117 = scmp.ne.s32.totalorder %s109, %s111
    %p118 = scmp.eq.s32.totalorder %s17, 1
    %p119 = por %p117, %p118
    %p120 = scmp.ne.s32.totalorder %s111, %s112
    %p121 = scmp.eq.s32.totalorder %s17, 0
    %p122 = por %p120, %p121
    %p123 = scmp.ne.s32.totalorder %s111, %s112
    %p124 = scmp.eq.s32.totalorder %s18, 1
    %p125 = por %p123, %p124
    %p127 = scmp.ne.s32.totalorder %s112, %s126
    %p128 = scmp.eq.s32.totalorder %s18, 0
    %p129 = por %p127, %p128
    %s131 = sadd.s32 %s130, 1
    %p134 = scmp.eq.s32.totalorder %s12, 1
    %p135 = scmp.ne.s32.totalorder %s130, %s132
    %p136 = scmp.eq.s32.totalorder %s12, 0
    %p137 = por %p135, %p136
    %p138 = scmp.ne.s32.totalorder %s130, %s132
    %p139 = scmp.eq.s32.totalorder %s17, 1
    %p140 = por %p138, %p139
    %p141 = scmp.ne.s32.totalorder %s132, %s133
    %p142 = scmp.eq.s32.totalorder %s17, 0
    %p143 = por %p141, %p142
    %p144 = scmp.ne.s32.totalorder %s132, %s133
    %p145 = scmp.eq.s32.totalorder %s18, 1
    %p146 = por %p144, %p145
    %p148 = scmp.ne.s32.totalorder %s133, %s147
    %p149 = scmp.eq.s32.totalorder %s18, 0
    %p150 = por %p148, %p149
    %s151 = ssub.s32 %s12, %s19
    %p152 = scmp.eq.s32.totalorder %s151, 0
    %s154 = sadd.s32 %s153, 1
    %s155 = scalar_select %p152, %s153, %s154
    %p158 = pneg %p152
    %p159 = scmp.eq.s32.totalorder %s12, 1
    %p160 = por %p158, %p159
    %p161 = scmp.ne.s32.totalorder %s153, %s156
    %p162 = scmp.eq.s32.totalorder %s12, 0
    %p163 = por %p161, %p162
    %p164 = scmp.ne.s32.totalorder %s153, %s156
    %p165 = scmp.eq.s32.totalorder %s17, 1
    %p166 = por %p164, %p165
    %p167 = scmp.ne.s32.totalorder %s156, %s157
    %p168 = scmp.eq.s32.totalorder %s17, 0
    %p169 = por %p167, %p168
    %p170 = scmp.ne.s32.totalorder %s156, %s157
    %p171 = scmp.eq.s32.totalorder %s18, 1
    %p172 = por %p170, %p171
    %p174 = scmp.ne.s32.totalorder %s157, %s173
    %p175 = scmp.eq.s32.totalorder %s18, 0
    %p176 = por %p174, %p175
    %p177 = scmp.le.s32.totalorder 1, %s12
    %p178 = scmp.lt.s32.totalorder %s12, 3
    %p179 = pnand %p177, %p178
    %p180 = pneg %p179
    // Predicated region
    $region9: #{tpu_custom_call.1} parent=5 // pred_check
      _
    $region10: #{tpu_custom_call.1} parent=5 // pred_check_branch
      %182 = sbr.rel (%p179) target = $region12
    $region11: #{tpu_custom_call.1} parent=5 // pred_region
      %s183 = ssub.s32 %s12, 1
      // Predicated region
      $region13: #{tpu_custom_call.1} parent=11 // pred_check
        %p184 = pneg %p59
      $region14: #{tpu_custom_call.1} parent=11 // pred_check_branch
        %186 = sbr.rel (%p184) target = $region16
      $region15: #{tpu_custom_call.1} parent=11 // pred_region
        _
      $region16: #{tpu_custom_call.1} parent=11 // pred_fallthru
        _
      // Predicated region
      $region17: #{tpu_custom_call.1} parent=11 // pred_check
        %p187 = pneg %p80
      $region18: #{tpu_custom_call.1} parent=11 // pred_check_branch
        %189 = sbr.rel (%p187) target = $region20
      $region19: #{tpu_custom_call.1} parent=11 // pred_region
        _
      $region20: #{tpu_custom_call.1} parent=11 // pred_fallthru
        _
      // Predicated region
      $region21: #{tpu_custom_call.1} parent=11 // pred_check
        %p190 = pneg %p101
      $region22: #{tpu_custom_call.1} parent=11 // pred_check_branch
        %192 = sbr.rel (%p190) target = $region24
      $region23: #{tpu_custom_call.1} parent=11 // pred_region
        _
      $region24: #{tpu_custom_call.1} parent=11 // pred_fallthru
        _
      // Predicated region
      $region25: #{tpu_custom_call.1} parent=11 // pred_check
        %p193 = pneg %p122
      $region26: #{tpu_custom_call.1} parent=11 // pred_check_branch
        %195 = sbr.rel (%p193) target = $region28
      $region27: #{tpu_custom_call.1} parent=11 // pred_region
        _
      $region28: #{tpu_custom_call.1} parent=11 // pred_fallthru
        _
      // Predicated region
      $region29: #{tpu_custom_call.1} parent=11 // pred_check
        %p196 = pneg %p143
      $region30: #{tpu_custom_call.1} parent=11 // pred_check_branch
        %198 = sbr.rel (%p196) target = $region32
      $region31: #{tpu_custom_call.1} parent=11 // pred_region
        _
      $region32: #{tpu_custom_call.1} parent=11 // pred_fallthru
        _
    $region12: #{tpu_custom_call.1} parent=5 // pred_fallthru
      _
    %p199 = scmp.lt.s32.totalorder %s12, 2
    // Predicated region
    $region33: #{tpu_custom_call.1} parent=5 // pred_check
      %p200 = pneg %p199
    $region34: #{tpu_custom_call.1} parent=5 // pred_check_branch
      %202 = sbr.rel (%p200) target = $region36
    $region35: #{tpu_custom_call.1} parent=5 // pred_region
      // Predicated region
      $region37: #{tpu_custom_call.1} parent=35 // pred_check
        %p203 = pneg %p32
      $region38: #{tpu_custom_call.1} parent=35 // pred_check_branch
        %205 = sbr.rel (%p203) target = $region40
      $region39: #{tpu_custom_call.1} parent=35 // pred_region
        %p206 = scmp.lt.s32.totalorder %s12, 1
        %s207 = scalar_select %p206, %s12, 1
        %s208 = smul.addr %s207, 8
        %s209 = smul.addr %s208, 8
        %s210 = scalar_lea.vmem %s0, %s209
      $region40: #{tpu_custom_call.1} parent=35 // pred_fallthru
        _
    $region36: #{tpu_custom_call.1} parent=5 // pred_fallthru
      _
    %p211 = scmp.le.s32.totalorder 1, %s12
    %p212 = scmp.lt.s32.totalorder %s12, 3
    %p213 = pnand %p211, %p212
    %p214 = pneg %p213
    // Predicated region
    $region41: #{tpu_custom_call.1} parent=5 // pred_check
      _
    $region42: #{tpu_custom_call.1} parent=5 // pred_check_branch
      %216 = sbr.rel (%p213) target = $region44
    $region43: #{tpu_custom_call.1} parent=5 // pred_region
      %s217 = ssub.s32 %s12, 1
      %p218 = scmp.lt.s32.totalorder %s17, 1
      %s219 = scalar_select %p218, %s17, 1
      %s220 = smul.addr %s219, 8
      %s221 = smul.addr %s220, 8
      %s222 = scalar_lea.vmem %s0, %s221
      %p223 = pneg %p38
      %p224 = pneg %p35
      %p225 = pneg %p59
      %p226 = pneg %p56
      %p227 = pneg %p80
      %p228 = pneg %p77
      %p229 = pneg %p101
      %p230 = pneg %p98
      %p231 = pneg %p122
      %p232 = pneg %p119
      %p233 = pneg %p143
      %p234 = pneg %p140
      %p235 = pneg %p169
      %p236 = pneg %p166
      %p237 = scmp.lt.s32.totalorder %s17, 1
      %s238 = scalar_select %p237, %s17, 1
      %s239 = smul.addr %s238, 8
      %s240 = smul.addr %s239, 8
      %s241 = scalar_lea.vmem %s6, %s240
      %p242 = scmp.lt.s32.totalorder %s17, 1
      %s243 = scalar_select %p242, %s17, 1
      %s244 = smul.addr %s243, 8
      %s245 = smul.addr %s244, 8
      %s246 = scalar_lea.vmem %s0, %s245
      %p247 = scmp.lt.s32.totalorder %s17, 1
      %s248 = scalar_select %p247, %s17, 1
      %s249 = smul.addr %s248, 8
      %s250 = smul.addr %s249, 8
      %s251 = scalar_lea.vmem %s6, %s250
      %v252 = vld [vmem:[%s246] sm:$0xff]
      %v253 = vld [vmem:[%s246 + $0x8] sm:$0xff]
      %v254 = vld [vmem:[%s246 + $0x10] sm:$0xff]
      %v255 = vld [vmem:[%s246 + $0x18] sm:$0xff]
      %v256 = vld [vmem:[%s246 + $0x20] sm:$0xf]
      %v257 = vld [vmem:[%s246 + $0x28] sm:$0xf]
      %v258 = vld [vmem:[%s246 + $0x30] sm:$0xf]
      %v259 = vld [vmem:[%s246 + $0x38] sm:$0xf]
      %v260 = vld [vmem:[%s3] sm:$0xff]
      %v261 = vld [vmem:[%s3 + $0x8] sm:$0xf]
      %263 = vset.pattern.permute.xlu0 0
      %264 = vperm.xlu0 %263, %v260
      %v265 = vpop.permute.xlu0 %264
      %268 = vset.pattern.permute.xlu0 0
      %269 = vperm.xlu0 %268, %v261
      %v270 = vpop.permute.xlu0 %269
      %272 = vrot.lane.b32.xlu0 %v252, 73
      %v273 = vpop.permute.xlu0 %272
      %274 = vrot.lane.b32.xlu0 %v256, 73
      %v275 = vpop.permute.xlu0 %274
      %276 = vrot.lane.b32.xlu0 %v253, 73
      %v277 = vpop.permute.xlu0 %276
      %278 = vrot.lane.b32.xlu0 %v257, 73
      %v279 = vpop.permute.xlu0 %278
      %280 = vrot.lane.b32.xlu0 %v254, 73
      %v281 = vpop.permute.xlu0 %280
      %282 = vrot.lane.b32.xlu0 %v258, 73
      %v283 = vpop.permute.xlu0 %282
      %284 = vrot.lane.b32.xlu0 %v255, 73
      %v285 = vpop.permute.xlu0 %284
      %286 = vrot.lane.b32.xlu0 %v259, 73
      %v287 = vpop.permute.xlu0 %286
      %v288 = vlaneseq
      %v289 = vand.u32 %v288, 127
      %vm290 = vcmp.lt.s32.totalorder %v289, 73
      %v291 = vsel %vm290, %v281, %v285
      %v292 = vsel %vm290, %v283, %v287
      %v293 = vsel %vm290, %v277, %v281
      %v294 = vsel %vm290, %v279, %v283
      %v295 = vsel %vm290, %v273, %v277
      %v296 = vsel %vm290, %v275, %v279
      %v297 = vsel %vm290, %v285, %v273
      %v298 = vsel %vm290, %v287, %v275
      %v299 = vld [vmem:[%s1] ss:$8 sm:$0xf]
      %v301 = vperm.slane %v299, 0
      %v302 = vperm.slane %v299, 1
      %v303 = vperm.slane %v299, 2
      %v304 = vperm.slane %v299, 3
      %v309 = vmul.f32 %v297, %v301
      %v310 = vmul.f32 %v295, %v302
      %v311 = vmul.f32 %v293, %v303
      %v312 = vmul.f32 %v291, %v304
      %v313 = vmul.f32 %v298, %v301
      %v314 = vmul.f32 %v296, %v302
      %v315 = vmul.f32 %v294, %v303
      %v316 = vmul.f32 %v292, %v304
      %v317 = vld [vmem:[%s2] sm:$0xff]
      %v318 = vld [vmem:[%s2 + $0x8] sm:$0xf]
      %vm319 = vcmask 97280
      %v321 = vsel %vm319, %v317, 0
      %v324 = vsel %vm319, %v318, 0
      %vm326 = vcmask 1043456
      %v328 = vsel %vm326, %v313, 0
      %v331 = vsel %vm326, %v314, 0
      %v334 = vsel %vm326, %v315, 0
      %v337 = vsel %vm326, %v316, 0
      %339 = vmatpush.msra.mxu0 0.0
      %340 = vmatpush.msra.mxu0 0.0
      %341 = vmatpush.msra.mxu0 0.0
      %342 = vmatpush.msra.mxu0 0.0
      %343 = vmatpush.msra.mxu0 0.0
      %344 = vmatpush.msra.mxu0 0.0
      %345 = vmatpush.msra.mxu0 0.0
      %346 = vmatpush.msra.mxu0 0.0
      %347 = vmatpush.msra.mxu0 0.0
      %348 = vmatpush.msra.mxu0 0.0
      %349 = vmatpush.msra.mxu0 0.0
      %350 = vmatpush.msra.mxu0 0.0
      %351 = vmatpush.msra.mxu0 0.0
      %352 = vmatpush.msra.mxu0 0.0
      %353 = vmatpush.msra.mxu0 %v328
      %354 = vmatpush.msra.mxu0 %v309
      %355 = vmatmul.f32.gmra.mxu0 %v321
      %v356 = vpop.f32.mrf.mxu0
      %v357 = vadd.f32 0.0, %v356
      %358 = vmatmul.f32.gmra.mxu0 %v324
      %v359 = vpop.f32.mrf.mxu0
      %v360 = vadd.f32 0.0, %v359
      %361 = vdwg.mxu0
      %362 = vmatpush.msra.mxu0 0.0
      %363 = vmatpush.msra.mxu0 0.0
      %364 = vmatpush.msra.mxu0 0.0
      %365 = vmatpush.msra.mxu0 0.0
      %366 = vmatpush.msra.mxu0 0.0
      %367 = vmatpush.msra.mxu0 0.0
      %368 = vmatpush.msra.mxu0 0.0
      %369 = vmatpush.msra.mxu0 0.0
      %370 = vmatpush.msra.mxu0 0.0
      %371 = vmatpush.msra.mxu0 0.0
      %372 = vmatpush.msra.mxu0 0.0
      %373 = vmatpush.msra.mxu0 0.0
      %374 = vmatpush.msra.mxu0 0.0
      %375 = vmatpush.msra.mxu0 0.0
      %376 = vmatpush.msra.mxu0 %v331
      %377 = vmatpush.msra.mxu0 %v310
      %378 = vmatmul.f32.gmra.mxu0 %v321
      %v379 = vpop.f32.mrf.mxu0
      %v380 = vadd.f32 0.0, %v379
      %381 = vmatmul.f32.gmra.mxu0 %v324
      %v382 = vpop.f32.mrf.mxu0
      %v383 = vadd.f32 0.0, %v382
      %384 = vdwg.mxu0
      %385 = vmatpush.msra.mxu0 0.0
      %386 = vmatpush.msra.mxu0 0.0
      %387 = vmatpush.msra.mxu0 0.0
      %388 = vmatpush.msra.mxu0 0.0
      %389 = vmatpush.msra.mxu0 0.0
      %390 = vmatpush.msra.mxu0 0.0
      %391 = vmatpush.msra.mxu0 0.0
      %392 = vmatpush.msra.mxu0 0.0
      %393 = vmatpush.msra.mxu0 0.0
      %394 = vmatpush.msra.mxu0 0.0
      %395 = vmatpush.msra.mxu0 0.0
      %396 = vmatpush.msra.mxu0 0.0
      %397 = vmatpush.msra.mxu0 0.0
      %398 = vmatpush.msra.mxu0 0.0
      %399 = vmatpush.msra.mxu0 %v334
      %400 = vmatpush.msra.mxu0 %v311
      %401 = vmatmul.f32.gmra.mxu0 %v321
      %v402 = vpop.f32.mrf.mxu0
      %v403 = vadd.f32 0.0, %v402
      %404 = vmatmul.f32.gmra.mxu0 %v324
      %v405 = vpop.f32.mrf.mxu0
      %v406 = vadd.f32 0.0, %v405
      %407 = vdwg.mxu0
      %408 = vmatpush.msra.mxu0 0.0
      %409 = vmatpush.msra.mxu0 0.0
      %410 = vmatpush.msra.mxu0 0.0
      %411 = vmatpush.msra.mxu0 0.0
      %412 = vmatpush.msra.mxu0 0.0
      %413 = vmatpush.msra.mxu0 0.0
      %414 = vmatpush.msra.mxu0 0.0
      %415 = vmatpush.msra.mxu0 0.0
      %416 = vmatpush.msra.mxu0 0.0
      %417 = vmatpush.msra.mxu0 0.0
      %418 = vmatpush.msra.mxu0 0.0
      %419 = vmatpush.msra.mxu0 0.0
      %420 = vmatpush.msra.mxu0 0.0
      %421 = vmatpush.msra.mxu0 0.0
      %422 = vmatpush.msra.mxu0 %v337
      %423 = vmatpush.msra.mxu0 %v312
      %424 = vmatmul.f32.gmra.mxu0 %v321
      %v425 = vpop.f32.mrf.mxu0
      %v426 = vadd.f32 0.0, %v425
      %427 = vmatmul.f32.gmra.mxu0 %v324
      %v428 = vpop.f32.mrf.mxu0
      %v429 = vadd.f32 0.0, %v428
      %430 = vdwg.mxu0
      %v431 = vadd.f32 %v265, %v357
      %v432 = vadd.f32 %v265, %v380
      %v433 = vadd.f32 %v265, %v403
      %v434 = vadd.f32 %v265, %v426
      %v435 = vadd.f32 %v270, %v360
      %v436 = vadd.f32 %v270, %v383
      %v437 = vadd.f32 %v270, %v406
      %v438 = vadd.f32 %v270, %v429
      %439 = vrot.lane.b32.xlu0 %v252, 72
      %v440 = vpop.permute.xlu0 %439
      %441 = vrot.lane.b32.xlu0 %v256, 72
      %v442 = vpop.permute.xlu0 %441
      %443 = vrot.lane.b32.xlu0 %v253, 72
      %v444 = vpop.permute.xlu0 %443
      %445 = vrot.lane.b32.xlu0 %v257, 72
      %v446 = vpop.permute.xlu0 %445
      %447 = vrot.lane.b32.xlu0 %v254, 72
      %v448 = vpop.permute.xlu0 %447
      %449 = vrot.lane.b32.xlu0 %v258, 72
      %v450 = vpop.permute.xlu0 %449
      %451 = vrot.lane.b32.xlu0 %v255, 72
      %v452 = vpop.permute.xlu0 %451
      %453 = vrot.lane.b32.xlu0 %v259, 72
      %v454 = vpop.permute.xlu0 %453
      %vm455 = vcmp.lt.s32.totalorder %v289, 72
      %v456 = vsel %vm455, %v448, %v452
      %v457 = vsel %vm455, %v450, %v454
      %v458 = vsel %vm455, %v444, %v448
      %v459 = vsel %vm455, %v446, %v450
      %v460 = vsel %vm455, %v440, %v444
      %v461 = vsel %vm455, %v442, %v446
      %v462 = vsel %vm455, %v452, %v440
      %v463 = vsel %vm455, %v454, %v442
      %s464 = scalar_lea.vmem %s1, 1
      %v465 = vld [vmem:[%s464] ss:$8 sm:$0xf]
      %v467 = vperm.slane %v465, 0
      %v468 = vperm.slane %v465, 1
      %v469 = vperm.slane %v465, 2
      %v470 = vperm.slane %v465, 3
      %v475 = vmul.f32 %v462, %v467
      %v476 = vmul.f32 %v460, %v468
      %v477 = vmul.f32 %v458, %v469
      %v478 = vmul.f32 %v456, %v470
      %v479 = vmul.f32 %v463, %v467
      %v480 = vmul.f32 %v461, %v468
      %v481 = vmul.f32 %v459, %v469
      %v482 = vmul.f32 %v457, %v470
      %s483 = scalar_lea.vmem %s2, 16
      %v484 = vld [vmem:[%s483] sm:$0xff]
      %v485 = vld [vmem:[%s483 + $0x8] sm:$0xf]
      %v487 = vsel %vm319, %v484, 0
      %v490 = vsel %vm319, %v485, 0
      %v493 = vsel %vm326, %v479, 0
      %v496 = vsel %vm326, %v480, 0
      %v499 = vsel %vm326, %v481, 0
      %v502 = vsel %vm326, %v482, 0
      %504 = vmatpush.msra.mxu0 0.0
      %505 = vmatpush.msra.mxu0 0.0
      %506 = vmatpush.msra.mxu0 0.0
      %507 = vmatpush.msra.mxu0 0.0
      %508 = vmatpush.msra.mxu0 0.0
      %509 = vmatpush.msra.mxu0 0.0
      %510 = vmatpush.msra.mxu0 0.0
      %511 = vmatpush.msra.mxu0 0.0
      %512 = vmatpush.msra.mxu0 0.0
      %513 = vmatpush.msra.mxu0 0.0
      %514 = vmatpush.msra.mxu0 0.0
      %515 = vmatpush.msra.mxu0 0.0
      %516 = vmatpush.msra.mxu0 0.0
      %517 = vmatpush.msra.mxu0 0.0
      %518 = vmatpush.msra.mxu0 %v493
      %519 = vmatpush.msra.mxu0 %v475
      %520 = vmatmul.f32.gmra.mxu0 %v487
      %v521 = vpop.f32.mrf.mxu0
      %v522 = vadd.f32 0.0, %v521
      %523 = vmatmul.f32.gmra.mxu0 %v490
      %v524 = vpop.f32.mrf.mxu0
      %v525 = vadd.f32 0.0, %v524
      %526 = vdwg.mxu0
      %527 = vmatpush.msra.mxu0 0.0
      %528 = vmatpush.msra.mxu0 0.0
      %529 = vmatpush.msra.mxu0 0.0
      %530 = vmatpush.msra.mxu0 0.0
      %531 = vmatpush.msra.mxu0 0.0
      %532 = vmatpush.msra.mxu0 0.0
      %533 = vmatpush.msra.mxu0 0.0
      %534 = vmatpush.msra.mxu0 0.0
      %535 = vmatpush.msra.mxu0 0.0
      %536 = vmatpush.msra.mxu0 0.0
      %537 = vmatpush.msra.mxu0 0.0
      %538 = vmatpush.msra.mxu0 0.0
      %539 = vmatpush.msra.mxu0 0.0
      %540 = vmatpush.msra.mxu0 0.0
      %541 = vmatpush.msra.mxu0 %v496
      %542 = vmatpush.msra.mxu0 %v476
      %543 = vmatmul.f32.gmra.mxu0 %v487
      %v544 = vpop.f32.mrf.mxu0
      %v545 = vadd.f32 0.0, %v544
      %546 = vmatmul.f32.gmra.mxu0 %v490
      %v547 = vpop.f32.mrf.mxu0
      %v548 = vadd.f32 0.0, %v547
      %549 = vdwg.mxu0
      %550 = vmatpush.msra.mxu0 0.0
      %551 = vmatpush.msra.mxu0 0.0
      %552 = vmatpush.msra.mxu0 0.0
      %553 = vmatpush.msra.mxu0 0.0
      %554 = vmatpush.msra.mxu0 0.0
      %555 = vmatpush.msra.mxu0 0.0
      %556 = vmatpush.msra.mxu0 0.0
      %557 = vmatpush.msra.mxu0 0.0
      %558 = vmatpush.msra.mxu0 0.0
      %559 = vmatpush.msra.mxu0 0.0
      %560 = vmatpush.msra.mxu0 0.0
      %561 = vmatpush.msra.mxu0 0.0
      %562 = vmatpush.msra.mxu0 0.0
      %563 = vmatpush.msra.mxu0 0.0
      %564 = vmatpush.msra.mxu0 %v499
      %565 = vmatpush.msra.mxu0 %v477
      %566 = vmatmul.f32.gmra.mxu0 %v487
      %v567 = vpop.f32.mrf.mxu0
      %v568 = vadd.f32 0.0, %v567
      %569 = vmatmul.f32.gmra.mxu0 %v490
      %v570 = vpop.f32.mrf.mxu0
      %v571 = vadd.f32 0.0, %v570
      %572 = vdwg.mxu0
      %573 = vmatpush.msra.mxu0 0.0
      %574 = vmatpush.msra.mxu0 0.0
      %575 = vmatpush.msra.mxu0 0.0
      %576 = vmatpush.msra.mxu0 0.0
      %577 = vmatpush.msra.mxu0 0.0
      %578 = vmatpush.msra.mxu0 0.0
      %579 = vmatpush.msra.mxu0 0.0
      %580 = vmatpush.msra.mxu0 0.0
      %581 = vmatpush.msra.mxu0 0.0
      %582 = vmatpush.msra.mxu0 0.0
      %583 = vmatpush.msra.mxu0 0.0
      %584 = vmatpush.msra.mxu0 0.0
      %585 = vmatpush.msra.mxu0 0.0
      %586 = vmatpush.msra.mxu0 0.0
      %587 = vmatpush.msra.mxu0 %v502
      %588 = vmatpush.msra.mxu0 %v478
      %589 = vmatmul.f32.gmra.mxu0 %v487
      %v590 = vpop.f32.mrf.mxu0
      %v591 = vadd.f32 0.0, %v590
      %592 = vmatmul.f32.gmra.mxu0 %v490
      %v593 = vpop.f32.mrf.mxu0
      %v594 = vadd.f32 0.0, %v593
      %595 = vdwg.mxu0
      %v596 = vadd.f32 %v431, %v522
      %v597 = vadd.f32 %v432, %v545
      %v598 = vadd.f32 %v433, %v568
      %v599 = vadd.f32 %v434, %v591
      %v600 = vadd.f32 %v435, %v525
      %v601 = vadd.f32 %v436, %v548
      %v602 = vadd.f32 %v437, %v571
      %v603 = vadd.f32 %v438, %v594
      %604 = vrot.lane.b32.xlu0 %v252, 71
      %v605 = vpop.permute.xlu0 %604
      %606 = vrot.lane.b32.xlu0 %v256, 71
      %v607 = vpop.permute.xlu0 %606
      %608 = vrot.lane.b32.xlu0 %v253, 71
      %v609 = vpop.permute.xlu0 %608
      %610 = vrot.lane.b32.xlu0 %v257, 71
      %v611 = vpop.permute.xlu0 %610
      %612 = vrot.lane.b32.xlu0 %v254, 71
      %v613 = vpop.permute.xlu0 %612
      %614 = vrot.lane.b32.xlu0 %v258, 71
      %v615 = vpop.permute.xlu0 %614
      %616 = vrot.lane.b32.xlu0 %v255, 71
      %v617 = vpop.permute.xlu0 %616
      %618 = vrot.lane.b32.xlu0 %v259, 71
      %v619 = vpop.permute.xlu0 %618
      %vm620 = vcmp.lt.s32.totalorder %v289, 71
      %v621 = vsel %vm620, %v613, %v617
      %v622 = vsel %vm620, %v615, %v619
      %v623 = vsel %vm620, %v609, %v613
      %v624 = vsel %vm620, %v611, %v615
      %v625 = vsel %vm620, %v605, %v609
      %v626 = vsel %vm620, %v607, %v611
      %v627 = vsel %vm620, %v617, %v605
      %v628 = vsel %vm620, %v619, %v607
      %s629 = scalar_lea.vmem %s1, 2
      %v630 = vld [vmem:[%s629] ss:$8 sm:$0xf]
      %v632 = vperm.slane %v630, 0
      %v633 = vperm.slane %v630, 1
      %v634 = vperm.slane %v630, 2
      %v635 = vperm.slane %v630, 3
      %v640 = vmul.f32 %v627, %v632
      %v641 = vmul.f32 %v625, %v633
      %v642 = vmul.f32 %v623, %v634
      %v643 = vmul.f32 %v621, %v635
      %v644 = vmul.f32 %v628, %v632
      %v645 = vmul.f32 %v626, %v633
      %v646 = vmul.f32 %v624, %v634
      %v647 = vmul.f32 %v622, %v635
      %s648 = scalar_lea.vmem %s2, 32
      %v649 = vld [vmem:[%s648] sm:$0xff]
      %v650 = vld [vmem:[%s648 + $0x8] sm:$0xf]
      %v652 = vsel %vm319, %v649, 0
      %v655 = vsel %vm319, %v650, 0
      %v658 = vsel %vm326, %v644, 0
      %v661 = vsel %vm326, %v645, 0
      %v664 = vsel %vm326, %v646, 0
      %v667 = vsel %vm326, %v647, 0
      %669 = vmatpush.msra.mxu0 0.0
      %670 = vmatpush.msra.mxu0 0.0
      %671 = vmatpush.msra.mxu0 0.0
      %672 = vmatpush.msra.mxu0 0.0
      %673 = vmatpush.msra.mxu0 0.0
      %674 = vmatpush.msra.mxu0 0.0
      %675 = vmatpush.msra.mxu0 0.0
      %676 = vmatpush.msra.mxu0 0.0
      %677 = vmatpush.msra.mxu0 0.0
      %678 = vmatpush.msra.mxu0 0.0
      %679 = vmatpush.msra.mxu0 0.0
      %680 = vmatpush.msra.mxu0 0.0
      %681 = vmatpush.msra.mxu0 0.0
      %682 = vmatpush.msra.mxu0 0.0
      %683 = vmatpush.msra.mxu0 %v658
      %684 = vmatpush.msra.mxu0 %v640
      %685 = vmatmul.f32.gmra.mxu0 %v652
      %v686 = vpop.f32.mrf.mxu0
      %v687 = vadd.f32 0.0, %v686
      %688 = vmatmul.f32.gmra.mxu0 %v655
      %v689 = vpop.f32.mrf.mxu0
      %v690 = vadd.f32 0.0, %v689
      %691 = vdwg.mxu0
      %692 = vmatpush.msra.mxu0 0.0
      %693 = vmatpush.msra.mxu0 0.0
      %694 = vmatpush.msra.mxu0 0.0
      %695 = vmatpush.msra.mxu0 0.0
      %696 = vmatpush.msra.mxu0 0.0
      %697 = vmatpush.msra.mxu0 0.0
      %698 = vmatpush.msra.mxu0 0.0
      %699 = vmatpush.msra.mxu0 0.0
      %700 = vmatpush.msra.mxu0 0.0
      %701 = vmatpush.msra.mxu0 0.0
      %702 = vmatpush.msra.mxu0 0.0
      %703 = vmatpush.msra.mxu0 0.0
      %704 = vmatpush.msra.mxu0 0.0
      %705 = vmatpush.msra.mxu0 0.0
      %706 = vmatpush.msra.mxu0 %v661
      %707 = vmatpush.msra.mxu0 %v641
      %708 = vmatmul.f32.gmra.mxu0 %v652
      %v709 = vpop.f32.mrf.mxu0
      %v710 = vadd.f32 0.0, %v709
      %711 = vmatmul.f32.gmra.mxu0 %v655
      %v712 = vpop.f32.mrf.mxu0
      %v713 = vadd.f32 0.0, %v712
      %714 = vdwg.mxu0
      %715 = vmatpush.msra.mxu0 0.0
      %716 = vmatpush.msra.mxu0 0.0
      %717 = vmatpush.msra.mxu0 0.0
      %718 = vmatpush.msra.mxu0 0.0
      %719 = vmatpush.msra.mxu0 0.0
      %720 = vmatpush.msra.mxu0 0.0
      %721 = vmatpush.msra.mxu0 0.0
      %722 = vmatpush.msra.mxu0 0.0
      %723 = vmatpush.msra.mxu0 0.0
      %724 = vmatpush.msra.mxu0 0.0
      %725 = vmatpush.msra.mxu0 0.0
      %726 = vmatpush.msra.mxu0 0.0
      %727 = vmatpush.msra.mxu0 0.0
      %728 = vmatpush.msra.mxu0 0.0
      %729 = vmatpush.msra.mxu0 %v664
      %730 = vmatpush.msra.mxu0 %v642
      %731 = vmatmul.f32.gmra.mxu0 %v652
      %v732 = vpop.f32.mrf.mxu0
      %v733 = vadd.f32 0.0, %v732
      %734 = vmatmul.f32.gmra.mxu0 %v655
      %v735 = vpop.f32.mrf.mxu0
      %v736 = vadd.f32 0.0, %v735
      %737 = vdwg.mxu0
      %738 = vmatpush.msra.mxu0 0.0
      %739 = vmatpush.msra.mxu0 0.0
      %740 = vmatpush.msra.mxu0 0.0
      %741 = vmatpush.msra.mxu0 0.0
      %742 = vmatpush.msra.mxu0 0.0
      %743 = vmatpush.msra.mxu0 0.0
      %744 = vmatpush.msra.mxu0 0.0
      %745 = vmatpush.msra.mxu0 0.0
      %746 = vmatpush.msra.mxu0 0.0
      %747 = vmatpush.msra.mxu0 0.0
      %748 = vmatpush.msra.mxu0 0.0
      %749 = vmatpush.msra.mxu0 0.0
      %750 = vmatpush.msra.mxu0 0.0
      %751 = vmatpush.msra.mxu0 0.0
      %752 = vmatpush.msra.mxu0 %v667
      %753 = vmatpush.msra.mxu0 %v643
      %754 = vmatmul.f32.gmra.mxu0 %v652
      %v755 = vpop.f32.mrf.mxu0
      %v756 = vadd.f32 0.0, %v755
      %757 = vmatmul.f32.gmra.mxu0 %v655
      %v758 = vpop.f32.mrf.mxu0
      %v759 = vadd.f32 0.0, %v758
      %760 = vdwg.mxu0
      %v761 = vadd.f32 %v596, %v687
      %v762 = vadd.f32 %v597, %v710
      %v763 = vadd.f32 %v598, %v733
      %v764 = vadd.f32 %v599, %v756
      %v765 = vadd.f32 %v600, %v690
      %v766 = vadd.f32 %v601, %v713
      %v767 = vadd.f32 %v602, %v736
      %v768 = vadd.f32 %v603, %v759
      %769 = vrot.lane.b32.xlu0 %v252, 65
      %v770 = vpop.permute.xlu0 %769
      %771 = vrot.lane.b32.xlu0 %v256, 65
      %v772 = vpop.permute.xlu0 %771
      %773 = vrot.lane.b32.xlu0 %v253, 65
      %v774 = vpop.permute.xlu0 %773
      %775 = vrot.lane.b32.xlu0 %v257, 65
      %v776 = vpop.permute.xlu0 %775
      %777 = vrot.lane.b32.xlu0 %v254, 65
      %v778 = vpop.permute.xlu0 %777
      %779 = vrot.lane.b32.xlu0 %v258, 65
      %v780 = vpop.permute.xlu0 %779
      %781 = vrot.lane.b32.xlu0 %v255, 65
      %v782 = vpop.permute.xlu0 %781
      %783 = vrot.lane.b32.xlu0 %v259, 65
      %v784 = vpop.permute.xlu0 %783
      %vm785 = vcmp.lt.s32.totalorder %v289, 65
      %v786 = vsel %vm785, %v778, %v782
      %v787 = vsel %vm785, %v780, %v784
      %v788 = vsel %vm785, %v774, %v778
      %v789 = vsel %vm785, %v776, %v780
      %v790 = vsel %vm785, %v770, %v774
      %v791 = vsel %vm785, %v772, %v776
      %v792 = vsel %vm785, %v782, %v770
      %v793 = vsel %vm785, %v784, %v772
      %s794 = scalar_lea.vmem %s1, 3
      %v795 = vld [vmem:[%s794] ss:$8 sm:$0xf]
      %v797 = vperm.slane %v795, 0
      %v798 = vperm.slane %v795, 1
      %v799 = vperm.slane %v795, 2
      %v800 = vperm.slane %v795, 3
      %v805 = vmul.f32 %v792, %v797
      %v806 = vmul.f32 %v790, %v798
      %v807 = vmul.f32 %v788, %v799
      %v808 = vmul.f32 %v786, %v800
      %v809 = vmul.f32 %v793, %v797
      %v810 = vmul.f32 %v791, %v798
      %v811 = vmul.f32 %v789, %v799
      %v812 = vmul.f32 %v787, %v800
      %s813 = scalar_lea.vmem %s2, 48
      %v814 = vld [vmem:[%s813] sm:$0xff]
      %v815 = vld [vmem:[%s813 + $0x8] sm:$0xf]
      %v817 = vsel %vm319, %v814, 0
      %v820 = vsel %vm319, %v815, 0
      %v823 = vsel %vm326, %v809, 0
      %v826 = vsel %vm326, %v810, 0
      %v829 = vsel %vm326, %v811, 0
      %v832 = vsel %vm326, %v812, 0
      %834 = vmatpush.msra.mxu0 0.0
      %835 = vmatpush.msra.mxu0 0.0
      %836 = vmatpush.msra.mxu0 0.0
      %837 = vmatpush.msra.mxu0 0.0
      %838 = vmatpush.msra.mxu0 0.0
      %839 = vmatpush.msra.mxu0 0.0
      %840 = vmatpush.msra.mxu0 0.0
      %841 = vmatpush.msra.mxu0 0.0
      %842 = vmatpush.msra.mxu0 0.0
      %843 = vmatpush.msra.mxu0 0.0
      %844 = vmatpush.msra.mxu0 0.0
      %845 = vmatpush.msra.mxu0 0.0
      %846 = vmatpush.msra.mxu0 0.0
      %847 = vmatpush.msra.mxu0 0.0
      %848 = vmatpush.msra.mxu0 %v823
      %849 = vmatpush.msra.mxu0 %v805
      %850 = vmatmul.f32.gmra.mxu0 %v817
      %v851 = vpop.f32.mrf.mxu0
      %v852 = vadd.f32 0.0, %v851
      %853 = vmatmul.f32.gmra.mxu0 %v820
      %v854 = vpop.f32.mrf.mxu0
      %v855 = vadd.f32 0.0, %v854
      %856 = vdwg.mxu0
      %857 = vmatpush.msra.mxu0 0.0
      %858 = vmatpush.msra.mxu0 0.0
      %859 = vmatpush.msra.mxu0 0.0
      %860 = vmatpush.msra.mxu0 0.0
      %861 = vmatpush.msra.mxu0 0.0
      %862 = vmatpush.msra.mxu0 0.0
      %863 = vmatpush.msra.mxu0 0.0
      %864 = vmatpush.msra.mxu0 0.0
      %865 = vmatpush.msra.mxu0 0.0
      %866 = vmatpush.msra.mxu0 0.0
      %867 = vmatpush.msra.mxu0 0.0
      %868 = vmatpush.msra.mxu0 0.0
      %869 = vmatpush.msra.mxu0 0.0
      %870 = vmatpush.msra.mxu0 0.0
      %871 = vmatpush.msra.mxu0 %v826
      %872 = vmatpush.msra.mxu0 %v806
      %873 = vmatmul.f32.gmra.mxu0 %v817
      %v874 = vpop.f32.mrf.mxu0
      %v875 = vadd.f32 0.0, %v874
      %876 = vmatmul.f32.gmra.mxu0 %v820
      %v877 = vpop.f32.mrf.mxu0
      %v878 = vadd.f32 0.0, %v877
      %879 = vdwg.mxu0
      %880 = vmatpush.msra.mxu0 0.0
      %881 = vmatpush.msra.mxu0 0.0
      %882 = vmatpush.msra.mxu0 0.0
      %883 = vmatpush.msra.mxu0 0.0
      %884 = vmatpush.msra.mxu0 0.0
      %885 = vmatpush.msra.mxu0 0.0
      %886 = vmatpush.msra.mxu0 0.0
      %887 = vmatpush.msra.mxu0 0.0
      %888 = vmatpush.msra.mxu0 0.0
      %889 = vmatpush.msra.mxu0 0.0
      %890 = vmatpush.msra.mxu0 0.0
      %891 = vmatpush.msra.mxu0 0.0
      %892 = vmatpush.msra.mxu0 0.0
      %893 = vmatpush.msra.mxu0 0.0
      %894 = vmatpush.msra.mxu0 %v829
      %895 = vmatpush.msra.mxu0 %v807
      %896 = vmatmul.f32.gmra.mxu0 %v817
      %v897 = vpop.f32.mrf.mxu0
      %v898 = vadd.f32 0.0, %v897
      %899 = vmatmul.f32.gmra.mxu0 %v820
      %v900 = vpop.f32.mrf.mxu0
      %v901 = vadd.f32 0.0, %v900
      %902 = vdwg.mxu0
      %903 = vmatpush.msra.mxu0 0.0
      %904 = vmatpush.msra.mxu0 0.0
      %905 = vmatpush.msra.mxu0 0.0
      %906 = vmatpush.msra.mxu0 0.0
      %907 = vmatpush.msra.mxu0 0.0
      %908 = vmatpush.msra.mxu0 0.0
      %909 = vmatpush.msra.mxu0 0.0
      %910 = vmatpush.msra.mxu0 0.0
      %911 = vmatpush.msra.mxu0 0.0
      %912 = vmatpush.msra.mxu0 0.0
      %913 = vmatpush.msra.mxu0 0.0
      %914 = vmatpush.msra.mxu0 0.0
      %915 = vmatpush.msra.mxu0 0.0
      %916 = vmatpush.msra.mxu0 0.0
      %917 = vmatpush.msra.mxu0 %v832
      %918 = vmatpush.msra.mxu0 %v808
      %919 = vmatmul.f32.gmra.mxu0 %v817
      %v920 = vpop.f32.mrf.mxu0
      %v921 = vadd.f32 0.0, %v920
      %922 = vmatmul.f32.gmra.mxu0 %v820
      %v923 = vpop.f32.mrf.mxu0
      %v924 = vadd.f32 0.0, %v923
      %925 = vdwg.mxu0
      %v926 = vadd.f32 %v761, %v852
      %v927 = vadd.f32 %v762, %v875
      %v928 = vadd.f32 %v763, %v898
      %v929 = vadd.f32 %v764, %v921
      %v930 = vadd.f32 %v765, %v855
      %v931 = vadd.f32 %v766, %v878
      %v932 = vadd.f32 %v767, %v901
      %v933 = vadd.f32 %v768, %v924
      %934 = vrot.lane.b32.xlu0 %v252, 64
      %v935 = vpop.permute.xlu0 %934
      %936 = vrot.lane.b32.xlu0 %v256, 64
      %v937 = vpop.permute.xlu0 %936
      %938 = vrot.lane.b32.xlu0 %v253, 64
      %v939 = vpop.permute.xlu0 %938
      %940 = vrot.lane.b32.xlu0 %v257, 64
      %v941 = vpop.permute.xlu0 %940
      %942 = vrot.lane.b32.xlu0 %v254, 64
      %v943 = vpop.permute.xlu0 %942
      %944 = vrot.lane.b32.xlu0 %v258, 64
      %v945 = vpop.permute.xlu0 %944
      %946 = vrot.lane.b32.xlu0 %v255, 64
      %v947 = vpop.permute.xlu0 %946
      %948 = vrot.lane.b32.xlu0 %v259, 64
      %v949 = vpop.permute.xlu0 %948
      %vm950 = vcmp.lt.s32.totalorder %v289, 64
      %v951 = vsel %vm950, %v943, %v947
      %v952 = vsel %vm950, %v945, %v949
      %v953 = vsel %vm950, %v939, %v943
      %v954 = vsel %vm950, %v941, %v945
      %v955 = vsel %vm950, %v935, %v939
      %v956 = vsel %vm950, %v937, %v941
      %v957 = vsel %vm950, %v947, %v935
      %v958 = vsel %vm950, %v949, %v937
      %s959 = scalar_lea.vmem %s1, 4
      %v960 = vld [vmem:[%s959] ss:$8 sm:$0xf]
      %v962 = vperm.slane %v960, 0
      %v963 = vperm.slane %v960, 1
      %v964 = vperm.slane %v960, 2
      %v965 = vperm.slane %v960, 3
      %v970 = vmul.f32 %v957, %v962
      %v971 = vmul.f32 %v955, %v963
      %v972 = vmul.f32 %v953, %v964
      %v973 = vmul.f32 %v951, %v965
      %v974 = vmul.f32 %v958, %v962
      %v975 = vmul.f32 %v956, %v963
      %v976 = vmul.f32 %v954, %v964
      %v977 = vmul.f32 %v952, %v965
      %s978 = scalar_lea.vmem %s2, 64
      %v979 = vld [vmem:[%s978] sm:$0xff]
      %v980 = vld [vmem:[%s978 + $0x8] sm:$0xf]
      %v982 = vsel %vm319, %v979, 0
      %v985 = vsel %vm319, %v980, 0
      %v988 = vsel %vm326, %v974, 0
      %v991 = vsel %vm326, %v975, 0
      %v994 = vsel %vm326, %v976, 0
      %v997 = vsel %vm326, %v977, 0
      %999 = vmatpush.msra.mxu0 0.0
      %1000 = vmatpush.msra.mxu0 0.0
      %1001 = vmatpush.msra.mxu0 0.0
      %1002 = vmatpush.msra.mxu0 0.0
      %1003 = vmatpush.msra.mxu0 0.0
      %1004 = vmatpush.msra.mxu0 0.0
      %1005 = vmatpush.msra.mxu0 0.0
      %1006 = vmatpush.msra.mxu0 0.0
      %1007 = vmatpush.msra.mxu0 0.0
      %1008 = vmatpush.msra.mxu0 0.0
      %1009 = vmatpush.msra.mxu0 0.0
      %1010 = vmatpush.msra.mxu0 0.0
      %1011 = vmatpush.msra.mxu0 0.0
      %1012 = vmatpush.msra.mxu0 0.0
      %1013 = vmatpush.msra.mxu0 %v988
      %1014 = vmatpush.msra.mxu0 %v970
      %1015 = vmatmul.f32.gmra.mxu0 %v982
      %v1016 = vpop.f32.mrf.mxu0
      %v1017 = vadd.f32 0.0, %v1016
      %1018 = vmatmul.f32.gmra.mxu0 %v985
      %v1019 = vpop.f32.mrf.mxu0
      %v1020 = vadd.f32 0.0, %v1019
      %1021 = vdwg.mxu0
      %1022 = vmatpush.msra.mxu0 0.0
      %1023 = vmatpush.msra.mxu0 0.0
      %1024 = vmatpush.msra.mxu0 0.0
      %1025 = vmatpush.msra.mxu0 0.0
      %1026 = vmatpush.msra.mxu0 0.0
      %1027 = vmatpush.msra.mxu0 0.0
      %1028 = vmatpush.msra.mxu0 0.0
      %1029 = vmatpush.msra.mxu0 0.0
      %1030 = vmatpush.msra.mxu0 0.0
      %1031 = vmatpush.msra.mxu0 0.0
      %1032 = vmatpush.msra.mxu0 0.0
      %1033 = vmatpush.msra.mxu0 0.0
      %1034 = vmatpush.msra.mxu0 0.0
      %1035 = vmatpush.msra.mxu0 0.0
      %1036 = vmatpush.msra.mxu0 %v991
      %1037 = vmatpush.msra.mxu0 %v971
      %1038 = vmatmul.f32.gmra.mxu0 %v982
      %v1039 = vpop.f32.mrf.mxu0
      %v1040 = vadd.f32 0.0, %v1039
      %1041 = vmatmul.f32.gmra.mxu0 %v985
      %v1042 = vpop.f32.mrf.mxu0
      %v1043 = vadd.f32 0.0, %v1042
      %1044 = vdwg.mxu0
      %1045 = vmatpush.msra.mxu0 0.0
      %1046 = vmatpush.msra.mxu0 0.0
      %1047 = vmatpush.msra.mxu0 0.0
      %1048 = vmatpush.msra.mxu0 0.0
      %1049 = vmatpush.msra.mxu0 0.0
      %1050 = vmatpush.msra.mxu0 0.0
      %1051 = vmatpush.msra.mxu0 0.0
      %1052 = vmatpush.msra.mxu0 0.0
      %1053 = vmatpush.msra.mxu0 0.0
      %1054 = vmatpush.msra.mxu0 0.0
      %1055 = vmatpush.msra.mxu0 0.0
      %1056 = vmatpush.msra.mxu0 0.0
      %1057 = vmatpush.msra.mxu0 0.0
      %1058 = vmatpush.msra.mxu0 0.0
      %1059 = vmatpush.msra.mxu0 %v994
      %1060 = vmatpush.msra.mxu0 %v972
      %1061 = vmatmul.f32.gmra.mxu0 %v982
      %v1062 = vpop.f32.mrf.mxu0
      %v1063 = vadd.f32 0.0, %v1062
      %1064 = vmatmul.f32.gmra.mxu0 %v985
      %v1065 = vpop.f32.mrf.mxu0
      %v1066 = vadd.f32 0.0, %v1065
      %1067 = vdwg.mxu0
      %1068 = vmatpush.msra.mxu0 0.0
      %1069 = vmatpush.msra.mxu0 0.0
      %1070 = vmatpush.msra.mxu0 0.0
      %1071 = vmatpush.msra.mxu0 0.0
      %1072 = vmatpush.msra.mxu0 0.0
      %1073 = vmatpush.msra.mxu0 0.0
      %1074 = vmatpush.msra.mxu0 0.0
      %1075 = vmatpush.msra.mxu0 0.0
      %1076 = vmatpush.msra.mxu0 0.0
      %1077 = vmatpush.msra.mxu0 0.0
      %1078 = vmatpush.msra.mxu0 0.0
      %1079 = vmatpush.msra.mxu0 0.0
      %1080 = vmatpush.msra.mxu0 0.0
      %1081 = vmatpush.msra.mxu0 0.0
      %1082 = vmatpush.msra.mxu0 %v997
      %1083 = vmatpush.msra.mxu0 %v973
      %1084 = vmatmul.f32.gmra.mxu0 %v982
      %v1085 = vpop.f32.mrf.mxu0
      %v1086 = vadd.f32 0.0, %v1085
      %1087 = vmatmul.f32.gmra.mxu0 %v985
      %v1088 = vpop.f32.mrf.mxu0
      %v1089 = vadd.f32 0.0, %v1088
      %1090 = vdwg.mxu0
      %v1091 = vadd.f32 %v926, %v1017
      %v1092 = vadd.f32 %v927, %v1040
      %v1093 = vadd.f32 %v928, %v1063
      %v1094 = vadd.f32 %v929, %v1086
      %v1095 = vadd.f32 %v930, %v1020
      %v1096 = vadd.f32 %v931, %v1043
      %v1097 = vadd.f32 %v932, %v1066
      %v1098 = vadd.f32 %v933, %v1089
      %1099 = vrot.lane.b32.xlu0 %v252, 63
      %v1100 = vpop.permute.xlu0 %1099
      %1101 = vrot.lane.b32.xlu0 %v256, 63
      %v1102 = vpop.permute.xlu0 %1101
      %1103 = vrot.lane.b32.xlu0 %v253, 63
      %v1104 = vpop.permute.xlu0 %1103
      %1105 = vrot.lane.b32.xlu0 %v257, 63
      %v1106 = vpop.permute.xlu0 %1105
      %1107 = vrot.lane.b32.xlu0 %v254, 63
      %v1108 = vpop.permute.xlu0 %1107
      %1109 = vrot.lane.b32.xlu0 %v258, 63
      %v1110 = vpop.permute.xlu0 %1109
      %1111 = vrot.lane.b32.xlu0 %v255, 63
      %v1112 = vpop.permute.xlu0 %1111
      %1113 = vrot.lane.b32.xlu0 %v259, 63
      %v1114 = vpop.permute.xlu0 %1113
      %vm1115 = vcmp.lt.s32.totalorder %v289, 63
      %v1116 = vsel %vm1115, %v1108, %v1112
      %v1117 = vsel %vm1115, %v1110, %v1114
      %v1118 = vsel %vm1115, %v1104, %v1108
      %v1119 = vsel %vm1115, %v1106, %v1110
      %v1120 = vsel %vm1115, %v1100, %v1104
      %v1121 = vsel %vm1115, %v1102, %v1106
      %v1122 = vsel %vm1115, %v1112, %v1100
      %v1123 = vsel %vm1115, %v1114, %v1102
      %s1124 = scalar_lea.vmem %s1, 5
      %v1125 = vld [vmem:[%s1124] ss:$8 sm:$0xf]
      %v1127 = vperm.slane %v1125, 0
      %v1128 = vperm.slane %v1125, 1
      %v1129 = vperm.slane %v1125, 2
      %v1130 = vperm.slane %v1125, 3
      %v1135 = vmul.f32 %v1122, %v1127
      %v1136 = vmul.f32 %v1120, %v1128
      %v1137 = vmul.f32 %v1118, %v1129
      %v1138 = vmul.f32 %v1116, %v1130
      %v1139 = vmul.f32 %v1123, %v1127
      %v1140 = vmul.f32 %v1121, %v1128
      %v1141 = vmul.f32 %v1119, %v1129
      %v1142 = vmul.f32 %v1117, %v1130
      %s1143 = scalar_lea.vmem %s2, 80
      %v1144 = vld [vmem:[%s1143] sm:$0xff]
      %v1145 = vld [vmem:[%s1143 + $0x8] sm:$0xf]
      %v1147 = vsel %vm319, %v1144, 0
      %v1150 = vsel %vm319, %v1145, 0
      %v1153 = vsel %vm326, %v1139, 0
      %v1156 = vsel %vm326, %v1140, 0
      %v1159 = vsel %vm326, %v1141, 0
      %v1162 = vsel %vm326, %v1142, 0
      %1164 = vmatpush.msra.mxu0 0.0
      %1165 = vmatpush.msra.mxu0 0.0
      %1166 = vmatpush.msra.mxu0 0.0
      %1167 = vmatpush.msra.mxu0 0.0
      %1168 = vmatpush.msra.mxu0 0.0
      %1169 = vmatpush.msra.mxu0 0.0
      %1170 = vmatpush.msra.mxu0 0.0
      %1171 = vmatpush.msra.mxu0 0.0
      %1172 = vmatpush.msra.mxu0 0.0
      %1173 = vmatpush.msra.mxu0 0.0
      %1174 = vmatpush.msra.mxu0 0.0
      %1175 = vmatpush.msra.mxu0 0.0
      %1176 = vmatpush.msra.mxu0 0.0
      %1177 = vmatpush.msra.mxu0 0.0
      %1178 = vmatpush.msra.mxu0 %v1153
      %1179 = vmatpush.msra.mxu0 %v1135
      %1180 = vmatmul.f32.gmra.mxu0 %v1147
      %v1181 = vpop.f32.mrf.mxu0
      %v1182 = vadd.f32 0.0, %v1181
      %1183 = vmatmul.f32.gmra.mxu0 %v1150
      %v1184 = vpop.f32.mrf.mxu0
      %v1185 = vadd.f32 0.0, %v1184
      %1186 = vdwg.mxu0
      %1187 = vmatpush.msra.mxu0 0.0
      %1188 = vmatpush.msra.mxu0 0.0
      %1189 = vmatpush.msra.mxu0 0.0
      %1190 = vmatpush.msra.mxu0 0.0
      %1191 = vmatpush.msra.mxu0 0.0
      %1192 = vmatpush.msra.mxu0 0.0
      %1193 = vmatpush.msra.mxu0 0.0
      %1194 = vmatpush.msra.mxu0 0.0
      %1195 = vmatpush.msra.mxu0 0.0
      %1196 = vmatpush.msra.mxu0 0.0
      %1197 = vmatpush.msra.mxu0 0.0
      %1198 = vmatpush.msra.mxu0 0.0
      %1199 = vmatpush.msra.mxu0 0.0
      %1200 = vmatpush.msra.mxu0 0.0
      %1201 = vmatpush.msra.mxu0 %v1156
      %1202 = vmatpush.msra.mxu0 %v1136
      %1203 = vmatmul.f32.gmra.mxu0 %v1147
      %v1204 = vpop.f32.mrf.mxu0
      %v1205 = vadd.f32 0.0, %v1204
      %1206 = vmatmul.f32.gmra.mxu0 %v1150
      %v1207 = vpop.f32.mrf.mxu0
      %v1208 = vadd.f32 0.0, %v1207
      %1209 = vdwg.mxu0
      %1210 = vmatpush.msra.mxu0 0.0
      %1211 = vmatpush.msra.mxu0 0.0
      %1212 = vmatpush.msra.mxu0 0.0
      %1213 = vmatpush.msra.mxu0 0.0
      %1214 = vmatpush.msra.mxu0 0.0
      %1215 = vmatpush.msra.mxu0 0.0
      %1216 = vmatpush.msra.mxu0 0.0
      %1217 = vmatpush.msra.mxu0 0.0
      %1218 = vmatpush.msra.mxu0 0.0
      %1219 = vmatpush.msra.mxu0 0.0
      %1220 = vmatpush.msra.mxu0 0.0
      %1221 = vmatpush.msra.mxu0 0.0
      %1222 = vmatpush.msra.mxu0 0.0
      %1223 = vmatpush.msra.mxu0 0.0
      %1224 = vmatpush.msra.mxu0 %v1159
      %1225 = vmatpush.msra.mxu0 %v1137
      %1226 = vmatmul.f32.gmra.mxu0 %v1147
      %v1227 = vpop.f32.mrf.mxu0
      %v1228 = vadd.f32 0.0, %v1227
      %1229 = vmatmul.f32.gmra.mxu0 %v1150
      %v1230 = vpop.f32.mrf.mxu0
      %v1231 = vadd.f32 0.0, %v1230
      %1232 = vdwg.mxu0
      %1233 = vmatpush.msra.mxu0 0.0
      %1234 = vmatpush.msra.mxu0 0.0
      %1235 = vmatpush.msra.mxu0 0.0
      %1236 = vmatpush.msra.mxu0 0.0
      %1237 = vmatpush.msra.mxu0 0.0
      %1238 = vmatpush.msra.mxu0 0.0
      %1239 = vmatpush.msra.mxu0 0.0
      %1240 = vmatpush.msra.mxu0 0.0
      %1241 = vmatpush.msra.mxu0 0.0
      %1242 = vmatpush.msra.mxu0 0.0
      %1243 = vmatpush.msra.mxu0 0.0
      %1244 = vmatpush.msra.mxu0 0.0
      %1245 = vmatpush.msra.mxu0 0.0
      %1246 = vmatpush.msra.mxu0 0.0
      %1247 = vmatpush.msra.mxu0 %v1162
      %1248 = vmatpush.msra.mxu0 %v1138
      %1249 = vmatmul.f32.gmra.mxu0 %v1147
      %v1250 = vpop.f32.mrf.mxu0
      %v1251 = vadd.f32 0.0, %v1250
      %1252 = vmatmul.f32.gmra.mxu0 %v1150
      %v1253 = vpop.f32.mrf.mxu0
      %v1254 = vadd.f32 0.0, %v1253
      %1255 = vdwg.mxu0
      %v1256 = vadd.f32 %v1091, %v1182
      %v1257 = vadd.f32 %v1092, %v1205
      %v1258 = vadd.f32 %v1093, %v1228
      %v1259 = vadd.f32 %v1094, %v1251
      %v1260 = vadd.f32 %v1095, %v1185
      %v1261 = vadd.f32 %v1096, %v1208
      %v1262 = vadd.f32 %v1097, %v1231
      %v1263 = vadd.f32 %v1098, %v1254
      %1264 = vrot.lane.b32.xlu0 %v252, 57
      %v1265 = vpop.permute.xlu0 %1264
      %1266 = vrot.lane.b32.xlu0 %v256, 57
      %v1267 = vpop.permute.xlu0 %1266
      %1268 = vrot.lane.b32.xlu0 %v253, 57
      %v1269 = vpop.permute.xlu0 %1268
      %1270 = vrot.lane.b32.xlu0 %v257, 57
      %v1271 = vpop.permute.xlu0 %1270
      %1272 = vrot.lane.b32.xlu0 %v254, 57
      %v1273 = vpop.permute.xlu0 %1272
      %1274 = vrot.lane.b32.xlu0 %v258, 57
      %v1275 = vpop.permute.xlu0 %1274
      %1276 = vrot.lane.b32.xlu0 %v255, 57
      %v1277 = vpop.permute.xlu0 %1276
      %1278 = vrot.lane.b32.xlu0 %v259, 57
      %v1279 = vpop.permute.xlu0 %1278
      %vm1280 = vcmp.lt.s32.totalorder %v289, 57
      %v1281 = vsel %vm1280, %v1273, %v1277
      %v1282 = vsel %vm1280, %v1275, %v1279
      %v1283 = vsel %vm1280, %v1269, %v1273
      %v1284 = vsel %vm1280, %v1271, %v1275
      %v1285 = vsel %vm1280, %v1265, %v1269
      %v1286 = vsel %vm1280, %v1267, %v1271
      %v1287 = vsel %vm1280, %v1277, %v1265
      %v1288 = vsel %vm1280, %v1279, %v1267
      %s1289 = scalar_lea.vmem %s1, 6
      %v1290 = vld [vmem:[%s1289] ss:$8 sm:$0xf]
      %v1292 = vperm.slane %v1290, 0
      %v1293 = vperm.slane %v1290, 1
      %v1294 = vperm.slane %v1290, 2
      %v1295 = vperm.slane %v1290, 3
      %v1300 = vmul.f32 %v1287, %v1292
      %v1301 = vmul.f32 %v1285, %v1293
      %v1302 = vmul.f32 %v1283, %v1294
      %v1303 = vmul.f32 %v1281, %v1295
      %v1304 = vmul.f32 %v1288, %v1292
      %v1305 = vmul.f32 %v1286, %v1293
      %v1306 = vmul.f32 %v1284, %v1294
      %v1307 = vmul.f32 %v1282, %v1295
      %s1308 = scalar_lea.vmem %s2, 96
      %v1309 = vld [vmem:[%s1308] sm:$0xff]
      %v1310 = vld [vmem:[%s1308 + $0x8] sm:$0xf]
      %v1312 = vsel %vm319, %v1309, 0
      %v1315 = vsel %vm319, %v1310, 0
      %v1318 = vsel %vm326, %v1304, 0
      %v1321 = vsel %vm326, %v1305, 0
      %v1324 = vsel %vm326, %v1306, 0
      %v1327 = vsel %vm326, %v1307, 0
      %1329 = vmatpush.msra.mxu0 0.0
      %1330 = vmatpush.msra.mxu0 0.0
      %1331 = vmatpush.msra.mxu0 0.0
      %1332 = vmatpush.msra.mxu0 0.0
      %1333 = vmatpush.msra.mxu0 0.0
      %1334 = vmatpush.msra.mxu0 0.0
      %1335 = vmatpush.msra.mxu0 0.0
      %1336 = vmatpush.msra.mxu0 0.0
      %1337 = vmatpush.msra.mxu0 0.0
      %1338 = vmatpush.msra.mxu0 0.0
      %1339 = vmatpush.msra.mxu0 0.0
      %1340 = vmatpush.msra.mxu0 0.0
      %1341 = vmatpush.msra.mxu0 0.0
      %1342 = vmatpush.msra.mxu0 0.0
      %1343 = vmatpush.msra.mxu0 %v1318
      %1344 = vmatpush.msra.mxu0 %v1300
      %1345 = vmatmul.f32.gmra.mxu0 %v1312
      %v1346 = vpop.f32.mrf.mxu0
      %v1347 = vadd.f32 0.0, %v1346
      %1348 = vmatmul.f32.gmra.mxu0 %v1315
      %v1349 = vpop.f32.mrf.mxu0
      %v1350 = vadd.f32 0.0, %v1349
      %1351 = vdwg.mxu0
      %1352 = vmatpush.msra.mxu0 0.0
      %1353 = vmatpush.msra.mxu0 0.0
      %1354 = vmatpush.msra.mxu0 0.0
      %1355 = vmatpush.msra.mxu0 0.0
      %1356 = vmatpush.msra.mxu0 0.0
      %1357 = vmatpush.msra.mxu0 0.0
      %1358 = vmatpush.msra.mxu0 0.0
      %1359 = vmatpush.msra.mxu0 0.0
      %1360 = vmatpush.msra.mxu0 0.0
      %1361 = vmatpush.msra.mxu0 0.0
      %1362 = vmatpush.msra.mxu0 0.0
      %1363 = vmatpush.msra.mxu0 0.0
      %1364 = vmatpush.msra.mxu0 0.0
      %1365 = vmatpush.msra.mxu0 0.0
      %1366 = vmatpush.msra.mxu0 %v1321
      %1367 = vmatpush.msra.mxu0 %v1301
      %1368 = vmatmul.f32.gmra.mxu0 %v1312
      %v1369 = vpop.f32.mrf.mxu0
      %v1370 = vadd.f32 0.0, %v1369
      %1371 = vmatmul.f32.gmra.mxu0 %v1315
      %v1372 = vpop.f32.mrf.mxu0
      %v1373 = vadd.f32 0.0, %v1372
      %1374 = vdwg.mxu0
      %1375 = vmatpush.msra.mxu0 0.0
      %1376 = vmatpush.msra.mxu0 0.0
      %1377 = vmatpush.msra.mxu0 0.0
      %1378 = vmatpush.msra.mxu0 0.0
      %1379 = vmatpush.msra.mxu0 0.0
      %1380 = vmatpush.msra.mxu0 0.0
      %1381 = vmatpush.msra.mxu0 0.0
      %1382 = vmatpush.msra.mxu0 0.0
      %1383 = vmatpush.msra.mxu0 0.0
      %1384 = vmatpush.msra.mxu0 0.0
      %1385 = vmatpush.msra.mxu0 0.0
      %1386 = vmatpush.msra.mxu0 0.0
      %1387 = vmatpush.msra.mxu0 0.0
      %1388 = vmatpush.msra.mxu0 0.0
      %1389 = vmatpush.msra.mxu0 %v1324
      %1390 = vmatpush.msra.mxu0 %v1302
      %1391 = vmatmul.f32.gmra.mxu0 %v1312
      %v1392 = vpop.f32.mrf.mxu0
      %v1393 = vadd.f32 0.0, %v1392
      %1394 = vmatmul.f32.gmra.mxu0 %v1315
      %v1395 = vpop.f32.mrf.mxu0
      %v1396 = vadd.f32 0.0, %v1395
      %1397 = vdwg.mxu0
      %1398 = vmatpush.msra.mxu0 0.0
      %1399 = vmatpush.msra.mxu0 0.0
      %1400 = vmatpush.msra.mxu0 0.0
      %1401 = vmatpush.msra.mxu0 0.0
      %1402 = vmatpush.msra.mxu0 0.0
      %1403 = vmatpush.msra.mxu0 0.0
      %1404 = vmatpush.msra.mxu0 0.0
      %1405 = vmatpush.msra.mxu0 0.0
      %1406 = vmatpush.msra.mxu0 0.0
      %1407 = vmatpush.msra.mxu0 0.0
      %1408 = vmatpush.msra.mxu0 0.0
      %1409 = vmatpush.msra.mxu0 0.0
      %1410 = vmatpush.msra.mxu0 0.0
      %1411 = vmatpush.msra.mxu0 0.0
      %1412 = vmatpush.msra.mxu0 %v1327
      %1413 = vmatpush.msra.mxu0 %v1303
      %1414 = vmatmul.f32.gmra.mxu0 %v1312
      %v1415 = vpop.f32.mrf.mxu0
      %v1416 = vadd.f32 0.0, %v1415
      %1417 = vmatmul.f32.gmra.mxu0 %v1315
      %v1418 = vpop.f32.mrf.mxu0
      %v1419 = vadd.f32 0.0, %v1418
      %1420 = vdwg.mxu0
      %v1421 = vadd.f32 %v1256, %v1347
      %v1422 = vadd.f32 %v1257, %v1370
      %v1423 = vadd.f32 %v1258, %v1393
      %v1424 = vadd.f32 %v1259, %v1416
      %v1425 = vadd.f32 %v1260, %v1350
      %v1426 = vadd.f32 %v1261, %v1373
      %v1427 = vadd.f32 %v1262, %v1396
      %v1428 = vadd.f32 %v1263, %v1419
      %1429 = vrot.lane.b32.xlu0 %v252, 56
      %v1430 = vpop.permute.xlu0 %1429
      %1431 = vrot.lane.b32.xlu0 %v256, 56
      %v1432 = vpop.permute.xlu0 %1431
      %1433 = vrot.lane.b32.xlu0 %v253, 56
      %v1434 = vpop.permute.xlu0 %1433
      %1435 = vrot.lane.b32.xlu0 %v257, 56
      %v1436 = vpop.permute.xlu0 %1435
      %1437 = vrot.lane.b32.xlu0 %v254, 56
      %v1438 = vpop.permute.xlu0 %1437
      %1439 = vrot.lane.b32.xlu0 %v258, 56
      %v1440 = vpop.permute.xlu0 %1439
      %1441 = vrot.lane.b32.xlu0 %v255, 56
      %v1442 = vpop.permute.xlu0 %1441
      %1443 = vrot.lane.b32.xlu0 %v259, 56
      %v1444 = vpop.permute.xlu0 %1443
      %vm1445 = vcmp.lt.s32.totalorder %v289, 56
      %v1446 = vsel %vm1445, %v1438, %v1442
      %v1447 = vsel %vm1445, %v1440, %v1444
      %v1448 = vsel %vm1445, %v1434, %v1438
      %v1449 = vsel %vm1445, %v1436, %v1440
      %v1450 = vsel %vm1445, %v1430, %v1434
      %v1451 = vsel %vm1445, %v1432, %v1436
      %v1452 = vsel %vm1445, %v1442, %v1430
      %v1453 = vsel %vm1445, %v1444, %v1432
      %s1454 = scalar_lea.vmem %s1, 7
      %v1455 = vld [vmem:[%s1454] ss:$8 sm:$0xf]
      %v1457 = vperm.slane %v1455, 0
      %v1458 = vperm.slane %v1455, 1
      %v1459 = vperm.slane %v1455, 2
      %v1460 = vperm.slane %v1455, 3
      %v1465 = vmul.f32 %v1452, %v1457
      %v1466 = vmul.f32 %v1450, %v1458
      %v1467 = vmul.f32 %v1448, %v1459
      %v1468 = vmul.f32 %v1446, %v1460
      %v1469 = vmul.f32 %v1453, %v1457
      %v1470 = vmul.f32 %v1451, %v1458
      %v1471 = vmul.f32 %v1449, %v1459
      %v1472 = vmul.f32 %v1447, %v1460
      %s1473 = scalar_lea.vmem %s2, 112
      %v1474 = vld [vmem:[%s1473] sm:$0xff]
      %v1475 = vld [vmem:[%s1473 + $0x8] sm:$0xf]
      %v1477 = vsel %vm319, %v1474, 0
      %v1480 = vsel %vm319, %v1475, 0
      %v1483 = vsel %vm326, %v1469, 0
      %v1486 = vsel %vm326, %v1470, 0
      %v1489 = vsel %vm326, %v1471, 0
      %v1492 = vsel %vm326, %v1472, 0
      %1494 = vmatpush.msra.mxu0 0.0
      %1495 = vmatpush.msra.mxu0 0.0
      %1496 = vmatpush.msra.mxu0 0.0
      %1497 = vmatpush.msra.mxu0 0.0
      %1498 = vmatpush.msra.mxu0 0.0
      %1499 = vmatpush.msra.mxu0 0.0
      %1500 = vmatpush.msra.mxu0 0.0
      %1501 = vmatpush.msra.mxu0 0.0
      %1502 = vmatpush.msra.mxu0 0.0
      %1503 = vmatpush.msra.mxu0 0.0
      %1504 = vmatpush.msra.mxu0 0.0
      %1505 = vmatpush.msra.mxu0 0.0
      %1506 = vmatpush.msra.mxu0 0.0
      %1507 = vmatpush.msra.mxu0 0.0
      %1508 = vmatpush.msra.mxu0 %v1483
      %1509 = vmatpush.msra.mxu0 %v1465
      %1510 = vmatmul.f32.gmra.mxu0 %v1477
      %v1511 = vpop.f32.mrf.mxu0
      %v1512 = vadd.f32 0.0, %v1511
      %1513 = vmatmul.f32.gmra.mxu0 %v1480
      %v1514 = vpop.f32.mrf.mxu0
      %v1515 = vadd.f32 0.0, %v1514
      %1516 = vdwg.mxu0
      %1517 = vmatpush.msra.mxu0 0.0
      %1518 = vmatpush.msra.mxu0 0.0
      %1519 = vmatpush.msra.mxu0 0.0
      %1520 = vmatpush.msra.mxu0 0.0
      %1521 = vmatpush.msra.mxu0 0.0
      %1522 = vmatpush.msra.mxu0 0.0
      %1523 = vmatpush.msra.mxu0 0.0
      %1524 = vmatpush.msra.mxu0 0.0
      %1525 = vmatpush.msra.mxu0 0.0
      %1526 = vmatpush.msra.mxu0 0.0
      %1527 = vmatpush.msra.mxu0 0.0
      %1528 = vmatpush.msra.mxu0 0.0
      %1529 = vmatpush.msra.mxu0 0.0
      %1530 = vmatpush.msra.mxu0 0.0
      %1531 = vmatpush.msra.mxu0 %v1486
      %1532 = vmatpush.msra.mxu0 %v1466
      %1533 = vmatmul.f32.gmra.mxu0 %v1477
      %v1534 = vpop.f32.mrf.mxu0
      %v1535 = vadd.f32 0.0, %v1534
      %1536 = vmatmul.f32.gmra.mxu0 %v1480
      %v1537 = vpop.f32.mrf.mxu0
      %v1538 = vadd.f32 0.0, %v1537
      %1539 = vdwg.mxu0
      %1540 = vmatpush.msra.mxu0 0.0
      %1541 = vmatpush.msra.mxu0 0.0
      %1542 = vmatpush.msra.mxu0 0.0
      %1543 = vmatpush.msra.mxu0 0.0
      %1544 = vmatpush.msra.mxu0 0.0
      %1545 = vmatpush.msra.mxu0 0.0
      %1546 = vmatpush.msra.mxu0 0.0
      %1547 = vmatpush.msra.mxu0 0.0
      %1548 = vmatpush.msra.mxu0 0.0
      %1549 = vmatpush.msra.mxu0 0.0
      %1550 = vmatpush.msra.mxu0 0.0
      %1551 = vmatpush.msra.mxu0 0.0
      %1552 = vmatpush.msra.mxu0 0.0
      %1553 = vmatpush.msra.mxu0 0.0
      %1554 = vmatpush.msra.mxu0 %v1489
      %1555 = vmatpush.msra.mxu0 %v1467
      %1556 = vmatmul.f32.gmra.mxu0 %v1477
      %v1557 = vpop.f32.mrf.mxu0
      %v1558 = vadd.f32 0.0, %v1557
      %1559 = vmatmul.f32.gmra.mxu0 %v1480
      %v1560 = vpop.f32.mrf.mxu0
      %v1561 = vadd.f32 0.0, %v1560
      %1562 = vdwg.mxu0
      %1563 = vmatpush.msra.mxu0 0.0
      %1564 = vmatpush.msra.mxu0 0.0
      %1565 = vmatpush.msra.mxu0 0.0
      %1566 = vmatpush.msra.mxu0 0.0
      %1567 = vmatpush.msra.mxu0 0.0
      %1568 = vmatpush.msra.mxu0 0.0
      %1569 = vmatpush.msra.mxu0 0.0
      %1570 = vmatpush.msra.mxu0 0.0
      %1571 = vmatpush.msra.mxu0 0.0
      %1572 = vmatpush.msra.mxu0 0.0
      %1573 = vmatpush.msra.mxu0 0.0
      %1574 = vmatpush.msra.mxu0 0.0
      %1575 = vmatpush.msra.mxu0 0.0
      %1576 = vmatpush.msra.mxu0 0.0
      %1577 = vmatpush.msra.mxu0 %v1492
      %1578 = vmatpush.msra.mxu0 %v1468
      %1579 = vmatmul.f32.gmra.mxu0 %v1477
      %v1580 = vpop.f32.mrf.mxu0
      %v1581 = vadd.f32 0.0, %v1580
      %1582 = vmatmul.f32.gmra.mxu0 %v1480
      %v1583 = vpop.f32.mrf.mxu0
      %v1584 = vadd.f32 0.0, %v1583
      %1585 = vdwg.mxu0
      %v1586 = vadd.f32 %v1421, %v1512
      %v1587 = vadd.f32 %v1422, %v1535
      %v1588 = vadd.f32 %v1423, %v1558
      %v1589 = vadd.f32 %v1424, %v1581
      %v1590 = vadd.f32 %v1425, %v1515
      %v1591 = vadd.f32 %v1426, %v1538
      %v1592 = vadd.f32 %v1427, %v1561
      %v1593 = vadd.f32 %v1428, %v1584
      %1594 = vrot.lane.b32.xlu0 %v252, 55
      %v1595 = vpop.permute.xlu0 %1594
      %1596 = vrot.lane.b32.xlu0 %v256, 55
      %v1597 = vpop.permute.xlu0 %1596
      %1598 = vrot.lane.b32.xlu0 %v253, 55
      %v1599 = vpop.permute.xlu0 %1598
      %1600 = vrot.lane.b32.xlu0 %v257, 55
      %v1601 = vpop.permute.xlu0 %1600
      %1602 = vrot.lane.b32.xlu0 %v254, 55
      %v1603 = vpop.permute.xlu0 %1602
      %1604 = vrot.lane.b32.xlu0 %v258, 55
      %v1605 = vpop.permute.xlu0 %1604
      %1606 = vrot.lane.b32.xlu0 %v255, 55
      %v1607 = vpop.permute.xlu0 %1606
      %1608 = vrot.lane.b32.xlu0 %v259, 55
      %v1609 = vpop.permute.xlu0 %1608
      %vm1610 = vcmp.lt.s32.totalorder %v289, 55
      %v1611 = vsel %vm1610, %v1603, %v1607
      %v1612 = vsel %vm1610, %v1605, %v1609
      %v1613 = vsel %vm1610, %v1599, %v1603
      %v1614 = vsel %vm1610, %v1601, %v1605
      %v1615 = vsel %vm1610, %v1595, %v1599
      %v1616 = vsel %vm1610, %v1597, %v1601
      %v1617 = vsel %vm1610, %v1607, %v1595
      %v1618 = vsel %vm1610, %v1609, %v1597
      %s1619 = scalar_lea.vmem %s1, 32
      %v1620 = vld [vmem:[%s1619] ss:$8 sm:$0xf]
      %v1622 = vperm.slane %v1620, 0
      %v1623 = vperm.slane %v1620, 1
      %v1624 = vperm.slane %v1620, 2
      %v1625 = vperm.slane %v1620, 3
      %v1630 = vmul.f32 %v1617, %v1622
      %v1631 = vmul.f32 %v1615, %v1623
      %v1632 = vmul.f32 %v1613, %v1624
      %v1633 = vmul.f32 %v1611, %v1625
      %v1634 = vmul.f32 %v1618, %v1622
      %v1635 = vmul.f32 %v1616, %v1623
      %v1636 = vmul.f32 %v1614, %v1624
      %v1637 = vmul.f32 %v1612, %v1625
      %s1638 = scalar_lea.vmem %s2, 128
      %v1639 = vld [vmem:[%s1638] sm:$0xff]
      %v1640 = vld [vmem:[%s1638 + $0x8] sm:$0xf]
      %v1642 = vsel %vm319, %v1639, 0
      %v1645 = vsel %vm319, %v1640, 0
      %v1648 = vsel %vm326, %v1634, 0
      %v1651 = vsel %vm326, %v1635, 0
      %v1654 = vsel %vm326, %v1636, 0
      %v1657 = vsel %vm326, %v1637, 0
      %1659 = vmatpush.msra.mxu0 0.0
      %1660 = vmatpush.msra.mxu0 0.0
      %1661 = vmatpush.msra.mxu0 0.0
      %1662 = vmatpush.msra.mxu0 0.0
      %1663 = vmatpush.msra.mxu0 0.0
      %1664 = vmatpush.msra.mxu0 0.0
      %1665 = vmatpush.msra.mxu0 0.0
      %1666 = vmatpush.msra.mxu0 0.0
      %1667 = vmatpush.msra.mxu0 0.0
      %1668 = vmatpush.msra.mxu0 0.0
      %1669 = vmatpush.msra.mxu0 0.0
      %1670 = vmatpush.msra.mxu0 0.0
      %1671 = vmatpush.msra.mxu0 0.0
      %1672 = vmatpush.msra.mxu0 0.0
      %1673 = vmatpush.msra.mxu0 %v1648
      %1674 = vmatpush.msra.mxu0 %v1630
      %1675 = vmatmul.f32.gmra.mxu0 %v1642
      %v1676 = vpop.f32.mrf.mxu0
      %v1677 = vadd.f32 0.0, %v1676
      %1678 = vmatmul.f32.gmra.mxu0 %v1645
      %v1679 = vpop.f32.mrf.mxu0
      %v1680 = vadd.f32 0.0, %v1679
      %1681 = vdwg.mxu0
      %1682 = vmatpush.msra.mxu0 0.0
      %1683 = vmatpush.msra.mxu0 0.0
      %1684 = vmatpush.msra.mxu0 0.0
      %1685 = vmatpush.msra.mxu0 0.0
      %1686 = vmatpush.msra.mxu0 0.0
      %1687 = vmatpush.msra.mxu0 0.0
      %1688 = vmatpush.msra.mxu0 0.0
      %1689 = vmatpush.msra.mxu0 0.0
      %1690 = vmatpush.msra.mxu0 0.0
      %1691 = vmatpush.msra.mxu0 0.0
      %1692 = vmatpush.msra.mxu0 0.0
      %1693 = vmatpush.msra.mxu0 0.0
      %1694 = vmatpush.msra.mxu0 0.0
      %1695 = vmatpush.msra.mxu0 0.0
      %1696 = vmatpush.msra.mxu0 %v1651
      %1697 = vmatpush.msra.mxu0 %v1631
      %1698 = vmatmul.f32.gmra.mxu0 %v1642
      %v1699 = vpop.f32.mrf.mxu0
      %v1700 = vadd.f32 0.0, %v1699
      %1701 = vmatmul.f32.gmra.mxu0 %v1645
      %v1702 = vpop.f32.mrf.mxu0
      %v1703 = vadd.f32 0.0, %v1702
      %1704 = vdwg.mxu0
      %1705 = vmatpush.msra.mxu0 0.0
      %1706 = vmatpush.msra.mxu0 0.0
      %1707 = vmatpush.msra.mxu0 0.0
      %1708 = vmatpush.msra.mxu0 0.0
      %1709 = vmatpush.msra.mxu0 0.0
      %1710 = vmatpush.msra.mxu0 0.0
      %1711 = vmatpush.msra.mxu0 0.0
      %1712 = vmatpush.msra.mxu0 0.0
      %1713 = vmatpush.msra.mxu0 0.0
      %1714 = vmatpush.msra.mxu0 0.0
      %1715 = vmatpush.msra.mxu0 0.0
      %1716 = vmatpush.msra.mxu0 0.0
      %1717 = vmatpush.msra.mxu0 0.0
      %1718 = vmatpush.msra.mxu0 0.0
      %1719 = vmatpush.msra.mxu0 %v1654
      %1720 = vmatpush.msra.mxu0 %v1632
      %1721 = vmatmul.f32.gmra.mxu0 %v1642
      %v1722 = vpop.f32.mrf.mxu0
      %v1723 = vadd.f32 0.0, %v1722
      %1724 = vmatmul.f32.gmra.mxu0 %v1645
      %v1725 = vpop.f32.mrf.mxu0
      %v1726 = vadd.f32 0.0, %v1725
      %1727 = vdwg.mxu0
      %1728 = vmatpush.msra.mxu0 0.0
      %1729 = vmatpush.msra.mxu0 0.0
      %1730 = vmatpush.msra.mxu0 0.0
      %1731 = vmatpush.msra.mxu0 0.0
      %1732 = vmatpush.msra.mxu0 0.0
      %1733 = vmatpush.msra.mxu0 0.0
      %1734 = vmatpush.msra.mxu0 0.0
      %1735 = vmatpush.msra.mxu0 0.0
      %1736 = vmatpush.msra.mxu0 0.0
      %1737 = vmatpush.msra.mxu0 0.0
      %1738 = vmatpush.msra.mxu0 0.0
      %1739 = vmatpush.msra.mxu0 0.0
      %1740 = vmatpush.msra.mxu0 0.0
      %1741 = vmatpush.msra.mxu0 0.0
      %1742 = vmatpush.msra.mxu0 %v1657
      %1743 = vmatpush.msra.mxu0 %v1633
      %1744 = vmatmul.f32.gmra.mxu0 %v1642
      %v1745 = vpop.f32.mrf.mxu0
      %v1746 = vadd.f32 0.0, %v1745
      %1747 = vmatmul.f32.gmra.mxu0 %v1645
      %v1748 = vpop.f32.mrf.mxu0
      %v1749 = vadd.f32 0.0, %v1748
      %1750 = vdwg.mxu0
      %v1751 = vadd.f32 %v1586, %v1677
      %v1752 = vadd.f32 %v1587, %v1700
      %v1753 = vadd.f32 %v1588, %v1723
      %v1754 = vadd.f32 %v1589, %v1746
      %v1755 = vadd.f32 %v1590, %v1680
      %v1756 = vadd.f32 %v1591, %v1703
      %v1757 = vadd.f32 %v1592, %v1726
      %v1758 = vadd.f32 %v1593, %v1749
      %1759 = vrot.lane.b32.xlu0 %v252, 9
      %v1760 = vpop.permute.xlu0 %1759
      %1761 = vrot.lane.b32.xlu0 %v256, 9
      %v1762 = vpop.permute.xlu0 %1761
      %1763 = vrot.lane.b32.xlu0 %v253, 9
      %v1764 = vpop.permute.xlu0 %1763
      %1765 = vrot.lane.b32.xlu0 %v257, 9
      %v1766 = vpop.permute.xlu0 %1765
      %1767 = vrot.lane.b32.xlu0 %v254, 9
      %v1768 = vpop.permute.xlu0 %1767
      %1769 = vrot.lane.b32.xlu0 %v258, 9
      %v1770 = vpop.permute.xlu0 %1769
      %1771 = vrot.lane.b32.xlu0 %v255, 9
      %v1772 = vpop.permute.xlu0 %1771
      %1773 = vrot.lane.b32.xlu0 %v259, 9
      %v1774 = vpop.permute.xlu0 %1773
      %vm1775 = vcmp.lt.s32.totalorder %v289, 9
      %v1776 = vsel %vm1775, %v1768, %v1772
      %v1777 = vsel %vm1775, %v1770, %v1774
      %v1778 = vsel %vm1775, %v1764, %v1768
      %v1779 = vsel %vm1775, %v1766, %v1770
      %v1780 = vsel %vm1775, %v1760, %v1764
      %v1781 = vsel %vm1775, %v1762, %v1766
      %v1782 = vsel %vm1775, %v1772, %v1760
      %v1783 = vsel %vm1775, %v1774, %v1762
      %s1784 = scalar_lea.vmem %s1, 33
      %v1785 = vld [vmem:[%s1784] ss:$8 sm:$0xf]
      %v1787 = vperm.slane %v1785, 0
      %v1788 = vperm.slane %v1785, 1
      %v1789 = vperm.slane %v1785, 2
      %v1790 = vperm.slane %v1785, 3
      %v1795 = vmul.f32 %v1782, %v1787
      %v1796 = vmul.f32 %v1780, %v1788
      %v1797 = vmul.f32 %v1778, %v1789
      %v1798 = vmul.f32 %v1776, %v1790
      %v1799 = vmul.f32 %v1783, %v1787
      %v1800 = vmul.f32 %v1781, %v1788
      %v1801 = vmul.f32 %v1779, %v1789
      %v1802 = vmul.f32 %v1777, %v1790
      %s1803 = scalar_lea.vmem %s2, 144
      %v1804 = vld [vmem:[%s1803] sm:$0xff]
      %v1805 = vld [vmem:[%s1803 + $0x8] sm:$0xf]
      %v1807 = vsel %vm319, %v1804, 0
      %v1810 = vsel %vm319, %v1805, 0
      %v1813 = vsel %vm326, %v1799, 0
      %v1816 = vsel %vm326, %v1800, 0
      %v1819 = vsel %vm326, %v1801, 0
      %v1822 = vsel %vm326, %v1802, 0
      %1824 = vmatpush.msra.mxu0 0.0
      %1825 = vmatpush.msra.mxu0 0.0
      %1826 = vmatpush.msra.mxu0 0.0
      %1827 = vmatpush.msra.mxu0 0.0
      %1828 = vmatpush.msra.mxu0 0.0
      %1829 = vmatpush.msra.mxu0 0.0
      %1830 = vmatpush.msra.mxu0 0.0
      %1831 = vmatpush.msra.mxu0 0.0
      %1832 = vmatpush.msra.mxu0 0.0
      %1833 = vmatpush.msra.mxu0 0.0
      %1834 = vmatpush.msra.mxu0 0.0
      %1835 = vmatpush.msra.mxu0 0.0
      %1836 = vmatpush.msra.mxu0 0.0
      %1837 = vmatpush.msra.mxu0 0.0
      %1838 = vmatpush.msra.mxu0 %v1813
      %1839 = vmatpush.msra.mxu0 %v1795
      %1840 = vmatmul.f32.gmra.mxu0 %v1807
      %v1841 = vpop.f32.mrf.mxu0
      %v1842 = vadd.f32 0.0, %v1841
      %1843 = vmatmul.f32.gmra.mxu0 %v1810
      %v1844 = vpop.f32.mrf.mxu0
      %v1845 = vadd.f32 0.0, %v1844
      %1846 = vdwg.mxu0
      %1847 = vmatpush.msra.mxu0 0.0
      %1848 = vmatpush.msra.mxu0 0.0
      %1849 = vmatpush.msra.mxu0 0.0
      %1850 = vmatpush.msra.mxu0 0.0
      %1851 = vmatpush.msra.mxu0 0.0
      %1852 = vmatpush.msra.mxu0 0.0
      %1853 = vmatpush.msra.mxu0 0.0
      %1854 = vmatpush.msra.mxu0 0.0
      %1855 = vmatpush.msra.mxu0 0.0
      %1856 = vmatpush.msra.mxu0 0.0
      %1857 = vmatpush.msra.mxu0 0.0
      %1858 = vmatpush.msra.mxu0 0.0
      %1859 = vmatpush.msra.mxu0 0.0
      %1860 = vmatpush.msra.mxu0 0.0
      %1861 = vmatpush.msra.mxu0 %v1816
      %1862 = vmatpush.msra.mxu0 %v1796
      %1863 = vmatmul.f32.gmra.mxu0 %v1807
      %v1864 = vpop.f32.mrf.mxu0
      %v1865 = vadd.f32 0.0, %v1864
      %1866 = vmatmul.f32.gmra.mxu0 %v1810
      %v1867 = vpop.f32.mrf.mxu0
      %v1868 = vadd.f32 0.0, %v1867
      %1869 = vdwg.mxu0
      %1870 = vmatpush.msra.mxu0 0.0
      %1871 = vmatpush.msra.mxu0 0.0
      %1872 = vmatpush.msra.mxu0 0.0
      %1873 = vmatpush.msra.mxu0 0.0
      %1874 = vmatpush.msra.mxu0 0.0
      %1875 = vmatpush.msra.mxu0 0.0
      %1876 = vmatpush.msra.mxu0 0.0
      %1877 = vmatpush.msra.mxu0 0.0
      %1878 = vmatpush.msra.mxu0 0.0
      %1879 = vmatpush.msra.mxu0 0.0
      %1880 = vmatpush.msra.mxu0 0.0
      %1881 = vmatpush.msra.mxu0 0.0
      %1882 = vmatpush.msra.mxu0 0.0
      %1883 = vmatpush.msra.mxu0 0.0
      %1884 = vmatpush.msra.mxu0 %v1819
      %1885 = vmatpush.msra.mxu0 %v1797
      %1886 = vmatmul.f32.gmra.mxu0 %v1807
      %v1887 = vpop.f32.mrf.mxu0
      %v1888 = vadd.f32 0.0, %v1887
      %1889 = vmatmul.f32.gmra.mxu0 %v1810
      %v1890 = vpop.f32.mrf.mxu0
      %v1891 = vadd.f32 0.0, %v1890
      %1892 = vdwg.mxu0
      %1893 = vmatpush.msra.mxu0 0.0
      %1894 = vmatpush.msra.mxu0 0.0
      %1895 = vmatpush.msra.mxu0 0.0
      %1896 = vmatpush.msra.mxu0 0.0
      %1897 = vmatpush.msra.mxu0 0.0
      %1898 = vmatpush.msra.mxu0 0.0
      %1899 = vmatpush.msra.mxu0 0.0
      %1900 = vmatpush.msra.mxu0 0.0
      %1901 = vmatpush.msra.mxu0 0.0
      %1902 = vmatpush.msra.mxu0 0.0
      %1903 = vmatpush.msra.mxu0 0.0
      %1904 = vmatpush.msra.mxu0 0.0
      %1905 = vmatpush.msra.mxu0 0.0
      %1906 = vmatpush.msra.mxu0 0.0
      %1907 = vmatpush.msra.mxu0 %v1822
      %1908 = vmatpush.msra.mxu0 %v1798
      %1909 = vmatmul.f32.gmra.mxu0 %v1807
      %v1910 = vpop.f32.mrf.mxu0
      %v1911 = vadd.f32 0.0, %v1910
      %1912 = vmatmul.f32.gmra.mxu0 %v1810
      %v1913 = vpop.f32.mrf.mxu0
      %v1914 = vadd.f32 0.0, %v1913
      %1915 = vdwg.mxu0
      %v1916 = vadd.f32 %v1751, %v1842
      %v1917 = vadd.f32 %v1752, %v1865
      %v1918 = vadd.f32 %v1753, %v1888
      %v1919 = vadd.f32 %v1754, %v1911
      %v1920 = vadd.f32 %v1755, %v1845
      %v1921 = vadd.f32 %v1756, %v1868
      %v1922 = vadd.f32 %v1757, %v1891
      %v1923 = vadd.f32 %v1758, %v1914
      %1924 = vrot.lane.b32.xlu0 %v252, 8
      %v1925 = vpop.permute.xlu0 %1924
      %1926 = vrot.lane.b32.xlu0 %v256, 8
      %v1927 = vpop.permute.xlu0 %1926
      %1928 = vrot.lane.b32.xlu0 %v253, 8
      %v1929 = vpop.permute.xlu0 %1928
      %1930 = vrot.lane.b32.xlu0 %v257, 8
      %v1931 = vpop.permute.xlu0 %1930
      %1932 = vrot.lane.b32.xlu0 %v254, 8
      %v1933 = vpop.permute.xlu0 %1932
      %1934 = vrot.lane.b32.xlu0 %v258, 8
      %v1935 = vpop.permute.xlu0 %1934
      %1936 = vrot.lane.b32.xlu0 %v255, 8
      %v1937 = vpop.permute.xlu0 %1936
      %1938 = vrot.lane.b32.xlu0 %v259, 8
      %v1939 = vpop.permute.xlu0 %1938
      %vm1940 = vcmp.lt.s32.totalorder %v289, 8
      %v1941 = vsel %vm1940, %v1933, %v1937
      %v1942 = vsel %vm1940, %v1935, %v1939
      %v1943 = vsel %vm1940, %v1929, %v1933
      %v1944 = vsel %vm1940, %v1931, %v1935
      %v1945 = vsel %vm1940, %v1925, %v1929
      %v1946 = vsel %vm1940, %v1927, %v1931
      %v1947 = vsel %vm1940, %v1937, %v1925
      %v1948 = vsel %vm1940, %v1939, %v1927
      %s1949 = scalar_lea.vmem %s1, 34
      %v1950 = vld [vmem:[%s1949] ss:$8 sm:$0xf]
      %v1952 = vperm.slane %v1950, 0
      %v1953 = vperm.slane %v1950, 1
      %v1954 = vperm.slane %v1950, 2
      %v1955 = vperm.slane %v1950, 3
      %v1960 = vmul.f32 %v1947, %v1952
      %v1961 = vmul.f32 %v1945, %v1953
      %v1962 = vmul.f32 %v1943, %v1954
      %v1963 = vmul.f32 %v1941, %v1955
      %v1964 = vmul.f32 %v1948, %v1952
      %v1965 = vmul.f32 %v1946, %v1953
      %v1966 = vmul.f32 %v1944, %v1954
      %v1967 = vmul.f32 %v1942, %v1955
      %s1968 = scalar_lea.vmem %s2, 160
      %v1969 = vld [vmem:[%s1968] sm:$0xff]
      %v1970 = vld [vmem:[%s1968 + $0x8] sm:$0xf]
      %v1972 = vsel %vm319, %v1969, 0
      %v1975 = vsel %vm319, %v1970, 0
      %v1978 = vsel %vm326, %v1964, 0
      %v1981 = vsel %vm326, %v1965, 0
      %v1984 = vsel %vm326, %v1966, 0
      %v1987 = vsel %vm326, %v1967, 0
      %1989 = vmatpush.msra.mxu0 0.0
      %1990 = vmatpush.msra.mxu0 0.0
      %1991 = vmatpush.msra.mxu0 0.0
      %1992 = vmatpush.msra.mxu0 0.0
      %1993 = vmatpush.msra.mxu0 0.0
      %1994 = vmatpush.msra.mxu0 0.0
      %1995 = vmatpush.msra.mxu0 0.0
      %1996 = vmatpush.msra.mxu0 0.0
      %1997 = vmatpush.msra.mxu0 0.0
      %1998 = vmatpush.msra.mxu0 0.0
      %1999 = vmatpush.msra.mxu0 0.0
      %2000 = vmatpush.msra.mxu0 0.0
      %2001 = vmatpush.msra.mxu0 0.0
      %2002 = vmatpush.msra.mxu0 0.0
      %2003 = vmatpush.msra.mxu0 %v1978
      %2004 = vmatpush.msra.mxu0 %v1960
      %2005 = vmatmul.f32.gmra.mxu0 %v1972
      %v2006 = vpop.f32.mrf.mxu0
      %v2007 = vadd.f32 0.0, %v2006
      %2008 = vmatmul.f32.gmra.mxu0 %v1975
      %v2009 = vpop.f32.mrf.mxu0
      %v2010 = vadd.f32 0.0, %v2009
      %2011 = vdwg.mxu0
      %2012 = vmatpush.msra.mxu0 0.0
      %2013 = vmatpush.msra.mxu0 0.0
      %2014 = vmatpush.msra.mxu0 0.0
      %2015 = vmatpush.msra.mxu0 0.0
      %2016 = vmatpush.msra.mxu0 0.0
      %2017 = vmatpush.msra.mxu0 0.0
      %2018 = vmatpush.msra.mxu0 0.0
      %2019 = vmatpush.msra.mxu0 0.0
      %2020 = vmatpush.msra.mxu0 0.0
      %2021 = vmatpush.msra.mxu0 0.0
      %2022 = vmatpush.msra.mxu0 0.0
      %2023 = vmatpush.msra.mxu0 0.0
      %2024 = vmatpush.msra.mxu0 0.0
      %2025 = vmatpush.msra.mxu0 0.0
      %2026 = vmatpush.msra.mxu0 %v1981
      %2027 = vmatpush.msra.mxu0 %v1961
      %2028 = vmatmul.f32.gmra.mxu0 %v1972
      %v2029 = vpop.f32.mrf.mxu0
      %v2030 = vadd.f32 0.0, %v2029
      %2031 = vmatmul.f32.gmra.mxu0 %v1975
      %v2032 = vpop.f32.mrf.mxu0
      %v2033 = vadd.f32 0.0, %v2032
      %2034 = vdwg.mxu0
      %2035 = vmatpush.msra.mxu0 0.0
      %2036 = vmatpush.msra.mxu0 0.0
      %2037 = vmatpush.msra.mxu0 0.0
      %2038 = vmatpush.msra.mxu0 0.0
      %2039 = vmatpush.msra.mxu0 0.0
      %2040 = vmatpush.msra.mxu0 0.0
      %2041 = vmatpush.msra.mxu0 0.0
      %2042 = vmatpush.msra.mxu0 0.0
      %2043 = vmatpush.msra.mxu0 0.0
      %2044 = vmatpush.msra.mxu0 0.0
      %2045 = vmatpush.msra.mxu0 0.0
      %2046 = vmatpush.msra.mxu0 0.0
      %2047 = vmatpush.msra.mxu0 0.0
      %2048 = vmatpush.msra.mxu0 0.0
      %2049 = vmatpush.msra.mxu0 %v1984
      %2050 = vmatpush.msra.mxu0 %v1962
      %2051 = vmatmul.f32.gmra.mxu0 %v1972
      %v2052 = vpop.f32.mrf.mxu0
      %v2053 = vadd.f32 0.0, %v2052
      %2054 = vmatmul.f32.gmra.mxu0 %v1975
      %v2055 = vpop.f32.mrf.mxu0
      %v2056 = vadd.f32 0.0, %v2055
      %2057 = vdwg.mxu0
      %2058 = vmatpush.msra.mxu0 0.0
      %2059 = vmatpush.msra.mxu0 0.0
      %2060 = vmatpush.msra.mxu0 0.0
      %2061 = vmatpush.msra.mxu0 0.0
      %2062 = vmatpush.msra.mxu0 0.0
      %2063 = vmatpush.msra.mxu0 0.0
      %2064 = vmatpush.msra.mxu0 0.0
      %2065 = vmatpush.msra.mxu0 0.0
      %2066 = vmatpush.msra.mxu0 0.0
      %2067 = vmatpush.msra.mxu0 0.0
      %2068 = vmatpush.msra.mxu0 0.0
      %2069 = vmatpush.msra.mxu0 0.0
      %2070 = vmatpush.msra.mxu0 0.0
      %2071 = vmatpush.msra.mxu0 0.0
      %2072 = vmatpush.msra.mxu0 %v1987
      %2073 = vmatpush.msra.mxu0 %v1963
      %2074 = vmatmul.f32.gmra.mxu0 %v1972
      %v2075 = vpop.f32.mrf.mxu0
      %v2076 = vadd.f32 0.0, %v2075
      %2077 = vmatmul.f32.gmra.mxu0 %v1975
      %v2078 = vpop.f32.mrf.mxu0
      %v2079 = vadd.f32 0.0, %v2078
      %2080 = vdwg.mxu0
      %v2081 = vadd.f32 %v1916, %v2007
      %v2082 = vadd.f32 %v1917, %v2030
      %v2083 = vadd.f32 %v1918, %v2053
      %v2084 = vadd.f32 %v1919, %v2076
      %v2085 = vadd.f32 %v1920, %v2010
      %v2086 = vadd.f32 %v1921, %v2033
      %v2087 = vadd.f32 %v1922, %v2056
      %v2088 = vadd.f32 %v1923, %v2079
      %2089 = vrot.lane.b32.xlu0 %v252, 7
      %v2090 = vpop.permute.xlu0 %2089
      %2091 = vrot.lane.b32.xlu0 %v256, 7
      %v2092 = vpop.permute.xlu0 %2091
      %2093 = vrot.lane.b32.xlu0 %v253, 7
      %v2094 = vpop.permute.xlu0 %2093
      %2095 = vrot.lane.b32.xlu0 %v257, 7
      %v2096 = vpop.permute.xlu0 %2095
      %2097 = vrot.lane.b32.xlu0 %v254, 7
      %v2098 = vpop.permute.xlu0 %2097
      %2099 = vrot.lane.b32.xlu0 %v258, 7
      %v2100 = vpop.permute.xlu0 %2099
      %2101 = vrot.lane.b32.xlu0 %v255, 7
      %v2102 = vpop.permute.xlu0 %2101
      %2103 = vrot.lane.b32.xlu0 %v259, 7
      %v2104 = vpop.permute.xlu0 %2103
      %vm2105 = vcmp.lt.s32.totalorder %v289, 7
      %v2106 = vsel %vm2105, %v2098, %v2102
      %v2107 = vsel %vm2105, %v2100, %v2104
      %v2108 = vsel %vm2105, %v2094, %v2098
      %v2109 = vsel %vm2105, %v2096, %v2100
      %v2110 = vsel %vm2105, %v2090, %v2094
      %v2111 = vsel %vm2105, %v2092, %v2096
      %v2112 = vsel %vm2105, %v2102, %v2090
      %v2113 = vsel %vm2105, %v2104, %v2092
      %s2114 = scalar_lea.vmem %s1, 35
      %v2115 = vld [vmem:[%s2114] ss:$8 sm:$0xf]
      %v2117 = vperm.slane %v2115, 0
      %v2118 = vperm.slane %v2115, 1
      %v2119 = vperm.slane %v2115, 2
      %v2120 = vperm.slane %v2115, 3
      %v2125 = vmul.f32 %v2112, %v2117
      %v2126 = vmul.f32 %v2110, %v2118
      %v2127 = vmul.f32 %v2108, %v2119
      %v2128 = vmul.f32 %v2106, %v2120
      %v2129 = vmul.f32 %v2113, %v2117
      %v2130 = vmul.f32 %v2111, %v2118
      %v2131 = vmul.f32 %v2109, %v2119
      %v2132 = vmul.f32 %v2107, %v2120
      %s2133 = scalar_lea.vmem %s2, 176
      %v2134 = vld [vmem:[%s2133] sm:$0xff]
      %v2135 = vld [vmem:[%s2133 + $0x8] sm:$0xf]
      %v2137 = vsel %vm319, %v2134, 0
      %v2140 = vsel %vm319, %v2135, 0
      %v2143 = vsel %vm326, %v2129, 0
      %v2146 = vsel %vm326, %v2130, 0
      %v2149 = vsel %vm326, %v2131, 0
      %v2152 = vsel %vm326, %v2132, 0
      %2154 = vmatpush.msra.mxu0 0.0
      %2155 = vmatpush.msra.mxu0 0.0
      %2156 = vmatpush.msra.mxu0 0.0
      %2157 = vmatpush.msra.mxu0 0.0
      %2158 = vmatpush.msra.mxu0 0.0
      %2159 = vmatpush.msra.mxu0 0.0
      %2160 = vmatpush.msra.mxu0 0.0
      %2161 = vmatpush.msra.mxu0 0.0
      %2162 = vmatpush.msra.mxu0 0.0
      %2163 = vmatpush.msra.mxu0 0.0
      %2164 = vmatpush.msra.mxu0 0.0
      %2165 = vmatpush.msra.mxu0 0.0
      %2166 = vmatpush.msra.mxu0 0.0
      %2167 = vmatpush.msra.mxu0 0.0
      %2168 = vmatpush.msra.mxu0 %v2143
      %2169 = vmatpush.msra.mxu0 %v2125
      %2170 = vmatmul.f32.gmra.mxu0 %v2137
      %v2171 = vpop.f32.mrf.mxu0
      %v2172 = vadd.f32 0.0, %v2171
      %2173 = vmatmul.f32.gmra.mxu0 %v2140
      %v2174 = vpop.f32.mrf.mxu0
      %v2175 = vadd.f32 0.0, %v2174
      %2176 = vdwg.mxu0
      %2177 = vmatpush.msra.mxu0 0.0
      %2178 = vmatpush.msra.mxu0 0.0
      %2179 = vmatpush.msra.mxu0 0.0
      %2180 = vmatpush.msra.mxu0 0.0
      %2181 = vmatpush.msra.mxu0 0.0
      %2182 = vmatpush.msra.mxu0 0.0
      %2183 = vmatpush.msra.mxu0 0.0
      %2184 = vmatpush.msra.mxu0 0.0
      %2185 = vmatpush.msra.mxu0 0.0
      %2186 = vmatpush.msra.mxu0 0.0
      %2187 = vmatpush.msra.mxu0 0.0
      %2188 = vmatpush.msra.mxu0 0.0
      %2189 = vmatpush.msra.mxu0 0.0
      %2190 = vmatpush.msra.mxu0 0.0
      %2191 = vmatpush.msra.mxu0 %v2146
      %2192 = vmatpush.msra.mxu0 %v2126
      %2193 = vmatmul.f32.gmra.mxu0 %v2137
      %v2194 = vpop.f32.mrf.mxu0
      %v2195 = vadd.f32 0.0, %v2194
      %2196 = vmatmul.f32.gmra.mxu0 %v2140
      %v2197 = vpop.f32.mrf.mxu0
      %v2198 = vadd.f32 0.0, %v2197
      %2199 = vdwg.mxu0
      %2200 = vmatpush.msra.mxu0 0.0
      %2201 = vmatpush.msra.mxu0 0.0
      %2202 = vmatpush.msra.mxu0 0.0
      %2203 = vmatpush.msra.mxu0 0.0
      %2204 = vmatpush.msra.mxu0 0.0
      %2205 = vmatpush.msra.mxu0 0.0
      %2206 = vmatpush.msra.mxu0 0.0
      %2207 = vmatpush.msra.mxu0 0.0
      %2208 = vmatpush.msra.mxu0 0.0
      %2209 = vmatpush.msra.mxu0 0.0
      %2210 = vmatpush.msra.mxu0 0.0
      %2211 = vmatpush.msra.mxu0 0.0
      %2212 = vmatpush.msra.mxu0 0.0
      %2213 = vmatpush.msra.mxu0 0.0
      %2214 = vmatpush.msra.mxu0 %v2149
      %2215 = vmatpush.msra.mxu0 %v2127
      %2216 = vmatmul.f32.gmra.mxu0 %v2137
      %v2217 = vpop.f32.mrf.mxu0
      %v2218 = vadd.f32 0.0, %v2217
      %2219 = vmatmul.f32.gmra.mxu0 %v2140
      %v2220 = vpop.f32.mrf.mxu0
      %v2221 = vadd.f32 0.0, %v2220
      %2222 = vdwg.mxu0
      %2223 = vmatpush.msra.mxu0 0.0
      %2224 = vmatpush.msra.mxu0 0.0
      %2225 = vmatpush.msra.mxu0 0.0
      %2226 = vmatpush.msra.mxu0 0.0
      %2227 = vmatpush.msra.mxu0 0.0
      %2228 = vmatpush.msra.mxu0 0.0
      %2229 = vmatpush.msra.mxu0 0.0
      %2230 = vmatpush.msra.mxu0 0.0
      %2231 = vmatpush.msra.mxu0 0.0
      %2232 = vmatpush.msra.mxu0 0.0
      %2233 = vmatpush.msra.mxu0 0.0
      %2234 = vmatpush.msra.mxu0 0.0
      %2235 = vmatpush.msra.mxu0 0.0
      %2236 = vmatpush.msra.mxu0 0.0
      %2237 = vmatpush.msra.mxu0 %v2152
      %2238 = vmatpush.msra.mxu0 %v2128
      %2239 = vmatmul.f32.gmra.mxu0 %v2137
      %v2240 = vpop.f32.mrf.mxu0
      %v2241 = vadd.f32 0.0, %v2240
      %2242 = vmatmul.f32.gmra.mxu0 %v2140
      %v2243 = vpop.f32.mrf.mxu0
      %v2244 = vadd.f32 0.0, %v2243
      %2245 = vdwg.mxu0
      %v2246 = vadd.f32 %v2081, %v2172
      %v2247 = vadd.f32 %v2082, %v2195
      %v2248 = vadd.f32 %v2083, %v2218
      %v2249 = vadd.f32 %v2084, %v2241
      %v2250 = vadd.f32 %v2085, %v2175
      %v2251 = vadd.f32 %v2086, %v2198
      %v2252 = vadd.f32 %v2087, %v2221
      %v2253 = vadd.f32 %v2088, %v2244
      %2254 = vrot.lane.b32.xlu0 %v252, 1
      %v2255 = vpop.permute.xlu0 %2254
      %2256 = vrot.lane.b32.xlu0 %v256, 1
      %v2257 = vpop.permute.xlu0 %2256
      %2258 = vrot.lane.b32.xlu0 %v253, 1
      %v2259 = vpop.permute.xlu0 %2258
      %2260 = vrot.lane.b32.xlu0 %v257, 1
      %v2261 = vpop.permute.xlu0 %2260
      %2262 = vrot.lane.b32.xlu0 %v254, 1
      %v2263 = vpop.permute.xlu0 %2262
      %2264 = vrot.lane.b32.xlu0 %v258, 1
      %v2265 = vpop.permute.xlu0 %2264
      %2266 = vrot.lane.b32.xlu0 %v255, 1
      %v2267 = vpop.permute.xlu0 %2266
      %2268 = vrot.lane.b32.xlu0 %v259, 1
      %v2269 = vpop.permute.xlu0 %2268
      %vm2270 = vcmp.lt.s32.totalorder %v289, 1
      %v2271 = vsel %vm2270, %v2263, %v2267
      %v2272 = vsel %vm2270, %v2265, %v2269
      %v2273 = vsel %vm2270, %v2259, %v2263
      %v2274 = vsel %vm2270, %v2261, %v2265
      %v2275 = vsel %vm2270, %v2255, %v2259
      %v2276 = vsel %vm2270, %v2257, %v2261
      %v2277 = vsel %vm2270, %v2267, %v2255
      %v2278 = vsel %vm2270, %v2269, %v2257
      %s2279 = scalar_lea.vmem %s1, 36
      %v2280 = vld [vmem:[%s2279] ss:$8 sm:$0xf]
      %v2282 = vperm.slane %v2280, 0
      %v2283 = vperm.slane %v2280, 1
      %v2284 = vperm.slane %v2280, 2
      %v2285 = vperm.slane %v2280, 3
      %v2290 = vmul.f32 %v2277, %v2282
      %v2291 = vmul.f32 %v2275, %v2283
      %v2292 = vmul.f32 %v2273, %v2284
      %v2293 = vmul.f32 %v2271, %v2285
      %v2294 = vmul.f32 %v2278, %v2282
      %v2295 = vmul.f32 %v2276, %v2283
      %v2296 = vmul.f32 %v2274, %v2284
      %v2297 = vmul.f32 %v2272, %v2285
      %s2298 = scalar_lea.vmem %s2, 192
      %v2299 = vld [vmem:[%s2298] sm:$0xff]
      %v2300 = vld [vmem:[%s2298 + $0x8] sm:$0xf]
      %v2302 = vsel %vm319, %v2299, 0
      %v2305 = vsel %vm319, %v2300, 0
      %v2308 = vsel %vm326, %v2294, 0
      %v2311 = vsel %vm326, %v2295, 0
      %v2314 = vsel %vm326, %v2296, 0
      %v2317 = vsel %vm326, %v2297, 0
      %2319 = vmatpush.msra.mxu0 0.0
      %2320 = vmatpush.msra.mxu0 0.0
      %2321 = vmatpush.msra.mxu0 0.0
      %2322 = vmatpush.msra.mxu0 0.0
      %2323 = vmatpush.msra.mxu0 0.0
      %2324 = vmatpush.msra.mxu0 0.0
      %2325 = vmatpush.msra.mxu0 0.0
      %2326 = vmatpush.msra.mxu0 0.0
      %2327 = vmatpush.msra.mxu0 0.0
      %2328 = vmatpush.msra.mxu0 0.0
      %2329 = vmatpush.msra.mxu0 0.0
      %2330 = vmatpush.msra.mxu0 0.0
      %2331 = vmatpush.msra.mxu0 0.0
      %2332 = vmatpush.msra.mxu0 0.0
      %2333 = vmatpush.msra.mxu0 %v2308
      %2334 = vmatpush.msra.mxu0 %v2290
      %2335 = vmatmul.f32.gmra.mxu0 %v2302
      %v2336 = vpop.f32.mrf.mxu0
      %v2337 = vadd.f32 0.0, %v2336
      %2338 = vmatmul.f32.gmra.mxu0 %v2305
      %v2339 = vpop.f32.mrf.mxu0
      %v2340 = vadd.f32 0.0, %v2339
      %2341 = vdwg.mxu0
      %2342 = vmatpush.msra.mxu0 0.0
      %2343 = vmatpush.msra.mxu0 0.0
      %2344 = vmatpush.msra.mxu0 0.0
      %2345 = vmatpush.msra.mxu0 0.0
      %2346 = vmatpush.msra.mxu0 0.0
      %2347 = vmatpush.msra.mxu0 0.0
      %2348 = vmatpush.msra.mxu0 0.0
      %2349 = vmatpush.msra.mxu0 0.0
      %2350 = vmatpush.msra.mxu0 0.0
      %2351 = vmatpush.msra.mxu0 0.0
      %2352 = vmatpush.msra.mxu0 0.0
      %2353 = vmatpush.msra.mxu0 0.0
      %2354 = vmatpush.msra.mxu0 0.0
      %2355 = vmatpush.msra.mxu0 0.0
      %2356 = vmatpush.msra.mxu0 %v2311
      %2357 = vmatpush.msra.mxu0 %v2291
      %2358 = vmatmul.f32.gmra.mxu0 %v2302
      %v2359 = vpop.f32.mrf.mxu0
      %v2360 = vadd.f32 0.0, %v2359
      %2361 = vmatmul.f32.gmra.mxu0 %v2305
      %v2362 = vpop.f32.mrf.mxu0
      %v2363 = vadd.f32 0.0, %v2362
      %2364 = vdwg.mxu0
      %2365 = vmatpush.msra.mxu0 0.0
      %2366 = vmatpush.msra.mxu0 0.0
      %2367 = vmatpush.msra.mxu0 0.0
      %2368 = vmatpush.msra.mxu0 0.0
      %2369 = vmatpush.msra.mxu0 0.0
      %2370 = vmatpush.msra.mxu0 0.0
      %2371 = vmatpush.msra.mxu0 0.0
      %2372 = vmatpush.msra.mxu0 0.0
      %2373 = vmatpush.msra.mxu0 0.0
      %2374 = vmatpush.msra.mxu0 0.0
      %2375 = vmatpush.msra.mxu0 0.0
      %2376 = vmatpush.msra.mxu0 0.0
      %2377 = vmatpush.msra.mxu0 0.0
      %2378 = vmatpush.msra.mxu0 0.0
      %2379 = vmatpush.msra.mxu0 %v2314
      %2380 = vmatpush.msra.mxu0 %v2292
      %2381 = vmatmul.f32.gmra.mxu0 %v2302
      %v2382 = vpop.f32.mrf.mxu0
      %v2383 = vadd.f32 0.0, %v2382
      %2384 = vmatmul.f32.gmra.mxu0 %v2305
      %v2385 = vpop.f32.mrf.mxu0
      %v2386 = vadd.f32 0.0, %v2385
      %2387 = vdwg.mxu0
      %2388 = vmatpush.msra.mxu0 0.0
      %2389 = vmatpush.msra.mxu0 0.0
      %2390 = vmatpush.msra.mxu0 0.0
      %2391 = vmatpush.msra.mxu0 0.0
      %2392 = vmatpush.msra.mxu0 0.0
      %2393 = vmatpush.msra.mxu0 0.0
      %2394 = vmatpush.msra.mxu0 0.0
      %2395 = vmatpush.msra.mxu0 0.0
      %2396 = vmatpush.msra.mxu0 0.0
      %2397 = vmatpush.msra.mxu0 0.0
      %2398 = vmatpush.msra.mxu0 0.0
      %2399 = vmatpush.msra.mxu0 0.0
      %2400 = vmatpush.msra.mxu0 0.0
      %2401 = vmatpush.msra.mxu0 0.0
      %2402 = vmatpush.msra.mxu0 %v2317
      %2403 = vmatpush.msra.mxu0 %v2293
      %2404 = vmatmul.f32.gmra.mxu0 %v2302
      %v2405 = vpop.f32.mrf.mxu0
      %v2406 = vadd.f32 0.0, %v2405
      %2407 = vmatmul.f32.gmra.mxu0 %v2305
      %v2408 = vpop.f32.mrf.mxu0
      %v2409 = vadd.f32 0.0, %v2408
      %2410 = vdwg.mxu0
      %v2411 = vadd.f32 %v2246, %v2337
      %v2412 = vadd.f32 %v2247, %v2360
      %v2413 = vadd.f32 %v2248, %v2383
      %v2414 = vadd.f32 %v2249, %v2406
      %v2415 = vadd.f32 %v2250, %v2340
      %v2416 = vadd.f32 %v2251, %v2363
      %v2417 = vadd.f32 %v2252, %v2386
      %v2418 = vadd.f32 %v2253, %v2409
      %s2419 = scalar_lea.vmem %s2, 208
      %v2420 = vld [vmem:[%s2419] sm:$0xff]
      %v2421 = vld [vmem:[%s2419 + $0x8] sm:$0xf]
      %v2423 = vsel %vm319, %v2420, 0
      %v2426 = vsel %vm319, %v2421, 0
      %v2429 = vsel %vm326, %v256, 0
      %v2432 = vsel %vm326, %v257, 0
      %v2435 = vsel %vm326, %v258, 0
      %v2438 = vsel %vm326, %v259, 0
      %2440 = vmatpush.msra.mxu0 0.0
      %2441 = vmatpush.msra.mxu0 0.0
      %2442 = vmatpush.msra.mxu0 0.0
      %2443 = vmatpush.msra.mxu0 0.0
      %2444 = vmatpush.msra.mxu0 0.0
      %2445 = vmatpush.msra.mxu0 0.0
      %2446 = vmatpush.msra.mxu0 0.0
      %2447 = vmatpush.msra.mxu0 0.0
      %2448 = vmatpush.msra.mxu0 0.0
      %2449 = vmatpush.msra.mxu0 0.0
      %2450 = vmatpush.msra.mxu0 0.0
      %2451 = vmatpush.msra.mxu0 0.0
      %2452 = vmatpush.msra.mxu0 0.0
      %2453 = vmatpush.msra.mxu0 0.0
      %2454 = vmatpush.msra.mxu0 %v2429
      %2455 = vmatpush.msra.mxu0 %v252
      %2456 = vmatmul.f32.gmra.mxu0 %v2423
      %v2457 = vpop.f32.mrf.mxu0
      %v2458 = vadd.f32 0.0, %v2457
      %2459 = vmatmul.f32.gmra.mxu0 %v2426
      %v2460 = vpop.f32.mrf.mxu0
      %v2461 = vadd.f32 0.0, %v2460
      %2462 = vdwg.mxu0
      %2463 = vmatpush.msra.mxu0 0.0
      %2464 = vmatpush.msra.mxu0 0.0
      %2465 = vmatpush.msra.mxu0 0.0
      %2466 = vmatpush.msra.mxu0 0.0
      %2467 = vmatpush.msra.mxu0 0.0
      %2468 = vmatpush.msra.mxu0 0.0
      %2469 = vmatpush.msra.mxu0 0.0
      %2470 = vmatpush.msra.mxu0 0.0
      %2471 = vmatpush.msra.mxu0 0.0
      %2472 = vmatpush.msra.mxu0 0.0
      %2473 = vmatpush.msra.mxu0 0.0
      %2474 = vmatpush.msra.mxu0 0.0
      %2475 = vmatpush.msra.mxu0 0.0
      %2476 = vmatpush.msra.mxu0 0.0
      %2477 = vmatpush.msra.mxu0 %v2432
      %2478 = vmatpush.msra.mxu0 %v253
      %2479 = vmatmul.f32.gmra.mxu0 %v2423
      %v2480 = vpop.f32.mrf.mxu0
      %v2481 = vadd.f32 0.0, %v2480
      %2482 = vmatmul.f32.gmra.mxu0 %v2426
      %v2483 = vpop.f32.mrf.mxu0
      %v2484 = vadd.f32 0.0, %v2483
      %2485 = vdwg.mxu0
      %2486 = vmatpush.msra.mxu0 0.0
      %2487 = vmatpush.msra.mxu0 0.0
      %2488 = vmatpush.msra.mxu0 0.0
      %2489 = vmatpush.msra.mxu0 0.0
      %2490 = vmatpush.msra.mxu0 0.0
      %2491 = vmatpush.msra.mxu0 0.0
      %2492 = vmatpush.msra.mxu0 0.0
      %2493 = vmatpush.msra.mxu0 0.0
      %2494 = vmatpush.msra.mxu0 0.0
      %2495 = vmatpush.msra.mxu0 0.0
      %2496 = vmatpush.msra.mxu0 0.0
      %2497 = vmatpush.msra.mxu0 0.0
      %2498 = vmatpush.msra.mxu0 0.0
      %2499 = vmatpush.msra.mxu0 0.0
      %2500 = vmatpush.msra.mxu0 %v2435
      %2501 = vmatpush.msra.mxu0 %v254
      %2502 = vmatmul.f32.gmra.mxu0 %v2423
      %v2503 = vpop.f32.mrf.mxu0
      %v2504 = vadd.f32 0.0, %v2503
      %2505 = vmatmul.f32.gmra.mxu0 %v2426
      %v2506 = vpop.f32.mrf.mxu0
      %v2507 = vadd.f32 0.0, %v2506
      %2508 = vdwg.mxu0
      %2509 = vmatpush.msra.mxu0 0.0
      %2510 = vmatpush.msra.mxu0 0.0
      %2511 = vmatpush.msra.mxu0 0.0
      %2512 = vmatpush.msra.mxu0 0.0
      %2513 = vmatpush.msra.mxu0 0.0
      %2514 = vmatpush.msra.mxu0 0.0
      %2515 = vmatpush.msra.mxu0 0.0
      %2516 = vmatpush.msra.mxu0 0.0
      %2517 = vmatpush.msra.mxu0 0.0
      %2518 = vmatpush.msra.mxu0 0.0
      %2519 = vmatpush.msra.mxu0 0.0
      %2520 = vmatpush.msra.mxu0 0.0
      %2521 = vmatpush.msra.mxu0 0.0
      %2522 = vmatpush.msra.mxu0 0.0
      %2523 = vmatpush.msra.mxu0 %v2438
      %2524 = vmatpush.msra.mxu0 %v255
      %2525 = vmatmul.f32.gmra.mxu0 %v2423
      %v2526 = vpop.f32.mrf.mxu0
      %v2527 = vadd.f32 0.0, %v2526
      %2528 = vmatmul.f32.gmra.mxu0 %v2426
      %v2529 = vpop.f32.mrf.mxu0
      %v2530 = vadd.f32 0.0, %v2529
      %2531 = vdwg.mxu0
      %v2532 = vadd.f32 %v2411, %v2458
      %v2533 = vadd.f32 %v2412, %v2481
      %v2534 = vadd.f32 %v2413, %v2504
      %v2535 = vadd.f32 %v2414, %v2527
      %v2536 = vadd.f32 %v2415, %v2461
      %v2537 = vadd.f32 %v2416, %v2484
      %v2538 = vadd.f32 %v2417, %v2507
      %v2539 = vadd.f32 %v2418, %v2530
      %2540 = vrot.lane.b32.xlu0 %v252, 127
      %v2541 = vpop.permute.xlu0 %2540
      %2542 = vrot.lane.b32.xlu0 %v256, 127
      %v2543 = vpop.permute.xlu0 %2542
      %2544 = vrot.lane.b32.xlu0 %v253, 127
      %v2545 = vpop.permute.xlu0 %2544
      %2546 = vrot.lane.b32.xlu0 %v257, 127
      %v2547 = vpop.permute.xlu0 %2546
      %2548 = vrot.lane.b32.xlu0 %v254, 127
      %v2549 = vpop.permute.xlu0 %2548
      %2550 = vrot.lane.b32.xlu0 %v258, 127
      %v2551 = vpop.permute.xlu0 %2550
      %2552 = vrot.lane.b32.xlu0 %v255, 127
      %v2553 = vpop.permute.xlu0 %2552
      %2554 = vrot.lane.b32.xlu0 %v259, 127
      %v2555 = vpop.permute.xlu0 %2554
      %vm2556 = vcmp.lt.s32.totalorder %v289, 127
      %v2557 = vsel %vm2556, %v2549, %v2553
      %v2558 = vsel %vm2556, %v2551, %v2555
      %v2559 = vsel %vm2556, %v2545, %v2549
      %v2560 = vsel %vm2556, %v2547, %v2551
      %v2561 = vsel %vm2556, %v2541, %v2545
      %v2562 = vsel %vm2556, %v2543, %v2547
      %v2563 = vsel %vm2556, %v2553, %v2541
      %v2564 = vsel %vm2556, %v2555, %v2543
      %s2565 = scalar_lea.vmem %s1, 38
      %v2566 = vld [vmem:[%s2565] ss:$8 sm:$0xf]
      %v2568 = vperm.slane %v2566, 0
      %v2569 = vperm.slane %v2566, 1
      %v2570 = vperm.slane %v2566, 2
      %v2571 = vperm.slane %v2566, 3
      %v2576 = vmul.f32 %v2561, %v2568
      %v2577 = vmul.f32 %v2559, %v2569
      %v2578 = vmul.f32 %v2557, %v2570
      %v2579 = vmul.f32 %v2563, %v2571
      %v2580 = vmul.f32 %v2562, %v2568
      %v2581 = vmul.f32 %v2560, %v2569
      %v2582 = vmul.f32 %v2558, %v2570
      %v2583 = vmul.f32 %v2564, %v2571
      %s2584 = scalar_lea.vmem %s2, 224
      %v2585 = vld [vmem:[%s2584] sm:$0xff]
      %v2586 = vld [vmem:[%s2584 + $0x8] sm:$0xf]
      %v2588 = vsel %vm319, %v2585, 0
      %v2591 = vsel %vm319, %v2586, 0
      %v2594 = vsel %vm326, %v2580, 0
      %v2597 = vsel %vm326, %v2581, 0
      %v2600 = vsel %vm326, %v2582, 0
      %v2603 = vsel %vm326, %v2583, 0
      %2605 = vmatpush.msra.mxu0 0.0
      %2606 = vmatpush.msra.mxu0 0.0
      %2607 = vmatpush.msra.mxu0 0.0
      %2608 = vmatpush.msra.mxu0 0.0
      %2609 = vmatpush.msra.mxu0 0.0
      %2610 = vmatpush.msra.mxu0 0.0
      %2611 = vmatpush.msra.mxu0 0.0
      %2612 = vmatpush.msra.mxu0 0.0
      %2613 = vmatpush.msra.mxu0 0.0
      %2614 = vmatpush.msra.mxu0 0.0
      %2615 = vmatpush.msra.mxu0 0.0
      %2616 = vmatpush.msra.mxu0 0.0
      %2617 = vmatpush.msra.mxu0 0.0
      %2618 = vmatpush.msra.mxu0 0.0
      %2619 = vmatpush.msra.mxu0 %v2594
      %2620 = vmatpush.msra.mxu0 %v2576
      %2621 = vmatmul.f32.gmra.mxu0 %v2588
      %v2622 = vpop.f32.mrf.mxu0
      %v2623 = vadd.f32 0.0, %v2622
      %2624 = vmatmul.f32.gmra.mxu0 %v2591
      %v2625 = vpop.f32.mrf.mxu0
      %v2626 = vadd.f32 0.0, %v2625
      %2627 = vdwg.mxu0
      %2628 = vmatpush.msra.mxu0 0.0
      %2629 = vmatpush.msra.mxu0 0.0
      %2630 = vmatpush.msra.mxu0 0.0
      %2631 = vmatpush.msra.mxu0 0.0
      %2632 = vmatpush.msra.mxu0 0.0
      %2633 = vmatpush.msra.mxu0 0.0
      %2634 = vmatpush.msra.mxu0 0.0
      %2635 = vmatpush.msra.mxu0 0.0
      %2636 = vmatpush.msra.mxu0 0.0
      %2637 = vmatpush.msra.mxu0 0.0
      %2638 = vmatpush.msra.mxu0 0.0
      %2639 = vmatpush.msra.mxu0 0.0
      %2640 = vmatpush.msra.mxu0 0.0
      %2641 = vmatpush.msra.mxu0 0.0
      %2642 = vmatpush.msra.mxu0 %v2597
      %2643 = vmatpush.msra.mxu0 %v2577
      %2644 = vmatmul.f32.gmra.mxu0 %v2588
      %v2645 = vpop.f32.mrf.mxu0
      %v2646 = vadd.f32 0.0, %v2645
      %2647 = vmatmul.f32.gmra.mxu0 %v2591
      %v2648 = vpop.f32.mrf.mxu0
      %v2649 = vadd.f32 0.0, %v2648
      %2650 = vdwg.mxu0
      %2651 = vmatpush.msra.mxu0 0.0
      %2652 = vmatpush.msra.mxu0 0.0
      %2653 = vmatpush.msra.mxu0 0.0
      %2654 = vmatpush.msra.mxu0 0.0
      %2655 = vmatpush.msra.mxu0 0.0
      %2656 = vmatpush.msra.mxu0 0.0
      %2657 = vmatpush.msra.mxu0 0.0
      %2658 = vmatpush.msra.mxu0 0.0
      %2659 = vmatpush.msra.mxu0 0.0
      %2660 = vmatpush.msra.mxu0 0.0
      %2661 = vmatpush.msra.mxu0 0.0
      %2662 = vmatpush.msra.mxu0 0.0
      %2663 = vmatpush.msra.mxu0 0.0
      %2664 = vmatpush.msra.mxu0 0.0
      %2665 = vmatpush.msra.mxu0 %v2600
      %2666 = vmatpush.msra.mxu0 %v2578
      %2667 = vmatmul.f32.gmra.mxu0 %v2588
      %v2668 = vpop.f32.mrf.mxu0
      %v2669 = vadd.f32 0.0, %v2668
      %2670 = vmatmul.f32.gmra.mxu0 %v2591
      %v2671 = vpop.f32.mrf.mxu0
      %v2672 = vadd.f32 0.0, %v2671
      %2673 = vdwg.mxu0
      %2674 = vmatpush.msra.mxu0 0.0
      %2675 = vmatpush.msra.mxu0 0.0
      %2676 = vmatpush.msra.mxu0 0.0
      %2677 = vmatpush.msra.mxu0 0.0
      %2678 = vmatpush.msra.mxu0 0.0
      %2679 = vmatpush.msra.mxu0 0.0
      %2680 = vmatpush.msra.mxu0 0.0
      %2681 = vmatpush.msra.mxu0 0.0
      %2682 = vmatpush.msra.mxu0 0.0
      %2683 = vmatpush.msra.mxu0 0.0
      %2684 = vmatpush.msra.mxu0 0.0
      %2685 = vmatpush.msra.mxu0 0.0
      %2686 = vmatpush.msra.mxu0 0.0
      %2687 = vmatpush.msra.mxu0 0.0
      %2688 = vmatpush.msra.mxu0 %v2603
      %2689 = vmatpush.msra.mxu0 %v2579
      %2690 = vmatmul.f32.gmra.mxu0 %v2588
      %v2691 = vpop.f32.mrf.mxu0
      %v2692 = vadd.f32 0.0, %v2691
      %2693 = vmatmul.f32.gmra.mxu0 %v2591
      %v2694 = vpop.f32.mrf.mxu0
      %v2695 = vadd.f32 0.0, %v2694
      %2696 = vdwg.mxu0
      %v2697 = vadd.f32 %v2532, %v2623
      %v2698 = vadd.f32 %v2533, %v2646
      %v2699 = vadd.f32 %v2534, %v2669
      %v2700 = vadd.f32 %v2535, %v2692
      %v2701 = vadd.f32 %v2536, %v2626
      %v2702 = vadd.f32 %v2537, %v2649
      %v2703 = vadd.f32 %v2538, %v2672
      %v2704 = vadd.f32 %v2539, %v2695
      %2705 = vrot.lane.b32.xlu0 %v252, 121
      %v2706 = vpop.permute.xlu0 %2705
      %2707 = vrot.lane.b32.xlu0 %v256, 121
      %v2708 = vpop.permute.xlu0 %2707
      %2709 = vrot.lane.b32.xlu0 %v253, 121
      %v2710 = vpop.permute.xlu0 %2709
      %2711 = vrot.lane.b32.xlu0 %v257, 121
      %v2712 = vpop.permute.xlu0 %2711
      %2713 = vrot.lane.b32.xlu0 %v254, 121
      %v2714 = vpop.permute.xlu0 %2713
      %2715 = vrot.lane.b32.xlu0 %v258, 121
      %v2716 = vpop.permute.xlu0 %2715
      %2717 = vrot.lane.b32.xlu0 %v255, 121
      %v2718 = vpop.permute.xlu0 %2717
      %2719 = vrot.lane.b32.xlu0 %v259, 121
      %v2720 = vpop.permute.xlu0 %2719
      %vm2721 = vcmp.lt.s32.totalorder %v289, 121
      %v2722 = vsel %vm2721, %v2714, %v2718
      %v2723 = vsel %vm2721, %v2716, %v2720
      %v2724 = vsel %vm2721, %v2710, %v2714
      %v2725 = vsel %vm2721, %v2712, %v2716
      %v2726 = vsel %vm2721, %v2706, %v2710
      %v2727 = vsel %vm2721, %v2708, %v2712
      %v2728 = vsel %vm2721, %v2718, %v2706
      %v2729 = vsel %vm2721, %v2720, %v2708
      %s2730 = scalar_lea.vmem %s1, 39
      %v2731 = vld [vmem:[%s2730] ss:$8 sm:$0xf]
      %v2733 = vperm.slane %v2731, 0
      %v2734 = vperm.slane %v2731, 1
      %v2735 = vperm.slane %v2731, 2
      %v2736 = vperm.slane %v2731, 3
      %v2741 = vmul.f32 %v2726, %v2733
      %v2742 = vmul.f32 %v2724, %v2734
      %v2743 = vmul.f32 %v2722, %v2735
      %v2744 = vmul.f32 %v2728, %v2736
      %v2745 = vmul.f32 %v2727, %v2733
      %v2746 = vmul.f32 %v2725, %v2734
      %v2747 = vmul.f32 %v2723, %v2735
      %v2748 = vmul.f32 %v2729, %v2736
      %s2749 = scalar_lea.vmem %s2, 240
      %v2750 = vld [vmem:[%s2749] sm:$0xff]
      %v2751 = vld [vmem:[%s2749 + $0x8] sm:$0xf]
      %v2753 = vsel %vm319, %v2750, 0
      %v2756 = vsel %vm319, %v2751, 0
      %v2759 = vsel %vm326, %v2745, 0
      %v2762 = vsel %vm326, %v2746, 0
      %v2765 = vsel %vm326, %v2747, 0
      %v2768 = vsel %vm326, %v2748, 0
      %2770 = vmatpush.msra.mxu0 0.0
      %2771 = vmatpush.msra.mxu0 0.0
      %2772 = vmatpush.msra.mxu0 0.0
      %2773 = vmatpush.msra.mxu0 0.0
      %2774 = vmatpush.msra.mxu0 0.0
      %2775 = vmatpush.msra.mxu0 0.0
      %2776 = vmatpush.msra.mxu0 0.0
      %2777 = vmatpush.msra.mxu0 0.0
      %2778 = vmatpush.msra.mxu0 0.0
      %2779 = vmatpush.msra.mxu0 0.0
      %2780 = vmatpush.msra.mxu0 0.0
      %2781 = vmatpush.msra.mxu0 0.0
      %2782 = vmatpush.msra.mxu0 0.0
      %2783 = vmatpush.msra.mxu0 0.0
      %2784 = vmatpush.msra.mxu0 %v2759
      %2785 = vmatpush.msra.mxu0 %v2741
      %2786 = vmatmul.f32.gmra.mxu0 %v2753
      %v2787 = vpop.f32.mrf.mxu0
      %v2788 = vadd.f32 0.0, %v2787
      %2789 = vmatmul.f32.gmra.mxu0 %v2756
      %v2790 = vpop.f32.mrf.mxu0
      %v2791 = vadd.f32 0.0, %v2790
      %2792 = vdwg.mxu0
      %2793 = vmatpush.msra.mxu0 0.0
      %2794 = vmatpush.msra.mxu0 0.0
      %2795 = vmatpush.msra.mxu0 0.0
      %2796 = vmatpush.msra.mxu0 0.0
      %2797 = vmatpush.msra.mxu0 0.0
      %2798 = vmatpush.msra.mxu0 0.0
      %2799 = vmatpush.msra.mxu0 0.0
      %2800 = vmatpush.msra.mxu0 0.0
      %2801 = vmatpush.msra.mxu0 0.0
      %2802 = vmatpush.msra.mxu0 0.0
      %2803 = vmatpush.msra.mxu0 0.0
      %2804 = vmatpush.msra.mxu0 0.0
      %2805 = vmatpush.msra.mxu0 0.0
      %2806 = vmatpush.msra.mxu0 0.0
      %2807 = vmatpush.msra.mxu0 %v2762
      %2808 = vmatpush.msra.mxu0 %v2742
      %2809 = vmatmul.f32.gmra.mxu0 %v2753
      %v2810 = vpop.f32.mrf.mxu0
      %v2811 = vadd.f32 0.0, %v2810
      %2812 = vmatmul.f32.gmra.mxu0 %v2756
      %v2813 = vpop.f32.mrf.mxu0
      %v2814 = vadd.f32 0.0, %v2813
      %2815 = vdwg.mxu0
      %2816 = vmatpush.msra.mxu0 0.0
      %2817 = vmatpush.msra.mxu0 0.0
      %2818 = vmatpush.msra.mxu0 0.0
      %2819 = vmatpush.msra.mxu0 0.0
      %2820 = vmatpush.msra.mxu0 0.0
      %2821 = vmatpush.msra.mxu0 0.0
      %2822 = vmatpush.msra.mxu0 0.0
      %2823 = vmatpush.msra.mxu0 0.0
      %2824 = vmatpush.msra.mxu0 0.0
      %2825 = vmatpush.msra.mxu0 0.0
      %2826 = vmatpush.msra.mxu0 0.0
      %2827 = vmatpush.msra.mxu0 0.0
      %2828 = vmatpush.msra.mxu0 0.0
      %2829 = vmatpush.msra.mxu0 0.0
      %2830 = vmatpush.msra.mxu0 %v2765
      %2831 = vmatpush.msra.mxu0 %v2743
      %2832 = vmatmul.f32.gmra.mxu0 %v2753
      %v2833 = vpop.f32.mrf.mxu0
      %v2834 = vadd.f32 0.0, %v2833
      %2835 = vmatmul.f32.gmra.mxu0 %v2756
      %v2836 = vpop.f32.mrf.mxu0
      %v2837 = vadd.f32 0.0, %v2836
      %2838 = vdwg.mxu0
      %2839 = vmatpush.msra.mxu0 0.0
      %2840 = vmatpush.msra.mxu0 0.0
      %2841 = vmatpush.msra.mxu0 0.0
      %2842 = vmatpush.msra.mxu0 0.0
      %2843 = vmatpush.msra.mxu0 0.0
      %2844 = vmatpush.msra.mxu0 0.0
      %2845 = vmatpush.msra.mxu0 0.0
      %2846 = vmatpush.msra.mxu0 0.0
      %2847 = vmatpush.msra.mxu0 0.0
      %2848 = vmatpush.msra.mxu0 0.0
      %2849 = vmatpush.msra.mxu0 0.0
      %2850 = vmatpush.msra.mxu0 0.0
      %2851 = vmatpush.msra.mxu0 0.0
      %2852 = vmatpush.msra.mxu0 0.0
      %2853 = vmatpush.msra.mxu0 %v2768
      %2854 = vmatpush.msra.mxu0 %v2744
      %2855 = vmatmul.f32.gmra.mxu0 %v2753
      %v2856 = vpop.f32.mrf.mxu0
      %v2857 = vadd.f32 0.0, %v2856
      %2858 = vmatmul.f32.gmra.mxu0 %v2756
      %v2859 = vpop.f32.mrf.mxu0
      %v2860 = vadd.f32 0.0, %v2859
      %2861 = vdwg.mxu0
      %v2862 = vadd.f32 %v2697, %v2788
      %v2863 = vadd.f32 %v2698, %v2811
      %v2864 = vadd.f32 %v2699, %v2834
      %v2865 = vadd.f32 %v2700, %v2857
      %v2866 = vadd.f32 %v2701, %v2791
      %v2867 = vadd.f32 %v2702, %v2814
      %v2868 = vadd.f32 %v2703, %v2837
      %v2869 = vadd.f32 %v2704, %v2860
      %2870 = vrot.lane.b32.xlu0 %v252, 120
      %v2871 = vpop.permute.xlu0 %2870
      %2872 = vrot.lane.b32.xlu0 %v256, 120
      %v2873 = vpop.permute.xlu0 %2872
      %2874 = vrot.lane.b32.xlu0 %v253, 120
      %v2875 = vpop.permute.xlu0 %2874
      %2876 = vrot.lane.b32.xlu0 %v257, 120
      %v2877 = vpop.permute.xlu0 %2876
      %2878 = vrot.lane.b32.xlu0 %v254, 120
      %v2879 = vpop.permute.xlu0 %2878
      %2880 = vrot.lane.b32.xlu0 %v258, 120
      %v2881 = vpop.permute.xlu0 %2880
      %2882 = vrot.lane.b32.xlu0 %v255, 120
      %v2883 = vpop.permute.xlu0 %2882
      %2884 = vrot.lane.b32.xlu0 %v259, 120
      %v2885 = vpop.permute.xlu0 %2884
      %vm2886 = vcmp.lt.s32.totalorder %v289, 120
      %v2887 = vsel %vm2886, %v2879, %v2883
      %v2888 = vsel %vm2886, %v2881, %v2885
      %v2889 = vsel %vm2886, %v2875, %v2879
      %v2890 = vsel %vm2886, %v2877, %v2881
      %v2891 = vsel %vm2886, %v2871, %v2875
      %v2892 = vsel %vm2886, %v2873, %v2877
      %v2893 = vsel %vm2886, %v2883, %v2871
      %v2894 = vsel %vm2886, %v2885, %v2873
      %s2895 = scalar_lea.vmem %s1, 64
      %v2896 = vld [vmem:[%s2895] ss:$8 sm:$0xf]
      %v2898 = vperm.slane %v2896, 0
      %v2899 = vperm.slane %v2896, 1
      %v2900 = vperm.slane %v2896, 2
      %v2901 = vperm.slane %v2896, 3
      %v2906 = vmul.f32 %v2891, %v2898
      %v2907 = vmul.f32 %v2889, %v2899
      %v2908 = vmul.f32 %v2887, %v2900
      %v2909 = vmul.f32 %v2893, %v2901
      %v2910 = vmul.f32 %v2892, %v2898
      %v2911 = vmul.f32 %v2890, %v2899
      %v2912 = vmul.f32 %v2888, %v2900
      %v2913 = vmul.f32 %v2894, %v2901
      %s2914 = scalar_lea.vmem %s2, 256
      %v2915 = vld [vmem:[%s2914] sm:$0xff]
      %v2916 = vld [vmem:[%s2914 + $0x8] sm:$0xf]
      %v2918 = vsel %vm319, %v2915, 0
      %v2921 = vsel %vm319, %v2916, 0
      %v2924 = vsel %vm326, %v2910, 0
      %v2927 = vsel %vm326, %v2911, 0
      %v2930 = vsel %vm326, %v2912, 0
      %v2933 = vsel %vm326, %v2913, 0
      %2935 = vmatpush.msra.mxu0 0.0
      %2936 = vmatpush.msra.mxu0 0.0
      %2937 = vmatpush.msra.mxu0 0.0
      %2938 = vmatpush.msra.mxu0 0.0
      %2939 = vmatpush.msra.mxu0 0.0
      %2940 = vmatpush.msra.mxu0 0.0
      %2941 = vmatpush.msra.mxu0 0.0
      %2942 = vmatpush.msra.mxu0 0.0
      %2943 = vmatpush.msra.mxu0 0.0
      %2944 = vmatpush.msra.mxu0 0.0
      %2945 = vmatpush.msra.mxu0 0.0
      %2946 = vmatpush.msra.mxu0 0.0
      %2947 = vmatpush.msra.mxu0 0.0
      %2948 = vmatpush.msra.mxu0 0.0
      %2949 = vmatpush.msra.mxu0 %v2924
      %2950 = vmatpush.msra.mxu0 %v2906
      %2951 = vmatmul.f32.gmra.mxu0 %v2918
      %v2952 = vpop.f32.mrf.mxu0
      %v2953 = vadd.f32 0.0, %v2952
      %2954 = vmatmul.f32.gmra.mxu0 %v2921
      %v2955 = vpop.f32.mrf.mxu0
      %v2956 = vadd.f32 0.0, %v2955
      %2957 = vdwg.mxu0
      %2958 = vmatpush.msra.mxu0 0.0
      %2959 = vmatpush.msra.mxu0 0.0
      %2960 = vmatpush.msra.mxu0 0.0
      %2961 = vmatpush.msra.mxu0 0.0
      %2962 = vmatpush.msra.mxu0 0.0
      %2963 = vmatpush.msra.mxu0 0.0
      %2964 = vmatpush.msra.mxu0 0.0
      %2965 = vmatpush.msra.mxu0 0.0
      %2966 = vmatpush.msra.mxu0 0.0
      %2967 = vmatpush.msra.mxu0 0.0
      %2968 = vmatpush.msra.mxu0 0.0
      %2969 = vmatpush.msra.mxu0 0.0
      %2970 = vmatpush.msra.mxu0 0.0
      %2971 = vmatpush.msra.mxu0 0.0
      %2972 = vmatpush.msra.mxu0 %v2927
      %2973 = vmatpush.msra.mxu0 %v2907
      %2974 = vmatmul.f32.gmra.mxu0 %v2918
      %v2975 = vpop.f32.mrf.mxu0
      %v2976 = vadd.f32 0.0, %v2975
      %2977 = vmatmul.f32.gmra.mxu0 %v2921
      %v2978 = vpop.f32.mrf.mxu0
      %v2979 = vadd.f32 0.0, %v2978
      %2980 = vdwg.mxu0
      %2981 = vmatpush.msra.mxu0 0.0
      %2982 = vmatpush.msra.mxu0 0.0
      %2983 = vmatpush.msra.mxu0 0.0
      %2984 = vmatpush.msra.mxu0 0.0
      %2985 = vmatpush.msra.mxu0 0.0
      %2986 = vmatpush.msra.mxu0 0.0
      %2987 = vmatpush.msra.mxu0 0.0
      %2988 = vmatpush.msra.mxu0 0.0
      %2989 = vmatpush.msra.mxu0 0.0
      %2990 = vmatpush.msra.mxu0 0.0
      %2991 = vmatpush.msra.mxu0 0.0
      %2992 = vmatpush.msra.mxu0 0.0
      %2993 = vmatpush.msra.mxu0 0.0
      %2994 = vmatpush.msra.mxu0 0.0
      %2995 = vmatpush.msra.mxu0 %v2930
      %2996 = vmatpush.msra.mxu0 %v2908
      %2997 = vmatmul.f32.gmra.mxu0 %v2918
      %v2998 = vpop.f32.mrf.mxu0
      %v2999 = vadd.f32 0.0, %v2998
      %3000 = vmatmul.f32.gmra.mxu0 %v2921
      %v3001 = vpop.f32.mrf.mxu0
      %v3002 = vadd.f32 0.0, %v3001
      %3003 = vdwg.mxu0
      %3004 = vmatpush.msra.mxu0 0.0
      %3005 = vmatpush.msra.mxu0 0.0
      %3006 = vmatpush.msra.mxu0 0.0
      %3007 = vmatpush.msra.mxu0 0.0
      %3008 = vmatpush.msra.mxu0 0.0
      %3009 = vmatpush.msra.mxu0 0.0
      %3010 = vmatpush.msra.mxu0 0.0
      %3011 = vmatpush.msra.mxu0 0.0
      %3012 = vmatpush.msra.mxu0 0.0
      %3013 = vmatpush.msra.mxu0 0.0
      %3014 = vmatpush.msra.mxu0 0.0
      %3015 = vmatpush.msra.mxu0 0.0
      %3016 = vmatpush.msra.mxu0 0.0
      %3017 = vmatpush.msra.mxu0 0.0
      %3018 = vmatpush.msra.mxu0 %v2933
      %3019 = vmatpush.msra.mxu0 %v2909
      %3020 = vmatmul.f32.gmra.mxu0 %v2918
      %v3021 = vpop.f32.mrf.mxu0
      %v3022 = vadd.f32 0.0, %v3021
      %3023 = vmatmul.f32.gmra.mxu0 %v2921
      %v3024 = vpop.f32.mrf.mxu0
      %v3025 = vadd.f32 0.0, %v3024
      %3026 = vdwg.mxu0
      %v3027 = vadd.f32 %v2862, %v2953
      %v3028 = vadd.f32 %v2863, %v2976
      %v3029 = vadd.f32 %v2864, %v2999
      %v3030 = vadd.f32 %v2865, %v3022
      %v3031 = vadd.f32 %v2866, %v2956
      %v3032 = vadd.f32 %v2867, %v2979
      %v3033 = vadd.f32 %v2868, %v3002
      %v3034 = vadd.f32 %v2869, %v3025
      %3035 = vrot.lane.b32.xlu0 %v252, 119
      %v3036 = vpop.permute.xlu0 %3035
      %3037 = vrot.lane.b32.xlu0 %v256, 119
      %v3038 = vpop.permute.xlu0 %3037
      %3039 = vrot.lane.b32.xlu0 %v253, 119
      %v3040 = vpop.permute.xlu0 %3039
      %3041 = vrot.lane.b32.xlu0 %v257, 119
      %v3042 = vpop.permute.xlu0 %3041
      %3043 = vrot.lane.b32.xlu0 %v254, 119
      %v3044 = vpop.permute.xlu0 %3043
      %3045 = vrot.lane.b32.xlu0 %v258, 119
      %v3046 = vpop.permute.xlu0 %3045
      %3047 = vrot.lane.b32.xlu0 %v255, 119
      %v3048 = vpop.permute.xlu0 %3047
      %3049 = vrot.lane.b32.xlu0 %v259, 119
      %v3050 = vpop.permute.xlu0 %3049
      %vm3051 = vcmp.lt.s32.totalorder %v289, 119
      %v3052 = vsel %vm3051, %v3044, %v3048
      %v3053 = vsel %vm3051, %v3046, %v3050
      %v3054 = vsel %vm3051, %v3040, %v3044
      %v3055 = vsel %vm3051, %v3042, %v3046
      %v3056 = vsel %vm3051, %v3036, %v3040
      %v3057 = vsel %vm3051, %v3038, %v3042
      %v3058 = vsel %vm3051, %v3048, %v3036
      %v3059 = vsel %vm3051, %v3050, %v3038
      %s3060 = scalar_lea.vmem %s1, 65
      %v3061 = vld [vmem:[%s3060] ss:$8 sm:$0xf]
      %v3063 = vperm.slane %v3061, 0
      %v3064 = vperm.slane %v3061, 1
      %v3065 = vperm.slane %v3061, 2
      %v3066 = vperm.slane %v3061, 3
      %v3071 = vmul.f32 %v3056, %v3063
      %v3072 = vmul.f32 %v3054, %v3064
      %v3073 = vmul.f32 %v3052, %v3065
      %v3074 = vmul.f32 %v3058, %v3066
      %v3075 = vmul.f32 %v3057, %v3063
      %v3076 = vmul.f32 %v3055, %v3064
      %v3077 = vmul.f32 %v3053, %v3065
      %v3078 = vmul.f32 %v3059, %v3066
      %s3079 = scalar_lea.vmem %s2, 272
      %v3080 = vld [vmem:[%s3079] sm:$0xff]
      %v3081 = vld [vmem:[%s3079 + $0x8] sm:$0xf]
      %v3083 = vsel %vm319, %v3080, 0
      %v3086 = vsel %vm319, %v3081, 0
      %v3089 = vsel %vm326, %v3075, 0
      %v3092 = vsel %vm326, %v3076, 0
      %v3095 = vsel %vm326, %v3077, 0
      %v3098 = vsel %vm326, %v3078, 0
      %3100 = vmatpush.msra.mxu0 0.0
      %3101 = vmatpush.msra.mxu0 0.0
      %3102 = vmatpush.msra.mxu0 0.0
      %3103 = vmatpush.msra.mxu0 0.0
      %3104 = vmatpush.msra.mxu0 0.0
      %3105 = vmatpush.msra.mxu0 0.0
      %3106 = vmatpush.msra.mxu0 0.0
      %3107 = vmatpush.msra.mxu0 0.0
      %3108 = vmatpush.msra.mxu0 0.0
      %3109 = vmatpush.msra.mxu0 0.0
      %3110 = vmatpush.msra.mxu0 0.0
      %3111 = vmatpush.msra.mxu0 0.0
      %3112 = vmatpush.msra.mxu0 0.0
      %3113 = vmatpush.msra.mxu0 0.0
      %3114 = vmatpush.msra.mxu0 %v3089
      %3115 = vmatpush.msra.mxu0 %v3071
      %3116 = vmatmul.f32.gmra.mxu0 %v3083
      %v3117 = vpop.f32.mrf.mxu0
      %v3118 = vadd.f32 0.0, %v3117
      %3119 = vmatmul.f32.gmra.mxu0 %v3086
      %v3120 = vpop.f32.mrf.mxu0
      %v3121 = vadd.f32 0.0, %v3120
      %3122 = vdwg.mxu0
      %3123 = vmatpush.msra.mxu0 0.0
      %3124 = vmatpush.msra.mxu0 0.0
      %3125 = vmatpush.msra.mxu0 0.0
      %3126 = vmatpush.msra.mxu0 0.0
      %3127 = vmatpush.msra.mxu0 0.0
      %3128 = vmatpush.msra.mxu0 0.0
      %3129 = vmatpush.msra.mxu0 0.0
      %3130 = vmatpush.msra.mxu0 0.0
      %3131 = vmatpush.msra.mxu0 0.0
      %3132 = vmatpush.msra.mxu0 0.0
      %3133 = vmatpush.msra.mxu0 0.0
      %3134 = vmatpush.msra.mxu0 0.0
      %3135 = vmatpush.msra.mxu0 0.0
      %3136 = vmatpush.msra.mxu0 0.0
      %3137 = vmatpush.msra.mxu0 %v3092
      %3138 = vmatpush.msra.mxu0 %v3072
      %3139 = vmatmul.f32.gmra.mxu0 %v3083
      %v3140 = vpop.f32.mrf.mxu0
      %v3141 = vadd.f32 0.0, %v3140
      %3142 = vmatmul.f32.gmra.mxu0 %v3086
      %v3143 = vpop.f32.mrf.mxu0
      %v3144 = vadd.f32 0.0, %v3143
      %3145 = vdwg.mxu0
      %3146 = vmatpush.msra.mxu0 0.0
      %3147 = vmatpush.msra.mxu0 0.0
      %3148 = vmatpush.msra.mxu0 0.0
      %3149 = vmatpush.msra.mxu0 0.0
      %3150 = vmatpush.msra.mxu0 0.0
      %3151 = vmatpush.msra.mxu0 0.0
      %3152 = vmatpush.msra.mxu0 0.0
      %3153 = vmatpush.msra.mxu0 0.0
      %3154 = vmatpush.msra.mxu0 0.0
      %3155 = vmatpush.msra.mxu0 0.0
      %3156 = vmatpush.msra.mxu0 0.0
      %3157 = vmatpush.msra.mxu0 0.0
      %3158 = vmatpush.msra.mxu0 0.0
      %3159 = vmatpush.msra.mxu0 0.0
      %3160 = vmatpush.msra.mxu0 %v3095
      %3161 = vmatpush.msra.mxu0 %v3073
      %3162 = vmatmul.f32.gmra.mxu0 %v3083
      %v3163 = vpop.f32.mrf.mxu0
      %v3164 = vadd.f32 0.0, %v3163
      %3165 = vmatmul.f32.gmra.mxu0 %v3086
      %v3166 = vpop.f32.mrf.mxu0
      %v3167 = vadd.f32 0.0, %v3166
      %3168 = vdwg.mxu0
      %3169 = vmatpush.msra.mxu0 0.0
      %3170 = vmatpush.msra.mxu0 0.0
      %3171 = vmatpush.msra.mxu0 0.0
      %3172 = vmatpush.msra.mxu0 0.0
      %3173 = vmatpush.msra.mxu0 0.0
      %3174 = vmatpush.msra.mxu0 0.0
      %3175 = vmatpush.msra.mxu0 0.0
      %3176 = vmatpush.msra.mxu0 0.0
      %3177 = vmatpush.msra.mxu0 0.0
      %3178 = vmatpush.msra.mxu0 0.0
      %3179 = vmatpush.msra.mxu0 0.0
      %3180 = vmatpush.msra.mxu0 0.0
      %3181 = vmatpush.msra.mxu0 0.0
      %3182 = vmatpush.msra.mxu0 0.0
      %3183 = vmatpush.msra.mxu0 %v3098
      %3184 = vmatpush.msra.mxu0 %v3074
      %3185 = vmatmul.f32.gmra.mxu0 %v3083
      %v3186 = vpop.f32.mrf.mxu0
      %v3187 = vadd.f32 0.0, %v3186
      %3188 = vmatmul.f32.gmra.mxu0 %v3086
      %v3189 = vpop.f32.mrf.mxu0
      %v3190 = vadd.f32 0.0, %v3189
      %3191 = vdwg.mxu0
      %v3192 = vadd.f32 %v3027, %v3118
      %v3193 = vadd.f32 %v3028, %v3141
      %v3194 = vadd.f32 %v3029, %v3164
      %v3195 = vadd.f32 %v3030, %v3187
      %v3196 = vadd.f32 %v3031, %v3121
      %v3197 = vadd.f32 %v3032, %v3144
      %v3198 = vadd.f32 %v3033, %v3167
      %v3199 = vadd.f32 %v3034, %v3190
      %s3200 = scalar_lea.vmem %s1, 66
      %v3201 = vld [vmem:[%s3200] ss:$8 sm:$0xf]
      %v3203 = vperm.slane %v3201, 0
      %v3204 = vperm.slane %v3201, 1
      %v3205 = vperm.slane %v3201, 2
      %v3206 = vperm.slane %v3201, 3
      %v3211 = vmul.f32 %v295, %v3203
      %v3212 = vmul.f32 %v293, %v3204
      %v3213 = vmul.f32 %v291, %v3205
      %v3214 = vmul.f32 %v297, %v3206
      %v3215 = vmul.f32 %v296, %v3203
      %v3216 = vmul.f32 %v294, %v3204
      %v3217 = vmul.f32 %v292, %v3205
      %v3218 = vmul.f32 %v298, %v3206
      %s3219 = scalar_lea.vmem %s2, 288
      %v3220 = vld [vmem:[%s3219] sm:$0xff]
      %v3221 = vld [vmem:[%s3219 + $0x8] sm:$0xf]
      %v3223 = vsel %vm319, %v3220, 0
      %v3226 = vsel %vm319, %v3221, 0
      %v3229 = vsel %vm326, %v3215, 0
      %v3232 = vsel %vm326, %v3216, 0
      %v3235 = vsel %vm326, %v3217, 0
      %v3238 = vsel %vm326, %v3218, 0
      %3240 = vmatpush.msra.mxu0 0.0
      %3241 = vmatpush.msra.mxu0 0.0
      %3242 = vmatpush.msra.mxu0 0.0
      %3243 = vmatpush.msra.mxu0 0.0
      %3244 = vmatpush.msra.mxu0 0.0
      %3245 = vmatpush.msra.mxu0 0.0
      %3246 = vmatpush.msra.mxu0 0.0
      %3247 = vmatpush.msra.mxu0 0.0
      %3248 = vmatpush.msra.mxu0 0.0
      %3249 = vmatpush.msra.mxu0 0.0
      %3250 = vmatpush.msra.mxu0 0.0
      %3251 = vmatpush.msra.mxu0 0.0
      %3252 = vmatpush.msra.mxu0 0.0
      %3253 = vmatpush.msra.mxu0 0.0
      %3254 = vmatpush.msra.mxu0 %v3229
      %3255 = vmatpush.msra.mxu0 %v3211
      %3256 = vmatmul.f32.gmra.mxu0 %v3223
      %v3257 = vpop.f32.mrf.mxu0
      %v3258 = vadd.f32 0.0, %v3257
      %3259 = vmatmul.f32.gmra.mxu0 %v3226
      %v3260 = vpop.f32.mrf.mxu0
      %v3261 = vadd.f32 0.0, %v3260
      %3262 = vdwg.mxu0
      %3263 = vmatpush.msra.mxu0 0.0
      %3264 = vmatpush.msra.mxu0 0.0
      %3265 = vmatpush.msra.mxu0 0.0
      %3266 = vmatpush.msra.mxu0 0.0
      %3267 = vmatpush.msra.mxu0 0.0
      %3268 = vmatpush.msra.mxu0 0.0
      %3269 = vmatpush.msra.mxu0 0.0
      %3270 = vmatpush.msra.mxu0 0.0
      %3271 = vmatpush.msra.mxu0 0.0
      %3272 = vmatpush.msra.mxu0 0.0
      %3273 = vmatpush.msra.mxu0 0.0
      %3274 = vmatpush.msra.mxu0 0.0
      %3275 = vmatpush.msra.mxu0 0.0
      %3276 = vmatpush.msra.mxu0 0.0
      %3277 = vmatpush.msra.mxu0 %v3232
      %3278 = vmatpush.msra.mxu0 %v3212
      %3279 = vmatmul.f32.gmra.mxu0 %v3223
      %v3280 = vpop.f32.mrf.mxu0
      %v3281 = vadd.f32 0.0, %v3280
      %3282 = vmatmul.f32.gmra.mxu0 %v3226
      %v3283 = vpop.f32.mrf.mxu0
      %v3284 = vadd.f32 0.0, %v3283
      %3285 = vdwg.mxu0
      %3286 = vmatpush.msra.mxu0 0.0
      %3287 = vmatpush.msra.mxu0 0.0
      %3288 = vmatpush.msra.mxu0 0.0
      %3289 = vmatpush.msra.mxu0 0.0
      %3290 = vmatpush.msra.mxu0 0.0
      %3291 = vmatpush.msra.mxu0 0.0
      %3292 = vmatpush.msra.mxu0 0.0
      %3293 = vmatpush.msra.mxu0 0.0
      %3294 = vmatpush.msra.mxu0 0.0
      %3295 = vmatpush.msra.mxu0 0.0
      %3296 = vmatpush.msra.mxu0 0.0
      %3297 = vmatpush.msra.mxu0 0.0
      %3298 = vmatpush.msra.mxu0 0.0
      %3299 = vmatpush.msra.mxu0 0.0
      %3300 = vmatpush.msra.mxu0 %v3235
      %3301 = vmatpush.msra.mxu0 %v3213
      %3302 = vmatmul.f32.gmra.mxu0 %v3223
      %v3303 = vpop.f32.mrf.mxu0
      %v3304 = vadd.f32 0.0, %v3303
      %3305 = vmatmul.f32.gmra.mxu0 %v3226
      %v3306 = vpop.f32.mrf.mxu0
      %v3307 = vadd.f32 0.0, %v3306
      %3308 = vdwg.mxu0
      %3309 = vmatpush.msra.mxu0 0.0
      %3310 = vmatpush.msra.mxu0 0.0
      %3311 = vmatpush.msra.mxu0 0.0
      %3312 = vmatpush.msra.mxu0 0.0
      %3313 = vmatpush.msra.mxu0 0.0
      %3314 = vmatpush.msra.mxu0 0.0
      %3315 = vmatpush.msra.mxu0 0.0
      %3316 = vmatpush.msra.mxu0 0.0
      %3317 = vmatpush.msra.mxu0 0.0
      %3318 = vmatpush.msra.mxu0 0.0
      %3319 = vmatpush.msra.mxu0 0.0
      %3320 = vmatpush.msra.mxu0 0.0
      %3321 = vmatpush.msra.mxu0 0.0
      %3322 = vmatpush.msra.mxu0 0.0
      %3323 = vmatpush.msra.mxu0 %v3238
      %3324 = vmatpush.msra.mxu0 %v3214
      %3325 = vmatmul.f32.gmra.mxu0 %v3223
      %v3326 = vpop.f32.mrf.mxu0
      %v3327 = vadd.f32 0.0, %v3326
      %3328 = vmatmul.f32.gmra.mxu0 %v3226
      %v3329 = vpop.f32.mrf.mxu0
      %v3330 = vadd.f32 0.0, %v3329
      %3331 = vdwg.mxu0
      %v3332 = vadd.f32 %v3192, %v3258
      %v3333 = vadd.f32 %v3193, %v3281
      %v3334 = vadd.f32 %v3194, %v3304
      %v3335 = vadd.f32 %v3195, %v3327
      %v3336 = vadd.f32 %v3196, %v3261
      %v3337 = vadd.f32 %v3197, %v3284
      %v3338 = vadd.f32 %v3198, %v3307
      %v3339 = vadd.f32 %v3199, %v3330
      %s3340 = scalar_lea.vmem %s1, 67
      %v3341 = vld [vmem:[%s3340] ss:$8 sm:$0xf]
      %v3343 = vperm.slane %v3341, 0
      %v3344 = vperm.slane %v3341, 1
      %v3345 = vperm.slane %v3341, 2
      %v3346 = vperm.slane %v3341, 3
      %v3351 = vmul.f32 %v460, %v3343
      %v3352 = vmul.f32 %v458, %v3344
      %v3353 = vmul.f32 %v456, %v3345
      %v3354 = vmul.f32 %v462, %v3346
      %v3355 = vmul.f32 %v461, %v3343
      %v3356 = vmul.f32 %v459, %v3344
      %v3357 = vmul.f32 %v457, %v3345
      %v3358 = vmul.f32 %v463, %v3346
      %s3359 = scalar_lea.vmem %s2, 304
      %v3360 = vld [vmem:[%s3359] sm:$0xff]
      %v3361 = vld [vmem:[%s3359 + $0x8] sm:$0xf]
      %v3363 = vsel %vm319, %v3360, 0
      %v3366 = vsel %vm319, %v3361, 0
      %v3369 = vsel %vm326, %v3355, 0
      %v3372 = vsel %vm326, %v3356, 0
      %v3375 = vsel %vm326, %v3357, 0
      %v3378 = vsel %vm326, %v3358, 0
      %3380 = vmatpush.msra.mxu0 0.0
      %3381 = vmatpush.msra.mxu0 0.0
      %3382 = vmatpush.msra.mxu0 0.0
      %3383 = vmatpush.msra.mxu0 0.0
      %3384 = vmatpush.msra.mxu0 0.0
      %3385 = vmatpush.msra.mxu0 0.0
      %3386 = vmatpush.msra.mxu0 0.0
      %3387 = vmatpush.msra.mxu0 0.0
      %3388 = vmatpush.msra.mxu0 0.0
      %3389 = vmatpush.msra.mxu0 0.0
      %3390 = vmatpush.msra.mxu0 0.0
      %3391 = vmatpush.msra.mxu0 0.0
      %3392 = vmatpush.msra.mxu0 0.0
      %3393 = vmatpush.msra.mxu0 0.0
      %3394 = vmatpush.msra.mxu0 %v3369
      %3395 = vmatpush.msra.mxu0 %v3351
      %3396 = vmatmul.f32.gmra.mxu0 %v3363
      %v3397 = vpop.f32.mrf.mxu0
      %v3398 = vadd.f32 0.0, %v3397
      %3399 = vmatmul.f32.gmra.mxu0 %v3366
      %v3400 = vpop.f32.mrf.mxu0
      %v3401 = vadd.f32 0.0, %v3400
      %3402 = vdwg.mxu0
      %3403 = vmatpush.msra.mxu0 0.0
      %3404 = vmatpush.msra.mxu0 0.0
      %3405 = vmatpush.msra.mxu0 0.0
      %3406 = vmatpush.msra.mxu0 0.0
      %3407 = vmatpush.msra.mxu0 0.0
      %3408 = vmatpush.msra.mxu0 0.0
      %3409 = vmatpush.msra.mxu0 0.0
      %3410 = vmatpush.msra.mxu0 0.0
      %3411 = vmatpush.msra.mxu0 0.0
      %3412 = vmatpush.msra.mxu0 0.0
      %3413 = vmatpush.msra.mxu0 0.0
      %3414 = vmatpush.msra.mxu0 0.0
      %3415 = vmatpush.msra.mxu0 0.0
      %3416 = vmatpush.msra.mxu0 0.0
      %3417 = vmatpush.msra.mxu0 %v3372
      %3418 = vmatpush.msra.mxu0 %v3352
      %3419 = vmatmul.f32.gmra.mxu0 %v3363
      %v3420 = vpop.f32.mrf.mxu0
      %v3421 = vadd.f32 0.0, %v3420
      %3422 = vmatmul.f32.gmra.mxu0 %v3366
      %v3423 = vpop.f32.mrf.mxu0
      %v3424 = vadd.f32 0.0, %v3423
      %3425 = vdwg.mxu0
      %3426 = vmatpush.msra.mxu0 0.0
      %3427 = vmatpush.msra.mxu0 0.0
      %3428 = vmatpush.msra.mxu0 0.0
      %3429 = vmatpush.msra.mxu0 0.0
      %3430 = vmatpush.msra.mxu0 0.0
      %3431 = vmatpush.msra.mxu0 0.0
      %3432 = vmatpush.msra.mxu0 0.0
      %3433 = vmatpush.msra.mxu0 0.0
      %3434 = vmatpush.msra.mxu0 0.0
      %3435 = vmatpush.msra.mxu0 0.0
      %3436 = vmatpush.msra.mxu0 0.0
      %3437 = vmatpush.msra.mxu0 0.0
      %3438 = vmatpush.msra.mxu0 0.0
      %3439 = vmatpush.msra.mxu0 0.0
      %3440 = vmatpush.msra.mxu0 %v3375
      %3441 = vmatpush.msra.mxu0 %v3353
      %3442 = vmatmul.f32.gmra.mxu0 %v3363
      %v3443 = vpop.f32.mrf.mxu0
      %v3444 = vadd.f32 0.0, %v3443
      %3445 = vmatmul.f32.gmra.mxu0 %v3366
      %v3446 = vpop.f32.mrf.mxu0
      %v3447 = vadd.f32 0.0, %v3446
      %3448 = vdwg.mxu0
      %3449 = vmatpush.msra.mxu0 0.0
      %3450 = vmatpush.msra.mxu0 0.0
      %3451 = vmatpush.msra.mxu0 0.0
      %3452 = vmatpush.msra.mxu0 0.0
      %3453 = vmatpush.msra.mxu0 0.0
      %3454 = vmatpush.msra.mxu0 0.0
      %3455 = vmatpush.msra.mxu0 0.0
      %3456 = vmatpush.msra.mxu0 0.0
      %3457 = vmatpush.msra.mxu0 0.0
      %3458 = vmatpush.msra.mxu0 0.0
      %3459 = vmatpush.msra.mxu0 0.0
      %3460 = vmatpush.msra.mxu0 0.0
      %3461 = vmatpush.msra.mxu0 0.0
      %3462 = vmatpush.msra.mxu0 0.0
      %3463 = vmatpush.msra.mxu0 %v3378
      %3464 = vmatpush.msra.mxu0 %v3354
      %3465 = vmatmul.f32.gmra.mxu0 %v3363
      %v3466 = vpop.f32.mrf.mxu0
      %v3467 = vadd.f32 0.0, %v3466
      %3468 = vmatmul.f32.gmra.mxu0 %v3366
      %v3469 = vpop.f32.mrf.mxu0
      %v3470 = vadd.f32 0.0, %v3469
      %3471 = vdwg.mxu0
      %v3472 = vadd.f32 %v3332, %v3398
      %v3473 = vadd.f32 %v3333, %v3421
      %v3474 = vadd.f32 %v3334, %v3444
      %v3475 = vadd.f32 %v3335, %v3467
      %v3476 = vadd.f32 %v3336, %v3401
      %v3477 = vadd.f32 %v3337, %v3424
      %v3478 = vadd.f32 %v3338, %v3447
      %v3479 = vadd.f32 %v3339, %v3470
      %s3480 = scalar_lea.vmem %s1, 68
      %v3481 = vld [vmem:[%s3480] ss:$8 sm:$0xf]
      %v3483 = vperm.slane %v3481, 0
      %v3484 = vperm.slane %v3481, 1
      %v3485 = vperm.slane %v3481, 2
      %v3486 = vperm.slane %v3481, 3
      %v3491 = vmul.f32 %v625, %v3483
      %v3492 = vmul.f32 %v623, %v3484
      %v3493 = vmul.f32 %v621, %v3485
      %v3494 = vmul.f32 %v627, %v3486
      %v3495 = vmul.f32 %v626, %v3483
      %v3496 = vmul.f32 %v624, %v3484
      %v3497 = vmul.f32 %v622, %v3485
      %v3498 = vmul.f32 %v628, %v3486
      %s3499 = scalar_lea.vmem %s2, 320
      %v3500 = vld [vmem:[%s3499] sm:$0xff]
      %v3501 = vld [vmem:[%s3499 + $0x8] sm:$0xf]
      %v3503 = vsel %vm319, %v3500, 0
      %v3506 = vsel %vm319, %v3501, 0
      %v3509 = vsel %vm326, %v3495, 0
      %v3512 = vsel %vm326, %v3496, 0
      %v3515 = vsel %vm326, %v3497, 0
      %v3518 = vsel %vm326, %v3498, 0
      %3520 = vmatpush.msra.mxu0 0.0
      %3521 = vmatpush.msra.mxu0 0.0
      %3522 = vmatpush.msra.mxu0 0.0
      %3523 = vmatpush.msra.mxu0 0.0
      %3524 = vmatpush.msra.mxu0 0.0
      %3525 = vmatpush.msra.mxu0 0.0
      %3526 = vmatpush.msra.mxu0 0.0
      %3527 = vmatpush.msra.mxu0 0.0
      %3528 = vmatpush.msra.mxu0 0.0
      %3529 = vmatpush.msra.mxu0 0.0
      %3530 = vmatpush.msra.mxu0 0.0
      %3531 = vmatpush.msra.mxu0 0.0
      %3532 = vmatpush.msra.mxu0 0.0
      %3533 = vmatpush.msra.mxu0 0.0
      %3534 = vmatpush.msra.mxu0 %v3509
      %3535 = vmatpush.msra.mxu0 %v3491
      %3536 = vmatmul.f32.gmra.mxu0 %v3503
      %v3537 = vpop.f32.mrf.mxu0
      %v3538 = vadd.f32 0.0, %v3537
      %3539 = vmatmul.f32.gmra.mxu0 %v3506
      %v3540 = vpop.f32.mrf.mxu0
      %v3541 = vadd.f32 0.0, %v3540
      %3542 = vdwg.mxu0
      %3543 = vmatpush.msra.mxu0 0.0
      %3544 = vmatpush.msra.mxu0 0.0
      %3545 = vmatpush.msra.mxu0 0.0
      %3546 = vmatpush.msra.mxu0 0.0
      %3547 = vmatpush.msra.mxu0 0.0
      %3548 = vmatpush.msra.mxu0 0.0
      %3549 = vmatpush.msra.mxu0 0.0
      %3550 = vmatpush.msra.mxu0 0.0
      %3551 = vmatpush.msra.mxu0 0.0
      %3552 = vmatpush.msra.mxu0 0.0
      %3553 = vmatpush.msra.mxu0 0.0
      %3554 = vmatpush.msra.mxu0 0.0
      %3555 = vmatpush.msra.mxu0 0.0
      %3556 = vmatpush.msra.mxu0 0.0
      %3557 = vmatpush.msra.mxu0 %v3512
      %3558 = vmatpush.msra.mxu0 %v3492
      %3559 = vmatmul.f32.gmra.mxu0 %v3503
      %v3560 = vpop.f32.mrf.mxu0
      %v3561 = vadd.f32 0.0, %v3560
      %3562 = vmatmul.f32.gmra.mxu0 %v3506
      %v3563 = vpop.f32.mrf.mxu0
      %v3564 = vadd.f32 0.0, %v3563
      %3565 = vdwg.mxu0
      %3566 = vmatpush.msra.mxu0 0.0
      %3567 = vmatpush.msra.mxu0 0.0
      %3568 = vmatpush.msra.mxu0 0.0
      %3569 = vmatpush.msra.mxu0 0.0
      %3570 = vmatpush.msra.mxu0 0.0
      %3571 = vmatpush.msra.mxu0 0.0
      %3572 = vmatpush.msra.mxu0 0.0
      %3573 = vmatpush.msra.mxu0 0.0
      %3574 = vmatpush.msra.mxu0 0.0
      %3575 = vmatpush.msra.mxu0 0.0
      %3576 = vmatpush.msra.mxu0 0.0
      %3577 = vmatpush.msra.mxu0 0.0
      %3578 = vmatpush.msra.mxu0 0.0
      %3579 = vmatpush.msra.mxu0 0.0
      %3580 = vmatpush.msra.mxu0 %v3515
      %3581 = vmatpush.msra.mxu0 %v3493
      %3582 = vmatmul.f32.gmra.mxu0 %v3503
      %v3583 = vpop.f32.mrf.mxu0
      %v3584 = vadd.f32 0.0, %v3583
      %3585 = vmatmul.f32.gmra.mxu0 %v3506
      %v3586 = vpop.f32.mrf.mxu0
      %v3587 = vadd.f32 0.0, %v3586
      %3588 = vdwg.mxu0
      %3589 = vmatpush.msra.mxu0 0.0
      %3590 = vmatpush.msra.mxu0 0.0
      %3591 = vmatpush.msra.mxu0 0.0
      %3592 = vmatpush.msra.mxu0 0.0
      %3593 = vmatpush.msra.mxu0 0.0
      %3594 = vmatpush.msra.mxu0 0.0
      %3595 = vmatpush.msra.mxu0 0.0
      %3596 = vmatpush.msra.mxu0 0.0
      %3597 = vmatpush.msra.mxu0 0.0
      %3598 = vmatpush.msra.mxu0 0.0
      %3599 = vmatpush.msra.mxu0 0.0
      %3600 = vmatpush.msra.mxu0 0.0
      %3601 = vmatpush.msra.mxu0 0.0
      %3602 = vmatpush.msra.mxu0 0.0
      %3603 = vmatpush.msra.mxu0 %v3518
      %3604 = vmatpush.msra.mxu0 %v3494
      %3605 = vmatmul.f32.gmra.mxu0 %v3503
      %v3606 = vpop.f32.mrf.mxu0
      %v3607 = vadd.f32 0.0, %v3606
      %3608 = vmatmul.f32.gmra.mxu0 %v3506
      %v3609 = vpop.f32.mrf.mxu0
      %v3610 = vadd.f32 0.0, %v3609
      %3611 = vdwg.mxu0
      %v3612 = vadd.f32 %v3472, %v3538
      %v3613 = vadd.f32 %v3473, %v3561
      %v3614 = vadd.f32 %v3474, %v3584
      %v3615 = vadd.f32 %v3475, %v3607
      %v3616 = vadd.f32 %v3476, %v3541
      %v3617 = vadd.f32 %v3477, %v3564
      %v3618 = vadd.f32 %v3478, %v3587
      %v3619 = vadd.f32 %v3479, %v3610
      %s3620 = scalar_lea.vmem %s1, 69
      %v3621 = vld [vmem:[%s3620] ss:$8 sm:$0xf]
      %v3623 = vperm.slane %v3621, 0
      %v3624 = vperm.slane %v3621, 1
      %v3625 = vperm.slane %v3621, 2
      %v3626 = vperm.slane %v3621, 3
      %v3631 = vmul.f32 %v790, %v3623
      %v3632 = vmul.f32 %v788, %v3624
      %v3633 = vmul.f32 %v786, %v3625
      %v3634 = vmul.f32 %v792, %v3626
      %v3635 = vmul.f32 %v791, %v3623
      %v3636 = vmul.f32 %v789, %v3624
      %v3637 = vmul.f32 %v787, %v3625
      %v3638 = vmul.f32 %v793, %v3626
      %s3639 = scalar_lea.vmem %s2, 336
      %v3640 = vld [vmem:[%s3639] sm:$0xff]
      %v3641 = vld [vmem:[%s3639 + $0x8] sm:$0xf]
      %v3643 = vsel %vm319, %v3640, 0
      %v3646 = vsel %vm319, %v3641, 0
      %v3649 = vsel %vm326, %v3635, 0
      %v3652 = vsel %vm326, %v3636, 0
      %v3655 = vsel %vm326, %v3637, 0
      %v3658 = vsel %vm326, %v3638, 0
      %3660 = vmatpush.msra.mxu0 0.0
      %3661 = vmatpush.msra.mxu0 0.0
      %3662 = vmatpush.msra.mxu0 0.0
      %3663 = vmatpush.msra.mxu0 0.0
      %3664 = vmatpush.msra.mxu0 0.0
      %3665 = vmatpush.msra.mxu0 0.0
      %3666 = vmatpush.msra.mxu0 0.0
      %3667 = vmatpush.msra.mxu0 0.0
      %3668 = vmatpush.msra.mxu0 0.0
      %3669 = vmatpush.msra.mxu0 0.0
      %3670 = vmatpush.msra.mxu0 0.0
      %3671 = vmatpush.msra.mxu0 0.0
      %3672 = vmatpush.msra.mxu0 0.0
      %3673 = vmatpush.msra.mxu0 0.0
      %3674 = vmatpush.msra.mxu0 %v3649
      %3675 = vmatpush.msra.mxu0 %v3631
      %3676 = vmatmul.f32.gmra.mxu0 %v3643
      %v3677 = vpop.f32.mrf.mxu0
      %v3678 = vadd.f32 0.0, %v3677
      %3679 = vmatmul.f32.gmra.mxu0 %v3646
      %v3680 = vpop.f32.mrf.mxu0
      %v3681 = vadd.f32 0.0, %v3680
      %3682 = vdwg.mxu0
      %3683 = vmatpush.msra.mxu0 0.0
      %3684 = vmatpush.msra.mxu0 0.0
      %3685 = vmatpush.msra.mxu0 0.0
      %3686 = vmatpush.msra.mxu0 0.0
      %3687 = vmatpush.msra.mxu0 0.0
      %3688 = vmatpush.msra.mxu0 0.0
      %3689 = vmatpush.msra.mxu0 0.0
      %3690 = vmatpush.msra.mxu0 0.0
      %3691 = vmatpush.msra.mxu0 0.0
      %3692 = vmatpush.msra.mxu0 0.0
      %3693 = vmatpush.msra.mxu0 0.0
      %3694 = vmatpush.msra.mxu0 0.0
      %3695 = vmatpush.msra.mxu0 0.0
      %3696 = vmatpush.msra.mxu0 0.0
      %3697 = vmatpush.msra.mxu0 %v3652
      %3698 = vmatpush.msra.mxu0 %v3632
      %3699 = vmatmul.f32.gmra.mxu0 %v3643
      %v3700 = vpop.f32.mrf.mxu0
      %v3701 = vadd.f32 0.0, %v3700
      %3702 = vmatmul.f32.gmra.mxu0 %v3646
      %v3703 = vpop.f32.mrf.mxu0
      %v3704 = vadd.f32 0.0, %v3703
      %3705 = vdwg.mxu0
      %3706 = vmatpush.msra.mxu0 0.0
      %3707 = vmatpush.msra.mxu0 0.0
      %3708 = vmatpush.msra.mxu0 0.0
      %3709 = vmatpush.msra.mxu0 0.0
      %3710 = vmatpush.msra.mxu0 0.0
      %3711 = vmatpush.msra.mxu0 0.0
      %3712 = vmatpush.msra.mxu0 0.0
      %3713 = vmatpush.msra.mxu0 0.0
      %3714 = vmatpush.msra.mxu0 0.0
      %3715 = vmatpush.msra.mxu0 0.0
      %3716 = vmatpush.msra.mxu0 0.0
      %3717 = vmatpush.msra.mxu0 0.0
      %3718 = vmatpush.msra.mxu0 0.0
      %3719 = vmatpush.msra.mxu0 0.0
      %3720 = vmatpush.msra.mxu0 %v3655
      %3721 = vmatpush.msra.mxu0 %v3633
      %3722 = vmatmul.f32.gmra.mxu0 %v3643
      %v3723 = vpop.f32.mrf.mxu0
      %v3724 = vadd.f32 0.0, %v3723
      %3725 = vmatmul.f32.gmra.mxu0 %v3646
      %v3726 = vpop.f32.mrf.mxu0
      %v3727 = vadd.f32 0.0, %v3726
      %3728 = vdwg.mxu0
      %3729 = vmatpush.msra.mxu0 0.0
      %3730 = vmatpush.msra.mxu0 0.0
      %3731 = vmatpush.msra.mxu0 0.0
      %3732 = vmatpush.msra.mxu0 0.0
      %3733 = vmatpush.msra.mxu0 0.0
      %3734 = vmatpush.msra.mxu0 0.0
      %3735 = vmatpush.msra.mxu0 0.0
      %3736 = vmatpush.msra.mxu0 0.0
      %3737 = vmatpush.msra.mxu0 0.0
      %3738 = vmatpush.msra.mxu0 0.0
      %3739 = vmatpush.msra.mxu0 0.0
      %3740 = vmatpush.msra.mxu0 0.0
      %3741 = vmatpush.msra.mxu0 0.0
      %3742 = vmatpush.msra.mxu0 0.0
      %3743 = vmatpush.msra.mxu0 %v3658
      %3744 = vmatpush.msra.mxu0 %v3634
      %3745 = vmatmul.f32.gmra.mxu0 %v3643
      %v3746 = vpop.f32.mrf.mxu0
      %v3747 = vadd.f32 0.0, %v3746
      %3748 = vmatmul.f32.gmra.mxu0 %v3646
      %v3749 = vpop.f32.mrf.mxu0
      %v3750 = vadd.f32 0.0, %v3749
      %3751 = vdwg.mxu0
      %v3752 = vadd.f32 %v3612, %v3678
      %v3753 = vadd.f32 %v3613, %v3701
      %v3754 = vadd.f32 %v3614, %v3724
      %v3755 = vadd.f32 %v3615, %v3747
      %v3756 = vadd.f32 %v3616, %v3681
      %v3757 = vadd.f32 %v3617, %v3704
      %v3758 = vadd.f32 %v3618, %v3727
      %v3759 = vadd.f32 %v3619, %v3750
      %s3760 = scalar_lea.vmem %s1, 70
      %v3761 = vld [vmem:[%s3760] ss:$8 sm:$0xf]
      %v3763 = vperm.slane %v3761, 0
      %v3764 = vperm.slane %v3761, 1
      %v3765 = vperm.slane %v3761, 2
      %v3766 = vperm.slane %v3761, 3
      %v3771 = vmul.f32 %v955, %v3763
      %v3772 = vmul.f32 %v953, %v3764
      %v3773 = vmul.f32 %v951, %v3765
      %v3774 = vmul.f32 %v957, %v3766
      %v3775 = vmul.f32 %v956, %v3763
      %v3776 = vmul.f32 %v954, %v3764
      %v3777 = vmul.f32 %v952, %v3765
      %v3778 = vmul.f32 %v958, %v3766
      %s3779 = scalar_lea.vmem %s2, 352
      %v3780 = vld [vmem:[%s3779] sm:$0xff]
      %v3781 = vld [vmem:[%s3779 + $0x8] sm:$0xf]
      %v3783 = vsel %vm319, %v3780, 0
      %v3786 = vsel %vm319, %v3781, 0
      %v3789 = vsel %vm326, %v3775, 0
      %v3792 = vsel %vm326, %v3776, 0
      %v3795 = vsel %vm326, %v3777, 0
      %v3798 = vsel %vm326, %v3778, 0
      %3800 = vmatpush.msra.mxu0 0.0
      %3801 = vmatpush.msra.mxu0 0.0
      %3802 = vmatpush.msra.mxu0 0.0
      %3803 = vmatpush.msra.mxu0 0.0
      %3804 = vmatpush.msra.mxu0 0.0
      %3805 = vmatpush.msra.mxu0 0.0
      %3806 = vmatpush.msra.mxu0 0.0
      %3807 = vmatpush.msra.mxu0 0.0
      %3808 = vmatpush.msra.mxu0 0.0
      %3809 = vmatpush.msra.mxu0 0.0
      %3810 = vmatpush.msra.mxu0 0.0
      %3811 = vmatpush.msra.mxu0 0.0
      %3812 = vmatpush.msra.mxu0 0.0
      %3813 = vmatpush.msra.mxu0 0.0
      %3814 = vmatpush.msra.mxu0 %v3789
      %3815 = vmatpush.msra.mxu0 %v3771
      %3816 = vmatmul.f32.gmra.mxu0 %v3783
      %v3817 = vpop.f32.mrf.mxu0
      %v3818 = vadd.f32 0.0, %v3817
      %3819 = vmatmul.f32.gmra.mxu0 %v3786
      %v3820 = vpop.f32.mrf.mxu0
      %v3821 = vadd.f32 0.0, %v3820
      %3822 = vdwg.mxu0
      %3823 = vmatpush.msra.mxu0 0.0
      %3824 = vmatpush.msra.mxu0 0.0
      %3825 = vmatpush.msra.mxu0 0.0
      %3826 = vmatpush.msra.mxu0 0.0
      %3827 = vmatpush.msra.mxu0 0.0
      %3828 = vmatpush.msra.mxu0 0.0
      %3829 = vmatpush.msra.mxu0 0.0
      %3830 = vmatpush.msra.mxu0 0.0
      %3831 = vmatpush.msra.mxu0 0.0
      %3832 = vmatpush.msra.mxu0 0.0
      %3833 = vmatpush.msra.mxu0 0.0
      %3834 = vmatpush.msra.mxu0 0.0
      %3835 = vmatpush.msra.mxu0 0.0
      %3836 = vmatpush.msra.mxu0 0.0
      %3837 = vmatpush.msra.mxu0 %v3792
      %3838 = vmatpush.msra.mxu0 %v3772
      %3839 = vmatmul.f32.gmra.mxu0 %v3783
      %v3840 = vpop.f32.mrf.mxu0
      %v3841 = vadd.f32 0.0, %v3840
      %3842 = vmatmul.f32.gmra.mxu0 %v3786
      %v3843 = vpop.f32.mrf.mxu0
      %v3844 = vadd.f32 0.0, %v3843
      %3845 = vdwg.mxu0
      %3846 = vmatpush.msra.mxu0 0.0
      %3847 = vmatpush.msra.mxu0 0.0
      %3848 = vmatpush.msra.mxu0 0.0
      %3849 = vmatpush.msra.mxu0 0.0
      %3850 = vmatpush.msra.mxu0 0.0
      %3851 = vmatpush.msra.mxu0 0.0
      %3852 = vmatpush.msra.mxu0 0.0
      %3853 = vmatpush.msra.mxu0 0.0
      %3854 = vmatpush.msra.mxu0 0.0
      %3855 = vmatpush.msra.mxu0 0.0
      %3856 = vmatpush.msra.mxu0 0.0
      %3857 = vmatpush.msra.mxu0 0.0
      %3858 = vmatpush.msra.mxu0 0.0
      %3859 = vmatpush.msra.mxu0 0.0
      %3860 = vmatpush.msra.mxu0 %v3795
      %3861 = vmatpush.msra.mxu0 %v3773
      %3862 = vmatmul.f32.gmra.mxu0 %v3783
      %v3863 = vpop.f32.mrf.mxu0
      %v3864 = vadd.f32 0.0, %v3863
      %3865 = vmatmul.f32.gmra.mxu0 %v3786
      %v3866 = vpop.f32.mrf.mxu0
      %v3867 = vadd.f32 0.0, %v3866
      %3868 = vdwg.mxu0
      %3869 = vmatpush.msra.mxu0 0.0
      %3870 = vmatpush.msra.mxu0 0.0
      %3871 = vmatpush.msra.mxu0 0.0
      %3872 = vmatpush.msra.mxu0 0.0
      %3873 = vmatpush.msra.mxu0 0.0
      %3874 = vmatpush.msra.mxu0 0.0
      %3875 = vmatpush.msra.mxu0 0.0
      %3876 = vmatpush.msra.mxu0 0.0
      %3877 = vmatpush.msra.mxu0 0.0
      %3878 = vmatpush.msra.mxu0 0.0
      %3879 = vmatpush.msra.mxu0 0.0
      %3880 = vmatpush.msra.mxu0 0.0
      %3881 = vmatpush.msra.mxu0 0.0
      %3882 = vmatpush.msra.mxu0 0.0
      %3883 = vmatpush.msra.mxu0 %v3798
      %3884 = vmatpush.msra.mxu0 %v3774
      %3885 = vmatmul.f32.gmra.mxu0 %v3783
      %v3886 = vpop.f32.mrf.mxu0
      %v3887 = vadd.f32 0.0, %v3886
      %3888 = vmatmul.f32.gmra.mxu0 %v3786
      %v3889 = vpop.f32.mrf.mxu0
      %v3890 = vadd.f32 0.0, %v3889
      %3891 = vdwg.mxu0
      %v3892 = vadd.f32 %v3752, %v3818
      %v3893 = vadd.f32 %v3753, %v3841
      %v3894 = vadd.f32 %v3754, %v3864
      %v3895 = vadd.f32 %v3755, %v3887
      %v3896 = vadd.f32 %v3756, %v3821
      %v3897 = vadd.f32 %v3757, %v3844
      %v3898 = vadd.f32 %v3758, %v3867
      %v3899 = vadd.f32 %v3759, %v3890
      %s3900 = scalar_lea.vmem %s1, 71
      %v3901 = vld [vmem:[%s3900] ss:$8 sm:$0xf]
      %v3903 = vperm.slane %v3901, 0
      %v3904 = vperm.slane %v3901, 1
      %v3905 = vperm.slane %v3901, 2
      %v3906 = vperm.slane %v3901, 3
      %v3911 = vmul.f32 %v1120, %v3903
      %v3912 = vmul.f32 %v1118, %v3904
      %v3913 = vmul.f32 %v1116, %v3905
      %v3914 = vmul.f32 %v1122, %v3906
      %v3915 = vmul.f32 %v1121, %v3903
      %v3916 = vmul.f32 %v1119, %v3904
      %v3917 = vmul.f32 %v1117, %v3905
      %v3918 = vmul.f32 %v1123, %v3906
      %s3919 = scalar_lea.vmem %s2, 368
      %v3920 = vld [vmem:[%s3919] sm:$0xff]
      %v3921 = vld [vmem:[%s3919 + $0x8] sm:$0xf]
      %v3923 = vsel %vm319, %v3920, 0
      %v3926 = vsel %vm319, %v3921, 0
      %v3929 = vsel %vm326, %v3915, 0
      %v3932 = vsel %vm326, %v3916, 0
      %v3935 = vsel %vm326, %v3917, 0
      %v3938 = vsel %vm326, %v3918, 0
      %3940 = vmatpush.msra.mxu0 0.0
      %3941 = vmatpush.msra.mxu0 0.0
      %3942 = vmatpush.msra.mxu0 0.0
      %3943 = vmatpush.msra.mxu0 0.0
      %3944 = vmatpush.msra.mxu0 0.0
      %3945 = vmatpush.msra.mxu0 0.0
      %3946 = vmatpush.msra.mxu0 0.0
      %3947 = vmatpush.msra.mxu0 0.0
      %3948 = vmatpush.msra.mxu0 0.0
      %3949 = vmatpush.msra.mxu0 0.0
      %3950 = vmatpush.msra.mxu0 0.0
      %3951 = vmatpush.msra.mxu0 0.0
      %3952 = vmatpush.msra.mxu0 0.0
      %3953 = vmatpush.msra.mxu0 0.0
      %3954 = vmatpush.msra.mxu0 %v3929
      %3955 = vmatpush.msra.mxu0 %v3911
      %3956 = vmatmul.f32.gmra.mxu0 %v3923
      %v3957 = vpop.f32.mrf.mxu0
      %v3958 = vadd.f32 0.0, %v3957
      %3959 = vmatmul.f32.gmra.mxu0 %v3926
      %v3960 = vpop.f32.mrf.mxu0
      %v3961 = vadd.f32 0.0, %v3960
      %3962 = vdwg.mxu0
      %3963 = vmatpush.msra.mxu0 0.0
      %3964 = vmatpush.msra.mxu0 0.0
      %3965 = vmatpush.msra.mxu0 0.0
      %3966 = vmatpush.msra.mxu0 0.0
      %3967 = vmatpush.msra.mxu0 0.0
      %3968 = vmatpush.msra.mxu0 0.0
      %3969 = vmatpush.msra.mxu0 0.0
      %3970 = vmatpush.msra.mxu0 0.0
      %3971 = vmatpush.msra.mxu0 0.0
      %3972 = vmatpush.msra.mxu0 0.0
      %3973 = vmatpush.msra.mxu0 0.0
      %3974 = vmatpush.msra.mxu0 0.0
      %3975 = vmatpush.msra.mxu0 0.0
      %3976 = vmatpush.msra.mxu0 0.0
      %3977 = vmatpush.msra.mxu0 %v3932
      %3978 = vmatpush.msra.mxu0 %v3912
      %3979 = vmatmul.f32.gmra.mxu0 %v3923
      %v3980 = vpop.f32.mrf.mxu0
      %v3981 = vadd.f32 0.0, %v3980
      %3982 = vmatmul.f32.gmra.mxu0 %v3926
      %v3983 = vpop.f32.mrf.mxu0
      %v3984 = vadd.f32 0.0, %v3983
      %3985 = vdwg.mxu0
      %3986 = vmatpush.msra.mxu0 0.0
      %3987 = vmatpush.msra.mxu0 0.0
      %3988 = vmatpush.msra.mxu0 0.0
      %3989 = vmatpush.msra.mxu0 0.0
      %3990 = vmatpush.msra.mxu0 0.0
      %3991 = vmatpush.msra.mxu0 0.0
      %3992 = vmatpush.msra.mxu0 0.0
      %3993 = vmatpush.msra.mxu0 0.0
      %3994 = vmatpush.msra.mxu0 0.0
      %3995 = vmatpush.msra.mxu0 0.0
      %3996 = vmatpush.msra.mxu0 0.0
      %3997 = vmatpush.msra.mxu0 0.0
      %3998 = vmatpush.msra.mxu0 0.0
      %3999 = vmatpush.msra.mxu0 0.0
      %4000 = vmatpush.msra.mxu0 %v3935
      %4001 = vmatpush.msra.mxu0 %v3913
      %4002 = vmatmul.f32.gmra.mxu0 %v3923
      %v4003 = vpop.f32.mrf.mxu0
      %v4004 = vadd.f32 0.0, %v4003
      %4005 = vmatmul.f32.gmra.mxu0 %v3926
      %v4006 = vpop.f32.mrf.mxu0
      %v4007 = vadd.f32 0.0, %v4006
      %4008 = vdwg.mxu0
      %4009 = vmatpush.msra.mxu0 0.0
      %4010 = vmatpush.msra.mxu0 0.0
      %4011 = vmatpush.msra.mxu0 0.0
      %4012 = vmatpush.msra.mxu0 0.0
      %4013 = vmatpush.msra.mxu0 0.0
      %4014 = vmatpush.msra.mxu0 0.0
      %4015 = vmatpush.msra.mxu0 0.0
      %4016 = vmatpush.msra.mxu0 0.0
      %4017 = vmatpush.msra.mxu0 0.0
      %4018 = vmatpush.msra.mxu0 0.0
      %4019 = vmatpush.msra.mxu0 0.0
      %4020 = vmatpush.msra.mxu0 0.0
      %4021 = vmatpush.msra.mxu0 0.0
      %4022 = vmatpush.msra.mxu0 0.0
      %4023 = vmatpush.msra.mxu0 %v3938
      %4024 = vmatpush.msra.mxu0 %v3914
      %4025 = vmatmul.f32.gmra.mxu0 %v3923
      %v4026 = vpop.f32.mrf.mxu0
      %v4027 = vadd.f32 0.0, %v4026
      %4028 = vmatmul.f32.gmra.mxu0 %v3926
      %v4029 = vpop.f32.mrf.mxu0
      %v4030 = vadd.f32 0.0, %v4029
      %4031 = vdwg.mxu0
      %v4032 = vadd.f32 %v3892, %v3958
      %v4033 = vadd.f32 %v3893, %v3981
      %v4034 = vadd.f32 %v3894, %v4004
      %v4035 = vadd.f32 %v3895, %v4027
      %v4036 = vadd.f32 %v3896, %v3961
      %v4037 = vadd.f32 %v3897, %v3984
      %v4038 = vadd.f32 %v3898, %v4007
      %v4039 = vadd.f32 %v3899, %v4030
      %s4040 = scalar_lea.vmem %s1, 96
      %v4041 = vld [vmem:[%s4040] ss:$8 sm:$0xf]
      %v4043 = vperm.slane %v4041, 0
      %v4044 = vperm.slane %v4041, 1
      %v4045 = vperm.slane %v4041, 2
      %v4046 = vperm.slane %v4041, 3
      %v4051 = vmul.f32 %v1285, %v4043
      %v4052 = vmul.f32 %v1283, %v4044
      %v4053 = vmul.f32 %v1281, %v4045
      %v4054 = vmul.f32 %v1287, %v4046
      %v4055 = vmul.f32 %v1286, %v4043
      %v4056 = vmul.f32 %v1284, %v4044
      %v4057 = vmul.f32 %v1282, %v4045
      %v4058 = vmul.f32 %v1288, %v4046
      %s4059 = scalar_lea.vmem %s2, 384
      %v4060 = vld [vmem:[%s4059] sm:$0xff]
      %v4061 = vld [vmem:[%s4059 + $0x8] sm:$0xf]
      %v4063 = vsel %vm319, %v4060, 0
      %v4066 = vsel %vm319, %v4061, 0
      %v4069 = vsel %vm326, %v4055, 0
      %v4072 = vsel %vm326, %v4056, 0
      %v4075 = vsel %vm326, %v4057, 0
      %v4078 = vsel %vm326, %v4058, 0
      %4080 = vmatpush.msra.mxu0 0.0
      %4081 = vmatpush.msra.mxu0 0.0
      %4082 = vmatpush.msra.mxu0 0.0
      %4083 = vmatpush.msra.mxu0 0.0
      %4084 = vmatpush.msra.mxu0 0.0
      %4085 = vmatpush.msra.mxu0 0.0
      %4086 = vmatpush.msra.mxu0 0.0
      %4087 = vmatpush.msra.mxu0 0.0
      %4088 = vmatpush.msra.mxu0 0.0
      %4089 = vmatpush.msra.mxu0 0.0
      %4090 = vmatpush.msra.mxu0 0.0
      %4091 = vmatpush.msra.mxu0 0.0
      %4092 = vmatpush.msra.mxu0 0.0
      %4093 = vmatpush.msra.mxu0 0.0
      %4094 = vmatpush.msra.mxu0 %v4069
      %4095 = vmatpush.msra.mxu0 %v4051
      %4096 = vmatmul.f32.gmra.mxu0 %v4063
      %v4097 = vpop.f32.mrf.mxu0
      %v4098 = vadd.f32 0.0, %v4097
      %4099 = vmatmul.f32.gmra.mxu0 %v4066
      %v4100 = vpop.f32.mrf.mxu0
      %v4101 = vadd.f32 0.0, %v4100
      %4102 = vdwg.mxu0
      %4103 = vmatpush.msra.mxu0 0.0
      %4104 = vmatpush.msra.mxu0 0.0
      %4105 = vmatpush.msra.mxu0 0.0
      %4106 = vmatpush.msra.mxu0 0.0
      %4107 = vmatpush.msra.mxu0 0.0
      %4108 = vmatpush.msra.mxu0 0.0
      %4109 = vmatpush.msra.mxu0 0.0
      %4110 = vmatpush.msra.mxu0 0.0
      %4111 = vmatpush.msra.mxu0 0.0
      %4112 = vmatpush.msra.mxu0 0.0
      %4113 = vmatpush.msra.mxu0 0.0
      %4114 = vmatpush.msra.mxu0 0.0
      %4115 = vmatpush.msra.mxu0 0.0
      %4116 = vmatpush.msra.mxu0 0.0
      %4117 = vmatpush.msra.mxu0 %v4072
      %4118 = vmatpush.msra.mxu0 %v4052
      %4119 = vmatmul.f32.gmra.mxu0 %v4063
      %v4120 = vpop.f32.mrf.mxu0
      %v4121 = vadd.f32 0.0, %v4120
      %4122 = vmatmul.f32.gmra.mxu0 %v4066
      %v4123 = vpop.f32.mrf.mxu0
      %v4124 = vadd.f32 0.0, %v4123
      %4125 = vdwg.mxu0
      %4126 = vmatpush.msra.mxu0 0.0
      %4127 = vmatpush.msra.mxu0 0.0
      %4128 = vmatpush.msra.mxu0 0.0
      %4129 = vmatpush.msra.mxu0 0.0
      %4130 = vmatpush.msra.mxu0 0.0
      %4131 = vmatpush.msra.mxu0 0.0
      %4132 = vmatpush.msra.mxu0 0.0
      %4133 = vmatpush.msra.mxu0 0.0
      %4134 = vmatpush.msra.mxu0 0.0
      %4135 = vmatpush.msra.mxu0 0.0
      %4136 = vmatpush.msra.mxu0 0.0
      %4137 = vmatpush.msra.mxu0 0.0
      %4138 = vmatpush.msra.mxu0 0.0
      %4139 = vmatpush.msra.mxu0 0.0
      %4140 = vmatpush.msra.mxu0 %v4075
      %4141 = vmatpush.msra.mxu0 %v4053
      %4142 = vmatmul.f32.gmra.mxu0 %v4063
      %v4143 = vpop.f32.mrf.mxu0
      %v4144 = vadd.f32 0.0, %v4143
      %4145 = vmatmul.f32.gmra.mxu0 %v4066
      %v4146 = vpop.f32.mrf.mxu0
      %v4147 = vadd.f32 0.0, %v4146
      %4148 = vdwg.mxu0
      %4149 = vmatpush.msra.mxu0 0.0
      %4150 = vmatpush.msra.mxu0 0.0
      %4151 = vmatpush.msra.mxu0 0.0
      %4152 = vmatpush.msra.mxu0 0.0
      %4153 = vmatpush.msra.mxu0 0.0
      %4154 = vmatpush.msra.mxu0 0.0
      %4155 = vmatpush.msra.mxu0 0.0
      %4156 = vmatpush.msra.mxu0 0.0
      %4157 = vmatpush.msra.mxu0 0.0
      %4158 = vmatpush.msra.mxu0 0.0
      %4159 = vmatpush.msra.mxu0 0.0
      %4160 = vmatpush.msra.mxu0 0.0
      %4161 = vmatpush.msra.mxu0 0.0
      %4162 = vmatpush.msra.mxu0 0.0
      %4163 = vmatpush.msra.mxu0 %v4078
      %4164 = vmatpush.msra.mxu0 %v4054
      %4165 = vmatmul.f32.gmra.mxu0 %v4063
      %v4166 = vpop.f32.mrf.mxu0
      %v4167 = vadd.f32 0.0, %v4166
      %4168 = vmatmul.f32.gmra.mxu0 %v4066
      %v4169 = vpop.f32.mrf.mxu0
      %v4170 = vadd.f32 0.0, %v4169
      %4171 = vdwg.mxu0
      %v4172 = vadd.f32 %v4032, %v4098
      %v4173 = vadd.f32 %v4033, %v4121
      %v4174 = vadd.f32 %v4034, %v4144
      %v4175 = vadd.f32 %v4035, %v4167
      %v4176 = vadd.f32 %v4036, %v4101
      %v4177 = vadd.f32 %v4037, %v4124
      %v4178 = vadd.f32 %v4038, %v4147
      %v4179 = vadd.f32 %v4039, %v4170
      %s4180 = scalar_lea.vmem %s1, 97
      %v4181 = vld [vmem:[%s4180] ss:$8 sm:$0xf]
      %v4183 = vperm.slane %v4181, 0
      %v4184 = vperm.slane %v4181, 1
      %v4185 = vperm.slane %v4181, 2
      %v4186 = vperm.slane %v4181, 3
      %v4191 = vmul.f32 %v1450, %v4183
      %v4192 = vmul.f32 %v1448, %v4184
      %v4193 = vmul.f32 %v1446, %v4185
      %v4194 = vmul.f32 %v1452, %v4186
      %v4195 = vmul.f32 %v1451, %v4183
      %v4196 = vmul.f32 %v1449, %v4184
      %v4197 = vmul.f32 %v1447, %v4185
      %v4198 = vmul.f32 %v1453, %v4186
      %s4199 = scalar_lea.vmem %s2, 400
      %v4200 = vld [vmem:[%s4199] sm:$0xff]
      %v4201 = vld [vmem:[%s4199 + $0x8] sm:$0xf]
      %v4203 = vsel %vm319, %v4200, 0
      %v4206 = vsel %vm319, %v4201, 0
      %v4209 = vsel %vm326, %v4195, 0
      %v4212 = vsel %vm326, %v4196, 0
      %v4215 = vsel %vm326, %v4197, 0
      %v4218 = vsel %vm326, %v4198, 0
      %4220 = vmatpush.msra.mxu0 0.0
      %4221 = vmatpush.msra.mxu0 0.0
      %4222 = vmatpush.msra.mxu0 0.0
      %4223 = vmatpush.msra.mxu0 0.0
      %4224 = vmatpush.msra.mxu0 0.0
      %4225 = vmatpush.msra.mxu0 0.0
      %4226 = vmatpush.msra.mxu0 0.0
      %4227 = vmatpush.msra.mxu0 0.0
      %4228 = vmatpush.msra.mxu0 0.0
      %4229 = vmatpush.msra.mxu0 0.0
      %4230 = vmatpush.msra.mxu0 0.0
      %4231 = vmatpush.msra.mxu0 0.0
      %4232 = vmatpush.msra.mxu0 0.0
      %4233 = vmatpush.msra.mxu0 0.0
      %4234 = vmatpush.msra.mxu0 %v4209
      %4235 = vmatpush.msra.mxu0 %v4191
      %4236 = vmatmul.f32.gmra.mxu0 %v4203
      %v4237 = vpop.f32.mrf.mxu0
      %v4238 = vadd.f32 0.0, %v4237
      %4239 = vmatmul.f32.gmra.mxu0 %v4206
      %v4240 = vpop.f32.mrf.mxu0
      %v4241 = vadd.f32 0.0, %v4240
      %4242 = vdwg.mxu0
      %4243 = vmatpush.msra.mxu0 0.0
      %4244 = vmatpush.msra.mxu0 0.0
      %4245 = vmatpush.msra.mxu0 0.0
      %4246 = vmatpush.msra.mxu0 0.0
      %4247 = vmatpush.msra.mxu0 0.0
      %4248 = vmatpush.msra.mxu0 0.0
      %4249 = vmatpush.msra.mxu0 0.0
      %4250 = vmatpush.msra.mxu0 0.0
      %4251 = vmatpush.msra.mxu0 0.0
      %4252 = vmatpush.msra.mxu0 0.0
      %4253 = vmatpush.msra.mxu0 0.0
      %4254 = vmatpush.msra.mxu0 0.0
      %4255 = vmatpush.msra.mxu0 0.0
      %4256 = vmatpush.msra.mxu0 0.0
      %4257 = vmatpush.msra.mxu0 %v4212
      %4258 = vmatpush.msra.mxu0 %v4192
      %4259 = vmatmul.f32.gmra.mxu0 %v4203
      %v4260 = vpop.f32.mrf.mxu0
      %v4261 = vadd.f32 0.0, %v4260
      %4262 = vmatmul.f32.gmra.mxu0 %v4206
      %v4263 = vpop.f32.mrf.mxu0
      %v4264 = vadd.f32 0.0, %v4263
      %4265 = vdwg.mxu0
      %4266 = vmatpush.msra.mxu0 0.0
      %4267 = vmatpush.msra.mxu0 0.0
      %4268 = vmatpush.msra.mxu0 0.0
      %4269 = vmatpush.msra.mxu0 0.0
      %4270 = vmatpush.msra.mxu0 0.0
      %4271 = vmatpush.msra.mxu0 0.0
      %4272 = vmatpush.msra.mxu0 0.0
      %4273 = vmatpush.msra.mxu0 0.0
      %4274 = vmatpush.msra.mxu0 0.0
      %4275 = vmatpush.msra.mxu0 0.0
      %4276 = vmatpush.msra.mxu0 0.0
      %4277 = vmatpush.msra.mxu0 0.0
      %4278 = vmatpush.msra.mxu0 0.0
      %4279 = vmatpush.msra.mxu0 0.0
      %4280 = vmatpush.msra.mxu0 %v4215
      %4281 = vmatpush.msra.mxu0 %v4193
      %4282 = vmatmul.f32.gmra.mxu0 %v4203
      %v4283 = vpop.f32.mrf.mxu0
      %v4284 = vadd.f32 0.0, %v4283
      %4285 = vmatmul.f32.gmra.mxu0 %v4206
      %v4286 = vpop.f32.mrf.mxu0
      %v4287 = vadd.f32 0.0, %v4286
      %4288 = vdwg.mxu0
      %4289 = vmatpush.msra.mxu0 0.0
      %4290 = vmatpush.msra.mxu0 0.0
      %4291 = vmatpush.msra.mxu0 0.0
      %4292 = vmatpush.msra.mxu0 0.0
      %4293 = vmatpush.msra.mxu0 0.0
      %4294 = vmatpush.msra.mxu0 0.0
      %4295 = vmatpush.msra.mxu0 0.0
      %4296 = vmatpush.msra.mxu0 0.0
      %4297 = vmatpush.msra.mxu0 0.0
      %4298 = vmatpush.msra.mxu0 0.0
      %4299 = vmatpush.msra.mxu0 0.0
      %4300 = vmatpush.msra.mxu0 0.0
      %4301 = vmatpush.msra.mxu0 0.0
      %4302 = vmatpush.msra.mxu0 0.0
      %4303 = vmatpush.msra.mxu0 %v4218
      %4304 = vmatpush.msra.mxu0 %v4194
      %4305 = vmatmul.f32.gmra.mxu0 %v4203
      %v4306 = vpop.f32.mrf.mxu0
      %v4307 = vadd.f32 0.0, %v4306
      %4308 = vmatmul.f32.gmra.mxu0 %v4206
      %v4309 = vpop.f32.mrf.mxu0
      %v4310 = vadd.f32 0.0, %v4309
      %4311 = vdwg.mxu0
      %v4312 = vadd.f32 %v4172, %v4238
      %v4313 = vadd.f32 %v4173, %v4261
      %v4314 = vadd.f32 %v4174, %v4284
      %v4315 = vadd.f32 %v4175, %v4307
      %v4316 = vadd.f32 %v4176, %v4241
      %v4317 = vadd.f32 %v4177, %v4264
      %v4318 = vadd.f32 %v4178, %v4287
      %v4319 = vadd.f32 %v4179, %v4310
      %s4320 = scalar_lea.vmem %s1, 98
      %v4321 = vld [vmem:[%s4320] ss:$8 sm:$0xf]
      %v4323 = vperm.slane %v4321, 0
      %v4324 = vperm.slane %v4321, 1
      %v4325 = vperm.slane %v4321, 2
      %v4326 = vperm.slane %v4321, 3
      %v4331 = vmul.f32 %v1615, %v4323
      %v4332 = vmul.f32 %v1613, %v4324
      %v4333 = vmul.f32 %v1611, %v4325
      %v4334 = vmul.f32 %v1617, %v4326
      %v4335 = vmul.f32 %v1616, %v4323
      %v4336 = vmul.f32 %v1614, %v4324
      %v4337 = vmul.f32 %v1612, %v4325
      %v4338 = vmul.f32 %v1618, %v4326
      %s4339 = scalar_lea.vmem %s2, 416
      %v4340 = vld [vmem:[%s4339] sm:$0xff]
      %v4341 = vld [vmem:[%s4339 + $0x8] sm:$0xf]
      %v4343 = vsel %vm319, %v4340, 0
      %v4346 = vsel %vm319, %v4341, 0
      %v4349 = vsel %vm326, %v4335, 0
      %v4352 = vsel %vm326, %v4336, 0
      %v4355 = vsel %vm326, %v4337, 0
      %v4358 = vsel %vm326, %v4338, 0
      %4360 = vmatpush.msra.mxu0 0.0
      %4361 = vmatpush.msra.mxu0 0.0
      %4362 = vmatpush.msra.mxu0 0.0
      %4363 = vmatpush.msra.mxu0 0.0
      %4364 = vmatpush.msra.mxu0 0.0
      %4365 = vmatpush.msra.mxu0 0.0
      %4366 = vmatpush.msra.mxu0 0.0
      %4367 = vmatpush.msra.mxu0 0.0
      %4368 = vmatpush.msra.mxu0 0.0
      %4369 = vmatpush.msra.mxu0 0.0
      %4370 = vmatpush.msra.mxu0 0.0
      %4371 = vmatpush.msra.mxu0 0.0
      %4372 = vmatpush.msra.mxu0 0.0
      %4373 = vmatpush.msra.mxu0 0.0
      %4374 = vmatpush.msra.mxu0 %v4349
      %4375 = vmatpush.msra.mxu0 %v4331
      %4376 = vmatmul.f32.gmra.mxu0 %v4343
      %v4377 = vpop.f32.mrf.mxu0
      %v4378 = vadd.f32 0.0, %v4377
      %4379 = vmatmul.f32.gmra.mxu0 %v4346
      %v4380 = vpop.f32.mrf.mxu0
      %v4381 = vadd.f32 0.0, %v4380
      %4382 = vdwg.mxu0
      %4383 = vmatpush.msra.mxu0 0.0
      %4384 = vmatpush.msra.mxu0 0.0
      %4385 = vmatpush.msra.mxu0 0.0
      %4386 = vmatpush.msra.mxu0 0.0
      %4387 = vmatpush.msra.mxu0 0.0
      %4388 = vmatpush.msra.mxu0 0.0
      %4389 = vmatpush.msra.mxu0 0.0
      %4390 = vmatpush.msra.mxu0 0.0
      %4391 = vmatpush.msra.mxu0 0.0
      %4392 = vmatpush.msra.mxu0 0.0
      %4393 = vmatpush.msra.mxu0 0.0
      %4394 = vmatpush.msra.mxu0 0.0
      %4395 = vmatpush.msra.mxu0 0.0
      %4396 = vmatpush.msra.mxu0 0.0
      %4397 = vmatpush.msra.mxu0 %v4352
      %4398 = vmatpush.msra.mxu0 %v4332
      %4399 = vmatmul.f32.gmra.mxu0 %v4343
      %v4400 = vpop.f32.mrf.mxu0
      %v4401 = vadd.f32 0.0, %v4400
      %4402 = vmatmul.f32.gmra.mxu0 %v4346
      %v4403 = vpop.f32.mrf.mxu0
      %v4404 = vadd.f32 0.0, %v4403
      %4405 = vdwg.mxu0
      %4406 = vmatpush.msra.mxu0 0.0
      %4407 = vmatpush.msra.mxu0 0.0
      %4408 = vmatpush.msra.mxu0 0.0
      %4409 = vmatpush.msra.mxu0 0.0
      %4410 = vmatpush.msra.mxu0 0.0
      %4411 = vmatpush.msra.mxu0 0.0
      %4412 = vmatpush.msra.mxu0 0.0
      %4413 = vmatpush.msra.mxu0 0.0
      %4414 = vmatpush.msra.mxu0 0.0
      %4415 = vmatpush.msra.mxu0 0.0
      %4416 = vmatpush.msra.mxu0 0.0
      %4417 = vmatpush.msra.mxu0 0.0
      %4418 = vmatpush.msra.mxu0 0.0
      %4419 = vmatpush.msra.mxu0 0.0
      %4420 = vmatpush.msra.mxu0 %v4355
      %4421 = vmatpush.msra.mxu0 %v4333
      %4422 = vmatmul.f32.gmra.mxu0 %v4343
      %v4423 = vpop.f32.mrf.mxu0
      %v4424 = vadd.f32 0.0, %v4423
      %4425 = vmatmul.f32.gmra.mxu0 %v4346
      %v4426 = vpop.f32.mrf.mxu0
      %v4427 = vadd.f32 0.0, %v4426
      %4428 = vdwg.mxu0
      %4429 = vmatpush.msra.mxu0 0.0
      %4430 = vmatpush.msra.mxu0 0.0
      %4431 = vmatpush.msra.mxu0 0.0
      %4432 = vmatpush.msra.mxu0 0.0
      %4433 = vmatpush.msra.mxu0 0.0
      %4434 = vmatpush.msra.mxu0 0.0
      %4435 = vmatpush.msra.mxu0 0.0
      %4436 = vmatpush.msra.mxu0 0.0
      %4437 = vmatpush.msra.mxu0 0.0
      %4438 = vmatpush.msra.mxu0 0.0
      %4439 = vmatpush.msra.mxu0 0.0
      %4440 = vmatpush.msra.mxu0 0.0
      %4441 = vmatpush.msra.mxu0 0.0
      %4442 = vmatpush.msra.mxu0 0.0
      %4443 = vmatpush.msra.mxu0 %v4358
      %4444 = vmatpush.msra.mxu0 %v4334
      %4445 = vmatmul.f32.gmra.mxu0 %v4343
      %v4446 = vpop.f32.mrf.mxu0
      %v4447 = vadd.f32 0.0, %v4446
      %4448 = vmatmul.f32.gmra.mxu0 %v4346
      %v4449 = vpop.f32.mrf.mxu0
      %v4450 = vadd.f32 0.0, %v4449
      %4451 = vdwg.mxu0
      %v4452 = vadd.f32 %v4312, %v4378
      %v4453 = vadd.f32 %v4313, %v4401
      %v4454 = vadd.f32 %v4314, %v4424
      %v4455 = vadd.f32 %v4315, %v4447
      %v4456 = vadd.f32 %v4316, %v4381
      %v4457 = vadd.f32 %v4317, %v4404
      %v4458 = vadd.f32 %v4318, %v4427
      %v4459 = vadd.f32 %v4319, %v4450
      %v4460 = vadd.f32 %v4452, %v4453
      %v4461 = vadd.f32 %v4460, %v4454
      %v4462 = vadd.f32 %v4461, %v4455
      %4463 = vadd.xlane.f32.xlu0 %v4462
      %v4464 = vpop.xlane.xlu0 %4463
      %v4465 = vsel %vm326, %v4456, 0.0
      %v4466 = vsel %vm326, %v4457, 0.0
      %v4467 = vadd.f32 %v4465, %v4466
      %v4468 = vsel %vm326, %v4458, 0.0
      %v4469 = vadd.f32 %v4467, %v4468
      %v4470 = vsel %vm326, %v4459, 0.0
      %v4471 = vadd.f32 %v4469, %v4470
      %4472 = vadd.xlane.f32.xlu0 %v4471
      %v4473 = vpop.xlane.xlu0 %4472
      %v4474 = vmul.f32 %v4464, 0.001953125
      %v4475 = vmul.f32 %v4473, 0.001953125
      %v4476 = vmul.f32 %v4452, %v4452
      %v4477 = vmul.f32 %v4453, %v4453
      %v4478 = vmul.f32 %v4454, %v4454
      %v4479 = vmul.f32 %v4455, %v4455
      %v4480 = vmul.f32 %v4456, %v4456
      %v4481 = vmul.f32 %v4457, %v4457
      %v4482 = vmul.f32 %v4458, %v4458
      %v4483 = vmul.f32 %v4459, %v4459
      %v4484 = vadd.f32 %v4476, %v4477
      %v4485 = vadd.f32 %v4484, %v4478
      %v4486 = vadd.f32 %v4485, %v4479
      %4487 = vadd.xlane.f32.xlu0 %v4486
      %v4488 = vpop.xlane.xlu0 %4487
      %v4489 = vsel %vm326, %v4480, 0.0
      %v4490 = vsel %vm326, %v4481, 0.0
      %v4491 = vadd.f32 %v4489, %v4490
      %v4492 = vsel %vm326, %v4482, 0.0
      %v4493 = vadd.f32 %v4491, %v4492
      %v4494 = vsel %vm326, %v4483, 0.0
      %v4495 = vadd.f32 %v4493, %v4494
      %4496 = vadd.xlane.f32.xlu0 %v4495
      %v4497 = vpop.xlane.xlu0 %4496
      %v4498 = vmul.f32 %v4488, 0.001953125
      %v4499 = vmul.f32 %v4497, 0.001953125
      %v4500 = vmul.f32 %v4474, %v4474
      %v4501 = vmul.f32 %v4475, %v4475
      %v4502 = vsub.f32 %v4498, %v4500
      %v4503 = vsub.f32 %v4499, %v4501
      %v4504 = vmax.f32 %v4502, 0.0
      %v4505 = vmax.f32 %v4503, 0.0
      %v4506 = vsub.f32 %v4452, %v4474
      %v4507 = vsub.f32 %v4453, %v4474
      %v4508 = vsub.f32 %v4454, %v4474
      %v4509 = vsub.f32 %v4455, %v4474
      %v4510 = vsub.f32 %v4456, %v4475
      %v4511 = vsub.f32 %v4457, %v4475
      %v4512 = vsub.f32 %v4458, %v4475
      %v4513 = vsub.f32 %v4459, %v4475
      %v4514 = vadd.f32 %v4504, 1e-05
      %v4515 = vadd.f32 %v4505, 1e-05
      %v4516 = vrsqrt.pop %v4514
      %v4517 = vmul.f32 %v4516, %v4514
      %v4518 = vmul.f32 %v4517, %v4516
      %v4519 = vmul.f32 0.5, %v4518
      %v4520 = vsub.f32 1.5, %v4519
      %v4521 = vmul.f32 %v4516, %v4520
      %vm4522 = vweird.f32 %v4514
      %vm4523 = vweird.f32 %v4516
      %vm4524 = vmor %vm4522, %vm4523
      %v4525 = vsel %vm4524, %v4516, %v4521
      %v4526 = vrsqrt.pop %v4515
      %v4527 = vmul.f32 %v4526, %v4515
      %v4528 = vmul.f32 %v4527, %v4526
      %v4529 = vmul.f32 0.5, %v4528
      %v4530 = vsub.f32 1.5, %v4529
      %v4531 = vmul.f32 %v4526, %v4530
      %vm4532 = vweird.f32 %v4515
      %vm4533 = vweird.f32 %v4526
      %vm4534 = vmor %vm4532, %vm4533
      %v4535 = vsel %vm4534, %v4526, %v4531
      %v4536 = vmul.f32 %v4506, %v4525
      %v4537 = vmul.f32 %v4507, %v4525
      %v4538 = vmul.f32 %v4508, %v4525
      %v4539 = vmul.f32 %v4509, %v4525
      %v4540 = vmul.f32 %v4510, %v4535
      %v4541 = vmul.f32 %v4511, %v4535
      %v4542 = vmul.f32 %v4512, %v4535
      %v4543 = vmul.f32 %v4513, %v4535
      %v4544 = vmul.f32 %v4536, 0.1
      %v4545 = vmul.f32 %v4537, 0.1
      %v4546 = vmul.f32 %v4538, 0.1
      %v4547 = vmul.f32 %v4539, 0.1
      %v4548 = vmul.f32 %v4540, 0.1
      %v4549 = vmul.f32 %v4541, 0.1
      %v4550 = vmul.f32 %v4542, 0.1
      %v4551 = vmul.f32 %v4543, 0.1
      %v4552 = vmax.f32 %v4536, %v4544
      %v4553 = vmax.f32 %v4537, %v4545
      %v4554 = vmax.f32 %v4538, %v4546
      %v4555 = vmax.f32 %v4539, %v4547
      %v4556 = vmax.f32 %v4540, %v4548
      %v4557 = vmax.f32 %v4541, %v4549
      %v4558 = vmax.f32 %v4542, %v4550
      %v4559 = vmax.f32 %v4543, %v4551
      %v4560 = vld [vmem:[%s5] sm:$0xff]
      %v4561 = vld [vmem:[%s5 + $0x8] sm:$0xf]
      %4563 = vset.pattern.permute.xlu0 0
      %4564 = vperm.xlu0 %4563, %v4560
      %v4565 = vpop.permute.xlu0 %4564
      %4568 = vset.pattern.permute.xlu0 0
      %4569 = vperm.xlu0 %4568, %v4561
      %v4570 = vpop.permute.xlu0 %4569
      %4572 = vrot.lane.b32.xlu0 %v4552, 73
      %v4573 = vpop.permute.xlu0 %4572
      %4574 = vrot.lane.b32.xlu0 %v4556, 73
      %v4575 = vpop.permute.xlu0 %4574
      %4576 = vrot.lane.b32.xlu0 %v4553, 73
      %v4577 = vpop.permute.xlu0 %4576
      %4578 = vrot.lane.b32.xlu0 %v4557, 73
      %v4579 = vpop.permute.xlu0 %4578
      %4580 = vrot.lane.b32.xlu0 %v4554, 73
      %v4581 = vpop.permute.xlu0 %4580
      %4582 = vrot.lane.b32.xlu0 %v4558, 73
      %v4583 = vpop.permute.xlu0 %4582
      %4584 = vrot.lane.b32.xlu0 %v4555, 73
      %v4585 = vpop.permute.xlu0 %4584
      %4586 = vrot.lane.b32.xlu0 %v4559, 73
      %v4587 = vpop.permute.xlu0 %4586
      %v4588 = vsel %vm290, %v4581, %v4585
      %v4589 = vsel %vm290, %v4583, %v4587
      %v4590 = vsel %vm290, %v4577, %v4581
      %v4591 = vsel %vm290, %v4579, %v4583
      %v4592 = vsel %vm290, %v4573, %v4577
      %v4593 = vsel %vm290, %v4575, %v4579
      %v4594 = vsel %vm290, %v4585, %v4573
      %v4595 = vsel %vm290, %v4587, %v4575
      %v4596 = vmul.f32 %v4594, %v301
      %v4597 = vmul.f32 %v4592, %v302
      %v4598 = vmul.f32 %v4590, %v303
      %v4599 = vmul.f32 %v4588, %v304
      %v4600 = vmul.f32 %v4595, %v301
      %v4601 = vmul.f32 %v4593, %v302
      %v4602 = vmul.f32 %v4591, %v303
      %v4603 = vmul.f32 %v4589, %v304
      %v4604 = vld [vmem:[%s4] sm:$0xff]
      %v4605 = vld [vmem:[%s4 + $0x8] sm:$0xf]
      %v4607 = vsel %vm319, %v4604, 0
      %v4610 = vsel %vm319, %v4605, 0
      %v4613 = vsel %vm326, %v4600, 0
      %v4616 = vsel %vm326, %v4601, 0
      %v4619 = vsel %vm326, %v4602, 0
      %v4622 = vsel %vm326, %v4603, 0
      %4624 = vmatpush.msra.mxu0 0.0
      %4625 = vmatpush.msra.mxu0 0.0
      %4626 = vmatpush.msra.mxu0 0.0
      %4627 = vmatpush.msra.mxu0 0.0
      %4628 = vmatpush.msra.mxu0 0.0
      %4629 = vmatpush.msra.mxu0 0.0
      %4630 = vmatpush.msra.mxu0 0.0
      %4631 = vmatpush.msra.mxu0 0.0
      %4632 = vmatpush.msra.mxu0 0.0
      %4633 = vmatpush.msra.mxu0 0.0
      %4634 = vmatpush.msra.mxu0 0.0
      %4635 = vmatpush.msra.mxu0 0.0
      %4636 = vmatpush.msra.mxu0 0.0
      %4637 = vmatpush.msra.mxu0 0.0
      %4638 = vmatpush.msra.mxu0 %v4613
      %4639 = vmatpush.msra.mxu0 %v4596
      %4640 = vmatmul.f32.gmra.mxu0 %v4607
      %v4641 = vpop.f32.mrf.mxu0
      %v4642 = vadd.f32 0.0, %v4641
      %4643 = vmatmul.f32.gmra.mxu0 %v4610
      %v4644 = vpop.f32.mrf.mxu0
      %v4645 = vadd.f32 0.0, %v4644
      %4646 = vdwg.mxu0
      %4647 = vmatpush.msra.mxu0 0.0
      %4648 = vmatpush.msra.mxu0 0.0
      %4649 = vmatpush.msra.mxu0 0.0
      %4650 = vmatpush.msra.mxu0 0.0
      %4651 = vmatpush.msra.mxu0 0.0
      %4652 = vmatpush.msra.mxu0 0.0
      %4653 = vmatpush.msra.mxu0 0.0
      %4654 = vmatpush.msra.mxu0 0.0
      %4655 = vmatpush.msra.mxu0 0.0
      %4656 = vmatpush.msra.mxu0 0.0
      %4657 = vmatpush.msra.mxu0 0.0
      %4658 = vmatpush.msra.mxu0 0.0
      %4659 = vmatpush.msra.mxu0 0.0
      %4660 = vmatpush.msra.mxu0 0.0
      %4661 = vmatpush.msra.mxu0 %v4616
      %4662 = vmatpush.msra.mxu0 %v4597
      %4663 = vmatmul.f32.gmra.mxu0 %v4607
      %v4664 = vpop.f32.mrf.mxu0
      %v4665 = vadd.f32 0.0, %v4664
      %4666 = vmatmul.f32.gmra.mxu0 %v4610
      %v4667 = vpop.f32.mrf.mxu0
      %v4668 = vadd.f32 0.0, %v4667
      %4669 = vdwg.mxu0
      %4670 = vmatpush.msra.mxu0 0.0
      %4671 = vmatpush.msra.mxu0 0.0
      %4672 = vmatpush.msra.mxu0 0.0
      %4673 = vmatpush.msra.mxu0 0.0
      %4674 = vmatpush.msra.mxu0 0.0
      %4675 = vmatpush.msra.mxu0 0.0
      %4676 = vmatpush.msra.mxu0 0.0
      %4677 = vmatpush.msra.mxu0 0.0
      %4678 = vmatpush.msra.mxu0 0.0
      %4679 = vmatpush.msra.mxu0 0.0
      %4680 = vmatpush.msra.mxu0 0.0
      %4681 = vmatpush.msra.mxu0 0.0
      %4682 = vmatpush.msra.mxu0 0.0
      %4683 = vmatpush.msra.mxu0 0.0
      %4684 = vmatpush.msra.mxu0 %v4619
      %4685 = vmatpush.msra.mxu0 %v4598
      %4686 = vmatmul.f32.gmra.mxu0 %v4607
      %v4687 = vpop.f32.mrf.mxu0
      %v4688 = vadd.f32 0.0, %v4687
      %4689 = vmatmul.f32.gmra.mxu0 %v4610
      %v4690 = vpop.f32.mrf.mxu0
      %v4691 = vadd.f32 0.0, %v4690
      %4692 = vdwg.mxu0
      %4693 = vmatpush.msra.mxu0 0.0
      %4694 = vmatpush.msra.mxu0 0.0
      %4695 = vmatpush.msra.mxu0 0.0
      %4696 = vmatpush.msra.mxu0 0.0
      %4697 = vmatpush.msra.mxu0 0.0
      %4698 = vmatpush.msra.mxu0 0.0
      %4699 = vmatpush.msra.mxu0 0.0
      %4700 = vmatpush.msra.mxu0 0.0
      %4701 = vmatpush.msra.mxu0 0.0
      %4702 = vmatpush.msra.mxu0 0.0
      %4703 = vmatpush.msra.mxu0 0.0
      %4704 = vmatpush.msra.mxu0 0.0
      %4705 = vmatpush.msra.mxu0 0.0
      %4706 = vmatpush.msra.mxu0 0.0
      %4707 = vmatpush.msra.mxu0 %v4622
      %4708 = vmatpush.msra.mxu0 %v4599
      %4709 = vmatmul.f32.gmra.mxu0 %v4607
      %v4710 = vpop.f32.mrf.mxu0
      %v4711 = vadd.f32 0.0, %v4710
      %4712 = vmatmul.f32.gmra.mxu0 %v4610
      %v4713 = vpop.f32.mrf.mxu0
      %v4714 = vadd.f32 0.0, %v4713
      %4715 = vdwg.mxu0
      %v4716 = vadd.f32 %v4565, %v4642
      %v4717 = vadd.f32 %v4565, %v4665
      %v4718 = vadd.f32 %v4565, %v4688
      %v4719 = vadd.f32 %v4565, %v4711
      %v4720 = vadd.f32 %v4570, %v4645
      %v4721 = vadd.f32 %v4570, %v4668
      %v4722 = vadd.f32 %v4570, %v4691
      %v4723 = vadd.f32 %v4570, %v4714
      %4724 = vrot.lane.b32.xlu0 %v4552, 72
      %v4725 = vpop.permute.xlu0 %4724
      %4726 = vrot.lane.b32.xlu0 %v4556, 72
      %v4727 = vpop.permute.xlu0 %4726
      %4728 = vrot.lane.b32.xlu0 %v4553, 72
      %v4729 = vpop.permute.xlu0 %4728
      %4730 = vrot.lane.b32.xlu0 %v4557, 72
      %v4731 = vpop.permute.xlu0 %4730
      %4732 = vrot.lane.b32.xlu0 %v4554, 72
      %v4733 = vpop.permute.xlu0 %4732
      %4734 = vrot.lane.b32.xlu0 %v4558, 72
      %v4735 = vpop.permute.xlu0 %4734
      %4736 = vrot.lane.b32.xlu0 %v4555, 72
      %v4737 = vpop.permute.xlu0 %4736
      %4738 = vrot.lane.b32.xlu0 %v4559, 72
      %v4739 = vpop.permute.xlu0 %4738
      %v4740 = vsel %vm455, %v4733, %v4737
      %v4741 = vsel %vm455, %v4735, %v4739
      %v4742 = vsel %vm455, %v4729, %v4733
      %v4743 = vsel %vm455, %v4731, %v4735
      %v4744 = vsel %vm455, %v4725, %v4729
      %v4745 = vsel %vm455, %v4727, %v4731
      %v4746 = vsel %vm455, %v4737, %v4725
      %v4747 = vsel %vm455, %v4739, %v4727
      %v4748 = vmul.f32 %v4746, %v467
      %v4749 = vmul.f32 %v4744, %v468
      %v4750 = vmul.f32 %v4742, %v469
      %v4751 = vmul.f32 %v4740, %v470
      %v4752 = vmul.f32 %v4747, %v467
      %v4753 = vmul.f32 %v4745, %v468
      %v4754 = vmul.f32 %v4743, %v469
      %v4755 = vmul.f32 %v4741, %v470
      %s4756 = scalar_lea.vmem %s4, 16
      %v4757 = vld [vmem:[%s4756] sm:$0xff]
      %v4758 = vld [vmem:[%s4756 + $0x8] sm:$0xf]
      %v4760 = vsel %vm319, %v4757, 0
      %v4763 = vsel %vm319, %v4758, 0
      %v4766 = vsel %vm326, %v4752, 0
      %v4769 = vsel %vm326, %v4753, 0
      %v4772 = vsel %vm326, %v4754, 0
      %v4775 = vsel %vm326, %v4755, 0
      %4777 = vmatpush.msra.mxu0 0.0
      %4778 = vmatpush.msra.mxu0 0.0
      %4779 = vmatpush.msra.mxu0 0.0
      %4780 = vmatpush.msra.mxu0 0.0
      %4781 = vmatpush.msra.mxu0 0.0
      %4782 = vmatpush.msra.mxu0 0.0
      %4783 = vmatpush.msra.mxu0 0.0
      %4784 = vmatpush.msra.mxu0 0.0
      %4785 = vmatpush.msra.mxu0 0.0
      %4786 = vmatpush.msra.mxu0 0.0
      %4787 = vmatpush.msra.mxu0 0.0
      %4788 = vmatpush.msra.mxu0 0.0
      %4789 = vmatpush.msra.mxu0 0.0
      %4790 = vmatpush.msra.mxu0 0.0
      %4791 = vmatpush.msra.mxu0 %v4766
      %4792 = vmatpush.msra.mxu0 %v4748
      %4793 = vmatmul.f32.gmra.mxu0 %v4760
      %v4794 = vpop.f32.mrf.mxu0
      %v4795 = vadd.f32 0.0, %v4794
      %4796 = vmatmul.f32.gmra.mxu0 %v4763
      %v4797 = vpop.f32.mrf.mxu0
      %v4798 = vadd.f32 0.0, %v4797
      %4799 = vdwg.mxu0
      %4800 = vmatpush.msra.mxu0 0.0
      %4801 = vmatpush.msra.mxu0 0.0
      %4802 = vmatpush.msra.mxu0 0.0
      %4803 = vmatpush.msra.mxu0 0.0
      %4804 = vmatpush.msra.mxu0 0.0
      %4805 = vmatpush.msra.mxu0 0.0
      %4806 = vmatpush.msra.mxu0 0.0
      %4807 = vmatpush.msra.mxu0 0.0
      %4808 = vmatpush.msra.mxu0 0.0
      %4809 = vmatpush.msra.mxu0 0.0
      %4810 = vmatpush.msra.mxu0 0.0
      %4811 = vmatpush.msra.mxu0 0.0
      %4812 = vmatpush.msra.mxu0 0.0
      %4813 = vmatpush.msra.mxu0 0.0
      %4814 = vmatpush.msra.mxu0 %v4769
      %4815 = vmatpush.msra.mxu0 %v4749
      %4816 = vmatmul.f32.gmra.mxu0 %v4760
      %v4817 = vpop.f32.mrf.mxu0
      %v4818 = vadd.f32 0.0, %v4817
      %4819 = vmatmul.f32.gmra.mxu0 %v4763
      %v4820 = vpop.f32.mrf.mxu0
      %v4821 = vadd.f32 0.0, %v4820
      %4822 = vdwg.mxu0
      %4823 = vmatpush.msra.mxu0 0.0
      %4824 = vmatpush.msra.mxu0 0.0
      %4825 = vmatpush.msra.mxu0 0.0
      %4826 = vmatpush.msra.mxu0 0.0
      %4827 = vmatpush.msra.mxu0 0.0
      %4828 = vmatpush.msra.mxu0 0.0
      %4829 = vmatpush.msra.mxu0 0.0
      %4830 = vmatpush.msra.mxu0 0.0
      %4831 = vmatpush.msra.mxu0 0.0
      %4832 = vmatpush.msra.mxu0 0.0
      %4833 = vmatpush.msra.mxu0 0.0
      %4834 = vmatpush.msra.mxu0 0.0
      %4835 = vmatpush.msra.mxu0 0.0
      %4836 = vmatpush.msra.mxu0 0.0
      %4837 = vmatpush.msra.mxu0 %v4772
      %4838 = vmatpush.msra.mxu0 %v4750
      %4839 = vmatmul.f32.gmra.mxu0 %v4760
      %v4840 = vpop.f32.mrf.mxu0
      %v4841 = vadd.f32 0.0, %v4840
      %4842 = vmatmul.f32.gmra.mxu0 %v4763
      %v4843 = vpop.f32.mrf.mxu0
      %v4844 = vadd.f32 0.0, %v4843
      %4845 = vdwg.mxu0
      %4846 = vmatpush.msra.mxu0 0.0
      %4847 = vmatpush.msra.mxu0 0.0
      %4848 = vmatpush.msra.mxu0 0.0
      %4849 = vmatpush.msra.mxu0 0.0
      %4850 = vmatpush.msra.mxu0 0.0
      %4851 = vmatpush.msra.mxu0 0.0
      %4852 = vmatpush.msra.mxu0 0.0
      %4853 = vmatpush.msra.mxu0 0.0
      %4854 = vmatpush.msra.mxu0 0.0
      %4855 = vmatpush.msra.mxu0 0.0
      %4856 = vmatpush.msra.mxu0 0.0
      %4857 = vmatpush.msra.mxu0 0.0
      %4858 = vmatpush.msra.mxu0 0.0
      %4859 = vmatpush.msra.mxu0 0.0
      %4860 = vmatpush.msra.mxu0 %v4775
      %4861 = vmatpush.msra.mxu0 %v4751
      %4862 = vmatmul.f32.gmra.mxu0 %v4760
      %v4863 = vpop.f32.mrf.mxu0
      %v4864 = vadd.f32 0.0, %v4863
      %4865 = vmatmul.f32.gmra.mxu0 %v4763
      %v4866 = vpop.f32.mrf.mxu0
      %v4867 = vadd.f32 0.0, %v4866
      %4868 = vdwg.mxu0
      %v4869 = vadd.f32 %v4716, %v4795
      %v4870 = vadd.f32 %v4717, %v4818
      %v4871 = vadd.f32 %v4718, %v4841
      %v4872 = vadd.f32 %v4719, %v4864
      %v4873 = vadd.f32 %v4720, %v4798
      %v4874 = vadd.f32 %v4721, %v4821
      %v4875 = vadd.f32 %v4722, %v4844
      %v4876 = vadd.f32 %v4723, %v4867
      %4877 = vrot.lane.b32.xlu0 %v4552, 71
      %v4878 = vpop.permute.xlu0 %4877
      %4879 = vrot.lane.b32.xlu0 %v4556, 71
      %v4880 = vpop.permute.xlu0 %4879
      %4881 = vrot.lane.b32.xlu0 %v4553, 71
      %v4882 = vpop.permute.xlu0 %4881
      %4883 = vrot.lane.b32.xlu0 %v4557, 71
      %v4884 = vpop.permute.xlu0 %4883
      %4885 = vrot.lane.b32.xlu0 %v4554, 71
      %v4886 = vpop.permute.xlu0 %4885
      %4887 = vrot.lane.b32.xlu0 %v4558, 71
      %v4888 = vpop.permute.xlu0 %4887
      %4889 = vrot.lane.b32.xlu0 %v4555, 71
      %v4890 = vpop.permute.xlu0 %4889
      %4891 = vrot.lane.b32.xlu0 %v4559, 71
      %v4892 = vpop.permute.xlu0 %4891
      %v4893 = vsel %vm620, %v4886, %v4890
      %v4894 = vsel %vm620, %v4888, %v4892
      %v4895 = vsel %vm620, %v4882, %v4886
      %v4896 = vsel %vm620, %v4884, %v4888
      %v4897 = vsel %vm620, %v4878, %v4882
      %v4898 = vsel %vm620, %v4880, %v4884
      %v4899 = vsel %vm620, %v4890, %v4878
      %v4900 = vsel %vm620, %v4892, %v4880
      %v4901 = vmul.f32 %v4899, %v632
      %v4902 = vmul.f32 %v4897, %v633
      %v4903 = vmul.f32 %v4895, %v634
      %v4904 = vmul.f32 %v4893, %v635
      %v4905 = vmul.f32 %v4900, %v632
      %v4906 = vmul.f32 %v4898, %v633
      %v4907 = vmul.f32 %v4896, %v634
      %v4908 = vmul.f32 %v4894, %v635
      %s4909 = scalar_lea.vmem %s4, 32
      %v4910 = vld [vmem:[%s4909] sm:$0xff]
      %v4911 = vld [vmem:[%s4909 + $0x8] sm:$0xf]
      %v4913 = vsel %vm319, %v4910, 0
      %v4916 = vsel %vm319, %v4911, 0
      %v4919 = vsel %vm326, %v4905, 0
      %v4922 = vsel %vm326, %v4906, 0
      %v4925 = vsel %vm326, %v4907, 0
      %v4928 = vsel %vm326, %v4908, 0
      %4930 = vmatpush.msra.mxu0 0.0
      %4931 = vmatpush.msra.mxu0 0.0
      %4932 = vmatpush.msra.mxu0 0.0
      %4933 = vmatpush.msra.mxu0 0.0
      %4934 = vmatpush.msra.mxu0 0.0
      %4935 = vmatpush.msra.mxu0 0.0
      %4936 = vmatpush.msra.mxu0 0.0
      %4937 = vmatpush.msra.mxu0 0.0
      %4938 = vmatpush.msra.mxu0 0.0
      %4939 = vmatpush.msra.mxu0 0.0
      %4940 = vmatpush.msra.mxu0 0.0
      %4941 = vmatpush.msra.mxu0 0.0
      %4942 = vmatpush.msra.mxu0 0.0
      %4943 = vmatpush.msra.mxu0 0.0
      %4944 = vmatpush.msra.mxu0 %v4919
      %4945 = vmatpush.msra.mxu0 %v4901
      %4946 = vmatmul.f32.gmra.mxu0 %v4913
      %v4947 = vpop.f32.mrf.mxu0
      %v4948 = vadd.f32 0.0, %v4947
      %4949 = vmatmul.f32.gmra.mxu0 %v4916
      %v4950 = vpop.f32.mrf.mxu0
      %v4951 = vadd.f32 0.0, %v4950
      %4952 = vdwg.mxu0
      %4953 = vmatpush.msra.mxu0 0.0
      %4954 = vmatpush.msra.mxu0 0.0
      %4955 = vmatpush.msra.mxu0 0.0
      %4956 = vmatpush.msra.mxu0 0.0
      %4957 = vmatpush.msra.mxu0 0.0
      %4958 = vmatpush.msra.mxu0 0.0
      %4959 = vmatpush.msra.mxu0 0.0
      %4960 = vmatpush.msra.mxu0 0.0
      %4961 = vmatpush.msra.mxu0 0.0
      %4962 = vmatpush.msra.mxu0 0.0
      %4963 = vmatpush.msra.mxu0 0.0
      %4964 = vmatpush.msra.mxu0 0.0
      %4965 = vmatpush.msra.mxu0 0.0
      %4966 = vmatpush.msra.mxu0 0.0
      %4967 = vmatpush.msra.mxu0 %v4922
      %4968 = vmatpush.msra.mxu0 %v4902
      %4969 = vmatmul.f32.gmra.mxu0 %v4913
      %v4970 = vpop.f32.mrf.mxu0
      %v4971 = vadd.f32 0.0, %v4970
      %4972 = vmatmul.f32.gmra.mxu0 %v4916
      %v4973 = vpop.f32.mrf.mxu0
      %v4974 = vadd.f32 0.0, %v4973
      %4975 = vdwg.mxu0
      %4976 = vmatpush.msra.mxu0 0.0
      %4977 = vmatpush.msra.mxu0 0.0
      %4978 = vmatpush.msra.mxu0 0.0
      %4979 = vmatpush.msra.mxu0 0.0
      %4980 = vmatpush.msra.mxu0 0.0
      %4981 = vmatpush.msra.mxu0 0.0
      %4982 = vmatpush.msra.mxu0 0.0
      %4983 = vmatpush.msra.mxu0 0.0
      %4984 = vmatpush.msra.mxu0 0.0
      %4985 = vmatpush.msra.mxu0 0.0
      %4986 = vmatpush.msra.mxu0 0.0
      %4987 = vmatpush.msra.mxu0 0.0
      %4988 = vmatpush.msra.mxu0 0.0
      %4989 = vmatpush.msra.mxu0 0.0
      %4990 = vmatpush.msra.mxu0 %v4925
      %4991 = vmatpush.msra.mxu0 %v4903
      %4992 = vmatmul.f32.gmra.mxu0 %v4913
      %v4993 = vpop.f32.mrf.mxu0
      %v4994 = vadd.f32 0.0, %v4993
      %4995 = vmatmul.f32.gmra.mxu0 %v4916
      %v4996 = vpop.f32.mrf.mxu0
      %v4997 = vadd.f32 0.0, %v4996
      %4998 = vdwg.mxu0
      %4999 = vmatpush.msra.mxu0 0.0
      %5000 = vmatpush.msra.mxu0 0.0
      %5001 = vmatpush.msra.mxu0 0.0
      %5002 = vmatpush.msra.mxu0 0.0
      %5003 = vmatpush.msra.mxu0 0.0
      %5004 = vmatpush.msra.mxu0 0.0
      %5005 = vmatpush.msra.mxu0 0.0
      %5006 = vmatpush.msra.mxu0 0.0
      %5007 = vmatpush.msra.mxu0 0.0
      %5008 = vmatpush.msra.mxu0 0.0
      %5009 = vmatpush.msra.mxu0 0.0
      %5010 = vmatpush.msra.mxu0 0.0
      %5011 = vmatpush.msra.mxu0 0.0
      %5012 = vmatpush.msra.mxu0 0.0
      %5013 = vmatpush.msra.mxu0 %v4928
      %5014 = vmatpush.msra.mxu0 %v4904
      %5015 = vmatmul.f32.gmra.mxu0 %v4913
      %v5016 = vpop.f32.mrf.mxu0
      %v5017 = vadd.f32 0.0, %v5016
      %5018 = vmatmul.f32.gmra.mxu0 %v4916
      %v5019 = vpop.f32.mrf.mxu0
      %v5020 = vadd.f32 0.0, %v5019
      %5021 = vdwg.mxu0
      %v5022 = vadd.f32 %v4869, %v4948
      %v5023 = vadd.f32 %v4870, %v4971
      %v5024 = vadd.f32 %v4871, %v4994
      %v5025 = vadd.f32 %v4872, %v5017
      %v5026 = vadd.f32 %v4873, %v4951
      %v5027 = vadd.f32 %v4874, %v4974
      %v5028 = vadd.f32 %v4875, %v4997
      %v5029 = vadd.f32 %v4876, %v5020
      %5030 = vrot.lane.b32.xlu0 %v4552, 65
      %v5031 = vpop.permute.xlu0 %5030
      %5032 = vrot.lane.b32.xlu0 %v4556, 65
      %v5033 = vpop.permute.xlu0 %5032
      %5034 = vrot.lane.b32.xlu0 %v4553, 65
      %v5035 = vpop.permute.xlu0 %5034
      %5036 = vrot.lane.b32.xlu0 %v4557, 65
      %v5037 = vpop.permute.xlu0 %5036
      %5038 = vrot.lane.b32.xlu0 %v4554, 65
      %v5039 = vpop.permute.xlu0 %5038
      %5040 = vrot.lane.b32.xlu0 %v4558, 65
      %v5041 = vpop.permute.xlu0 %5040
      %5042 = vrot.lane.b32.xlu0 %v4555, 65
      %v5043 = vpop.permute.xlu0 %5042
      %5044 = vrot.lane.b32.xlu0 %v4559, 65
      %v5045 = vpop.permute.xlu0 %5044
      %v5046 = vsel %vm785, %v5039, %v5043
      %v5047 = vsel %vm785, %v5041, %v5045
      %v5048 = vsel %vm785, %v5035, %v5039
      %v5049 = vsel %vm785, %v5037, %v5041
      %v5050 = vsel %vm785, %v5031, %v5035
      %v5051 = vsel %vm785, %v5033, %v5037
      %v5052 = vsel %vm785, %v5043, %v5031
      %v5053 = vsel %vm785, %v5045, %v5033
      %v5054 = vmul.f32 %v5052, %v797
      %v5055 = vmul.f32 %v5050, %v798
      %v5056 = vmul.f32 %v5048, %v799
      %v5057 = vmul.f32 %v5046, %v800
      %v5058 = vmul.f32 %v5053, %v797
      %v5059 = vmul.f32 %v5051, %v798
      %v5060 = vmul.f32 %v5049, %v799
      %v5061 = vmul.f32 %v5047, %v800
      %s5062 = scalar_lea.vmem %s4, 48
      %v5063 = vld [vmem:[%s5062] sm:$0xff]
      %v5064 = vld [vmem:[%s5062 + $0x8] sm:$0xf]
      %v5066 = vsel %vm319, %v5063, 0
      %v5069 = vsel %vm319, %v5064, 0
      %v5072 = vsel %vm326, %v5058, 0
      %v5075 = vsel %vm326, %v5059, 0
      %v5078 = vsel %vm326, %v5060, 0
      %v5081 = vsel %vm326, %v5061, 0
      %5083 = vmatpush.msra.mxu0 0.0
      %5084 = vmatpush.msra.mxu0 0.0
      %5085 = vmatpush.msra.mxu0 0.0
      %5086 = vmatpush.msra.mxu0 0.0
      %5087 = vmatpush.msra.mxu0 0.0
      %5088 = vmatpush.msra.mxu0 0.0
      %5089 = vmatpush.msra.mxu0 0.0
      %5090 = vmatpush.msra.mxu0 0.0
      %5091 = vmatpush.msra.mxu0 0.0
      %5092 = vmatpush.msra.mxu0 0.0
      %5093 = vmatpush.msra.mxu0 0.0
      %5094 = vmatpush.msra.mxu0 0.0
      %5095 = vmatpush.msra.mxu0 0.0
      %5096 = vmatpush.msra.mxu0 0.0
      %5097 = vmatpush.msra.mxu0 %v5072
      %5098 = vmatpush.msra.mxu0 %v5054
      %5099 = vmatmul.f32.gmra.mxu0 %v5066
      %v5100 = vpop.f32.mrf.mxu0
      %v5101 = vadd.f32 0.0, %v5100
      %5102 = vmatmul.f32.gmra.mxu0 %v5069
      %v5103 = vpop.f32.mrf.mxu0
      %v5104 = vadd.f32 0.0, %v5103
      %5105 = vdwg.mxu0
      %5106 = vmatpush.msra.mxu0 0.0
      %5107 = vmatpush.msra.mxu0 0.0
      %5108 = vmatpush.msra.mxu0 0.0
      %5109 = vmatpush.msra.mxu0 0.0
      %5110 = vmatpush.msra.mxu0 0.0
      %5111 = vmatpush.msra.mxu0 0.0
      %5112 = vmatpush.msra.mxu0 0.0
      %5113 = vmatpush.msra.mxu0 0.0
      %5114 = vmatpush.msra.mxu0 0.0
      %5115 = vmatpush.msra.mxu0 0.0
      %5116 = vmatpush.msra.mxu0 0.0
      %5117 = vmatpush.msra.mxu0 0.0
      %5118 = vmatpush.msra.mxu0 0.0
      %5119 = vmatpush.msra.mxu0 0.0
      %5120 = vmatpush.msra.mxu0 %v5075
      %5121 = vmatpush.msra.mxu0 %v5055
      %5122 = vmatmul.f32.gmra.mxu0 %v5066
      %v5123 = vpop.f32.mrf.mxu0
      %v5124 = vadd.f32 0.0, %v5123
      %5125 = vmatmul.f32.gmra.mxu0 %v5069
      %v5126 = vpop.f32.mrf.mxu0
      %v5127 = vadd.f32 0.0, %v5126
      %5128 = vdwg.mxu0
      %5129 = vmatpush.msra.mxu0 0.0
      %5130 = vmatpush.msra.mxu0 0.0
      %5131 = vmatpush.msra.mxu0 0.0
      %5132 = vmatpush.msra.mxu0 0.0
      %5133 = vmatpush.msra.mxu0 0.0
      %5134 = vmatpush.msra.mxu0 0.0
      %5135 = vmatpush.msra.mxu0 0.0
      %5136 = vmatpush.msra.mxu0 0.0
      %5137 = vmatpush.msra.mxu0 0.0
      %5138 = vmatpush.msra.mxu0 0.0
      %5139 = vmatpush.msra.mxu0 0.0
      %5140 = vmatpush.msra.mxu0 0.0
      %5141 = vmatpush.msra.mxu0 0.0
      %5142 = vmatpush.msra.mxu0 0.0
      %5143 = vmatpush.msra.mxu0 %v5078
      %5144 = vmatpush.msra.mxu0 %v5056
      %5145 = vmatmul.f32.gmra.mxu0 %v5066
      %v5146 = vpop.f32.mrf.mxu0
      %v5147 = vadd.f32 0.0, %v5146
      %5148 = vmatmul.f32.gmra.mxu0 %v5069
      %v5149 = vpop.f32.mrf.mxu0
      %v5150 = vadd.f32 0.0, %v5149
      %5151 = vdwg.mxu0
      %5152 = vmatpush.msra.mxu0 0.0
      %5153 = vmatpush.msra.mxu0 0.0
      %5154 = vmatpush.msra.mxu0 0.0
      %5155 = vmatpush.msra.mxu0 0.0
      %5156 = vmatpush.msra.mxu0 0.0
      %5157 = vmatpush.msra.mxu0 0.0
      %5158 = vmatpush.msra.mxu0 0.0
      %5159 = vmatpush.msra.mxu0 0.0
      %5160 = vmatpush.msra.mxu0 0.0
      %5161 = vmatpush.msra.mxu0 0.0
      %5162 = vmatpush.msra.mxu0 0.0
      %5163 = vmatpush.msra.mxu0 0.0
      %5164 = vmatpush.msra.mxu0 0.0
      %5165 = vmatpush.msra.mxu0 0.0
      %5166 = vmatpush.msra.mxu0 %v5081
      %5167 = vmatpush.msra.mxu0 %v5057
      %5168 = vmatmul.f32.gmra.mxu0 %v5066
      %v5169 = vpop.f32.mrf.mxu0
      %v5170 = vadd.f32 0.0, %v5169
      %5171 = vmatmul.f32.gmra.mxu0 %v5069
      %v5172 = vpop.f32.mrf.mxu0
      %v5173 = vadd.f32 0.0, %v5172
      %5174 = vdwg.mxu0
      %v5175 = vadd.f32 %v5022, %v5101
      %v5176 = vadd.f32 %v5023, %v5124
      %v5177 = vadd.f32 %v5024, %v5147
      %v5178 = vadd.f32 %v5025, %v5170
      %v5179 = vadd.f32 %v5026, %v5104
      %v5180 = vadd.f32 %v5027, %v5127
      %v5181 = vadd.f32 %v5028, %v5150
      %v5182 = vadd.f32 %v5029, %v5173
      %5183 = vrot.lane.b32.xlu0 %v4552, 64
      %v5184 = vpop.permute.xlu0 %5183
      %5185 = vrot.lane.b32.xlu0 %v4556, 64
      %v5186 = vpop.permute.xlu0 %5185
      %5187 = vrot.lane.b32.xlu0 %v4553, 64
      %v5188 = vpop.permute.xlu0 %5187
      %5189 = vrot.lane.b32.xlu0 %v4557, 64
      %v5190 = vpop.permute.xlu0 %5189
      %5191 = vrot.lane.b32.xlu0 %v4554, 64
      %v5192 = vpop.permute.xlu0 %5191
      %5193 = vrot.lane.b32.xlu0 %v4558, 64
      %v5194 = vpop.permute.xlu0 %5193
      %5195 = vrot.lane.b32.xlu0 %v4555, 64
      %v5196 = vpop.permute.xlu0 %5195
      %5197 = vrot.lane.b32.xlu0 %v4559, 64
      %v5198 = vpop.permute.xlu0 %5197
      %v5199 = vsel %vm950, %v5192, %v5196
      %v5200 = vsel %vm950, %v5194, %v5198
      %v5201 = vsel %vm950, %v5188, %v5192
      %v5202 = vsel %vm950, %v5190, %v5194
      %v5203 = vsel %vm950, %v5184, %v5188
      %v5204 = vsel %vm950, %v5186, %v5190
      %v5205 = vsel %vm950, %v5196, %v5184
      %v5206 = vsel %vm950, %v5198, %v5186
      %v5207 = vmul.f32 %v5205, %v962
      %v5208 = vmul.f32 %v5203, %v963
      %v5209 = vmul.f32 %v5201, %v964
      %v5210 = vmul.f32 %v5199, %v965
      %v5211 = vmul.f32 %v5206, %v962
      %v5212 = vmul.f32 %v5204, %v963
      %v5213 = vmul.f32 %v5202, %v964
      %v5214 = vmul.f32 %v5200, %v965
      %s5215 = scalar_lea.vmem %s4, 64
      %v5216 = vld [vmem:[%s5215] sm:$0xff]
      %v5217 = vld [vmem:[%s5215 + $0x8] sm:$0xf]
      %v5219 = vsel %vm319, %v5216, 0
      %v5222 = vsel %vm319, %v5217, 0
      %v5225 = vsel %vm326, %v5211, 0
      %v5228 = vsel %vm326, %v5212, 0
      %v5231 = vsel %vm326, %v5213, 0
      %v5234 = vsel %vm326, %v5214, 0
      %5236 = vmatpush.msra.mxu0 0.0
      %5237 = vmatpush.msra.mxu0 0.0
      %5238 = vmatpush.msra.mxu0 0.0
      %5239 = vmatpush.msra.mxu0 0.0
      %5240 = vmatpush.msra.mxu0 0.0
      %5241 = vmatpush.msra.mxu0 0.0
      %5242 = vmatpush.msra.mxu0 0.0
      %5243 = vmatpush.msra.mxu0 0.0
      %5244 = vmatpush.msra.mxu0 0.0
      %5245 = vmatpush.msra.mxu0 0.0
      %5246 = vmatpush.msra.mxu0 0.0
      %5247 = vmatpush.msra.mxu0 0.0
      %5248 = vmatpush.msra.mxu0 0.0
      %5249 = vmatpush.msra.mxu0 0.0
      %5250 = vmatpush.msra.mxu0 %v5225
      %5251 = vmatpush.msra.mxu0 %v5207
      %5252 = vmatmul.f32.gmra.mxu0 %v5219
      %v5253 = vpop.f32.mrf.mxu0
      %v5254 = vadd.f32 0.0, %v5253
      %5255 = vmatmul.f32.gmra.mxu0 %v5222
      %v5256 = vpop.f32.mrf.mxu0
      %v5257 = vadd.f32 0.0, %v5256
      %5258 = vdwg.mxu0
      %5259 = vmatpush.msra.mxu0 0.0
      %5260 = vmatpush.msra.mxu0 0.0
      %5261 = vmatpush.msra.mxu0 0.0
      %5262 = vmatpush.msra.mxu0 0.0
      %5263 = vmatpush.msra.mxu0 0.0
      %5264 = vmatpush.msra.mxu0 0.0
      %5265 = vmatpush.msra.mxu0 0.0
      %5266 = vmatpush.msra.mxu0 0.0
      %5267 = vmatpush.msra.mxu0 0.0
      %5268 = vmatpush.msra.mxu0 0.0
      %5269 = vmatpush.msra.mxu0 0.0
      %5270 = vmatpush.msra.mxu0 0.0
      %5271 = vmatpush.msra.mxu0 0.0
      %5272 = vmatpush.msra.mxu0 0.0
      %5273 = vmatpush.msra.mxu0 %v5228
      %5274 = vmatpush.msra.mxu0 %v5208
      %5275 = vmatmul.f32.gmra.mxu0 %v5219
      %v5276 = vpop.f32.mrf.mxu0
      %v5277 = vadd.f32 0.0, %v5276
      %5278 = vmatmul.f32.gmra.mxu0 %v5222
      %v5279 = vpop.f32.mrf.mxu0
      %v5280 = vadd.f32 0.0, %v5279
      %5281 = vdwg.mxu0
      %5282 = vmatpush.msra.mxu0 0.0
      %5283 = vmatpush.msra.mxu0 0.0
      %5284 = vmatpush.msra.mxu0 0.0
      %5285 = vmatpush.msra.mxu0 0.0
      %5286 = vmatpush.msra.mxu0 0.0
      %5287 = vmatpush.msra.mxu0 0.0
      %5288 = vmatpush.msra.mxu0 0.0
      %5289 = vmatpush.msra.mxu0 0.0
      %5290 = vmatpush.msra.mxu0 0.0
      %5291 = vmatpush.msra.mxu0 0.0
      %5292 = vmatpush.msra.mxu0 0.0
      %5293 = vmatpush.msra.mxu0 0.0
      %5294 = vmatpush.msra.mxu0 0.0
      %5295 = vmatpush.msra.mxu0 0.0
      %5296 = vmatpush.msra.mxu0 %v5231
      %5297 = vmatpush.msra.mxu0 %v5209
      %5298 = vmatmul.f32.gmra.mxu0 %v5219
      %v5299 = vpop.f32.mrf.mxu0
      %v5300 = vadd.f32 0.0, %v5299
      %5301 = vmatmul.f32.gmra.mxu0 %v5222
      %v5302 = vpop.f32.mrf.mxu0
      %v5303 = vadd.f32 0.0, %v5302
      %5304 = vdwg.mxu0
      %5305 = vmatpush.msra.mxu0 0.0
      %5306 = vmatpush.msra.mxu0 0.0
      %5307 = vmatpush.msra.mxu0 0.0
      %5308 = vmatpush.msra.mxu0 0.0
      %5309 = vmatpush.msra.mxu0 0.0
      %5310 = vmatpush.msra.mxu0 0.0
      %5311 = vmatpush.msra.mxu0 0.0
      %5312 = vmatpush.msra.mxu0 0.0
      %5313 = vmatpush.msra.mxu0 0.0
      %5314 = vmatpush.msra.mxu0 0.0
      %5315 = vmatpush.msra.mxu0 0.0
      %5316 = vmatpush.msra.mxu0 0.0
      %5317 = vmatpush.msra.mxu0 0.0
      %5318 = vmatpush.msra.mxu0 0.0
      %5319 = vmatpush.msra.mxu0 %v5234
      %5320 = vmatpush.msra.mxu0 %v5210
      %5321 = vmatmul.f32.gmra.mxu0 %v5219
      %v5322 = vpop.f32.mrf.mxu0
      %v5323 = vadd.f32 0.0, %v5322
      %5324 = vmatmul.f32.gmra.mxu0 %v5222
      %v5325 = vpop.f32.mrf.mxu0
      %v5326 = vadd.f32 0.0, %v5325
      %5327 = vdwg.mxu0
      %v5328 = vadd.f32 %v5175, %v5254
      %v5329 = vadd.f32 %v5176, %v5277
      %v5330 = vadd.f32 %v5177, %v5300
      %v5331 = vadd.f32 %v5178, %v5323
      %v5332 = vadd.f32 %v5179, %v5257
      %v5333 = vadd.f32 %v5180, %v5280
      %v5334 = vadd.f32 %v5181, %v5303
      %v5335 = vadd.f32 %v5182, %v5326
      %5336 = vrot.lane.b32.xlu0 %v4552, 63
      %v5337 = vpop.permute.xlu0 %5336
      %5338 = vrot.lane.b32.xlu0 %v4556, 63
      %v5339 = vpop.permute.xlu0 %5338
      %5340 = vrot.lane.b32.xlu0 %v4553, 63
      %v5341 = vpop.permute.xlu0 %5340
      %5342 = vrot.lane.b32.xlu0 %v4557, 63
      %v5343 = vpop.permute.xlu0 %5342
      %5344 = vrot.lane.b32.xlu0 %v4554, 63
      %v5345 = vpop.permute.xlu0 %5344
      %5346 = vrot.lane.b32.xlu0 %v4558, 63
      %v5347 = vpop.permute.xlu0 %5346
      %5348 = vrot.lane.b32.xlu0 %v4555, 63
      %v5349 = vpop.permute.xlu0 %5348
      %5350 = vrot.lane.b32.xlu0 %v4559, 63
      %v5351 = vpop.permute.xlu0 %5350
      %v5352 = vsel %vm1115, %v5345, %v5349
      %v5353 = vsel %vm1115, %v5347, %v5351
      %v5354 = vsel %vm1115, %v5341, %v5345
      %v5355 = vsel %vm1115, %v5343, %v5347
      %v5356 = vsel %vm1115, %v5337, %v5341
      %v5357 = vsel %vm1115, %v5339, %v5343
      %v5358 = vsel %vm1115, %v5349, %v5337
      %v5359 = vsel %vm1115, %v5351, %v5339
      %v5360 = vmul.f32 %v5358, %v1127
      %v5361 = vmul.f32 %v5356, %v1128
      %v5362 = vmul.f32 %v5354, %v1129
      %v5363 = vmul.f32 %v5352, %v1130
      %v5364 = vmul.f32 %v5359, %v1127
      %v5365 = vmul.f32 %v5357, %v1128
      %v5366 = vmul.f32 %v5355, %v1129
      %v5367 = vmul.f32 %v5353, %v1130
      %s5368 = scalar_lea.vmem %s4, 80
      %v5369 = vld [vmem:[%s5368] sm:$0xff]
      %v5370 = vld [vmem:[%s5368 + $0x8] sm:$0xf]
      %v5372 = vsel %vm319, %v5369, 0
      %v5375 = vsel %vm319, %v5370, 0
      %v5378 = vsel %vm326, %v5364, 0
      %v5381 = vsel %vm326, %v5365, 0
      %v5384 = vsel %vm326, %v5366, 0
      %v5387 = vsel %vm326, %v5367, 0
      %5389 = vmatpush.msra.mxu0 0.0
      %5390 = vmatpush.msra.mxu0 0.0
      %5391 = vmatpush.msra.mxu0 0.0
      %5392 = vmatpush.msra.mxu0 0.0
      %5393 = vmatpush.msra.mxu0 0.0
      %5394 = vmatpush.msra.mxu0 0.0
      %5395 = vmatpush.msra.mxu0 0.0
      %5396 = vmatpush.msra.mxu0 0.0
      %5397 = vmatpush.msra.mxu0 0.0
      %5398 = vmatpush.msra.mxu0 0.0
      %5399 = vmatpush.msra.mxu0 0.0
      %5400 = vmatpush.msra.mxu0 0.0
      %5401 = vmatpush.msra.mxu0 0.0
      %5402 = vmatpush.msra.mxu0 0.0
      %5403 = vmatpush.msra.mxu0 %v5378
      %5404 = vmatpush.msra.mxu0 %v5360
      %5405 = vmatmul.f32.gmra.mxu0 %v5372
      %v5406 = vpop.f32.mrf.mxu0
      %v5407 = vadd.f32 0.0, %v5406
      %5408 = vmatmul.f32.gmra.mxu0 %v5375
      %v5409 = vpop.f32.mrf.mxu0
      %v5410 = vadd.f32 0.0, %v5409
      %5411 = vdwg.mxu0
      %5412 = vmatpush.msra.mxu0 0.0
      %5413 = vmatpush.msra.mxu0 0.0
      %5414 = vmatpush.msra.mxu0 0.0
      %5415 = vmatpush.msra.mxu0 0.0
      %5416 = vmatpush.msra.mxu0 0.0
      %5417 = vmatpush.msra.mxu0 0.0
      %5418 = vmatpush.msra.mxu0 0.0
      %5419 = vmatpush.msra.mxu0 0.0
      %5420 = vmatpush.msra.mxu0 0.0
      %5421 = vmatpush.msra.mxu0 0.0
      %5422 = vmatpush.msra.mxu0 0.0
      %5423 = vmatpush.msra.mxu0 0.0
      %5424 = vmatpush.msra.mxu0 0.0
      %5425 = vmatpush.msra.mxu0 0.0
      %5426 = vmatpush.msra.mxu0 %v5381
      %5427 = vmatpush.msra.mxu0 %v5361
      %5428 = vmatmul.f32.gmra.mxu0 %v5372
      %v5429 = vpop.f32.mrf.mxu0
      %v5430 = vadd.f32 0.0, %v5429
      %5431 = vmatmul.f32.gmra.mxu0 %v5375
      %v5432 = vpop.f32.mrf.mxu0
      %v5433 = vadd.f32 0.0, %v5432
      %5434 = vdwg.mxu0
      %5435 = vmatpush.msra.mxu0 0.0
      %5436 = vmatpush.msra.mxu0 0.0
      %5437 = vmatpush.msra.mxu0 0.0
      %5438 = vmatpush.msra.mxu0 0.0
      %5439 = vmatpush.msra.mxu0 0.0
      %5440 = vmatpush.msra.mxu0 0.0
      %5441 = vmatpush.msra.mxu0 0.0
      %5442 = vmatpush.msra.mxu0 0.0
      %5443 = vmatpush.msra.mxu0 0.0
      %5444 = vmatpush.msra.mxu0 0.0
      %5445 = vmatpush.msra.mxu0 0.0
      %5446 = vmatpush.msra.mxu0 0.0
      %5447 = vmatpush.msra.mxu0 0.0
      %5448 = vmatpush.msra.mxu0 0.0
      %5449 = vmatpush.msra.mxu0 %v5384
      %5450 = vmatpush.msra.mxu0 %v5362
      %5451 = vmatmul.f32.gmra.mxu0 %v5372
      %v5452 = vpop.f32.mrf.mxu0
      %v5453 = vadd.f32 0.0, %v5452
      %5454 = vmatmul.f32.gmra.mxu0 %v5375
      %v5455 = vpop.f32.mrf.mxu0
      %v5456 = vadd.f32 0.0, %v5455
      %5457 = vdwg.mxu0
      %5458 = vmatpush.msra.mxu0 0.0
      %5459 = vmatpush.msra.mxu0 0.0
      %5460 = vmatpush.msra.mxu0 0.0
      %5461 = vmatpush.msra.mxu0 0.0
      %5462 = vmatpush.msra.mxu0 0.0
      %5463 = vmatpush.msra.mxu0 0.0
      %5464 = vmatpush.msra.mxu0 0.0
      %5465 = vmatpush.msra.mxu0 0.0
      %5466 = vmatpush.msra.mxu0 0.0
      %5467 = vmatpush.msra.mxu0 0.0
      %5468 = vmatpush.msra.mxu0 0.0
      %5469 = vmatpush.msra.mxu0 0.0
      %5470 = vmatpush.msra.mxu0 0.0
      %5471 = vmatpush.msra.mxu0 0.0
      %5472 = vmatpush.msra.mxu0 %v5387
      %5473 = vmatpush.msra.mxu0 %v5363
      %5474 = vmatmul.f32.gmra.mxu0 %v5372
      %v5475 = vpop.f32.mrf.mxu0
      %v5476 = vadd.f32 0.0, %v5475
      %5477 = vmatmul.f32.gmra.mxu0 %v5375
      %v5478 = vpop.f32.mrf.mxu0
      %v5479 = vadd.f32 0.0, %v5478
      %5480 = vdwg.mxu0
      %v5481 = vadd.f32 %v5328, %v5407
      %v5482 = vadd.f32 %v5329, %v5430
      %v5483 = vadd.f32 %v5330, %v5453
      %v5484 = vadd.f32 %v5331, %v5476
      %v5485 = vadd.f32 %v5332, %v5410
      %v5486 = vadd.f32 %v5333, %v5433
      %v5487 = vadd.f32 %v5334, %v5456
      %v5488 = vadd.f32 %v5335, %v5479
      %5489 = vrot.lane.b32.xlu0 %v4552, 57
      %v5490 = vpop.permute.xlu0 %5489
      %5491 = vrot.lane.b32.xlu0 %v4556, 57
      %v5492 = vpop.permute.xlu0 %5491
      %5493 = vrot.lane.b32.xlu0 %v4553, 57
      %v5494 = vpop.permute.xlu0 %5493
      %5495 = vrot.lane.b32.xlu0 %v4557, 57
      %v5496 = vpop.permute.xlu0 %5495
      %5497 = vrot.lane.b32.xlu0 %v4554, 57
      %v5498 = vpop.permute.xlu0 %5497
      %5499 = vrot.lane.b32.xlu0 %v4558, 57
      %v5500 = vpop.permute.xlu0 %5499
      %5501 = vrot.lane.b32.xlu0 %v4555, 57
      %v5502 = vpop.permute.xlu0 %5501
      %5503 = vrot.lane.b32.xlu0 %v4559, 57
      %v5504 = vpop.permute.xlu0 %5503
      %v5505 = vsel %vm1280, %v5498, %v5502
      %v5506 = vsel %vm1280, %v5500, %v5504
      %v5507 = vsel %vm1280, %v5494, %v5498
      %v5508 = vsel %vm1280, %v5496, %v5500
      %v5509 = vsel %vm1280, %v5490, %v5494
      %v5510 = vsel %vm1280, %v5492, %v5496
      %v5511 = vsel %vm1280, %v5502, %v5490
      %v5512 = vsel %vm1280, %v5504, %v5492
      %v5513 = vmul.f32 %v5511, %v1292
      %v5514 = vmul.f32 %v5509, %v1293
      %v5515 = vmul.f32 %v5507, %v1294
      %v5516 = vmul.f32 %v5505, %v1295
      %v5517 = vmul.f32 %v5512, %v1292
      %v5518 = vmul.f32 %v5510, %v1293
      %v5519 = vmul.f32 %v5508, %v1294
      %v5520 = vmul.f32 %v5506, %v1295
      %s5521 = scalar_lea.vmem %s4, 96
      %v5522 = vld [vmem:[%s5521] sm:$0xff]
      %v5523 = vld [vmem:[%s5521 + $0x8] sm:$0xf]
      %v5525 = vsel %vm319, %v5522, 0
      %v5528 = vsel %vm319, %v5523, 0
      %v5531 = vsel %vm326, %v5517, 0
      %v5534 = vsel %vm326, %v5518, 0
      %v5537 = vsel %vm326, %v5519, 0
      %v5540 = vsel %vm326, %v5520, 0
      %5542 = vmatpush.msra.mxu0 0.0
      %5543 = vmatpush.msra.mxu0 0.0
      %5544 = vmatpush.msra.mxu0 0.0
      %5545 = vmatpush.msra.mxu0 0.0
      %5546 = vmatpush.msra.mxu0 0.0
      %5547 = vmatpush.msra.mxu0 0.0
      %5548 = vmatpush.msra.mxu0 0.0
      %5549 = vmatpush.msra.mxu0 0.0
      %5550 = vmatpush.msra.mxu0 0.0
      %5551 = vmatpush.msra.mxu0 0.0
      %5552 = vmatpush.msra.mxu0 0.0
      %5553 = vmatpush.msra.mxu0 0.0
      %5554 = vmatpush.msra.mxu0 0.0
      %5555 = vmatpush.msra.mxu0 0.0
      %5556 = vmatpush.msra.mxu0 %v5531
      %5557 = vmatpush.msra.mxu0 %v5513
      %5558 = vmatmul.f32.gmra.mxu0 %v5525
      %v5559 = vpop.f32.mrf.mxu0
      %v5560 = vadd.f32 0.0, %v5559
      %5561 = vmatmul.f32.gmra.mxu0 %v5528
      %v5562 = vpop.f32.mrf.mxu0
      %v5563 = vadd.f32 0.0, %v5562
      %5564 = vdwg.mxu0
      %5565 = vmatpush.msra.mxu0 0.0
      %5566 = vmatpush.msra.mxu0 0.0
      %5567 = vmatpush.msra.mxu0 0.0
      %5568 = vmatpush.msra.mxu0 0.0
      %5569 = vmatpush.msra.mxu0 0.0
      %5570 = vmatpush.msra.mxu0 0.0
      %5571 = vmatpush.msra.mxu0 0.0
      %5572 = vmatpush.msra.mxu0 0.0
      %5573 = vmatpush.msra.mxu0 0.0
      %5574 = vmatpush.msra.mxu0 0.0
      %5575 = vmatpush.msra.mxu0 0.0
      %5576 = vmatpush.msra.mxu0 0.0
      %5577 = vmatpush.msra.mxu0 0.0
      %5578 = vmatpush.msra.mxu0 0.0
      %5579 = vmatpush.msra.mxu0 %v5534
      %5580 = vmatpush.msra.mxu0 %v5514
      %5581 = vmatmul.f32.gmra.mxu0 %v5525
      %v5582 = vpop.f32.mrf.mxu0
      %v5583 = vadd.f32 0.0, %v5582
      %5584 = vmatmul.f32.gmra.mxu0 %v5528
      %v5585 = vpop.f32.mrf.mxu0
      %v5586 = vadd.f32 0.0, %v5585
      %5587 = vdwg.mxu0
      %5588 = vmatpush.msra.mxu0 0.0
      %5589 = vmatpush.msra.mxu0 0.0
      %5590 = vmatpush.msra.mxu0 0.0
      %5591 = vmatpush.msra.mxu0 0.0
      %5592 = vmatpush.msra.mxu0 0.0
      %5593 = vmatpush.msra.mxu0 0.0
      %5594 = vmatpush.msra.mxu0 0.0
      %5595 = vmatpush.msra.mxu0 0.0
      %5596 = vmatpush.msra.mxu0 0.0
      %5597 = vmatpush.msra.mxu0 0.0
      %5598 = vmatpush.msra.mxu0 0.0
      %5599 = vmatpush.msra.mxu0 0.0
      %5600 = vmatpush.msra.mxu0 0.0
      %5601 = vmatpush.msra.mxu0 0.0
      %5602 = vmatpush.msra.mxu0 %v5537
      %5603 = vmatpush.msra.mxu0 %v5515
      %5604 = vmatmul.f32.gmra.mxu0 %v5525
      %v5605 = vpop.f32.mrf.mxu0
      %v5606 = vadd.f32 0.0, %v5605
      %5607 = vmatmul.f32.gmra.mxu0 %v5528
      %v5608 = vpop.f32.mrf.mxu0
      %v5609 = vadd.f32 0.0, %v5608
      %5610 = vdwg.mxu0
      %5611 = vmatpush.msra.mxu0 0.0
      %5612 = vmatpush.msra.mxu0 0.0
      %5613 = vmatpush.msra.mxu0 0.0
      %5614 = vmatpush.msra.mxu0 0.0
      %5615 = vmatpush.msra.mxu0 0.0
      %5616 = vmatpush.msra.mxu0 0.0
      %5617 = vmatpush.msra.mxu0 0.0
      %5618 = vmatpush.msra.mxu0 0.0
      %5619 = vmatpush.msra.mxu0 0.0
      %5620 = vmatpush.msra.mxu0 0.0
      %5621 = vmatpush.msra.mxu0 0.0
      %5622 = vmatpush.msra.mxu0 0.0
      %5623 = vmatpush.msra.mxu0 0.0
      %5624 = vmatpush.msra.mxu0 0.0
      %5625 = vmatpush.msra.mxu0 %v5540
      %5626 = vmatpush.msra.mxu0 %v5516
      %5627 = vmatmul.f32.gmra.mxu0 %v5525
      %v5628 = vpop.f32.mrf.mxu0
      %v5629 = vadd.f32 0.0, %v5628
      %5630 = vmatmul.f32.gmra.mxu0 %v5528
      %v5631 = vpop.f32.mrf.mxu0
      %v5632 = vadd.f32 0.0, %v5631
      %5633 = vdwg.mxu0
      %v5634 = vadd.f32 %v5481, %v5560
      %v5635 = vadd.f32 %v5482, %v5583
      %v5636 = vadd.f32 %v5483, %v5606
      %v5637 = vadd.f32 %v5484, %v5629
      %v5638 = vadd.f32 %v5485, %v5563
      %v5639 = vadd.f32 %v5486, %v5586
      %v5640 = vadd.f32 %v5487, %v5609
      %v5641 = vadd.f32 %v5488, %v5632
      %5642 = vrot.lane.b32.xlu0 %v4552, 56
      %v5643 = vpop.permute.xlu0 %5642
      %5644 = vrot.lane.b32.xlu0 %v4556, 56
      %v5645 = vpop.permute.xlu0 %5644
      %5646 = vrot.lane.b32.xlu0 %v4553, 56
      %v5647 = vpop.permute.xlu0 %5646
      %5648 = vrot.lane.b32.xlu0 %v4557, 56
      %v5649 = vpop.permute.xlu0 %5648
      %5650 = vrot.lane.b32.xlu0 %v4554, 56
      %v5651 = vpop.permute.xlu0 %5650
      %5652 = vrot.lane.b32.xlu0 %v4558, 56
      %v5653 = vpop.permute.xlu0 %5652
      %5654 = vrot.lane.b32.xlu0 %v4555, 56
      %v5655 = vpop.permute.xlu0 %5654
      %5656 = vrot.lane.b32.xlu0 %v4559, 56
      %v5657 = vpop.permute.xlu0 %5656
      %v5658 = vsel %vm1445, %v5651, %v5655
      %v5659 = vsel %vm1445, %v5653, %v5657
      %v5660 = vsel %vm1445, %v5647, %v5651
      %v5661 = vsel %vm1445, %v5649, %v5653
      %v5662 = vsel %vm1445, %v5643, %v5647
      %v5663 = vsel %vm1445, %v5645, %v5649
      %v5664 = vsel %vm1445, %v5655, %v5643
      %v5665 = vsel %vm1445, %v5657, %v5645
      %v5666 = vmul.f32 %v5664, %v1457
      %v5667 = vmul.f32 %v5662, %v1458
      %v5668 = vmul.f32 %v5660, %v1459
      %v5669 = vmul.f32 %v5658, %v1460
      %v5670 = vmul.f32 %v5665, %v1457
      %v5671 = vmul.f32 %v5663, %v1458
      %v5672 = vmul.f32 %v5661, %v1459
      %v5673 = vmul.f32 %v5659, %v1460
      %s5674 = scalar_lea.vmem %s4, 112
      %v5675 = vld [vmem:[%s5674] sm:$0xff]
      %v5676 = vld [vmem:[%s5674 + $0x8] sm:$0xf]
      %v5678 = vsel %vm319, %v5675, 0
      %v5681 = vsel %vm319, %v5676, 0
      %v5684 = vsel %vm326, %v5670, 0
      %v5687 = vsel %vm326, %v5671, 0
      %v5690 = vsel %vm326, %v5672, 0
      %v5693 = vsel %vm326, %v5673, 0
      %5695 = vmatpush.msra.mxu0 0.0
      %5696 = vmatpush.msra.mxu0 0.0
      %5697 = vmatpush.msra.mxu0 0.0
      %5698 = vmatpush.msra.mxu0 0.0
      %5699 = vmatpush.msra.mxu0 0.0
      %5700 = vmatpush.msra.mxu0 0.0
      %5701 = vmatpush.msra.mxu0 0.0
      %5702 = vmatpush.msra.mxu0 0.0
      %5703 = vmatpush.msra.mxu0 0.0
      %5704 = vmatpush.msra.mxu0 0.0
      %5705 = vmatpush.msra.mxu0 0.0
      %5706 = vmatpush.msra.mxu0 0.0
      %5707 = vmatpush.msra.mxu0 0.0
      %5708 = vmatpush.msra.mxu0 0.0
      %5709 = vmatpush.msra.mxu0 %v5684
      %5710 = vmatpush.msra.mxu0 %v5666
      %5711 = vmatmul.f32.gmra.mxu0 %v5678
      %v5712 = vpop.f32.mrf.mxu0
      %v5713 = vadd.f32 0.0, %v5712
      %5714 = vmatmul.f32.gmra.mxu0 %v5681
      %v5715 = vpop.f32.mrf.mxu0
      %v5716 = vadd.f32 0.0, %v5715
      %5717 = vdwg.mxu0
      %5718 = vmatpush.msra.mxu0 0.0
      %5719 = vmatpush.msra.mxu0 0.0
      %5720 = vmatpush.msra.mxu0 0.0
      %5721 = vmatpush.msra.mxu0 0.0
      %5722 = vmatpush.msra.mxu0 0.0
      %5723 = vmatpush.msra.mxu0 0.0
      %5724 = vmatpush.msra.mxu0 0.0
      %5725 = vmatpush.msra.mxu0 0.0
      %5726 = vmatpush.msra.mxu0 0.0
      %5727 = vmatpush.msra.mxu0 0.0
      %5728 = vmatpush.msra.mxu0 0.0
      %5729 = vmatpush.msra.mxu0 0.0
      %5730 = vmatpush.msra.mxu0 0.0
      %5731 = vmatpush.msra.mxu0 0.0
      %5732 = vmatpush.msra.mxu0 %v5687
      %5733 = vmatpush.msra.mxu0 %v5667
      %5734 = vmatmul.f32.gmra.mxu0 %v5678
      %v5735 = vpop.f32.mrf.mxu0
      %v5736 = vadd.f32 0.0, %v5735
      %5737 = vmatmul.f32.gmra.mxu0 %v5681
      %v5738 = vpop.f32.mrf.mxu0
      %v5739 = vadd.f32 0.0, %v5738
      %5740 = vdwg.mxu0
      %5741 = vmatpush.msra.mxu0 0.0
      %5742 = vmatpush.msra.mxu0 0.0
      %5743 = vmatpush.msra.mxu0 0.0
      %5744 = vmatpush.msra.mxu0 0.0
      %5745 = vmatpush.msra.mxu0 0.0
      %5746 = vmatpush.msra.mxu0 0.0
      %5747 = vmatpush.msra.mxu0 0.0
      %5748 = vmatpush.msra.mxu0 0.0
      %5749 = vmatpush.msra.mxu0 0.0
      %5750 = vmatpush.msra.mxu0 0.0
      %5751 = vmatpush.msra.mxu0 0.0
      %5752 = vmatpush.msra.mxu0 0.0
      %5753 = vmatpush.msra.mxu0 0.0
      %5754 = vmatpush.msra.mxu0 0.0
      %5755 = vmatpush.msra.mxu0 %v5690
      %5756 = vmatpush.msra.mxu0 %v5668
      %5757 = vmatmul.f32.gmra.mxu0 %v5678
      %v5758 = vpop.f32.mrf.mxu0
      %v5759 = vadd.f32 0.0, %v5758
      %5760 = vmatmul.f32.gmra.mxu0 %v5681
      %v5761 = vpop.f32.mrf.mxu0
      %v5762 = vadd.f32 0.0, %v5761
      %5763 = vdwg.mxu0
      %5764 = vmatpush.msra.mxu0 0.0
      %5765 = vmatpush.msra.mxu0 0.0
      %5766 = vmatpush.msra.mxu0 0.0
      %5767 = vmatpush.msra.mxu0 0.0
      %5768 = vmatpush.msra.mxu0 0.0
      %5769 = vmatpush.msra.mxu0 0.0
      %5770 = vmatpush.msra.mxu0 0.0
      %5771 = vmatpush.msra.mxu0 0.0
      %5772 = vmatpush.msra.mxu0 0.0
      %5773 = vmatpush.msra.mxu0 0.0
      %5774 = vmatpush.msra.mxu0 0.0
      %5775 = vmatpush.msra.mxu0 0.0
      %5776 = vmatpush.msra.mxu0 0.0
      %5777 = vmatpush.msra.mxu0 0.0
      %5778 = vmatpush.msra.mxu0 %v5693
      %5779 = vmatpush.msra.mxu0 %v5669
      %5780 = vmatmul.f32.gmra.mxu0 %v5678
      %v5781 = vpop.f32.mrf.mxu0
      %v5782 = vadd.f32 0.0, %v5781
      %5783 = vmatmul.f32.gmra.mxu0 %v5681
      %v5784 = vpop.f32.mrf.mxu0
      %v5785 = vadd.f32 0.0, %v5784
      %5786 = vdwg.mxu0
      %v5787 = vadd.f32 %v5634, %v5713
      %v5788 = vadd.f32 %v5635, %v5736
      %v5789 = vadd.f32 %v5636, %v5759
      %v5790 = vadd.f32 %v5637, %v5782
      %v5791 = vadd.f32 %v5638, %v5716
      %v5792 = vadd.f32 %v5639, %v5739
      %v5793 = vadd.f32 %v5640, %v5762
      %v5794 = vadd.f32 %v5641, %v5785
      %5795 = vrot.lane.b32.xlu0 %v4552, 55
      %v5796 = vpop.permute.xlu0 %5795
      %5797 = vrot.lane.b32.xlu0 %v4556, 55
      %v5798 = vpop.permute.xlu0 %5797
      %5799 = vrot.lane.b32.xlu0 %v4553, 55
      %v5800 = vpop.permute.xlu0 %5799
      %5801 = vrot.lane.b32.xlu0 %v4557, 55
      %v5802 = vpop.permute.xlu0 %5801
      %5803 = vrot.lane.b32.xlu0 %v4554, 55
      %v5804 = vpop.permute.xlu0 %5803
      %5805 = vrot.lane.b32.xlu0 %v4558, 55
      %v5806 = vpop.permute.xlu0 %5805
      %5807 = vrot.lane.b32.xlu0 %v4555, 55
      %v5808 = vpop.permute.xlu0 %5807
      %5809 = vrot.lane.b32.xlu0 %v4559, 55
      %v5810 = vpop.permute.xlu0 %5809
      %v5811 = vsel %vm1610, %v5804, %v5808
      %v5812 = vsel %vm1610, %v5806, %v5810
      %v5813 = vsel %vm1610, %v5800, %v5804
      %v5814 = vsel %vm1610, %v5802, %v5806
      %v5815 = vsel %vm1610, %v5796, %v5800
      %v5816 = vsel %vm1610, %v5798, %v5802
      %v5817 = vsel %vm1610, %v5808, %v5796
      %v5818 = vsel %vm1610, %v5810, %v5798
      %v5819 = vmul.f32 %v5817, %v1622
      %v5820 = vmul.f32 %v5815, %v1623
      %v5821 = vmul.f32 %v5813, %v1624
      %v5822 = vmul.f32 %v5811, %v1625
      %v5823 = vmul.f32 %v5818, %v1622
      %v5824 = vmul.f32 %v5816, %v1623
      %v5825 = vmul.f32 %v5814, %v1624
      %v5826 = vmul.f32 %v5812, %v1625
      %s5827 = scalar_lea.vmem %s4, 128
      %v5828 = vld [vmem:[%s5827] sm:$0xff]
      %v5829 = vld [vmem:[%s5827 + $0x8] sm:$0xf]
      %v5831 = vsel %vm319, %v5828, 0
      %v5834 = vsel %vm319, %v5829, 0
      %v5837 = vsel %vm326, %v5823, 0
      %v5840 = vsel %vm326, %v5824, 0
      %v5843 = vsel %vm326, %v5825, 0
      %v5846 = vsel %vm326, %v5826, 0
      %5848 = vmatpush.msra.mxu0 0.0
      %5849 = vmatpush.msra.mxu0 0.0
      %5850 = vmatpush.msra.mxu0 0.0
      %5851 = vmatpush.msra.mxu0 0.0
      %5852 = vmatpush.msra.mxu0 0.0
      %5853 = vmatpush.msra.mxu0 0.0
      %5854 = vmatpush.msra.mxu0 0.0
      %5855 = vmatpush.msra.mxu0 0.0
      %5856 = vmatpush.msra.mxu0 0.0
      %5857 = vmatpush.msra.mxu0 0.0
      %5858 = vmatpush.msra.mxu0 0.0
      %5859 = vmatpush.msra.mxu0 0.0
      %5860 = vmatpush.msra.mxu0 0.0
      %5861 = vmatpush.msra.mxu0 0.0
      %5862 = vmatpush.msra.mxu0 %v5837
      %5863 = vmatpush.msra.mxu0 %v5819
      %5864 = vmatmul.f32.gmra.mxu0 %v5831
      %v5865 = vpop.f32.mrf.mxu0
      %v5866 = vadd.f32 0.0, %v5865
      %5867 = vmatmul.f32.gmra.mxu0 %v5834
      %v5868 = vpop.f32.mrf.mxu0
      %v5869 = vadd.f32 0.0, %v5868
      %5870 = vdwg.mxu0
      %5871 = vmatpush.msra.mxu0 0.0
      %5872 = vmatpush.msra.mxu0 0.0
      %5873 = vmatpush.msra.mxu0 0.0
      %5874 = vmatpush.msra.mxu0 0.0
      %5875 = vmatpush.msra.mxu0 0.0
      %5876 = vmatpush.msra.mxu0 0.0
      %5877 = vmatpush.msra.mxu0 0.0
      %5878 = vmatpush.msra.mxu0 0.0
      %5879 = vmatpush.msra.mxu0 0.0
      %5880 = vmatpush.msra.mxu0 0.0
      %5881 = vmatpush.msra.mxu0 0.0
      %5882 = vmatpush.msra.mxu0 0.0
      %5883 = vmatpush.msra.mxu0 0.0
      %5884 = vmatpush.msra.mxu0 0.0
      %5885 = vmatpush.msra.mxu0 %v5840
      %5886 = vmatpush.msra.mxu0 %v5820
      %5887 = vmatmul.f32.gmra.mxu0 %v5831
      %v5888 = vpop.f32.mrf.mxu0
      %v5889 = vadd.f32 0.0, %v5888
      %5890 = vmatmul.f32.gmra.mxu0 %v5834
      %v5891 = vpop.f32.mrf.mxu0
      %v5892 = vadd.f32 0.0, %v5891
      %5893 = vdwg.mxu0
      %5894 = vmatpush.msra.mxu0 0.0
      %5895 = vmatpush.msra.mxu0 0.0
      %5896 = vmatpush.msra.mxu0 0.0
      %5897 = vmatpush.msra.mxu0 0.0
      %5898 = vmatpush.msra.mxu0 0.0
      %5899 = vmatpush.msra.mxu0 0.0
      %5900 = vmatpush.msra.mxu0 0.0
      %5901 = vmatpush.msra.mxu0 0.0
      %5902 = vmatpush.msra.mxu0 0.0
      %5903 = vmatpush.msra.mxu0 0.0
      %5904 = vmatpush.msra.mxu0 0.0
      %5905 = vmatpush.msra.mxu0 0.0
      %5906 = vmatpush.msra.mxu0 0.0
      %5907 = vmatpush.msra.mxu0 0.0
      %5908 = vmatpush.msra.mxu0 %v5843
      %5909 = vmatpush.msra.mxu0 %v5821
      %5910 = vmatmul.f32.gmra.mxu0 %v5831
      %v5911 = vpop.f32.mrf.mxu0
      %v5912 = vadd.f32 0.0, %v5911
      %5913 = vmatmul.f32.gmra.mxu0 %v5834
      %v5914 = vpop.f32.mrf.mxu0
      %v5915 = vadd.f32 0.0, %v5914
      %5916 = vdwg.mxu0
      %5917 = vmatpush.msra.mxu0 0.0
      %5918 = vmatpush.msra.mxu0 0.0
      %5919 = vmatpush.msra.mxu0 0.0
      %5920 = vmatpush.msra.mxu0 0.0
      %5921 = vmatpush.msra.mxu0 0.0
      %5922 = vmatpush.msra.mxu0 0.0
      %5923 = vmatpush.msra.mxu0 0.0
      %5924 = vmatpush.msra.mxu0 0.0
      %5925 = vmatpush.msra.mxu0 0.0
      %5926 = vmatpush.msra.mxu0 0.0
      %5927 = vmatpush.msra.mxu0 0.0
      %5928 = vmatpush.msra.mxu0 0.0
      %5929 = vmatpush.msra.mxu0 0.0
      %5930 = vmatpush.msra.mxu0 0.0
      %5931 = vmatpush.msra.mxu0 %v5846
      %5932 = vmatpush.msra.mxu0 %v5822
      %5933 = vmatmul.f32.gmra.mxu0 %v5831
      %v5934 = vpop.f32.mrf.mxu0
      %v5935 = vadd.f32 0.0, %v5934
      %5936 = vmatmul.f32.gmra.mxu0 %v5834
      %v5937 = vpop.f32.mrf.mxu0
      %v5938 = vadd.f32 0.0, %v5937
      %5939 = vdwg.mxu0
      %v5940 = vadd.f32 %v5787, %v5866
      %v5941 = vadd.f32 %v5788, %v5889
      %v5942 = vadd.f32 %v5789, %v5912
      %v5943 = vadd.f32 %v5790, %v5935
      %v5944 = vadd.f32 %v5791, %v5869
      %v5945 = vadd.f32 %v5792, %v5892
      %v5946 = vadd.f32 %v5793, %v5915
      %v5947 = vadd.f32 %v5794, %v5938
      %5948 = vrot.lane.b32.xlu0 %v4552, 9
      %v5949 = vpop.permute.xlu0 %5948
      %5950 = vrot.lane.b32.xlu0 %v4556, 9
      %v5951 = vpop.permute.xlu0 %5950
      %5952 = vrot.lane.b32.xlu0 %v4553, 9
      %v5953 = vpop.permute.xlu0 %5952
      %5954 = vrot.lane.b32.xlu0 %v4557, 9
      %v5955 = vpop.permute.xlu0 %5954
      %5956 = vrot.lane.b32.xlu0 %v4554, 9
      %v5957 = vpop.permute.xlu0 %5956
      %5958 = vrot.lane.b32.xlu0 %v4558, 9
      %v5959 = vpop.permute.xlu0 %5958
      %5960 = vrot.lane.b32.xlu0 %v4555, 9
      %v5961 = vpop.permute.xlu0 %5960
      %5962 = vrot.lane.b32.xlu0 %v4559, 9
      %v5963 = vpop.permute.xlu0 %5962
      %v5964 = vsel %vm1775, %v5957, %v5961
      %v5965 = vsel %vm1775, %v5959, %v5963
      %v5966 = vsel %vm1775, %v5953, %v5957
      %v5967 = vsel %vm1775, %v5955, %v5959
      %v5968 = vsel %vm1775, %v5949, %v5953
      %v5969 = vsel %vm1775, %v5951, %v5955
      %v5970 = vsel %vm1775, %v5961, %v5949
      %v5971 = vsel %vm1775, %v5963, %v5951
      %v5972 = vmul.f32 %v5970, %v1787
      %v5973 = vmul.f32 %v5968, %v1788
      %v5974 = vmul.f32 %v5966, %v1789
      %v5975 = vmul.f32 %v5964, %v1790
      %v5976 = vmul.f32 %v5971, %v1787
      %v5977 = vmul.f32 %v5969, %v1788
      %v5978 = vmul.f32 %v5967, %v1789
      %v5979 = vmul.f32 %v5965, %v1790
      %s5980 = scalar_lea.vmem %s4, 144
      %v5981 = vld [vmem:[%s5980] sm:$0xff]
      %v5982 = vld [vmem:[%s5980 + $0x8] sm:$0xf]
      %v5984 = vsel %vm319, %v5981, 0
      %v5987 = vsel %vm319, %v5982, 0
      %v5990 = vsel %vm326, %v5976, 0
      %v5993 = vsel %vm326, %v5977, 0
      %v5996 = vsel %vm326, %v5978, 0
      %v5999 = vsel %vm326, %v5979, 0
      %6001 = vmatpush.msra.mxu0 0.0
      %6002 = vmatpush.msra.mxu0 0.0
      %6003 = vmatpush.msra.mxu0 0.0
      %6004 = vmatpush.msra.mxu0 0.0
      %6005 = vmatpush.msra.mxu0 0.0
      %6006 = vmatpush.msra.mxu0 0.0
      %6007 = vmatpush.msra.mxu0 0.0
      %6008 = vmatpush.msra.mxu0 0.0
      %6009 = vmatpush.msra.mxu0 0.0
      %6010 = vmatpush.msra.mxu0 0.0
      %6011 = vmatpush.msra.mxu0 0.0
      %6012 = vmatpush.msra.mxu0 0.0
      %6013 = vmatpush.msra.mxu0 0.0
      %6014 = vmatpush.msra.mxu0 0.0
      %6015 = vmatpush.msra.mxu0 %v5990
      %6016 = vmatpush.msra.mxu0 %v5972
      %6017 = vmatmul.f32.gmra.mxu0 %v5984
      %v6018 = vpop.f32.mrf.mxu0
      %v6019 = vadd.f32 0.0, %v6018
      %6020 = vmatmul.f32.gmra.mxu0 %v5987
      %v6021 = vpop.f32.mrf.mxu0
      %v6022 = vadd.f32 0.0, %v6021
      %6023 = vdwg.mxu0
      %6024 = vmatpush.msra.mxu0 0.0
      %6025 = vmatpush.msra.mxu0 0.0
      %6026 = vmatpush.msra.mxu0 0.0
      %6027 = vmatpush.msra.mxu0 0.0
      %6028 = vmatpush.msra.mxu0 0.0
      %6029 = vmatpush.msra.mxu0 0.0
      %6030 = vmatpush.msra.mxu0 0.0
      %6031 = vmatpush.msra.mxu0 0.0
      %6032 = vmatpush.msra.mxu0 0.0
      %6033 = vmatpush.msra.mxu0 0.0
      %6034 = vmatpush.msra.mxu0 0.0
      %6035 = vmatpush.msra.mxu0 0.0
      %6036 = vmatpush.msra.mxu0 0.0
      %6037 = vmatpush.msra.mxu0 0.0
      %6038 = vmatpush.msra.mxu0 %v5993
      %6039 = vmatpush.msra.mxu0 %v5973
      %6040 = vmatmul.f32.gmra.mxu0 %v5984
      %v6041 = vpop.f32.mrf.mxu0
      %v6042 = vadd.f32 0.0, %v6041
      %6043 = vmatmul.f32.gmra.mxu0 %v5987
      %v6044 = vpop.f32.mrf.mxu0
      %v6045 = vadd.f32 0.0, %v6044
      %6046 = vdwg.mxu0
      %6047 = vmatpush.msra.mxu0 0.0
      %6048 = vmatpush.msra.mxu0 0.0
      %6049 = vmatpush.msra.mxu0 0.0
      %6050 = vmatpush.msra.mxu0 0.0
      %6051 = vmatpush.msra.mxu0 0.0
      %6052 = vmatpush.msra.mxu0 0.0
      %6053 = vmatpush.msra.mxu0 0.0
      %6054 = vmatpush.msra.mxu0 0.0
      %6055 = vmatpush.msra.mxu0 0.0
      %6056 = vmatpush.msra.mxu0 0.0
      %6057 = vmatpush.msra.mxu0 0.0
      %6058 = vmatpush.msra.mxu0 0.0
      %6059 = vmatpush.msra.mxu0 0.0
      %6060 = vmatpush.msra.mxu0 0.0
      %6061 = vmatpush.msra.mxu0 %v5996
      %6062 = vmatpush.msra.mxu0 %v5974
      %6063 = vmatmul.f32.gmra.mxu0 %v5984
      %v6064 = vpop.f32.mrf.mxu0
      %v6065 = vadd.f32 0.0, %v6064
      %6066 = vmatmul.f32.gmra.mxu0 %v5987
      %v6067 = vpop.f32.mrf.mxu0
      %v6068 = vadd.f32 0.0, %v6067
      %6069 = vdwg.mxu0
      %6070 = vmatpush.msra.mxu0 0.0
      %6071 = vmatpush.msra.mxu0 0.0
      %6072 = vmatpush.msra.mxu0 0.0
      %6073 = vmatpush.msra.mxu0 0.0
      %6074 = vmatpush.msra.mxu0 0.0
      %6075 = vmatpush.msra.mxu0 0.0
      %6076 = vmatpush.msra.mxu0 0.0
      %6077 = vmatpush.msra.mxu0 0.0
      %6078 = vmatpush.msra.mxu0 0.0
      %6079 = vmatpush.msra.mxu0 0.0
      %6080 = vmatpush.msra.mxu0 0.0
      %6081 = vmatpush.msra.mxu0 0.0
      %6082 = vmatpush.msra.mxu0 0.0
      %6083 = vmatpush.msra.mxu0 0.0
      %6084 = vmatpush.msra.mxu0 %v5999
      %6085 = vmatpush.msra.mxu0 %v5975
      %6086 = vmatmul.f32.gmra.mxu0 %v5984
      %v6087 = vpop.f32.mrf.mxu0
      %v6088 = vadd.f32 0.0, %v6087
      %6089 = vmatmul.f32.gmra.mxu0 %v5987
      %v6090 = vpop.f32.mrf.mxu0
      %v6091 = vadd.f32 0.0, %v6090
      %6092 = vdwg.mxu0
      %v6093 = vadd.f32 %v5940, %v6019
      %v6094 = vadd.f32 %v5941, %v6042
      %v6095 = vadd.f32 %v5942, %v6065
      %v6096 = vadd.f32 %v5943, %v6088
      %v6097 = vadd.f32 %v5944, %v6022
      %v6098 = vadd.f32 %v5945, %v6045
      %v6099 = vadd.f32 %v5946, %v6068
      %v6100 = vadd.f32 %v5947, %v6091
      %6101 = vrot.lane.b32.xlu0 %v4552, 8
      %v6102 = vpop.permute.xlu0 %6101
      %6103 = vrot.lane.b32.xlu0 %v4556, 8
      %v6104 = vpop.permute.xlu0 %6103
      %6105 = vrot.lane.b32.xlu0 %v4553, 8
      %v6106 = vpop.permute.xlu0 %6105
      %6107 = vrot.lane.b32.xlu0 %v4557, 8
      %v6108 = vpop.permute.xlu0 %6107
      %6109 = vrot.lane.b32.xlu0 %v4554, 8
      %v6110 = vpop.permute.xlu0 %6109
      %6111 = vrot.lane.b32.xlu0 %v4558, 8
      %v6112 = vpop.permute.xlu0 %6111
      %6113 = vrot.lane.b32.xlu0 %v4555, 8
      %v6114 = vpop.permute.xlu0 %6113
      %6115 = vrot.lane.b32.xlu0 %v4559, 8
      %v6116 = vpop.permute.xlu0 %6115
      %v6117 = vsel %vm1940, %v6110, %v6114
      %v6118 = vsel %vm1940, %v6112, %v6116
      %v6119 = vsel %vm1940, %v6106, %v6110
      %v6120 = vsel %vm1940, %v6108, %v6112
      %v6121 = vsel %vm1940, %v6102, %v6106
      %v6122 = vsel %vm1940, %v6104, %v6108
      %v6123 = vsel %vm1940, %v6114, %v6102
      %v6124 = vsel %vm1940, %v6116, %v6104
      %v6125 = vmul.f32 %v6123, %v1952
      %v6126 = vmul.f32 %v6121, %v1953
      %v6127 = vmul.f32 %v6119, %v1954
      %v6128 = vmul.f32 %v6117, %v1955
      %v6129 = vmul.f32 %v6124, %v1952
      %v6130 = vmul.f32 %v6122, %v1953
      %v6131 = vmul.f32 %v6120, %v1954
      %v6132 = vmul.f32 %v6118, %v1955
      %s6133 = scalar_lea.vmem %s4, 160
      %v6134 = vld [vmem:[%s6133] sm:$0xff]
      %v6135 = vld [vmem:[%s6133 + $0x8] sm:$0xf]
      %v6137 = vsel %vm319, %v6134, 0
      %v6140 = vsel %vm319, %v6135, 0
      %v6143 = vsel %vm326, %v6129, 0
      %v6146 = vsel %vm326, %v6130, 0
      %v6149 = vsel %vm326, %v6131, 0
      %v6152 = vsel %vm326, %v6132, 0
      %6154 = vmatpush.msra.mxu0 0.0
      %6155 = vmatpush.msra.mxu0 0.0
      %6156 = vmatpush.msra.mxu0 0.0
      %6157 = vmatpush.msra.mxu0 0.0
      %6158 = vmatpush.msra.mxu0 0.0
      %6159 = vmatpush.msra.mxu0 0.0
      %6160 = vmatpush.msra.mxu0 0.0
      %6161 = vmatpush.msra.mxu0 0.0
      %6162 = vmatpush.msra.mxu0 0.0
      %6163 = vmatpush.msra.mxu0 0.0
      %6164 = vmatpush.msra.mxu0 0.0
      %6165 = vmatpush.msra.mxu0 0.0
      %6166 = vmatpush.msra.mxu0 0.0
      %6167 = vmatpush.msra.mxu0 0.0
      %6168 = vmatpush.msra.mxu0 %v6143
      %6169 = vmatpush.msra.mxu0 %v6125
      %6170 = vmatmul.f32.gmra.mxu0 %v6137
      %v6171 = vpop.f32.mrf.mxu0
      %v6172 = vadd.f32 0.0, %v6171
      %6173 = vmatmul.f32.gmra.mxu0 %v6140
      %v6174 = vpop.f32.mrf.mxu0
      %v6175 = vadd.f32 0.0, %v6174
      %6176 = vdwg.mxu0
      %6177 = vmatpush.msra.mxu0 0.0
      %6178 = vmatpush.msra.mxu0 0.0
      %6179 = vmatpush.msra.mxu0 0.0
      %6180 = vmatpush.msra.mxu0 0.0
      %6181 = vmatpush.msra.mxu0 0.0
      %6182 = vmatpush.msra.mxu0 0.0
      %6183 = vmatpush.msra.mxu0 0.0
      %6184 = vmatpush.msra.mxu0 0.0
      %6185 = vmatpush.msra.mxu0 0.0
      %6186 = vmatpush.msra.mxu0 0.0
      %6187 = vmatpush.msra.mxu0 0.0
      %6188 = vmatpush.msra.mxu0 0.0
      %6189 = vmatpush.msra.mxu0 0.0
      %6190 = vmatpush.msra.mxu0 0.0
      %6191 = vmatpush.msra.mxu0 %v6146
      %6192 = vmatpush.msra.mxu0 %v6126
      %6193 = vmatmul.f32.gmra.mxu0 %v6137
      %v6194 = vpop.f32.mrf.mxu0
      %v6195 = vadd.f32 0.0, %v6194
      %6196 = vmatmul.f32.gmra.mxu0 %v6140
      %v6197 = vpop.f32.mrf.mxu0
      %v6198 = vadd.f32 0.0, %v6197
      %6199 = vdwg.mxu0
      %6200 = vmatpush.msra.mxu0 0.0
      %6201 = vmatpush.msra.mxu0 0.0
      %6202 = vmatpush.msra.mxu0 0.0
      %6203 = vmatpush.msra.mxu0 0.0
      %6204 = vmatpush.msra.mxu0 0.0
      %6205 = vmatpush.msra.mxu0 0.0
      %6206 = vmatpush.msra.mxu0 0.0
      %6207 = vmatpush.msra.mxu0 0.0
      %6208 = vmatpush.msra.mxu0 0.0
      %6209 = vmatpush.msra.mxu0 0.0
      %6210 = vmatpush.msra.mxu0 0.0
      %6211 = vmatpush.msra.mxu0 0.0
      %6212 = vmatpush.msra.mxu0 0.0
      %6213 = vmatpush.msra.mxu0 0.0
      %6214 = vmatpush.msra.mxu0 %v6149
      %6215 = vmatpush.msra.mxu0 %v6127
      %6216 = vmatmul.f32.gmra.mxu0 %v6137
      %v6217 = vpop.f32.mrf.mxu0
      %v6218 = vadd.f32 0.0, %v6217
      %6219 = vmatmul.f32.gmra.mxu0 %v6140
      %v6220 = vpop.f32.mrf.mxu0
      %v6221 = vadd.f32 0.0, %v6220
      %6222 = vdwg.mxu0
      %6223 = vmatpush.msra.mxu0 0.0
      %6224 = vmatpush.msra.mxu0 0.0
      %6225 = vmatpush.msra.mxu0 0.0
      %6226 = vmatpush.msra.mxu0 0.0
      %6227 = vmatpush.msra.mxu0 0.0
      %6228 = vmatpush.msra.mxu0 0.0
      %6229 = vmatpush.msra.mxu0 0.0
      %6230 = vmatpush.msra.mxu0 0.0
      %6231 = vmatpush.msra.mxu0 0.0
      %6232 = vmatpush.msra.mxu0 0.0
      %6233 = vmatpush.msra.mxu0 0.0
      %6234 = vmatpush.msra.mxu0 0.0
      %6235 = vmatpush.msra.mxu0 0.0
      %6236 = vmatpush.msra.mxu0 0.0
      %6237 = vmatpush.msra.mxu0 %v6152
      %6238 = vmatpush.msra.mxu0 %v6128
      %6239 = vmatmul.f32.gmra.mxu0 %v6137
      %v6240 = vpop.f32.mrf.mxu0
      %v6241 = vadd.f32 0.0, %v6240
      %6242 = vmatmul.f32.gmra.mxu0 %v6140
      %v6243 = vpop.f32.mrf.mxu0
      %v6244 = vadd.f32 0.0, %v6243
      %6245 = vdwg.mxu0
      %v6246 = vadd.f32 %v6093, %v6172
      %v6247 = vadd.f32 %v6094, %v6195
      %v6248 = vadd.f32 %v6095, %v6218
      %v6249 = vadd.f32 %v6096, %v6241
      %v6250 = vadd.f32 %v6097, %v6175
      %v6251 = vadd.f32 %v6098, %v6198
      %v6252 = vadd.f32 %v6099, %v6221
      %v6253 = vadd.f32 %v6100, %v6244
      %6254 = vrot.lane.b32.xlu0 %v4552, 7
      %v6255 = vpop.permute.xlu0 %6254
      %6256 = vrot.lane.b32.xlu0 %v4556, 7
      %v6257 = vpop.permute.xlu0 %6256
      %6258 = vrot.lane.b32.xlu0 %v4553, 7
      %v6259 = vpop.permute.xlu0 %6258
      %6260 = vrot.lane.b32.xlu0 %v4557, 7
      %v6261 = vpop.permute.xlu0 %6260
      %6262 = vrot.lane.b32.xlu0 %v4554, 7
      %v6263 = vpop.permute.xlu0 %6262
      %6264 = vrot.lane.b32.xlu0 %v4558, 7
      %v6265 = vpop.permute.xlu0 %6264
      %6266 = vrot.lane.b32.xlu0 %v4555, 7
      %v6267 = vpop.permute.xlu0 %6266
      %6268 = vrot.lane.b32.xlu0 %v4559, 7
      %v6269 = vpop.permute.xlu0 %6268
      %v6270 = vsel %vm2105, %v6263, %v6267
      %v6271 = vsel %vm2105, %v6265, %v6269
      %v6272 = vsel %vm2105, %v6259, %v6263
      %v6273 = vsel %vm2105, %v6261, %v6265
      %v6274 = vsel %vm2105, %v6255, %v6259
      %v6275 = vsel %vm2105, %v6257, %v6261
      %v6276 = vsel %vm2105, %v6267, %v6255
      %v6277 = vsel %vm2105, %v6269, %v6257
      %v6278 = vmul.f32 %v6276, %v2117
      %v6279 = vmul.f32 %v6274, %v2118
      %v6280 = vmul.f32 %v6272, %v2119
      %v6281 = vmul.f32 %v6270, %v2120
      %v6282 = vmul.f32 %v6277, %v2117
      %v6283 = vmul.f32 %v6275, %v2118
      %v6284 = vmul.f32 %v6273, %v2119
      %v6285 = vmul.f32 %v6271, %v2120
      %s6286 = scalar_lea.vmem %s4, 176
      %v6287 = vld [vmem:[%s6286] sm:$0xff]
      %v6288 = vld [vmem:[%s6286 + $0x8] sm:$0xf]
      %v6290 = vsel %vm319, %v6287, 0
      %v6293 = vsel %vm319, %v6288, 0
      %v6296 = vsel %vm326, %v6282, 0
      %v6299 = vsel %vm326, %v6283, 0
      %v6302 = vsel %vm326, %v6284, 0
      %v6305 = vsel %vm326, %v6285, 0
      %6307 = vmatpush.msra.mxu0 0.0
      %6308 = vmatpush.msra.mxu0 0.0
      %6309 = vmatpush.msra.mxu0 0.0
      %6310 = vmatpush.msra.mxu0 0.0
      %6311 = vmatpush.msra.mxu0 0.0
      %6312 = vmatpush.msra.mxu0 0.0
      %6313 = vmatpush.msra.mxu0 0.0
      %6314 = vmatpush.msra.mxu0 0.0
      %6315 = vmatpush.msra.mxu0 0.0
      %6316 = vmatpush.msra.mxu0 0.0
      %6317 = vmatpush.msra.mxu0 0.0
      %6318 = vmatpush.msra.mxu0 0.0
      %6319 = vmatpush.msra.mxu0 0.0
      %6320 = vmatpush.msra.mxu0 0.0
      %6321 = vmatpush.msra.mxu0 %v6296
      %6322 = vmatpush.msra.mxu0 %v6278
      %6323 = vmatmul.f32.gmra.mxu0 %v6290
      %v6324 = vpop.f32.mrf.mxu0
      %v6325 = vadd.f32 0.0, %v6324
      %6326 = vmatmul.f32.gmra.mxu0 %v6293
      %v6327 = vpop.f32.mrf.mxu0
      %v6328 = vadd.f32 0.0, %v6327
      %6329 = vdwg.mxu0
      %6330 = vmatpush.msra.mxu0 0.0
      %6331 = vmatpush.msra.mxu0 0.0
      %6332 = vmatpush.msra.mxu0 0.0
      %6333 = vmatpush.msra.mxu0 0.0
      %6334 = vmatpush.msra.mxu0 0.0
      %6335 = vmatpush.msra.mxu0 0.0
      %6336 = vmatpush.msra.mxu0 0.0
      %6337 = vmatpush.msra.mxu0 0.0
      %6338 = vmatpush.msra.mxu0 0.0
      %6339 = vmatpush.msra.mxu0 0.0
      %6340 = vmatpush.msra.mxu0 0.0
      %6341 = vmatpush.msra.mxu0 0.0
      %6342 = vmatpush.msra.mxu0 0.0
      %6343 = vmatpush.msra.mxu0 0.0
      %6344 = vmatpush.msra.mxu0 %v6299
      %6345 = vmatpush.msra.mxu0 %v6279
      %6346 = vmatmul.f32.gmra.mxu0 %v6290
      %v6347 = vpop.f32.mrf.mxu0
      %v6348 = vadd.f32 0.0, %v6347
      %6349 = vmatmul.f32.gmra.mxu0 %v6293
      %v6350 = vpop.f32.mrf.mxu0
      %v6351 = vadd.f32 0.0, %v6350
      %6352 = vdwg.mxu0
      %6353 = vmatpush.msra.mxu0 0.0
      %6354 = vmatpush.msra.mxu0 0.0
      %6355 = vmatpush.msra.mxu0 0.0
      %6356 = vmatpush.msra.mxu0 0.0
      %6357 = vmatpush.msra.mxu0 0.0
      %6358 = vmatpush.msra.mxu0 0.0
      %6359 = vmatpush.msra.mxu0 0.0
      %6360 = vmatpush.msra.mxu0 0.0
      %6361 = vmatpush.msra.mxu0 0.0
      %6362 = vmatpush.msra.mxu0 0.0
      %6363 = vmatpush.msra.mxu0 0.0
      %6364 = vmatpush.msra.mxu0 0.0
      %6365 = vmatpush.msra.mxu0 0.0
      %6366 = vmatpush.msra.mxu0 0.0
      %6367 = vmatpush.msra.mxu0 %v6302
      %6368 = vmatpush.msra.mxu0 %v6280
      %6369 = vmatmul.f32.gmra.mxu0 %v6290
      %v6370 = vpop.f32.mrf.mxu0
      %v6371 = vadd.f32 0.0, %v6370
      %6372 = vmatmul.f32.gmra.mxu0 %v6293
      %v6373 = vpop.f32.mrf.mxu0
      %v6374 = vadd.f32 0.0, %v6373
      %6375 = vdwg.mxu0
      %6376 = vmatpush.msra.mxu0 0.0
      %6377 = vmatpush.msra.mxu0 0.0
      %6378 = vmatpush.msra.mxu0 0.0
      %6379 = vmatpush.msra.mxu0 0.0
      %6380 = vmatpush.msra.mxu0 0.0
      %6381 = vmatpush.msra.mxu0 0.0
      %6382 = vmatpush.msra.mxu0 0.0
      %6383 = vmatpush.msra.mxu0 0.0
      %6384 = vmatpush.msra.mxu0 0.0
      %6385 = vmatpush.msra.mxu0 0.0
      %6386 = vmatpush.msra.mxu0 0.0
      %6387 = vmatpush.msra.mxu0 0.0
      %6388 = vmatpush.msra.mxu0 0.0
      %6389 = vmatpush.msra.mxu0 0.0
      %6390 = vmatpush.msra.mxu0 %v6305
      %6391 = vmatpush.msra.mxu0 %v6281
      %6392 = vmatmul.f32.gmra.mxu0 %v6290
      %v6393 = vpop.f32.mrf.mxu0
      %v6394 = vadd.f32 0.0, %v6393
      %6395 = vmatmul.f32.gmra.mxu0 %v6293
      %v6396 = vpop.f32.mrf.mxu0
      %v6397 = vadd.f32 0.0, %v6396
      %6398 = vdwg.mxu0
      %v6399 = vadd.f32 %v6246, %v6325
      %v6400 = vadd.f32 %v6247, %v6348
      %v6401 = vadd.f32 %v6248, %v6371
      %v6402 = vadd.f32 %v6249, %v6394
      %v6403 = vadd.f32 %v6250, %v6328
      %v6404 = vadd.f32 %v6251, %v6351
      %v6405 = vadd.f32 %v6252, %v6374
      %v6406 = vadd.f32 %v6253, %v6397
      %6407 = vrot.lane.b32.xlu0 %v4552, 1
      %v6408 = vpop.permute.xlu0 %6407
      %6409 = vrot.lane.b32.xlu0 %v4556, 1
      %v6410 = vpop.permute.xlu0 %6409
      %6411 = vrot.lane.b32.xlu0 %v4553, 1
      %v6412 = vpop.permute.xlu0 %6411
      %6413 = vrot.lane.b32.xlu0 %v4557, 1
      %v6414 = vpop.permute.xlu0 %6413
      %6415 = vrot.lane.b32.xlu0 %v4554, 1
      %v6416 = vpop.permute.xlu0 %6415
      %6417 = vrot.lane.b32.xlu0 %v4558, 1
      %v6418 = vpop.permute.xlu0 %6417
      %6419 = vrot.lane.b32.xlu0 %v4555, 1
      %v6420 = vpop.permute.xlu0 %6419
      %6421 = vrot.lane.b32.xlu0 %v4559, 1
      %v6422 = vpop.permute.xlu0 %6421
      %v6423 = vsel %vm2270, %v6416, %v6420
      %v6424 = vsel %vm2270, %v6418, %v6422
      %v6425 = vsel %vm2270, %v6412, %v6416
      %v6426 = vsel %vm2270, %v6414, %v6418
      %v6427 = vsel %vm2270, %v6408, %v6412
      %v6428 = vsel %vm2270, %v6410, %v6414
      %v6429 = vsel %vm2270, %v6420, %v6408
      %v6430 = vsel %vm2270, %v6422, %v6410
      %v6431 = vmul.f32 %v6429, %v2282
      %v6432 = vmul.f32 %v6427, %v2283
      %v6433 = vmul.f32 %v6425, %v2284
      %v6434 = vmul.f32 %v6423, %v2285
      %v6435 = vmul.f32 %v6430, %v2282
      %v6436 = vmul.f32 %v6428, %v2283
      %v6437 = vmul.f32 %v6426, %v2284
      %v6438 = vmul.f32 %v6424, %v2285
      %s6439 = scalar_lea.vmem %s4, 192
      %v6440 = vld [vmem:[%s6439] sm:$0xff]
      %v6441 = vld [vmem:[%s6439 + $0x8] sm:$0xf]
      %v6443 = vsel %vm319, %v6440, 0
      %v6446 = vsel %vm319, %v6441, 0
      %v6449 = vsel %vm326, %v6435, 0
      %v6452 = vsel %vm326, %v6436, 0
      %v6455 = vsel %vm326, %v6437, 0
      %v6458 = vsel %vm326, %v6438, 0
      %6460 = vmatpush.msra.mxu0 0.0
      %6461 = vmatpush.msra.mxu0 0.0
      %6462 = vmatpush.msra.mxu0 0.0
      %6463 = vmatpush.msra.mxu0 0.0
      %6464 = vmatpush.msra.mxu0 0.0
      %6465 = vmatpush.msra.mxu0 0.0
      %6466 = vmatpush.msra.mxu0 0.0
      %6467 = vmatpush.msra.mxu0 0.0
      %6468 = vmatpush.msra.mxu0 0.0
      %6469 = vmatpush.msra.mxu0 0.0
      %6470 = vmatpush.msra.mxu0 0.0
      %6471 = vmatpush.msra.mxu0 0.0
      %6472 = vmatpush.msra.mxu0 0.0
      %6473 = vmatpush.msra.mxu0 0.0
      %6474 = vmatpush.msra.mxu0 %v6449
      %6475 = vmatpush.msra.mxu0 %v6431
      %6476 = vmatmul.f32.gmra.mxu0 %v6443
      %v6477 = vpop.f32.mrf.mxu0
      %v6478 = vadd.f32 0.0, %v6477
      %6479 = vmatmul.f32.gmra.mxu0 %v6446
      %v6480 = vpop.f32.mrf.mxu0
      %v6481 = vadd.f32 0.0, %v6480
      %6482 = vdwg.mxu0
      %6483 = vmatpush.msra.mxu0 0.0
      %6484 = vmatpush.msra.mxu0 0.0
      %6485 = vmatpush.msra.mxu0 0.0
      %6486 = vmatpush.msra.mxu0 0.0
      %6487 = vmatpush.msra.mxu0 0.0
      %6488 = vmatpush.msra.mxu0 0.0
      %6489 = vmatpush.msra.mxu0 0.0
      %6490 = vmatpush.msra.mxu0 0.0
      %6491 = vmatpush.msra.mxu0 0.0
      %6492 = vmatpush.msra.mxu0 0.0
      %6493 = vmatpush.msra.mxu0 0.0
      %6494 = vmatpush.msra.mxu0 0.0
      %6495 = vmatpush.msra.mxu0 0.0
      %6496 = vmatpush.msra.mxu0 0.0
      %6497 = vmatpush.msra.mxu0 %v6452
      %6498 = vmatpush.msra.mxu0 %v6432
      %6499 = vmatmul.f32.gmra.mxu0 %v6443
      %v6500 = vpop.f32.mrf.mxu0
      %v6501 = vadd.f32 0.0, %v6500
      %6502 = vmatmul.f32.gmra.mxu0 %v6446
      %v6503 = vpop.f32.mrf.mxu0
      %v6504 = vadd.f32 0.0, %v6503
      %6505 = vdwg.mxu0
      %6506 = vmatpush.msra.mxu0 0.0
      %6507 = vmatpush.msra.mxu0 0.0
      %6508 = vmatpush.msra.mxu0 0.0
      %6509 = vmatpush.msra.mxu0 0.0
      %6510 = vmatpush.msra.mxu0 0.0
      %6511 = vmatpush.msra.mxu0 0.0
      %6512 = vmatpush.msra.mxu0 0.0
      %6513 = vmatpush.msra.mxu0 0.0
      %6514 = vmatpush.msra.mxu0 0.0
      %6515 = vmatpush.msra.mxu0 0.0
      %6516 = vmatpush.msra.mxu0 0.0
      %6517 = vmatpush.msra.mxu0 0.0
      %6518 = vmatpush.msra.mxu0 0.0
      %6519 = vmatpush.msra.mxu0 0.0
      %6520 = vmatpush.msra.mxu0 %v6455
      %6521 = vmatpush.msra.mxu0 %v6433
      %6522 = vmatmul.f32.gmra.mxu0 %v6443
      %v6523 = vpop.f32.mrf.mxu0
      %v6524 = vadd.f32 0.0, %v6523
      %6525 = vmatmul.f32.gmra.mxu0 %v6446
      %v6526 = vpop.f32.mrf.mxu0
      %v6527 = vadd.f32 0.0, %v6526
      %6528 = vdwg.mxu0
      %6529 = vmatpush.msra.mxu0 0.0
      %6530 = vmatpush.msra.mxu0 0.0
      %6531 = vmatpush.msra.mxu0 0.0
      %6532 = vmatpush.msra.mxu0 0.0
      %6533 = vmatpush.msra.mxu0 0.0
      %6534 = vmatpush.msra.mxu0 0.0
      %6535 = vmatpush.msra.mxu0 0.0
      %6536 = vmatpush.msra.mxu0 0.0
      %6537 = vmatpush.msra.mxu0 0.0
      %6538 = vmatpush.msra.mxu0 0.0
      %6539 = vmatpush.msra.mxu0 0.0
      %6540 = vmatpush.msra.mxu0 0.0
      %6541 = vmatpush.msra.mxu0 0.0
      %6542 = vmatpush.msra.mxu0 0.0
      %6543 = vmatpush.msra.mxu0 %v6458
      %6544 = vmatpush.msra.mxu0 %v6434
      %6545 = vmatmul.f32.gmra.mxu0 %v6443
      %v6546 = vpop.f32.mrf.mxu0
      %v6547 = vadd.f32 0.0, %v6546
      %6548 = vmatmul.f32.gmra.mxu0 %v6446
      %v6549 = vpop.f32.mrf.mxu0
      %v6550 = vadd.f32 0.0, %v6549
      %6551 = vdwg.mxu0
      %v6552 = vadd.f32 %v6399, %v6478
      %v6553 = vadd.f32 %v6400, %v6501
      %v6554 = vadd.f32 %v6401, %v6524
      %v6555 = vadd.f32 %v6402, %v6547
      %v6556 = vadd.f32 %v6403, %v6481
      %v6557 = vadd.f32 %v6404, %v6504
      %v6558 = vadd.f32 %v6405, %v6527
      %v6559 = vadd.f32 %v6406, %v6550
      %s6560 = scalar_lea.vmem %s4, 208
      %v6561 = vld [vmem:[%s6560] sm:$0xff]
      %v6562 = vld [vmem:[%s6560 + $0x8] sm:$0xf]
      %v6564 = vsel %vm319, %v6561, 0
      %v6567 = vsel %vm319, %v6562, 0
      %v6570 = vsel %vm326, %v4556, 0
      %v6573 = vsel %vm326, %v4557, 0
      %v6576 = vsel %vm326, %v4558, 0
      %v6579 = vsel %vm326, %v4559, 0
      %6581 = vmatpush.msra.mxu0 0.0
      %6582 = vmatpush.msra.mxu0 0.0
      %6583 = vmatpush.msra.mxu0 0.0
      %6584 = vmatpush.msra.mxu0 0.0
      %6585 = vmatpush.msra.mxu0 0.0
      %6586 = vmatpush.msra.mxu0 0.0
      %6587 = vmatpush.msra.mxu0 0.0
      %6588 = vmatpush.msra.mxu0 0.0
      %6589 = vmatpush.msra.mxu0 0.0
      %6590 = vmatpush.msra.mxu0 0.0
      %6591 = vmatpush.msra.mxu0 0.0
      %6592 = vmatpush.msra.mxu0 0.0
      %6593 = vmatpush.msra.mxu0 0.0
      %6594 = vmatpush.msra.mxu0 0.0
      %6595 = vmatpush.msra.mxu0 %v6570
      %6596 = vmatpush.msra.mxu0 %v4552
      %6597 = vmatmul.f32.gmra.mxu0 %v6564
      %v6598 = vpop.f32.mrf.mxu0
      %v6599 = vadd.f32 0.0, %v6598
      %6600 = vmatmul.f32.gmra.mxu0 %v6567
      %v6601 = vpop.f32.mrf.mxu0
      %v6602 = vadd.f32 0.0, %v6601
      %6603 = vdwg.mxu0
      %6604 = vmatpush.msra.mxu0 0.0
      %6605 = vmatpush.msra.mxu0 0.0
      %6606 = vmatpush.msra.mxu0 0.0
      %6607 = vmatpush.msra.mxu0 0.0
      %6608 = vmatpush.msra.mxu0 0.0
      %6609 = vmatpush.msra.mxu0 0.0
      %6610 = vmatpush.msra.mxu0 0.0
      %6611 = vmatpush.msra.mxu0 0.0
      %6612 = vmatpush.msra.mxu0 0.0
      %6613 = vmatpush.msra.mxu0 0.0
      %6614 = vmatpush.msra.mxu0 0.0
      %6615 = vmatpush.msra.mxu0 0.0
      %6616 = vmatpush.msra.mxu0 0.0
      %6617 = vmatpush.msra.mxu0 0.0
      %6618 = vmatpush.msra.mxu0 %v6573
      %6619 = vmatpush.msra.mxu0 %v4553
      %6620 = vmatmul.f32.gmra.mxu0 %v6564
      %v6621 = vpop.f32.mrf.mxu0
      %v6622 = vadd.f32 0.0, %v6621
      %6623 = vmatmul.f32.gmra.mxu0 %v6567
      %v6624 = vpop.f32.mrf.mxu0
      %v6625 = vadd.f32 0.0, %v6624
      %6626 = vdwg.mxu0
      %6627 = vmatpush.msra.mxu0 0.0
      %6628 = vmatpush.msra.mxu0 0.0
      %6629 = vmatpush.msra.mxu0 0.0
      %6630 = vmatpush.msra.mxu0 0.0
      %6631 = vmatpush.msra.mxu0 0.0
      %6632 = vmatpush.msra.mxu0 0.0
      %6633 = vmatpush.msra.mxu0 0.0
      %6634 = vmatpush.msra.mxu0 0.0
      %6635 = vmatpush.msra.mxu0 0.0
      %6636 = vmatpush.msra.mxu0 0.0
      %6637 = vmatpush.msra.mxu0 0.0
      %6638 = vmatpush.msra.mxu0 0.0
      %6639 = vmatpush.msra.mxu0 0.0
      %6640 = vmatpush.msra.mxu0 0.0
      %6641 = vmatpush.msra.mxu0 %v6576
      %6642 = vmatpush.msra.mxu0 %v4554
      %6643 = vmatmul.f32.gmra.mxu0 %v6564
      %v6644 = vpop.f32.mrf.mxu0
      %v6645 = vadd.f32 0.0, %v6644
      %6646 = vmatmul.f32.gmra.mxu0 %v6567
      %v6647 = vpop.f32.mrf.mxu0
      %v6648 = vadd.f32 0.0, %v6647
      %6649 = vdwg.mxu0
      %6650 = vmatpush.msra.mxu0 0.0
      %6651 = vmatpush.msra.mxu0 0.0
      %6652 = vmatpush.msra.mxu0 0.0
      %6653 = vmatpush.msra.mxu0 0.0
      %6654 = vmatpush.msra.mxu0 0.0
      %6655 = vmatpush.msra.mxu0 0.0
      %6656 = vmatpush.msra.mxu0 0.0
      %6657 = vmatpush.msra.mxu0 0.0
      %6658 = vmatpush.msra.mxu0 0.0
      %6659 = vmatpush.msra.mxu0 0.0
      %6660 = vmatpush.msra.mxu0 0.0
      %6661 = vmatpush.msra.mxu0 0.0
      %6662 = vmatpush.msra.mxu0 0.0
      %6663 = vmatpush.msra.mxu0 0.0
      %6664 = vmatpush.msra.mxu0 %v6579
      %6665 = vmatpush.msra.mxu0 %v4555
      %6666 = vmatmul.f32.gmra.mxu0 %v6564
      %v6667 = vpop.f32.mrf.mxu0
      %v6668 = vadd.f32 0.0, %v6667
      %6669 = vmatmul.f32.gmra.mxu0 %v6567
      %v6670 = vpop.f32.mrf.mxu0
      %v6671 = vadd.f32 0.0, %v6670
      %6672 = vdwg.mxu0
      %v6673 = vadd.f32 %v6552, %v6599
      %v6674 = vadd.f32 %v6553, %v6622
      %v6675 = vadd.f32 %v6554, %v6645
      %v6676 = vadd.f32 %v6555, %v6668
      %v6677 = vadd.f32 %v6556, %v6602
      %v6678 = vadd.f32 %v6557, %v6625
      %v6679 = vadd.f32 %v6558, %v6648
      %v6680 = vadd.f32 %v6559, %v6671
      %6681 = vrot.lane.b32.xlu0 %v4552, 127
      %v6682 = vpop.permute.xlu0 %6681
      %6683 = vrot.lane.b32.xlu0 %v4556, 127
      %v6684 = vpop.permute.xlu0 %6683
      %6685 = vrot.lane.b32.xlu0 %v4553, 127
      %v6686 = vpop.permute.xlu0 %6685
      %6687 = vrot.lane.b32.xlu0 %v4557, 127
      %v6688 = vpop.permute.xlu0 %6687
      %6689 = vrot.lane.b32.xlu0 %v4554, 127
      %v6690 = vpop.permute.xlu0 %6689
      %6691 = vrot.lane.b32.xlu0 %v4558, 127
      %v6692 = vpop.permute.xlu0 %6691
      %6693 = vrot.lane.b32.xlu0 %v4555, 127
      %v6694 = vpop.permute.xlu0 %6693
      %6695 = vrot.lane.b32.xlu0 %v4559, 127
      %v6696 = vpop.permute.xlu0 %6695
      %v6697 = vsel %vm2556, %v6690, %v6694
      %v6698 = vsel %vm2556, %v6692, %v6696
      %v6699 = vsel %vm2556, %v6686, %v6690
      %v6700 = vsel %vm2556, %v6688, %v6692
      %v6701 = vsel %vm2556, %v6682, %v6686
      %v6702 = vsel %vm2556, %v6684, %v6688
      %v6703 = vsel %vm2556, %v6694, %v6682
      %v6704 = vsel %vm2556, %v6696, %v6684
      %v6705 = vmul.f32 %v6701, %v2568
      %v6706 = vmul.f32 %v6699, %v2569
      %v6707 = vmul.f32 %v6697, %v2570
      %v6708 = vmul.f32 %v6703, %v2571
      %v6709 = vmul.f32 %v6702, %v2568
      %v6710 = vmul.f32 %v6700, %v2569
      %v6711 = vmul.f32 %v6698, %v2570
      %v6712 = vmul.f32 %v6704, %v2571
      %s6713 = scalar_lea.vmem %s4, 224
      %v6714 = vld [vmem:[%s6713] sm:$0xff]
      %v6715 = vld [vmem:[%s6713 + $0x8] sm:$0xf]
      %v6717 = vsel %vm319, %v6714, 0
      %v6720 = vsel %vm319, %v6715, 0
      %v6723 = vsel %vm326, %v6709, 0
      %v6726 = vsel %vm326, %v6710, 0
      %v6729 = vsel %vm326, %v6711, 0
      %v6732 = vsel %vm326, %v6712, 0
      %6734 = vmatpush.msra.mxu0 0.0
      %6735 = vmatpush.msra.mxu0 0.0
      %6736 = vmatpush.msra.mxu0 0.0
      %6737 = vmatpush.msra.mxu0 0.0
      %6738 = vmatpush.msra.mxu0 0.0
      %6739 = vmatpush.msra.mxu0 0.0
      %6740 = vmatpush.msra.mxu0 0.0
      %6741 = vmatpush.msra.mxu0 0.0
      %6742 = vmatpush.msra.mxu0 0.0
      %6743 = vmatpush.msra.mxu0 0.0
      %6744 = vmatpush.msra.mxu0 0.0
      %6745 = vmatpush.msra.mxu0 0.0
      %6746 = vmatpush.msra.mxu0 0.0
      %6747 = vmatpush.msra.mxu0 0.0
      %6748 = vmatpush.msra.mxu0 %v6723
      %6749 = vmatpush.msra.mxu0 %v6705
      %6750 = vmatmul.f32.gmra.mxu0 %v6717
      %v6751 = vpop.f32.mrf.mxu0
      %v6752 = vadd.f32 0.0, %v6751
      %6753 = vmatmul.f32.gmra.mxu0 %v6720
      %v6754 = vpop.f32.mrf.mxu0
      %v6755 = vadd.f32 0.0, %v6754
      %6756 = vdwg.mxu0
      %6757 = vmatpush.msra.mxu0 0.0
      %6758 = vmatpush.msra.mxu0 0.0
      %6759 = vmatpush.msra.mxu0 0.0
      %6760 = vmatpush.msra.mxu0 0.0
      %6761 = vmatpush.msra.mxu0 0.0
      %6762 = vmatpush.msra.mxu0 0.0
      %6763 = vmatpush.msra.mxu0 0.0
      %6764 = vmatpush.msra.mxu0 0.0
      %6765 = vmatpush.msra.mxu0 0.0
      %6766 = vmatpush.msra.mxu0 0.0
      %6767 = vmatpush.msra.mxu0 0.0
      %6768 = vmatpush.msra.mxu0 0.0
      %6769 = vmatpush.msra.mxu0 0.0
      %6770 = vmatpush.msra.mxu0 0.0
      %6771 = vmatpush.msra.mxu0 %v6726
      %6772 = vmatpush.msra.mxu0 %v6706
      %6773 = vmatmul.f32.gmra.mxu0 %v6717
      %v6774 = vpop.f32.mrf.mxu0
      %v6775 = vadd.f32 0.0, %v6774
      %6776 = vmatmul.f32.gmra.mxu0 %v6720
      %v6777 = vpop.f32.mrf.mxu0
      %v6778 = vadd.f32 0.0, %v6777
      %6779 = vdwg.mxu0
      %6780 = vmatpush.msra.mxu0 0.0
      %6781 = vmatpush.msra.mxu0 0.0
      %6782 = vmatpush.msra.mxu0 0.0
      %6783 = vmatpush.msra.mxu0 0.0
      %6784 = vmatpush.msra.mxu0 0.0
      %6785 = vmatpush.msra.mxu0 0.0
      %6786 = vmatpush.msra.mxu0 0.0
      %6787 = vmatpush.msra.mxu0 0.0
      %6788 = vmatpush.msra.mxu0 0.0
      %6789 = vmatpush.msra.mxu0 0.0
      %6790 = vmatpush.msra.mxu0 0.0
      %6791 = vmatpush.msra.mxu0 0.0
      %6792 = vmatpush.msra.mxu0 0.0
      %6793 = vmatpush.msra.mxu0 0.0
      %6794 = vmatpush.msra.mxu0 %v6729
      %6795 = vmatpush.msra.mxu0 %v6707
      %6796 = vmatmul.f32.gmra.mxu0 %v6717
      %v6797 = vpop.f32.mrf.mxu0
      %v6798 = vadd.f32 0.0, %v6797
      %6799 = vmatmul.f32.gmra.mxu0 %v6720
      %v6800 = vpop.f32.mrf.mxu0
      %v6801 = vadd.f32 0.0, %v6800
      %6802 = vdwg.mxu0
      %6803 = vmatpush.msra.mxu0 0.0
      %6804 = vmatpush.msra.mxu0 0.0
      %6805 = vmatpush.msra.mxu0 0.0
      %6806 = vmatpush.msra.mxu0 0.0
      %6807 = vmatpush.msra.mxu0 0.0
      %6808 = vmatpush.msra.mxu0 0.0
      %6809 = vmatpush.msra.mxu0 0.0
      %6810 = vmatpush.msra.mxu0 0.0
      %6811 = vmatpush.msra.mxu0 0.0
      %6812 = vmatpush.msra.mxu0 0.0
      %6813 = vmatpush.msra.mxu0 0.0
      %6814 = vmatpush.msra.mxu0 0.0
      %6815 = vmatpush.msra.mxu0 0.0
      %6816 = vmatpush.msra.mxu0 0.0
      %6817 = vmatpush.msra.mxu0 %v6732
      %6818 = vmatpush.msra.mxu0 %v6708
      %6819 = vmatmul.f32.gmra.mxu0 %v6717
      %v6820 = vpop.f32.mrf.mxu0
      %v6821 = vadd.f32 0.0, %v6820
      %6822 = vmatmul.f32.gmra.mxu0 %v6720
      %v6823 = vpop.f32.mrf.mxu0
      %v6824 = vadd.f32 0.0, %v6823
      %6825 = vdwg.mxu0
      %v6826 = vadd.f32 %v6673, %v6752
      %v6827 = vadd.f32 %v6674, %v6775
      %v6828 = vadd.f32 %v6675, %v6798
      %v6829 = vadd.f32 %v6676, %v6821
      %v6830 = vadd.f32 %v6677, %v6755
      %v6831 = vadd.f32 %v6678, %v6778
      %v6832 = vadd.f32 %v6679, %v6801
      %v6833 = vadd.f32 %v6680, %v6824
      %6834 = vrot.lane.b32.xlu0 %v4552, 121
      %v6835 = vpop.permute.xlu0 %6834
      %6836 = vrot.lane.b32.xlu0 %v4556, 121
      %v6837 = vpop.permute.xlu0 %6836
      %6838 = vrot.lane.b32.xlu0 %v4553, 121
      %v6839 = vpop.permute.xlu0 %6838
      %6840 = vrot.lane.b32.xlu0 %v4557, 121
      %v6841 = vpop.permute.xlu0 %6840
      %6842 = vrot.lane.b32.xlu0 %v4554, 121
      %v6843 = vpop.permute.xlu0 %6842
      %6844 = vrot.lane.b32.xlu0 %v4558, 121
      %v6845 = vpop.permute.xlu0 %6844
      %6846 = vrot.lane.b32.xlu0 %v4555, 121
      %v6847 = vpop.permute.xlu0 %6846
      %6848 = vrot.lane.b32.xlu0 %v4559, 121
      %v6849 = vpop.permute.xlu0 %6848
      %v6850 = vsel %vm2721, %v6843, %v6847
      %v6851 = vsel %vm2721, %v6845, %v6849
      %v6852 = vsel %vm2721, %v6839, %v6843
      %v6853 = vsel %vm2721, %v6841, %v6845
      %v6854 = vsel %vm2721, %v6835, %v6839
      %v6855 = vsel %vm2721, %v6837, %v6841
      %v6856 = vsel %vm2721, %v6847, %v6835
      %v6857 = vsel %vm2721, %v6849, %v6837
      %v6858 = vmul.f32 %v6854, %v2733
      %v6859 = vmul.f32 %v6852, %v2734
      %v6860 = vmul.f32 %v6850, %v2735
      %v6861 = vmul.f32 %v6856, %v2736
      %v6862 = vmul.f32 %v6855, %v2733
      %v6863 = vmul.f32 %v6853, %v2734
      %v6864 = vmul.f32 %v6851, %v2735
      %v6865 = vmul.f32 %v6857, %v2736
      %s6866 = scalar_lea.vmem %s4, 240
      %v6867 = vld [vmem:[%s6866] sm:$0xff]
      %v6868 = vld [vmem:[%s6866 + $0x8] sm:$0xf]
      %v6870 = vsel %vm319, %v6867, 0
      %v6873 = vsel %vm319, %v6868, 0
      %v6876 = vsel %vm326, %v6862, 0
      %v6879 = vsel %vm326, %v6863, 0
      %v6882 = vsel %vm326, %v6864, 0
      %v6885 = vsel %vm326, %v6865, 0
      %6887 = vmatpush.msra.mxu0 0.0
      %6888 = vmatpush.msra.mxu0 0.0
      %6889 = vmatpush.msra.mxu0 0.0
      %6890 = vmatpush.msra.mxu0 0.0
      %6891 = vmatpush.msra.mxu0 0.0
      %6892 = vmatpush.msra.mxu0 0.0
      %6893 = vmatpush.msra.mxu0 0.0
      %6894 = vmatpush.msra.mxu0 0.0
      %6895 = vmatpush.msra.mxu0 0.0
      %6896 = vmatpush.msra.mxu0 0.0
      %6897 = vmatpush.msra.mxu0 0.0
      %6898 = vmatpush.msra.mxu0 0.0
      %6899 = vmatpush.msra.mxu0 0.0
      %6900 = vmatpush.msra.mxu0 0.0
      %6901 = vmatpush.msra.mxu0 %v6876
      %6902 = vmatpush.msra.mxu0 %v6858
      %6903 = vmatmul.f32.gmra.mxu0 %v6870
      %v6904 = vpop.f32.mrf.mxu0
      %v6905 = vadd.f32 0.0, %v6904
      %6906 = vmatmul.f32.gmra.mxu0 %v6873
      %v6907 = vpop.f32.mrf.mxu0
      %v6908 = vadd.f32 0.0, %v6907
      %6909 = vdwg.mxu0
      %6910 = vmatpush.msra.mxu0 0.0
      %6911 = vmatpush.msra.mxu0 0.0
      %6912 = vmatpush.msra.mxu0 0.0
      %6913 = vmatpush.msra.mxu0 0.0
      %6914 = vmatpush.msra.mxu0 0.0
      %6915 = vmatpush.msra.mxu0 0.0
      %6916 = vmatpush.msra.mxu0 0.0
      %6917 = vmatpush.msra.mxu0 0.0
      %6918 = vmatpush.msra.mxu0 0.0
      %6919 = vmatpush.msra.mxu0 0.0
      %6920 = vmatpush.msra.mxu0 0.0
      %6921 = vmatpush.msra.mxu0 0.0
      %6922 = vmatpush.msra.mxu0 0.0
      %6923 = vmatpush.msra.mxu0 0.0
      %6924 = vmatpush.msra.mxu0 %v6879
      %6925 = vmatpush.msra.mxu0 %v6859
      %6926 = vmatmul.f32.gmra.mxu0 %v6870
      %v6927 = vpop.f32.mrf.mxu0
      %v6928 = vadd.f32 0.0, %v6927
      %6929 = vmatmul.f32.gmra.mxu0 %v6873
      %v6930 = vpop.f32.mrf.mxu0
      %v6931 = vadd.f32 0.0, %v6930
      %6932 = vdwg.mxu0
      %6933 = vmatpush.msra.mxu0 0.0
      %6934 = vmatpush.msra.mxu0 0.0
      %6935 = vmatpush.msra.mxu0 0.0
      %6936 = vmatpush.msra.mxu0 0.0
      %6937 = vmatpush.msra.mxu0 0.0
      %6938 = vmatpush.msra.mxu0 0.0
      %6939 = vmatpush.msra.mxu0 0.0
      %6940 = vmatpush.msra.mxu0 0.0
      %6941 = vmatpush.msra.mxu0 0.0
      %6942 = vmatpush.msra.mxu0 0.0
      %6943 = vmatpush.msra.mxu0 0.0
      %6944 = vmatpush.msra.mxu0 0.0
      %6945 = vmatpush.msra.mxu0 0.0
      %6946 = vmatpush.msra.mxu0 0.0
      %6947 = vmatpush.msra.mxu0 %v6882
      %6948 = vmatpush.msra.mxu0 %v6860
      %6949 = vmatmul.f32.gmra.mxu0 %v6870
      %v6950 = vpop.f32.mrf.mxu0
      %v6951 = vadd.f32 0.0, %v6950
      %6952 = vmatmul.f32.gmra.mxu0 %v6873
      %v6953 = vpop.f32.mrf.mxu0
      %v6954 = vadd.f32 0.0, %v6953
      %6955 = vdwg.mxu0
      %6956 = vmatpush.msra.mxu0 0.0
      %6957 = vmatpush.msra.mxu0 0.0
      %6958 = vmatpush.msra.mxu0 0.0
      %6959 = vmatpush.msra.mxu0 0.0
      %6960 = vmatpush.msra.mxu0 0.0
      %6961 = vmatpush.msra.mxu0 0.0
      %6962 = vmatpush.msra.mxu0 0.0
      %6963 = vmatpush.msra.mxu0 0.0
      %6964 = vmatpush.msra.mxu0 0.0
      %6965 = vmatpush.msra.mxu0 0.0
      %6966 = vmatpush.msra.mxu0 0.0
      %6967 = vmatpush.msra.mxu0 0.0
      %6968 = vmatpush.msra.mxu0 0.0
      %6969 = vmatpush.msra.mxu0 0.0
      %6970 = vmatpush.msra.mxu0 %v6885
      %6971 = vmatpush.msra.mxu0 %v6861
      %6972 = vmatmul.f32.gmra.mxu0 %v6870
      %v6973 = vpop.f32.mrf.mxu0
      %v6974 = vadd.f32 0.0, %v6973
      %6975 = vmatmul.f32.gmra.mxu0 %v6873
      %v6976 = vpop.f32.mrf.mxu0
      %v6977 = vadd.f32 0.0, %v6976
      %6978 = vdwg.mxu0
      %v6979 = vadd.f32 %v6826, %v6905
      %v6980 = vadd.f32 %v6827, %v6928
      %v6981 = vadd.f32 %v6828, %v6951
      %v6982 = vadd.f32 %v6829, %v6974
      %v6983 = vadd.f32 %v6830, %v6908
      %v6984 = vadd.f32 %v6831, %v6931
      %v6985 = vadd.f32 %v6832, %v6954
      %v6986 = vadd.f32 %v6833, %v6977
      %6987 = vrot.lane.b32.xlu0 %v4552, 120
      %v6988 = vpop.permute.xlu0 %6987
      %6989 = vrot.lane.b32.xlu0 %v4556, 120
      %v6990 = vpop.permute.xlu0 %6989
      %6991 = vrot.lane.b32.xlu0 %v4553, 120
      %v6992 = vpop.permute.xlu0 %6991
      %6993 = vrot.lane.b32.xlu0 %v4557, 120
      %v6994 = vpop.permute.xlu0 %6993
      %6995 = vrot.lane.b32.xlu0 %v4554, 120
      %v6996 = vpop.permute.xlu0 %6995
      %6997 = vrot.lane.b32.xlu0 %v4558, 120
      %v6998 = vpop.permute.xlu0 %6997
      %6999 = vrot.lane.b32.xlu0 %v4555, 120
      %v7000 = vpop.permute.xlu0 %6999
      %7001 = vrot.lane.b32.xlu0 %v4559, 120
      %v7002 = vpop.permute.xlu0 %7001
      %v7003 = vsel %vm2886, %v6996, %v7000
      %v7004 = vsel %vm2886, %v6998, %v7002
      %v7005 = vsel %vm2886, %v6992, %v6996
      %v7006 = vsel %vm2886, %v6994, %v6998
      %v7007 = vsel %vm2886, %v6988, %v6992
      %v7008 = vsel %vm2886, %v6990, %v6994
      %v7009 = vsel %vm2886, %v7000, %v6988
      %v7010 = vsel %vm2886, %v7002, %v6990
      %v7011 = vmul.f32 %v7007, %v2898
      %v7012 = vmul.f32 %v7005, %v2899
      %v7013 = vmul.f32 %v7003, %v2900
      %v7014 = vmul.f32 %v7009, %v2901
      %v7015 = vmul.f32 %v7008, %v2898
      %v7016 = vmul.f32 %v7006, %v2899
      %v7017 = vmul.f32 %v7004, %v2900
      %v7018 = vmul.f32 %v7010, %v2901
      %s7019 = scalar_lea.vmem %s4, 256
      %v7020 = vld [vmem:[%s7019] sm:$0xff]
      %v7021 = vld [vmem:[%s7019 + $0x8] sm:$0xf]
      %v7023 = vsel %vm319, %v7020, 0
      %v7026 = vsel %vm319, %v7021, 0
      %v7029 = vsel %vm326, %v7015, 0
      %v7032 = vsel %vm326, %v7016, 0
      %v7035 = vsel %vm326, %v7017, 0
      %v7038 = vsel %vm326, %v7018, 0
      %7040 = vmatpush.msra.mxu0 0.0
      %7041 = vmatpush.msra.mxu0 0.0
      %7042 = vmatpush.msra.mxu0 0.0
      %7043 = vmatpush.msra.mxu0 0.0
      %7044 = vmatpush.msra.mxu0 0.0
      %7045 = vmatpush.msra.mxu0 0.0
      %7046 = vmatpush.msra.mxu0 0.0
      %7047 = vmatpush.msra.mxu0 0.0
      %7048 = vmatpush.msra.mxu0 0.0
      %7049 = vmatpush.msra.mxu0 0.0
      %7050 = vmatpush.msra.mxu0 0.0
      %7051 = vmatpush.msra.mxu0 0.0
      %7052 = vmatpush.msra.mxu0 0.0
      %7053 = vmatpush.msra.mxu0 0.0
      %7054 = vmatpush.msra.mxu0 %v7029
      %7055 = vmatpush.msra.mxu0 %v7011
      %7056 = vmatmul.f32.gmra.mxu0 %v7023
      %v7057 = vpop.f32.mrf.mxu0
      %v7058 = vadd.f32 0.0, %v7057
      %7059 = vmatmul.f32.gmra.mxu0 %v7026
      %v7060 = vpop.f32.mrf.mxu0
      %v7061 = vadd.f32 0.0, %v7060
      %7062 = vdwg.mxu0
      %7063 = vmatpush.msra.mxu0 0.0
      %7064 = vmatpush.msra.mxu0 0.0
      %7065 = vmatpush.msra.mxu0 0.0
      %7066 = vmatpush.msra.mxu0 0.0
      %7067 = vmatpush.msra.mxu0 0.0
      %7068 = vmatpush.msra.mxu0 0.0
      %7069 = vmatpush.msra.mxu0 0.0
      %7070 = vmatpush.msra.mxu0 0.0
      %7071 = vmatpush.msra.mxu0 0.0
      %7072 = vmatpush.msra.mxu0 0.0
      %7073 = vmatpush.msra.mxu0 0.0
      %7074 = vmatpush.msra.mxu0 0.0
      %7075 = vmatpush.msra.mxu0 0.0
      %7076 = vmatpush.msra.mxu0 0.0
      %7077 = vmatpush.msra.mxu0 %v7032
      %7078 = vmatpush.msra.mxu0 %v7012
      %7079 = vmatmul.f32.gmra.mxu0 %v7023
      %v7080 = vpop.f32.mrf.mxu0
      %v7081 = vadd.f32 0.0, %v7080
      %7082 = vmatmul.f32.gmra.mxu0 %v7026
      %v7083 = vpop.f32.mrf.mxu0
      %v7084 = vadd.f32 0.0, %v7083
      %7085 = vdwg.mxu0
      %7086 = vmatpush.msra.mxu0 0.0
      %7087 = vmatpush.msra.mxu0 0.0
      %7088 = vmatpush.msra.mxu0 0.0
      %7089 = vmatpush.msra.mxu0 0.0
      %7090 = vmatpush.msra.mxu0 0.0
      %7091 = vmatpush.msra.mxu0 0.0
      %7092 = vmatpush.msra.mxu0 0.0
      %7093 = vmatpush.msra.mxu0 0.0
      %7094 = vmatpush.msra.mxu0 0.0
      %7095 = vmatpush.msra.mxu0 0.0
      %7096 = vmatpush.msra.mxu0 0.0
      %7097 = vmatpush.msra.mxu0 0.0
      %7098 = vmatpush.msra.mxu0 0.0
      %7099 = vmatpush.msra.mxu0 0.0
      %7100 = vmatpush.msra.mxu0 %v7035
      %7101 = vmatpush.msra.mxu0 %v7013
      %7102 = vmatmul.f32.gmra.mxu0 %v7023
      %v7103 = vpop.f32.mrf.mxu0
      %v7104 = vadd.f32 0.0, %v7103
      %7105 = vmatmul.f32.gmra.mxu0 %v7026
      %v7106 = vpop.f32.mrf.mxu0
      %v7107 = vadd.f32 0.0, %v7106
      %7108 = vdwg.mxu0
      %7109 = vmatpush.msra.mxu0 0.0
      %7110 = vmatpush.msra.mxu0 0.0
      %7111 = vmatpush.msra.mxu0 0.0
      %7112 = vmatpush.msra.mxu0 0.0
      %7113 = vmatpush.msra.mxu0 0.0
      %7114 = vmatpush.msra.mxu0 0.0
      %7115 = vmatpush.msra.mxu0 0.0
      %7116 = vmatpush.msra.mxu0 0.0
      %7117 = vmatpush.msra.mxu0 0.0
      %7118 = vmatpush.msra.mxu0 0.0
      %7119 = vmatpush.msra.mxu0 0.0
      %7120 = vmatpush.msra.mxu0 0.0
      %7121 = vmatpush.msra.mxu0 0.0
      %7122 = vmatpush.msra.mxu0 0.0
      %7123 = vmatpush.msra.mxu0 %v7038
      %7124 = vmatpush.msra.mxu0 %v7014
      %7125 = vmatmul.f32.gmra.mxu0 %v7023
      %v7126 = vpop.f32.mrf.mxu0
      %v7127 = vadd.f32 0.0, %v7126
      %7128 = vmatmul.f32.gmra.mxu0 %v7026
      %v7129 = vpop.f32.mrf.mxu0
      %v7130 = vadd.f32 0.0, %v7129
      %7131 = vdwg.mxu0
      %v7132 = vadd.f32 %v6979, %v7058
      %v7133 = vadd.f32 %v6980, %v7081
      %v7134 = vadd.f32 %v6981, %v7104
      %v7135 = vadd.f32 %v6982, %v7127
      %v7136 = vadd.f32 %v6983, %v7061
      %v7137 = vadd.f32 %v6984, %v7084
      %v7138 = vadd.f32 %v6985, %v7107
      %v7139 = vadd.f32 %v6986, %v7130
      %7140 = vrot.lane.b32.xlu0 %v4552, 119
      %v7141 = vpop.permute.xlu0 %7140
      %7142 = vrot.lane.b32.xlu0 %v4556, 119
      %v7143 = vpop.permute.xlu0 %7142
      %7144 = vrot.lane.b32.xlu0 %v4553, 119
      %v7145 = vpop.permute.xlu0 %7144
      %7146 = vrot.lane.b32.xlu0 %v4557, 119
      %v7147 = vpop.permute.xlu0 %7146
      %7148 = vrot.lane.b32.xlu0 %v4554, 119
      %v7149 = vpop.permute.xlu0 %7148
      %7150 = vrot.lane.b32.xlu0 %v4558, 119
      %v7151 = vpop.permute.xlu0 %7150
      %7152 = vrot.lane.b32.xlu0 %v4555, 119
      %v7153 = vpop.permute.xlu0 %7152
      %7154 = vrot.lane.b32.xlu0 %v4559, 119
      %v7155 = vpop.permute.xlu0 %7154
      %v7156 = vsel %vm3051, %v7149, %v7153
      %v7157 = vsel %vm3051, %v7151, %v7155
      %v7158 = vsel %vm3051, %v7145, %v7149
      %v7159 = vsel %vm3051, %v7147, %v7151
      %v7160 = vsel %vm3051, %v7141, %v7145
      %v7161 = vsel %vm3051, %v7143, %v7147
      %v7162 = vsel %vm3051, %v7153, %v7141
      %v7163 = vsel %vm3051, %v7155, %v7143
      %v7164 = vmul.f32 %v7160, %v3063
      %v7165 = vmul.f32 %v7158, %v3064
      %v7166 = vmul.f32 %v7156, %v3065
      %v7167 = vmul.f32 %v7162, %v3066
      %v7168 = vmul.f32 %v7161, %v3063
      %v7169 = vmul.f32 %v7159, %v3064
      %v7170 = vmul.f32 %v7157, %v3065
      %v7171 = vmul.f32 %v7163, %v3066
      %s7172 = scalar_lea.vmem %s4, 272
      %v7173 = vld [vmem:[%s7172] sm:$0xff]
      %v7174 = vld [vmem:[%s7172 + $0x8] sm:$0xf]
      %v7176 = vsel %vm319, %v7173, 0
      %v7179 = vsel %vm319, %v7174, 0
      %v7182 = vsel %vm326, %v7168, 0
      %v7185 = vsel %vm326, %v7169, 0
      %v7188 = vsel %vm326, %v7170, 0
      %v7191 = vsel %vm326, %v7171, 0
      %7193 = vmatpush.msra.mxu0 0.0
      %7194 = vmatpush.msra.mxu0 0.0
      %7195 = vmatpush.msra.mxu0 0.0
      %7196 = vmatpush.msra.mxu0 0.0
      %7197 = vmatpush.msra.mxu0 0.0
      %7198 = vmatpush.msra.mxu0 0.0
      %7199 = vmatpush.msra.mxu0 0.0
      %7200 = vmatpush.msra.mxu0 0.0
      %7201 = vmatpush.msra.mxu0 0.0
      %7202 = vmatpush.msra.mxu0 0.0
      %7203 = vmatpush.msra.mxu0 0.0
      %7204 = vmatpush.msra.mxu0 0.0
      %7205 = vmatpush.msra.mxu0 0.0
      %7206 = vmatpush.msra.mxu0 0.0
      %7207 = vmatpush.msra.mxu0 %v7182
      %7208 = vmatpush.msra.mxu0 %v7164
      %7209 = vmatmul.f32.gmra.mxu0 %v7176
      %v7210 = vpop.f32.mrf.mxu0
      %v7211 = vadd.f32 0.0, %v7210
      %7212 = vmatmul.f32.gmra.mxu0 %v7179
      %v7213 = vpop.f32.mrf.mxu0
      %v7214 = vadd.f32 0.0, %v7213
      %7215 = vdwg.mxu0
      %7216 = vmatpush.msra.mxu0 0.0
      %7217 = vmatpush.msra.mxu0 0.0
      %7218 = vmatpush.msra.mxu0 0.0
      %7219 = vmatpush.msra.mxu0 0.0
      %7220 = vmatpush.msra.mxu0 0.0
      %7221 = vmatpush.msra.mxu0 0.0
      %7222 = vmatpush.msra.mxu0 0.0
      %7223 = vmatpush.msra.mxu0 0.0
      %7224 = vmatpush.msra.mxu0 0.0
      %7225 = vmatpush.msra.mxu0 0.0
      %7226 = vmatpush.msra.mxu0 0.0
      %7227 = vmatpush.msra.mxu0 0.0
      %7228 = vmatpush.msra.mxu0 0.0
      %7229 = vmatpush.msra.mxu0 0.0
      %7230 = vmatpush.msra.mxu0 %v7185
      %7231 = vmatpush.msra.mxu0 %v7165
      %7232 = vmatmul.f32.gmra.mxu0 %v7176
      %v7233 = vpop.f32.mrf.mxu0
      %v7234 = vadd.f32 0.0, %v7233
      %7235 = vmatmul.f32.gmra.mxu0 %v7179
      %v7236 = vpop.f32.mrf.mxu0
      %v7237 = vadd.f32 0.0, %v7236
      %7238 = vdwg.mxu0
      %7239 = vmatpush.msra.mxu0 0.0
      %7240 = vmatpush.msra.mxu0 0.0
      %7241 = vmatpush.msra.mxu0 0.0
      %7242 = vmatpush.msra.mxu0 0.0
      %7243 = vmatpush.msra.mxu0 0.0
      %7244 = vmatpush.msra.mxu0 0.0
      %7245 = vmatpush.msra.mxu0 0.0
      %7246 = vmatpush.msra.mxu0 0.0
      %7247 = vmatpush.msra.mxu0 0.0
      %7248 = vmatpush.msra.mxu0 0.0
      %7249 = vmatpush.msra.mxu0 0.0
      %7250 = vmatpush.msra.mxu0 0.0
      %7251 = vmatpush.msra.mxu0 0.0
      %7252 = vmatpush.msra.mxu0 0.0
      %7253 = vmatpush.msra.mxu0 %v7188
      %7254 = vmatpush.msra.mxu0 %v7166
      %7255 = vmatmul.f32.gmra.mxu0 %v7176
      %v7256 = vpop.f32.mrf.mxu0
      %v7257 = vadd.f32 0.0, %v7256
      %7258 = vmatmul.f32.gmra.mxu0 %v7179
      %v7259 = vpop.f32.mrf.mxu0
      %v7260 = vadd.f32 0.0, %v7259
      %7261 = vdwg.mxu0
      %7262 = vmatpush.msra.mxu0 0.0
      %7263 = vmatpush.msra.mxu0 0.0
      %7264 = vmatpush.msra.mxu0 0.0
      %7265 = vmatpush.msra.mxu0 0.0
      %7266 = vmatpush.msra.mxu0 0.0
      %7267 = vmatpush.msra.mxu0 0.0
      %7268 = vmatpush.msra.mxu0 0.0
      %7269 = vmatpush.msra.mxu0 0.0
      %7270 = vmatpush.msra.mxu0 0.0
      %7271 = vmatpush.msra.mxu0 0.0
      %7272 = vmatpush.msra.mxu0 0.0
      %7273 = vmatpush.msra.mxu0 0.0
      %7274 = vmatpush.msra.mxu0 0.0
      %7275 = vmatpush.msra.mxu0 0.0
      %7276 = vmatpush.msra.mxu0 %v7191
      %7277 = vmatpush.msra.mxu0 %v7167
      %7278 = vmatmul.f32.gmra.mxu0 %v7176
      %v7279 = vpop.f32.mrf.mxu0
      %v7280 = vadd.f32 0.0, %v7279
      %7281 = vmatmul.f32.gmra.mxu0 %v7179
      %v7282 = vpop.f32.mrf.mxu0
      %v7283 = vadd.f32 0.0, %v7282
      %7284 = vdwg.mxu0
      %v7285 = vadd.f32 %v7132, %v7211
      %v7286 = vadd.f32 %v7133, %v7234
      %v7287 = vadd.f32 %v7134, %v7257
      %v7288 = vadd.f32 %v7135, %v7280
      %v7289 = vadd.f32 %v7136, %v7214
      %v7290 = vadd.f32 %v7137, %v7237
      %v7291 = vadd.f32 %v7138, %v7260
      %v7292 = vadd.f32 %v7139, %v7283
      %v7293 = vmul.f32 %v4592, %v3203
      %v7294 = vmul.f32 %v4590, %v3204
      %v7295 = vmul.f32 %v4588, %v3205
      %v7296 = vmul.f32 %v4594, %v3206
      %v7297 = vmul.f32 %v4593, %v3203
      %v7298 = vmul.f32 %v4591, %v3204
      %v7299 = vmul.f32 %v4589, %v3205
      %v7300 = vmul.f32 %v4595, %v3206
      %s7301 = scalar_lea.vmem %s4, 288
      %v7302 = vld [vmem:[%s7301] sm:$0xff]
      %v7303 = vld [vmem:[%s7301 + $0x8] sm:$0xf]
      %v7305 = vsel %vm319, %v7302, 0
      %v7308 = vsel %vm319, %v7303, 0
      %v7311 = vsel %vm326, %v7297, 0
      %v7314 = vsel %vm326, %v7298, 0
      %v7317 = vsel %vm326, %v7299, 0
      %v7320 = vsel %vm326, %v7300, 0
      %7322 = vmatpush.msra.mxu0 0.0
      %7323 = vmatpush.msra.mxu0 0.0
      %7324 = vmatpush.msra.mxu0 0.0
      %7325 = vmatpush.msra.mxu0 0.0
      %7326 = vmatpush.msra.mxu0 0.0
      %7327 = vmatpush.msra.mxu0 0.0
      %7328 = vmatpush.msra.mxu0 0.0
      %7329 = vmatpush.msra.mxu0 0.0
      %7330 = vmatpush.msra.mxu0 0.0
      %7331 = vmatpush.msra.mxu0 0.0
      %7332 = vmatpush.msra.mxu0 0.0
      %7333 = vmatpush.msra.mxu0 0.0
      %7334 = vmatpush.msra.mxu0 0.0
      %7335 = vmatpush.msra.mxu0 0.0
      %7336 = vmatpush.msra.mxu0 %v7311
      %7337 = vmatpush.msra.mxu0 %v7293
      %7338 = vmatmul.f32.gmra.mxu0 %v7305
      %v7339 = vpop.f32.mrf.mxu0
      %v7340 = vadd.f32 0.0, %v7339
      %7341 = vmatmul.f32.gmra.mxu0 %v7308
      %v7342 = vpop.f32.mrf.mxu0
      %v7343 = vadd.f32 0.0, %v7342
      %7344 = vdwg.mxu0
      %7345 = vmatpush.msra.mxu0 0.0
      %7346 = vmatpush.msra.mxu0 0.0
      %7347 = vmatpush.msra.mxu0 0.0
      %7348 = vmatpush.msra.mxu0 0.0
      %7349 = vmatpush.msra.mxu0 0.0
      %7350 = vmatpush.msra.mxu0 0.0
      %7351 = vmatpush.msra.mxu0 0.0
      %7352 = vmatpush.msra.mxu0 0.0
      %7353 = vmatpush.msra.mxu0 0.0
      %7354 = vmatpush.msra.mxu0 0.0
      %7355 = vmatpush.msra.mxu0 0.0
      %7356 = vmatpush.msra.mxu0 0.0
      %7357 = vmatpush.msra.mxu0 0.0
      %7358 = vmatpush.msra.mxu0 0.0
      %7359 = vmatpush.msra.mxu0 %v7314
      %7360 = vmatpush.msra.mxu0 %v7294
      %7361 = vmatmul.f32.gmra.mxu0 %v7305
      %v7362 = vpop.f32.mrf.mxu0
      %v7363 = vadd.f32 0.0, %v7362
      %7364 = vmatmul.f32.gmra.mxu0 %v7308
      %v7365 = vpop.f32.mrf.mxu0
      %v7366 = vadd.f32 0.0, %v7365
      %7367 = vdwg.mxu0
      %7368 = vmatpush.msra.mxu0 0.0
      %7369 = vmatpush.msra.mxu0 0.0
      %7370 = vmatpush.msra.mxu0 0.0
      %7371 = vmatpush.msra.mxu0 0.0
      %7372 = vmatpush.msra.mxu0 0.0
      %7373 = vmatpush.msra.mxu0 0.0
      %7374 = vmatpush.msra.mxu0 0.0
      %7375 = vmatpush.msra.mxu0 0.0
      %7376 = vmatpush.msra.mxu0 0.0
      %7377 = vmatpush.msra.mxu0 0.0
      %7378 = vmatpush.msra.mxu0 0.0
      %7379 = vmatpush.msra.mxu0 0.0
      %7380 = vmatpush.msra.mxu0 0.0
      %7381 = vmatpush.msra.mxu0 0.0
      %7382 = vmatpush.msra.mxu0 %v7317
      %7383 = vmatpush.msra.mxu0 %v7295
      %7384 = vmatmul.f32.gmra.mxu0 %v7305
      %v7385 = vpop.f32.mrf.mxu0
      %v7386 = vadd.f32 0.0, %v7385
      %7387 = vmatmul.f32.gmra.mxu0 %v7308
      %v7388 = vpop.f32.mrf.mxu0
      %v7389 = vadd.f32 0.0, %v7388
      %7390 = vdwg.mxu0
      %7391 = vmatpush.msra.mxu0 0.0
      %7392 = vmatpush.msra.mxu0 0.0
      %7393 = vmatpush.msra.mxu0 0.0
      %7394 = vmatpush.msra.mxu0 0.0
      %7395 = vmatpush.msra.mxu0 0.0
      %7396 = vmatpush.msra.mxu0 0.0
      %7397 = vmatpush.msra.mxu0 0.0
      %7398 = vmatpush.msra.mxu0 0.0
      %7399 = vmatpush.msra.mxu0 0.0
      %7400 = vmatpush.msra.mxu0 0.0
      %7401 = vmatpush.msra.mxu0 0.0
      %7402 = vmatpush.msra.mxu0 0.0
      %7403 = vmatpush.msra.mxu0 0.0
      %7404 = vmatpush.msra.mxu0 0.0
      %7405 = vmatpush.msra.mxu0 %v7320
      %7406 = vmatpush.msra.mxu0 %v7296
      %7407 = vmatmul.f32.gmra.mxu0 %v7305
      %v7408 = vpop.f32.mrf.mxu0
      %v7409 = vadd.f32 0.0, %v7408
      %7410 = vmatmul.f32.gmra.mxu0 %v7308
      %v7411 = vpop.f32.mrf.mxu0
      %v7412 = vadd.f32 0.0, %v7411
      %7413 = vdwg.mxu0
      %v7414 = vadd.f32 %v7285, %v7340
      %v7415 = vadd.f32 %v7286, %v7363
      %v7416 = vadd.f32 %v7287, %v7386
      %v7417 = vadd.f32 %v7288, %v7409
      %v7418 = vadd.f32 %v7289, %v7343
      %v7419 = vadd.f32 %v7290, %v7366
      %v7420 = vadd.f32 %v7291, %v7389
      %v7421 = vadd.f32 %v7292, %v7412
      %v7422 = vmul.f32 %v4744, %v3343
      %v7423 = vmul.f32 %v4742, %v3344
      %v7424 = vmul.f32 %v4740, %v3345
      %v7425 = vmul.f32 %v4746, %v3346
      %v7426 = vmul.f32 %v4745, %v3343
      %v7427 = vmul.f32 %v4743, %v3344
      %v7428 = vmul.f32 %v4741, %v3345
      %v7429 = vmul.f32 %v4747, %v3346
      %s7430 = scalar_lea.vmem %s4, 304
      %v7431 = vld [vmem:[%s7430] sm:$0xff]
      %v7432 = vld [vmem:[%s7430 + $0x8] sm:$0xf]
      %v7434 = vsel %vm319, %v7431, 0
      %v7437 = vsel %vm319, %v7432, 0
      %v7440 = vsel %vm326, %v7426, 0
      %v7443 = vsel %vm326, %v7427, 0
      %v7446 = vsel %vm326, %v7428, 0
      %v7449 = vsel %vm326, %v7429, 0
      %7451 = vmatpush.msra.mxu0 0.0
      %7452 = vmatpush.msra.mxu0 0.0
      %7453 = vmatpush.msra.mxu0 0.0
      %7454 = vmatpush.msra.mxu0 0.0
      %7455 = vmatpush.msra.mxu0 0.0
      %7456 = vmatpush.msra.mxu0 0.0
      %7457 = vmatpush.msra.mxu0 0.0
      %7458 = vmatpush.msra.mxu0 0.0
      %7459 = vmatpush.msra.mxu0 0.0
      %7460 = vmatpush.msra.mxu0 0.0
      %7461 = vmatpush.msra.mxu0 0.0
      %7462 = vmatpush.msra.mxu0 0.0
      %7463 = vmatpush.msra.mxu0 0.0
      %7464 = vmatpush.msra.mxu0 0.0
      %7465 = vmatpush.msra.mxu0 %v7440
      %7466 = vmatpush.msra.mxu0 %v7422
      %7467 = vmatmul.f32.gmra.mxu0 %v7434
      %v7468 = vpop.f32.mrf.mxu0
      %v7469 = vadd.f32 0.0, %v7468
      %7470 = vmatmul.f32.gmra.mxu0 %v7437
      %v7471 = vpop.f32.mrf.mxu0
      %v7472 = vadd.f32 0.0, %v7471
      %7473 = vdwg.mxu0
      %7474 = vmatpush.msra.mxu0 0.0
      %7475 = vmatpush.msra.mxu0 0.0
      %7476 = vmatpush.msra.mxu0 0.0
      %7477 = vmatpush.msra.mxu0 0.0
      %7478 = vmatpush.msra.mxu0 0.0
      %7479 = vmatpush.msra.mxu0 0.0
      %7480 = vmatpush.msra.mxu0 0.0
      %7481 = vmatpush.msra.mxu0 0.0
      %7482 = vmatpush.msra.mxu0 0.0
      %7483 = vmatpush.msra.mxu0 0.0
      %7484 = vmatpush.msra.mxu0 0.0
      %7485 = vmatpush.msra.mxu0 0.0
      %7486 = vmatpush.msra.mxu0 0.0
      %7487 = vmatpush.msra.mxu0 0.0
      %7488 = vmatpush.msra.mxu0 %v7443
      %7489 = vmatpush.msra.mxu0 %v7423
      %7490 = vmatmul.f32.gmra.mxu0 %v7434
      %v7491 = vpop.f32.mrf.mxu0
      %v7492 = vadd.f32 0.0, %v7491
      %7493 = vmatmul.f32.gmra.mxu0 %v7437
      %v7494 = vpop.f32.mrf.mxu0
      %v7495 = vadd.f32 0.0, %v7494
      %7496 = vdwg.mxu0
      %7497 = vmatpush.msra.mxu0 0.0
      %7498 = vmatpush.msra.mxu0 0.0
      %7499 = vmatpush.msra.mxu0 0.0
      %7500 = vmatpush.msra.mxu0 0.0
      %7501 = vmatpush.msra.mxu0 0.0
      %7502 = vmatpush.msra.mxu0 0.0
      %7503 = vmatpush.msra.mxu0 0.0
      %7504 = vmatpush.msra.mxu0 0.0
      %7505 = vmatpush.msra.mxu0 0.0
      %7506 = vmatpush.msra.mxu0 0.0
      %7507 = vmatpush.msra.mxu0 0.0
      %7508 = vmatpush.msra.mxu0 0.0
      %7509 = vmatpush.msra.mxu0 0.0
      %7510 = vmatpush.msra.mxu0 0.0
      %7511 = vmatpush.msra.mxu0 %v7446
      %7512 = vmatpush.msra.mxu0 %v7424
      %7513 = vmatmul.f32.gmra.mxu0 %v7434
      %v7514 = vpop.f32.mrf.mxu0
      %v7515 = vadd.f32 0.0, %v7514
      %7516 = vmatmul.f32.gmra.mxu0 %v7437
      %v7517 = vpop.f32.mrf.mxu0
      %v7518 = vadd.f32 0.0, %v7517
      %7519 = vdwg.mxu0
      %7520 = vmatpush.msra.mxu0 0.0
      %7521 = vmatpush.msra.mxu0 0.0
      %7522 = vmatpush.msra.mxu0 0.0
      %7523 = vmatpush.msra.mxu0 0.0
      %7524 = vmatpush.msra.mxu0 0.0
      %7525 = vmatpush.msra.mxu0 0.0
      %7526 = vmatpush.msra.mxu0 0.0
      %7527 = vmatpush.msra.mxu0 0.0
      %7528 = vmatpush.msra.mxu0 0.0
      %7529 = vmatpush.msra.mxu0 0.0
      %7530 = vmatpush.msra.mxu0 0.0
      %7531 = vmatpush.msra.mxu0 0.0
      %7532 = vmatpush.msra.mxu0 0.0
      %7533 = vmatpush.msra.mxu0 0.0
      %7534 = vmatpush.msra.mxu0 %v7449
      %7535 = vmatpush.msra.mxu0 %v7425
      %7536 = vmatmul.f32.gmra.mxu0 %v7434
      %v7537 = vpop.f32.mrf.mxu0
      %v7538 = vadd.f32 0.0, %v7537
      %7539 = vmatmul.f32.gmra.mxu0 %v7437
      %v7540 = vpop.f32.mrf.mxu0
      %v7541 = vadd.f32 0.0, %v7540
      %7542 = vdwg.mxu0
      %v7543 = vadd.f32 %v7414, %v7469
      %v7544 = vadd.f32 %v7415, %v7492
      %v7545 = vadd.f32 %v7416, %v7515
      %v7546 = vadd.f32 %v7417, %v7538
      %v7547 = vadd.f32 %v7418, %v7472
      %v7548 = vadd.f32 %v7419, %v7495
      %v7549 = vadd.f32 %v7420, %v7518
      %v7550 = vadd.f32 %v7421, %v7541
      %v7551 = vmul.f32 %v4897, %v3483
      %v7552 = vmul.f32 %v4895, %v3484
      %v7553 = vmul.f32 %v4893, %v3485
      %v7554 = vmul.f32 %v4899, %v3486
      %v7555 = vmul.f32 %v4898, %v3483
      %v7556 = vmul.f32 %v4896, %v3484
      %v7557 = vmul.f32 %v4894, %v3485
      %v7558 = vmul.f32 %v4900, %v3486
      %s7559 = scalar_lea.vmem %s4, 320
      %v7560 = vld [vmem:[%s7559] sm:$0xff]
      %v7561 = vld [vmem:[%s7559 + $0x8] sm:$0xf]
      %v7563 = vsel %vm319, %v7560, 0
      %v7566 = vsel %vm319, %v7561, 0
      %v7569 = vsel %vm326, %v7555, 0
      %v7572 = vsel %vm326, %v7556, 0
      %v7575 = vsel %vm326, %v7557, 0
      %v7578 = vsel %vm326, %v7558, 0
      %7580 = vmatpush.msra.mxu0 0.0
      %7581 = vmatpush.msra.mxu0 0.0
      %7582 = vmatpush.msra.mxu0 0.0
      %7583 = vmatpush.msra.mxu0 0.0
      %7584 = vmatpush.msra.mxu0 0.0
      %7585 = vmatpush.msra.mxu0 0.0
      %7586 = vmatpush.msra.mxu0 0.0
      %7587 = vmatpush.msra.mxu0 0.0
      %7588 = vmatpush.msra.mxu0 0.0
      %7589 = vmatpush.msra.mxu0 0.0
      %7590 = vmatpush.msra.mxu0 0.0
      %7591 = vmatpush.msra.mxu0 0.0
      %7592 = vmatpush.msra.mxu0 0.0
      %7593 = vmatpush.msra.mxu0 0.0
      %7594 = vmatpush.msra.mxu0 %v7569
      %7595 = vmatpush.msra.mxu0 %v7551
      %7596 = vmatmul.f32.gmra.mxu0 %v7563
      %v7597 = vpop.f32.mrf.mxu0
      %v7598 = vadd.f32 0.0, %v7597
      %7599 = vmatmul.f32.gmra.mxu0 %v7566
      %v7600 = vpop.f32.mrf.mxu0
      %v7601 = vadd.f32 0.0, %v7600
      %7602 = vdwg.mxu0
      %7603 = vmatpush.msra.mxu0 0.0
      %7604 = vmatpush.msra.mxu0 0.0
      %7605 = vmatpush.msra.mxu0 0.0
      %7606 = vmatpush.msra.mxu0 0.0
      %7607 = vmatpush.msra.mxu0 0.0
      %7608 = vmatpush.msra.mxu0 0.0
      %7609 = vmatpush.msra.mxu0 0.0
      %7610 = vmatpush.msra.mxu0 0.0
      %7611 = vmatpush.msra.mxu0 0.0
      %7612 = vmatpush.msra.mxu0 0.0
      %7613 = vmatpush.msra.mxu0 0.0
      %7614 = vmatpush.msra.mxu0 0.0
      %7615 = vmatpush.msra.mxu0 0.0
      %7616 = vmatpush.msra.mxu0 0.0
      %7617 = vmatpush.msra.mxu0 %v7572
      %7618 = vmatpush.msra.mxu0 %v7552
      %7619 = vmatmul.f32.gmra.mxu0 %v7563
      %v7620 = vpop.f32.mrf.mxu0
      %v7621 = vadd.f32 0.0, %v7620
      %7622 = vmatmul.f32.gmra.mxu0 %v7566
      %v7623 = vpop.f32.mrf.mxu0
      %v7624 = vadd.f32 0.0, %v7623
      %7625 = vdwg.mxu0
      %7626 = vmatpush.msra.mxu0 0.0
      %7627 = vmatpush.msra.mxu0 0.0
      %7628 = vmatpush.msra.mxu0 0.0
      %7629 = vmatpush.msra.mxu0 0.0
      %7630 = vmatpush.msra.mxu0 0.0
      %7631 = vmatpush.msra.mxu0 0.0
      %7632 = vmatpush.msra.mxu0 0.0
      %7633 = vmatpush.msra.mxu0 0.0
      %7634 = vmatpush.msra.mxu0 0.0
      %7635 = vmatpush.msra.mxu0 0.0
      %7636 = vmatpush.msra.mxu0 0.0
      %7637 = vmatpush.msra.mxu0 0.0
      %7638 = vmatpush.msra.mxu0 0.0
      %7639 = vmatpush.msra.mxu0 0.0
      %7640 = vmatpush.msra.mxu0 %v7575
      %7641 = vmatpush.msra.mxu0 %v7553
      %7642 = vmatmul.f32.gmra.mxu0 %v7563
      %v7643 = vpop.f32.mrf.mxu0
      %v7644 = vadd.f32 0.0, %v7643
      %7645 = vmatmul.f32.gmra.mxu0 %v7566
      %v7646 = vpop.f32.mrf.mxu0
      %v7647 = vadd.f32 0.0, %v7646
      %7648 = vdwg.mxu0
      %7649 = vmatpush.msra.mxu0 0.0
      %7650 = vmatpush.msra.mxu0 0.0
      %7651 = vmatpush.msra.mxu0 0.0
      %7652 = vmatpush.msra.mxu0 0.0
      %7653 = vmatpush.msra.mxu0 0.0
      %7654 = vmatpush.msra.mxu0 0.0
      %7655 = vmatpush.msra.mxu0 0.0
      %7656 = vmatpush.msra.mxu0 0.0
      %7657 = vmatpush.msra.mxu0 0.0
      %7658 = vmatpush.msra.mxu0 0.0
      %7659 = vmatpush.msra.mxu0 0.0
      %7660 = vmatpush.msra.mxu0 0.0
      %7661 = vmatpush.msra.mxu0 0.0
      %7662 = vmatpush.msra.mxu0 0.0
      %7663 = vmatpush.msra.mxu0 %v7578
      %7664 = vmatpush.msra.mxu0 %v7554
      %7665 = vmatmul.f32.gmra.mxu0 %v7563
      %v7666 = vpop.f32.mrf.mxu0
      %v7667 = vadd.f32 0.0, %v7666
      %7668 = vmatmul.f32.gmra.mxu0 %v7566
      %v7669 = vpop.f32.mrf.mxu0
      %v7670 = vadd.f32 0.0, %v7669
      %7671 = vdwg.mxu0
      %v7672 = vadd.f32 %v7543, %v7598
      %v7673 = vadd.f32 %v7544, %v7621
      %v7674 = vadd.f32 %v7545, %v7644
      %v7675 = vadd.f32 %v7546, %v7667
      %v7676 = vadd.f32 %v7547, %v7601
      %v7677 = vadd.f32 %v7548, %v7624
      %v7678 = vadd.f32 %v7549, %v7647
      %v7679 = vadd.f32 %v7550, %v7670
      %v7680 = vmul.f32 %v5050, %v3623
      %v7681 = vmul.f32 %v5048, %v3624
      %v7682 = vmul.f32 %v5046, %v3625
      %v7683 = vmul.f32 %v5052, %v3626
      %v7684 = vmul.f32 %v5051, %v3623
      %v7685 = vmul.f32 %v5049, %v3624
      %v7686 = vmul.f32 %v5047, %v3625
      %v7687 = vmul.f32 %v5053, %v3626
      %s7688 = scalar_lea.vmem %s4, 336
      %v7689 = vld [vmem:[%s7688] sm:$0xff]
      %v7690 = vld [vmem:[%s7688 + $0x8] sm:$0xf]
      %v7692 = vsel %vm319, %v7689, 0
      %v7695 = vsel %vm319, %v7690, 0
      %v7698 = vsel %vm326, %v7684, 0
      %v7701 = vsel %vm326, %v7685, 0
      %v7704 = vsel %vm326, %v7686, 0
      %v7707 = vsel %vm326, %v7687, 0
      %7709 = vmatpush.msra.mxu0 0.0
      %7710 = vmatpush.msra.mxu0 0.0
      %7711 = vmatpush.msra.mxu0 0.0
      %7712 = vmatpush.msra.mxu0 0.0
      %7713 = vmatpush.msra.mxu0 0.0
      %7714 = vmatpush.msra.mxu0 0.0
      %7715 = vmatpush.msra.mxu0 0.0
      %7716 = vmatpush.msra.mxu0 0.0
      %7717 = vmatpush.msra.mxu0 0.0
      %7718 = vmatpush.msra.mxu0 0.0
      %7719 = vmatpush.msra.mxu0 0.0
      %7720 = vmatpush.msra.mxu0 0.0
      %7721 = vmatpush.msra.mxu0 0.0
      %7722 = vmatpush.msra.mxu0 0.0
      %7723 = vmatpush.msra.mxu0 %v7698
      %7724 = vmatpush.msra.mxu0 %v7680
      %7725 = vmatmul.f32.gmra.mxu0 %v7692
      %v7726 = vpop.f32.mrf.mxu0
      %v7727 = vadd.f32 0.0, %v7726
      %7728 = vmatmul.f32.gmra.mxu0 %v7695
      %v7729 = vpop.f32.mrf.mxu0
      %v7730 = vadd.f32 0.0, %v7729
      %7731 = vdwg.mxu0
      %7732 = vmatpush.msra.mxu0 0.0
      %7733 = vmatpush.msra.mxu0 0.0
      %7734 = vmatpush.msra.mxu0 0.0
      %7735 = vmatpush.msra.mxu0 0.0
      %7736 = vmatpush.msra.mxu0 0.0
      %7737 = vmatpush.msra.mxu0 0.0
      %7738 = vmatpush.msra.mxu0 0.0
      %7739 = vmatpush.msra.mxu0 0.0
      %7740 = vmatpush.msra.mxu0 0.0
      %7741 = vmatpush.msra.mxu0 0.0
      %7742 = vmatpush.msra.mxu0 0.0
      %7743 = vmatpush.msra.mxu0 0.0
      %7744 = vmatpush.msra.mxu0 0.0
      %7745 = vmatpush.msra.mxu0 0.0
      %7746 = vmatpush.msra.mxu0 %v7701
      %7747 = vmatpush.msra.mxu0 %v7681
      %7748 = vmatmul.f32.gmra.mxu0 %v7692
      %v7749 = vpop.f32.mrf.mxu0
      %v7750 = vadd.f32 0.0, %v7749
      %7751 = vmatmul.f32.gmra.mxu0 %v7695
      %v7752 = vpop.f32.mrf.mxu0
      %v7753 = vadd.f32 0.0, %v7752
      %7754 = vdwg.mxu0
      %7755 = vmatpush.msra.mxu0 0.0
      %7756 = vmatpush.msra.mxu0 0.0
      %7757 = vmatpush.msra.mxu0 0.0
      %7758 = vmatpush.msra.mxu0 0.0
      %7759 = vmatpush.msra.mxu0 0.0
      %7760 = vmatpush.msra.mxu0 0.0
      %7761 = vmatpush.msra.mxu0 0.0
      %7762 = vmatpush.msra.mxu0 0.0
      %7763 = vmatpush.msra.mxu0 0.0
      %7764 = vmatpush.msra.mxu0 0.0
      %7765 = vmatpush.msra.mxu0 0.0
      %7766 = vmatpush.msra.mxu0 0.0
      %7767 = vmatpush.msra.mxu0 0.0
      %7768 = vmatpush.msra.mxu0 0.0
      %7769 = vmatpush.msra.mxu0 %v7704
      %7770 = vmatpush.msra.mxu0 %v7682
      %7771 = vmatmul.f32.gmra.mxu0 %v7692
      %v7772 = vpop.f32.mrf.mxu0
      %v7773 = vadd.f32 0.0, %v7772
      %7774 = vmatmul.f32.gmra.mxu0 %v7695
      %v7775 = vpop.f32.mrf.mxu0
      %v7776 = vadd.f32 0.0, %v7775
      %7777 = vdwg.mxu0
      %7778 = vmatpush.msra.mxu0 0.0
      %7779 = vmatpush.msra.mxu0 0.0
      %7780 = vmatpush.msra.mxu0 0.0
      %7781 = vmatpush.msra.mxu0 0.0
      %7782 = vmatpush.msra.mxu0 0.0
      %7783 = vmatpush.msra.mxu0 0.0
      %7784 = vmatpush.msra.mxu0 0.0
      %7785 = vmatpush.msra.mxu0 0.0
      %7786 = vmatpush.msra.mxu0 0.0
      %7787 = vmatpush.msra.mxu0 0.0
      %7788 = vmatpush.msra.mxu0 0.0
      %7789 = vmatpush.msra.mxu0 0.0
      %7790 = vmatpush.msra.mxu0 0.0
      %7791 = vmatpush.msra.mxu0 0.0
      %7792 = vmatpush.msra.mxu0 %v7707
      %7793 = vmatpush.msra.mxu0 %v7683
      %7794 = vmatmul.f32.gmra.mxu0 %v7692
      %v7795 = vpop.f32.mrf.mxu0
      %v7796 = vadd.f32 0.0, %v7795
      %7797 = vmatmul.f32.gmra.mxu0 %v7695
      %v7798 = vpop.f32.mrf.mxu0
      %v7799 = vadd.f32 0.0, %v7798
      %7800 = vdwg.mxu0
      %v7801 = vadd.f32 %v7672, %v7727
      %v7802 = vadd.f32 %v7673, %v7750
      %v7803 = vadd.f32 %v7674, %v7773
      %v7804 = vadd.f32 %v7675, %v7796
      %v7805 = vadd.f32 %v7676, %v7730
      %v7806 = vadd.f32 %v7677, %v7753
      %v7807 = vadd.f32 %v7678, %v7776
      %v7808 = vadd.f32 %v7679, %v7799
      %v7809 = vmul.f32 %v5203, %v3763
      %v7810 = vmul.f32 %v5201, %v3764
      %v7811 = vmul.f32 %v5199, %v3765
      %v7812 = vmul.f32 %v5205, %v3766
      %v7813 = vmul.f32 %v5204, %v3763
      %v7814 = vmul.f32 %v5202, %v3764
      %v7815 = vmul.f32 %v5200, %v3765
      %v7816 = vmul.f32 %v5206, %v3766
      %s7817 = scalar_lea.vmem %s4, 352
      %v7818 = vld [vmem:[%s7817] sm:$0xff]
      %v7819 = vld [vmem:[%s7817 + $0x8] sm:$0xf]
      %v7821 = vsel %vm319, %v7818, 0
      %v7824 = vsel %vm319, %v7819, 0
      %v7827 = vsel %vm326, %v7813, 0
      %v7830 = vsel %vm326, %v7814, 0
      %v7833 = vsel %vm326, %v7815, 0
      %v7836 = vsel %vm326, %v7816, 0
      %7838 = vmatpush.msra.mxu0 0.0
      %7839 = vmatpush.msra.mxu0 0.0
      %7840 = vmatpush.msra.mxu0 0.0
      %7841 = vmatpush.msra.mxu0 0.0
      %7842 = vmatpush.msra.mxu0 0.0
      %7843 = vmatpush.msra.mxu0 0.0
      %7844 = vmatpush.msra.mxu0 0.0
      %7845 = vmatpush.msra.mxu0 0.0
      %7846 = vmatpush.msra.mxu0 0.0
      %7847 = vmatpush.msra.mxu0 0.0
      %7848 = vmatpush.msra.mxu0 0.0
      %7849 = vmatpush.msra.mxu0 0.0
      %7850 = vmatpush.msra.mxu0 0.0
      %7851 = vmatpush.msra.mxu0 0.0
      %7852 = vmatpush.msra.mxu0 %v7827
      %7853 = vmatpush.msra.mxu0 %v7809
      %7854 = vmatmul.f32.gmra.mxu0 %v7821
      %v7855 = vpop.f32.mrf.mxu0
      %v7856 = vadd.f32 0.0, %v7855
      %7857 = vmatmul.f32.gmra.mxu0 %v7824
      %v7858 = vpop.f32.mrf.mxu0
      %v7859 = vadd.f32 0.0, %v7858
      %7860 = vdwg.mxu0
      %7861 = vmatpush.msra.mxu0 0.0
      %7862 = vmatpush.msra.mxu0 0.0
      %7863 = vmatpush.msra.mxu0 0.0
      %7864 = vmatpush.msra.mxu0 0.0
      %7865 = vmatpush.msra.mxu0 0.0
      %7866 = vmatpush.msra.mxu0 0.0
      %7867 = vmatpush.msra.mxu0 0.0
      %7868 = vmatpush.msra.mxu0 0.0
      %7869 = vmatpush.msra.mxu0 0.0
      %7870 = vmatpush.msra.mxu0 0.0
      %7871 = vmatpush.msra.mxu0 0.0
      %7872 = vmatpush.msra.mxu0 0.0
      %7873 = vmatpush.msra.mxu0 0.0
      %7874 = vmatpush.msra.mxu0 0.0
      %7875 = vmatpush.msra.mxu0 %v7830
      %7876 = vmatpush.msra.mxu0 %v7810
      %7877 = vmatmul.f32.gmra.mxu0 %v7821
      %v7878 = vpop.f32.mrf.mxu0
      %v7879 = vadd.f32 0.0, %v7878
      %7880 = vmatmul.f32.gmra.mxu0 %v7824
      %v7881 = vpop.f32.mrf.mxu0
      %v7882 = vadd.f32 0.0, %v7881
      %7883 = vdwg.mxu0
      %7884 = vmatpush.msra.mxu0 0.0
      %7885 = vmatpush.msra.mxu0 0.0
      %7886 = vmatpush.msra.mxu0 0.0
      %7887 = vmatpush.msra.mxu0 0.0
      %7888 = vmatpush.msra.mxu0 0.0
      %7889 = vmatpush.msra.mxu0 0.0
      %7890 = vmatpush.msra.mxu0 0.0
      %7891 = vmatpush.msra.mxu0 0.0
      %7892 = vmatpush.msra.mxu0 0.0
      %7893 = vmatpush.msra.mxu0 0.0
      %7894 = vmatpush.msra.mxu0 0.0
      %7895 = vmatpush.msra.mxu0 0.0
      %7896 = vmatpush.msra.mxu0 0.0
      %7897 = vmatpush.msra.mxu0 0.0
      %7898 = vmatpush.msra.mxu0 %v7833
      %7899 = vmatpush.msra.mxu0 %v7811
      %7900 = vmatmul.f32.gmra.mxu0 %v7821
      %v7901 = vpop.f32.mrf.mxu0
      %v7902 = vadd.f32 0.0, %v7901
      %7903 = vmatmul.f32.gmra.mxu0 %v7824
      %v7904 = vpop.f32.mrf.mxu0
      %v7905 = vadd.f32 0.0, %v7904
      %7906 = vdwg.mxu0
      %7907 = vmatpush.msra.mxu0 0.0
      %7908 = vmatpush.msra.mxu0 0.0
      %7909 = vmatpush.msra.mxu0 0.0
      %7910 = vmatpush.msra.mxu0 0.0
      %7911 = vmatpush.msra.mxu0 0.0
      %7912 = vmatpush.msra.mxu0 0.0
      %7913 = vmatpush.msra.mxu0 0.0
      %7914 = vmatpush.msra.mxu0 0.0
      %7915 = vmatpush.msra.mxu0 0.0
      %7916 = vmatpush.msra.mxu0 0.0
      %7917 = vmatpush.msra.mxu0 0.0
      %7918 = vmatpush.msra.mxu0 0.0
      %7919 = vmatpush.msra.mxu0 0.0
      %7920 = vmatpush.msra.mxu0 0.0
      %7921 = vmatpush.msra.mxu0 %v7836
      %7922 = vmatpush.msra.mxu0 %v7812
      %7923 = vmatmul.f32.gmra.mxu0 %v7821
      %v7924 = vpop.f32.mrf.mxu0
      %v7925 = vadd.f32 0.0, %v7924
      %7926 = vmatmul.f32.gmra.mxu0 %v7824
      %v7927 = vpop.f32.mrf.mxu0
      %v7928 = vadd.f32 0.0, %v7927
      %7929 = vdwg.mxu0
      %v7930 = vadd.f32 %v7801, %v7856
      %v7931 = vadd.f32 %v7802, %v7879
      %v7932 = vadd.f32 %v7803, %v7902
      %v7933 = vadd.f32 %v7804, %v7925
      %v7934 = vadd.f32 %v7805, %v7859
      %v7935 = vadd.f32 %v7806, %v7882
      %v7936 = vadd.f32 %v7807, %v7905
      %v7937 = vadd.f32 %v7808, %v7928
      %v7938 = vmul.f32 %v5356, %v3903
      %v7939 = vmul.f32 %v5354, %v3904
      %v7940 = vmul.f32 %v5352, %v3905
      %v7941 = vmul.f32 %v5358, %v3906
      %v7942 = vmul.f32 %v5357, %v3903
      %v7943 = vmul.f32 %v5355, %v3904
      %v7944 = vmul.f32 %v5353, %v3905
      %v7945 = vmul.f32 %v5359, %v3906
      %s7946 = scalar_lea.vmem %s4, 368
      %v7947 = vld [vmem:[%s7946] sm:$0xff]
      %v7948 = vld [vmem:[%s7946 + $0x8] sm:$0xf]
      %v7950 = vsel %vm319, %v7947, 0
      %v7953 = vsel %vm319, %v7948, 0
      %v7956 = vsel %vm326, %v7942, 0
      %v7959 = vsel %vm326, %v7943, 0
      %v7962 = vsel %vm326, %v7944, 0
      %v7965 = vsel %vm326, %v7945, 0
      %7967 = vmatpush.msra.mxu0 0.0
      %7968 = vmatpush.msra.mxu0 0.0
      %7969 = vmatpush.msra.mxu0 0.0
      %7970 = vmatpush.msra.mxu0 0.0
      %7971 = vmatpush.msra.mxu0 0.0
      %7972 = vmatpush.msra.mxu0 0.0
      %7973 = vmatpush.msra.mxu0 0.0
      %7974 = vmatpush.msra.mxu0 0.0
      %7975 = vmatpush.msra.mxu0 0.0
      %7976 = vmatpush.msra.mxu0 0.0
      %7977 = vmatpush.msra.mxu0 0.0
      %7978 = vmatpush.msra.mxu0 0.0
      %7979 = vmatpush.msra.mxu0 0.0
      %7980 = vmatpush.msra.mxu0 0.0
      %7981 = vmatpush.msra.mxu0 %v7956
      %7982 = vmatpush.msra.mxu0 %v7938
      %7983 = vmatmul.f32.gmra.mxu0 %v7950
      %v7984 = vpop.f32.mrf.mxu0
      %v7985 = vadd.f32 0.0, %v7984
      %7986 = vmatmul.f32.gmra.mxu0 %v7953
      %v7987 = vpop.f32.mrf.mxu0
      %v7988 = vadd.f32 0.0, %v7987
      %7989 = vdwg.mxu0
      %7990 = vmatpush.msra.mxu0 0.0
      %7991 = vmatpush.msra.mxu0 0.0
      %7992 = vmatpush.msra.mxu0 0.0
      %7993 = vmatpush.msra.mxu0 0.0
      %7994 = vmatpush.msra.mxu0 0.0
      %7995 = vmatpush.msra.mxu0 0.0
      %7996 = vmatpush.msra.mxu0 0.0
      %7997 = vmatpush.msra.mxu0 0.0
      %7998 = vmatpush.msra.mxu0 0.0
      %7999 = vmatpush.msra.mxu0 0.0
      %8000 = vmatpush.msra.mxu0 0.0
      %8001 = vmatpush.msra.mxu0 0.0
      %8002 = vmatpush.msra.mxu0 0.0
      %8003 = vmatpush.msra.mxu0 0.0
      %8004 = vmatpush.msra.mxu0 %v7959
      %8005 = vmatpush.msra.mxu0 %v7939
      %8006 = vmatmul.f32.gmra.mxu0 %v7950
      %v8007 = vpop.f32.mrf.mxu0
      %v8008 = vadd.f32 0.0, %v8007
      %8009 = vmatmul.f32.gmra.mxu0 %v7953
      %v8010 = vpop.f32.mrf.mxu0
      %v8011 = vadd.f32 0.0, %v8010
      %8012 = vdwg.mxu0
      %8013 = vmatpush.msra.mxu0 0.0
      %8014 = vmatpush.msra.mxu0 0.0
      %8015 = vmatpush.msra.mxu0 0.0
      %8016 = vmatpush.msra.mxu0 0.0
      %8017 = vmatpush.msra.mxu0 0.0
      %8018 = vmatpush.msra.mxu0 0.0
      %8019 = vmatpush.msra.mxu0 0.0
      %8020 = vmatpush.msra.mxu0 0.0
      %8021 = vmatpush.msra.mxu0 0.0
      %8022 = vmatpush.msra.mxu0 0.0
      %8023 = vmatpush.msra.mxu0 0.0
      %8024 = vmatpush.msra.mxu0 0.0
      %8025 = vmatpush.msra.mxu0 0.0
      %8026 = vmatpush.msra.mxu0 0.0
      %8027 = vmatpush.msra.mxu0 %v7962
      %8028 = vmatpush.msra.mxu0 %v7940
      %8029 = vmatmul.f32.gmra.mxu0 %v7950
      %v8030 = vpop.f32.mrf.mxu0
      %v8031 = vadd.f32 0.0, %v8030
      %8032 = vmatmul.f32.gmra.mxu0 %v7953
      %v8033 = vpop.f32.mrf.mxu0
      %v8034 = vadd.f32 0.0, %v8033
      %8035 = vdwg.mxu0
      %8036 = vmatpush.msra.mxu0 0.0
      %8037 = vmatpush.msra.mxu0 0.0
      %8038 = vmatpush.msra.mxu0 0.0
      %8039 = vmatpush.msra.mxu0 0.0
      %8040 = vmatpush.msra.mxu0 0.0
      %8041 = vmatpush.msra.mxu0 0.0
      %8042 = vmatpush.msra.mxu0 0.0
      %8043 = vmatpush.msra.mxu0 0.0
      %8044 = vmatpush.msra.mxu0 0.0
      %8045 = vmatpush.msra.mxu0 0.0
      %8046 = vmatpush.msra.mxu0 0.0
      %8047 = vmatpush.msra.mxu0 0.0
      %8048 = vmatpush.msra.mxu0 0.0
      %8049 = vmatpush.msra.mxu0 0.0
      %8050 = vmatpush.msra.mxu0 %v7965
      %8051 = vmatpush.msra.mxu0 %v7941
      %8052 = vmatmul.f32.gmra.mxu0 %v7950
      %v8053 = vpop.f32.mrf.mxu0
      %v8054 = vadd.f32 0.0, %v8053
      %8055 = vmatmul.f32.gmra.mxu0 %v7953
      %v8056 = vpop.f32.mrf.mxu0
      %v8057 = vadd.f32 0.0, %v8056
      %8058 = vdwg.mxu0
      %v8059 = vadd.f32 %v7930, %v7985
      %v8060 = vadd.f32 %v7931, %v8008
      %v8061 = vadd.f32 %v7932, %v8031
      %v8062 = vadd.f32 %v7933, %v8054
      %v8063 = vadd.f32 %v7934, %v7988
      %v8064 = vadd.f32 %v7935, %v8011
      %v8065 = vadd.f32 %v7936, %v8034
      %v8066 = vadd.f32 %v7937, %v8057
      %v8067 = vmul.f32 %v5509, %v4043
      %v8068 = vmul.f32 %v5507, %v4044
      %v8069 = vmul.f32 %v5505, %v4045
      %v8070 = vmul.f32 %v5511, %v4046
      %v8071 = vmul.f32 %v5510, %v4043
      %v8072 = vmul.f32 %v5508, %v4044
      %v8073 = vmul.f32 %v5506, %v4045
      %v8074 = vmul.f32 %v5512, %v4046
      %s8075 = scalar_lea.vmem %s4, 384
      %v8076 = vld [vmem:[%s8075] sm:$0xff]
      %v8077 = vld [vmem:[%s8075 + $0x8] sm:$0xf]
      %v8079 = vsel %vm319, %v8076, 0
      %v8082 = vsel %vm319, %v8077, 0
      %v8085 = vsel %vm326, %v8071, 0
      %v8088 = vsel %vm326, %v8072, 0
      %v8091 = vsel %vm326, %v8073, 0
      %v8094 = vsel %vm326, %v8074, 0
      %8096 = vmatpush.msra.mxu0 0.0
      %8097 = vmatpush.msra.mxu0 0.0
      %8098 = vmatpush.msra.mxu0 0.0
      %8099 = vmatpush.msra.mxu0 0.0
      %8100 = vmatpush.msra.mxu0 0.0
      %8101 = vmatpush.msra.mxu0 0.0
      %8102 = vmatpush.msra.mxu0 0.0
      %8103 = vmatpush.msra.mxu0 0.0
      %8104 = vmatpush.msra.mxu0 0.0
      %8105 = vmatpush.msra.mxu0 0.0
      %8106 = vmatpush.msra.mxu0 0.0
      %8107 = vmatpush.msra.mxu0 0.0
      %8108 = vmatpush.msra.mxu0 0.0
      %8109 = vmatpush.msra.mxu0 0.0
      %8110 = vmatpush.msra.mxu0 %v8085
      %8111 = vmatpush.msra.mxu0 %v8067
      %8112 = vmatmul.f32.gmra.mxu0 %v8079
      %v8113 = vpop.f32.mrf.mxu0
      %v8114 = vadd.f32 0.0, %v8113
      %8115 = vmatmul.f32.gmra.mxu0 %v8082
      %v8116 = vpop.f32.mrf.mxu0
      %v8117 = vadd.f32 0.0, %v8116
      %8118 = vdwg.mxu0
      %8119 = vmatpush.msra.mxu0 0.0
      %8120 = vmatpush.msra.mxu0 0.0
      %8121 = vmatpush.msra.mxu0 0.0
      %8122 = vmatpush.msra.mxu0 0.0
      %8123 = vmatpush.msra.mxu0 0.0
      %8124 = vmatpush.msra.mxu0 0.0
      %8125 = vmatpush.msra.mxu0 0.0
      %8126 = vmatpush.msra.mxu0 0.0
      %8127 = vmatpush.msra.mxu0 0.0
      %8128 = vmatpush.msra.mxu0 0.0
      %8129 = vmatpush.msra.mxu0 0.0
      %8130 = vmatpush.msra.mxu0 0.0
      %8131 = vmatpush.msra.mxu0 0.0
      %8132 = vmatpush.msra.mxu0 0.0
      %8133 = vmatpush.msra.mxu0 %v8088
      %8134 = vmatpush.msra.mxu0 %v8068
      %8135 = vmatmul.f32.gmra.mxu0 %v8079
      %v8136 = vpop.f32.mrf.mxu0
      %v8137 = vadd.f32 0.0, %v8136
      %8138 = vmatmul.f32.gmra.mxu0 %v8082
      %v8139 = vpop.f32.mrf.mxu0
      %v8140 = vadd.f32 0.0, %v8139
      %8141 = vdwg.mxu0
      %8142 = vmatpush.msra.mxu0 0.0
      %8143 = vmatpush.msra.mxu0 0.0
      %8144 = vmatpush.msra.mxu0 0.0
      %8145 = vmatpush.msra.mxu0 0.0
      %8146 = vmatpush.msra.mxu0 0.0
      %8147 = vmatpush.msra.mxu0 0.0
      %8148 = vmatpush.msra.mxu0 0.0
      %8149 = vmatpush.msra.mxu0 0.0
      %8150 = vmatpush.msra.mxu0 0.0
      %8151 = vmatpush.msra.mxu0 0.0
      %8152 = vmatpush.msra.mxu0 0.0
      %8153 = vmatpush.msra.mxu0 0.0
      %8154 = vmatpush.msra.mxu0 0.0
      %8155 = vmatpush.msra.mxu0 0.0
      %8156 = vmatpush.msra.mxu0 %v8091
      %8157 = vmatpush.msra.mxu0 %v8069
      %8158 = vmatmul.f32.gmra.mxu0 %v8079
      %v8159 = vpop.f32.mrf.mxu0
      %v8160 = vadd.f32 0.0, %v8159
      %8161 = vmatmul.f32.gmra.mxu0 %v8082
      %v8162 = vpop.f32.mrf.mxu0
      %v8163 = vadd.f32 0.0, %v8162
      %8164 = vdwg.mxu0
      %8165 = vmatpush.msra.mxu0 0.0
      %8166 = vmatpush.msra.mxu0 0.0
      %8167 = vmatpush.msra.mxu0 0.0
      %8168 = vmatpush.msra.mxu0 0.0
      %8169 = vmatpush.msra.mxu0 0.0
      %8170 = vmatpush.msra.mxu0 0.0
      %8171 = vmatpush.msra.mxu0 0.0
      %8172 = vmatpush.msra.mxu0 0.0
      %8173 = vmatpush.msra.mxu0 0.0
      %8174 = vmatpush.msra.mxu0 0.0
      %8175 = vmatpush.msra.mxu0 0.0
      %8176 = vmatpush.msra.mxu0 0.0
      %8177 = vmatpush.msra.mxu0 0.0
      %8178 = vmatpush.msra.mxu0 0.0
      %8179 = vmatpush.msra.mxu0 %v8094
      %8180 = vmatpush.msra.mxu0 %v8070
      %8181 = vmatmul.f32.gmra.mxu0 %v8079
      %v8182 = vpop.f32.mrf.mxu0
      %v8183 = vadd.f32 0.0, %v8182
      %8184 = vmatmul.f32.gmra.mxu0 %v8082
      %v8185 = vpop.f32.mrf.mxu0
      %v8186 = vadd.f32 0.0, %v8185
      %8187 = vdwg.mxu0
      %v8188 = vadd.f32 %v8059, %v8114
      %v8189 = vadd.f32 %v8060, %v8137
      %v8190 = vadd.f32 %v8061, %v8160
      %v8191 = vadd.f32 %v8062, %v8183
      %v8192 = vadd.f32 %v8063, %v8117
      %v8193 = vadd.f32 %v8064, %v8140
      %v8194 = vadd.f32 %v8065, %v8163
      %v8195 = vadd.f32 %v8066, %v8186
      %v8196 = vmul.f32 %v5662, %v4183
      %v8197 = vmul.f32 %v5660, %v4184
      %v8198 = vmul.f32 %v5658, %v4185
      %v8199 = vmul.f32 %v5664, %v4186
      %v8200 = vmul.f32 %v5663, %v4183
      %v8201 = vmul.f32 %v5661, %v4184
      %v8202 = vmul.f32 %v5659, %v4185
      %v8203 = vmul.f32 %v5665, %v4186
      %s8204 = scalar_lea.vmem %s4, 400
      %v8205 = vld [vmem:[%s8204] sm:$0xff]
      %v8206 = vld [vmem:[%s8204 + $0x8] sm:$0xf]
      %v8208 = vsel %vm319, %v8205, 0
      %v8211 = vsel %vm319, %v8206, 0
      %v8214 = vsel %vm326, %v8200, 0
      %v8217 = vsel %vm326, %v8201, 0
      %v8220 = vsel %vm326, %v8202, 0
      %v8223 = vsel %vm326, %v8203, 0
      %8225 = vmatpush.msra.mxu0 0.0
      %8226 = vmatpush.msra.mxu0 0.0
      %8227 = vmatpush.msra.mxu0 0.0
      %8228 = vmatpush.msra.mxu0 0.0
      %8229 = vmatpush.msra.mxu0 0.0
      %8230 = vmatpush.msra.mxu0 0.0
      %8231 = vmatpush.msra.mxu0 0.0
      %8232 = vmatpush.msra.mxu0 0.0
      %8233 = vmatpush.msra.mxu0 0.0
      %8234 = vmatpush.msra.mxu0 0.0
      %8235 = vmatpush.msra.mxu0 0.0
      %8236 = vmatpush.msra.mxu0 0.0
      %8237 = vmatpush.msra.mxu0 0.0
      %8238 = vmatpush.msra.mxu0 0.0
      %8239 = vmatpush.msra.mxu0 %v8214
      %8240 = vmatpush.msra.mxu0 %v8196
      %8241 = vmatmul.f32.gmra.mxu0 %v8208
      %v8242 = vpop.f32.mrf.mxu0
      %v8243 = vadd.f32 0.0, %v8242
      %8244 = vmatmul.f32.gmra.mxu0 %v8211
      %v8245 = vpop.f32.mrf.mxu0
      %v8246 = vadd.f32 0.0, %v8245
      %8247 = vdwg.mxu0
      %8248 = vmatpush.msra.mxu0 0.0
      %8249 = vmatpush.msra.mxu0 0.0
      %8250 = vmatpush.msra.mxu0 0.0
      %8251 = vmatpush.msra.mxu0 0.0
      %8252 = vmatpush.msra.mxu0 0.0
      %8253 = vmatpush.msra.mxu0 0.0
      %8254 = vmatpush.msra.mxu0 0.0
      %8255 = vmatpush.msra.mxu0 0.0
      %8256 = vmatpush.msra.mxu0 0.0
      %8257 = vmatpush.msra.mxu0 0.0
      %8258 = vmatpush.msra.mxu0 0.0
      %8259 = vmatpush.msra.mxu0 0.0
      %8260 = vmatpush.msra.mxu0 0.0
      %8261 = vmatpush.msra.mxu0 0.0
      %8262 = vmatpush.msra.mxu0 %v8217
      %8263 = vmatpush.msra.mxu0 %v8197
      %8264 = vmatmul.f32.gmra.mxu0 %v8208
      %v8265 = vpop.f32.mrf.mxu0
      %v8266 = vadd.f32 0.0, %v8265
      %8267 = vmatmul.f32.gmra.mxu0 %v8211
      %v8268 = vpop.f32.mrf.mxu0
      %v8269 = vadd.f32 0.0, %v8268
      %8270 = vdwg.mxu0
      %8271 = vmatpush.msra.mxu0 0.0
      %8272 = vmatpush.msra.mxu0 0.0
      %8273 = vmatpush.msra.mxu0 0.0
      %8274 = vmatpush.msra.mxu0 0.0
      %8275 = vmatpush.msra.mxu0 0.0
      %8276 = vmatpush.msra.mxu0 0.0
      %8277 = vmatpush.msra.mxu0 0.0
      %8278 = vmatpush.msra.mxu0 0.0
      %8279 = vmatpush.msra.mxu0 0.0
      %8280 = vmatpush.msra.mxu0 0.0
      %8281 = vmatpush.msra.mxu0 0.0
      %8282 = vmatpush.msra.mxu0 0.0
      %8283 = vmatpush.msra.mxu0 0.0
      %8284 = vmatpush.msra.mxu0 0.0
      %8285 = vmatpush.msra.mxu0 %v8220
      %8286 = vmatpush.msra.mxu0 %v8198
      %8287 = vmatmul.f32.gmra.mxu0 %v8208
      %v8288 = vpop.f32.mrf.mxu0
      %v8289 = vadd.f32 0.0, %v8288
      %8290 = vmatmul.f32.gmra.mxu0 %v8211
      %v8291 = vpop.f32.mrf.mxu0
      %v8292 = vadd.f32 0.0, %v8291
      %8293 = vdwg.mxu0
      %8294 = vmatpush.msra.mxu0 0.0
      %8295 = vmatpush.msra.mxu0 0.0
      %8296 = vmatpush.msra.mxu0 0.0
      %8297 = vmatpush.msra.mxu0 0.0
      %8298 = vmatpush.msra.mxu0 0.0
      %8299 = vmatpush.msra.mxu0 0.0
      %8300 = vmatpush.msra.mxu0 0.0
      %8301 = vmatpush.msra.mxu0 0.0
      %8302 = vmatpush.msra.mxu0 0.0
      %8303 = vmatpush.msra.mxu0 0.0
      %8304 = vmatpush.msra.mxu0 0.0
      %8305 = vmatpush.msra.mxu0 0.0
      %8306 = vmatpush.msra.mxu0 0.0
      %8307 = vmatpush.msra.mxu0 0.0
      %8308 = vmatpush.msra.mxu0 %v8223
      %8309 = vmatpush.msra.mxu0 %v8199
      %8310 = vmatmul.f32.gmra.mxu0 %v8208
      %v8311 = vpop.f32.mrf.mxu0
      %v8312 = vadd.f32 0.0, %v8311
      %8313 = vmatmul.f32.gmra.mxu0 %v8211
      %v8314 = vpop.f32.mrf.mxu0
      %v8315 = vadd.f32 0.0, %v8314
      %8316 = vdwg.mxu0
      %v8317 = vadd.f32 %v8188, %v8243
      %v8318 = vadd.f32 %v8189, %v8266
      %v8319 = vadd.f32 %v8190, %v8289
      %v8320 = vadd.f32 %v8191, %v8312
      %v8321 = vadd.f32 %v8192, %v8246
      %v8322 = vadd.f32 %v8193, %v8269
      %v8323 = vadd.f32 %v8194, %v8292
      %v8324 = vadd.f32 %v8195, %v8315
      %v8325 = vmul.f32 %v5815, %v4323
      %v8326 = vmul.f32 %v5813, %v4324
      %v8327 = vmul.f32 %v5811, %v4325
      %v8328 = vmul.f32 %v5817, %v4326
      %v8329 = vmul.f32 %v5816, %v4323
      %v8330 = vmul.f32 %v5814, %v4324
      %v8331 = vmul.f32 %v5812, %v4325
      %v8332 = vmul.f32 %v5818, %v4326
      %s8333 = scalar_lea.vmem %s4, 416
      %v8334 = vld [vmem:[%s8333] sm:$0xff]
      %v8335 = vld [vmem:[%s8333 + $0x8] sm:$0xf]
      %v8337 = vsel %vm319, %v8334, 0
      %v8340 = vsel %vm319, %v8335, 0
      %v8343 = vsel %vm326, %v8329, 0
      %v8346 = vsel %vm326, %v8330, 0
      %v8349 = vsel %vm326, %v8331, 0
      %v8352 = vsel %vm326, %v8332, 0
      %8354 = vmatpush.msra.mxu0 0.0
      %8355 = vmatpush.msra.mxu0 0.0
      %8356 = vmatpush.msra.mxu0 0.0
      %8357 = vmatpush.msra.mxu0 0.0
      %8358 = vmatpush.msra.mxu0 0.0
      %8359 = vmatpush.msra.mxu0 0.0
      %8360 = vmatpush.msra.mxu0 0.0
      %8361 = vmatpush.msra.mxu0 0.0
      %8362 = vmatpush.msra.mxu0 0.0
      %8363 = vmatpush.msra.mxu0 0.0
      %8364 = vmatpush.msra.mxu0 0.0
      %8365 = vmatpush.msra.mxu0 0.0
      %8366 = vmatpush.msra.mxu0 0.0
      %8367 = vmatpush.msra.mxu0 0.0
      %8368 = vmatpush.msra.mxu0 %v8343
      %8369 = vmatpush.msra.mxu0 %v8325
      %8370 = vmatmul.f32.gmra.mxu0 %v8337
      %v8371 = vpop.f32.mrf.mxu0
      %v8372 = vadd.f32 0.0, %v8371
      %8373 = vmatmul.f32.gmra.mxu0 %v8340
      %v8374 = vpop.f32.mrf.mxu0
      %v8375 = vadd.f32 0.0, %v8374
      %8376 = vdwg.mxu0
      %8377 = vmatpush.msra.mxu0 0.0
      %8378 = vmatpush.msra.mxu0 0.0
      %8379 = vmatpush.msra.mxu0 0.0
      %8380 = vmatpush.msra.mxu0 0.0
      %8381 = vmatpush.msra.mxu0 0.0
      %8382 = vmatpush.msra.mxu0 0.0
      %8383 = vmatpush.msra.mxu0 0.0
      %8384 = vmatpush.msra.mxu0 0.0
      %8385 = vmatpush.msra.mxu0 0.0
      %8386 = vmatpush.msra.mxu0 0.0
      %8387 = vmatpush.msra.mxu0 0.0
      %8388 = vmatpush.msra.mxu0 0.0
      %8389 = vmatpush.msra.mxu0 0.0
      %8390 = vmatpush.msra.mxu0 0.0
      %8391 = vmatpush.msra.mxu0 %v8346
      %8392 = vmatpush.msra.mxu0 %v8326
      %8393 = vmatmul.f32.gmra.mxu0 %v8337
      %v8394 = vpop.f32.mrf.mxu0
      %v8395 = vadd.f32 0.0, %v8394
      %8396 = vmatmul.f32.gmra.mxu0 %v8340
      %v8397 = vpop.f32.mrf.mxu0
      %v8398 = vadd.f32 0.0, %v8397
      %8399 = vdwg.mxu0
      %8400 = vmatpush.msra.mxu0 0.0
      %8401 = vmatpush.msra.mxu0 0.0
      %8402 = vmatpush.msra.mxu0 0.0
      %8403 = vmatpush.msra.mxu0 0.0
      %8404 = vmatpush.msra.mxu0 0.0
      %8405 = vmatpush.msra.mxu0 0.0
      %8406 = vmatpush.msra.mxu0 0.0
      %8407 = vmatpush.msra.mxu0 0.0
      %8408 = vmatpush.msra.mxu0 0.0
      %8409 = vmatpush.msra.mxu0 0.0
      %8410 = vmatpush.msra.mxu0 0.0
      %8411 = vmatpush.msra.mxu0 0.0
      %8412 = vmatpush.msra.mxu0 0.0
      %8413 = vmatpush.msra.mxu0 0.0
      %8414 = vmatpush.msra.mxu0 %v8349
      %8415 = vmatpush.msra.mxu0 %v8327
      %8416 = vmatmul.f32.gmra.mxu0 %v8337
      %v8417 = vpop.f32.mrf.mxu0
      %v8418 = vadd.f32 0.0, %v8417
      %8419 = vmatmul.f32.gmra.mxu0 %v8340
      %v8420 = vpop.f32.mrf.mxu0
      %v8421 = vadd.f32 0.0, %v8420
      %8422 = vdwg.mxu0
      %8423 = vmatpush.msra.mxu0 0.0
      %8424 = vmatpush.msra.mxu0 0.0
      %8425 = vmatpush.msra.mxu0 0.0
      %8426 = vmatpush.msra.mxu0 0.0
      %8427 = vmatpush.msra.mxu0 0.0
      %8428 = vmatpush.msra.mxu0 0.0
      %8429 = vmatpush.msra.mxu0 0.0
      %8430 = vmatpush.msra.mxu0 0.0
      %8431 = vmatpush.msra.mxu0 0.0
      %8432 = vmatpush.msra.mxu0 0.0
      %8433 = vmatpush.msra.mxu0 0.0
      %8434 = vmatpush.msra.mxu0 0.0
      %8435 = vmatpush.msra.mxu0 0.0
      %8436 = vmatpush.msra.mxu0 0.0
      %8437 = vmatpush.msra.mxu0 %v8352
      %8438 = vmatpush.msra.mxu0 %v8328
      %8439 = vmatmul.f32.gmra.mxu0 %v8337
      %v8440 = vpop.f32.mrf.mxu0
      %v8441 = vadd.f32 0.0, %v8440
      %8442 = vmatmul.f32.gmra.mxu0 %v8340
      %v8443 = vpop.f32.mrf.mxu0
      %v8444 = vadd.f32 0.0, %v8443
      %8445 = vdwg.mxu0
      %v8446 = vadd.f32 %v8317, %v8372
      %v8447 = vadd.f32 %v8318, %v8395
      %v8448 = vadd.f32 %v8319, %v8418
      %v8449 = vadd.f32 %v8320, %v8441
      %v8450 = vadd.f32 %v8321, %v8375
      %v8451 = vadd.f32 %v8322, %v8398
      %v8452 = vadd.f32 %v8323, %v8421
      %v8453 = vadd.f32 %v8324, %v8444
      %v8454 = vadd.f32 %v8446, %v8447
      %v8455 = vadd.f32 %v8454, %v8448
      %v8456 = vadd.f32 %v8455, %v8449
      %8457 = vadd.xlane.f32.xlu0 %v8456
      %v8458 = vpop.xlane.xlu0 %8457
      %v8459 = vsel %vm326, %v8450, 0.0
      %v8460 = vsel %vm326, %v8451, 0.0
      %v8461 = vadd.f32 %v8459, %v8460
      %v8462 = vsel %vm326, %v8452, 0.0
      %v8463 = vadd.f32 %v8461, %v8462
      %v8464 = vsel %vm326, %v8453, 0.0
      %v8465 = vadd.f32 %v8463, %v8464
      %8466 = vadd.xlane.f32.xlu0 %v8465
      %v8467 = vpop.xlane.xlu0 %8466
      %v8468 = vmul.f32 %v8458, 0.001953125
      %v8469 = vmul.f32 %v8467, 0.001953125
      %v8470 = vmul.f32 %v8446, %v8446
      %v8471 = vmul.f32 %v8447, %v8447
      %v8472 = vmul.f32 %v8448, %v8448
      %v8473 = vmul.f32 %v8449, %v8449
      %v8474 = vmul.f32 %v8450, %v8450
      %v8475 = vmul.f32 %v8451, %v8451
      %v8476 = vmul.f32 %v8452, %v8452
      %v8477 = vmul.f32 %v8453, %v8453
      %v8478 = vadd.f32 %v8470, %v8471
      %v8479 = vadd.f32 %v8478, %v8472
      %v8480 = vadd.f32 %v8479, %v8473
      %8481 = vadd.xlane.f32.xlu0 %v8480
      %v8482 = vpop.xlane.xlu0 %8481
      %v8483 = vsel %vm326, %v8474, 0.0
      %v8484 = vsel %vm326, %v8475, 0.0
      %v8485 = vadd.f32 %v8483, %v8484
      %v8486 = vsel %vm326, %v8476, 0.0
      %v8487 = vadd.f32 %v8485, %v8486
      %v8488 = vsel %vm326, %v8477, 0.0
      %v8489 = vadd.f32 %v8487, %v8488
      %8490 = vadd.xlane.f32.xlu0 %v8489
      %v8491 = vpop.xlane.xlu0 %8490
      %v8492 = vmul.f32 %v8482, 0.001953125
      %v8493 = vmul.f32 %v8491, 0.001953125
      %v8494 = vmul.f32 %v8468, %v8468
      %v8495 = vmul.f32 %v8469, %v8469
      %v8496 = vsub.f32 %v8492, %v8494
      %v8497 = vsub.f32 %v8493, %v8495
      %v8498 = vmax.f32 %v8496, 0.0
      %v8499 = vmax.f32 %v8497, 0.0
      %v8500 = vsub.f32 %v8446, %v8468
      %v8501 = vsub.f32 %v8447, %v8468
      %v8502 = vsub.f32 %v8448, %v8468
      %v8503 = vsub.f32 %v8449, %v8468
      %v8504 = vsub.f32 %v8450, %v8469
      %v8505 = vsub.f32 %v8451, %v8469
      %v8506 = vsub.f32 %v8452, %v8469
      %v8507 = vsub.f32 %v8453, %v8469
      %v8508 = vadd.f32 %v8498, 1e-05
      %v8509 = vadd.f32 %v8499, 1e-05
      %v8510 = vrsqrt.pop %v8508
      %v8511 = vmul.f32 %v8510, %v8508
      %v8512 = vmul.f32 %v8511, %v8510
      %v8513 = vmul.f32 0.5, %v8512
      %v8514 = vsub.f32 1.5, %v8513
      %v8515 = vmul.f32 %v8510, %v8514
      %vm8516 = vweird.f32 %v8508
      %vm8517 = vweird.f32 %v8510
      %vm8518 = vmor %vm8516, %vm8517
      %v8519 = vsel %vm8518, %v8510, %v8515
      %v8520 = vrsqrt.pop %v8509
      %v8521 = vmul.f32 %v8520, %v8509
      %v8522 = vmul.f32 %v8521, %v8520
      %v8523 = vmul.f32 0.5, %v8522
      %v8524 = vsub.f32 1.5, %v8523
      %v8525 = vmul.f32 %v8520, %v8524
      %vm8526 = vweird.f32 %v8509
      %vm8527 = vweird.f32 %v8520
      %vm8528 = vmor %vm8526, %vm8527
      %v8529 = vsel %vm8528, %v8520, %v8525
      %v8530 = vmul.f32 %v8500, %v8519
      %v8531 = vmul.f32 %v8501, %v8519
      %v8532 = vmul.f32 %v8502, %v8519
      %v8533 = vmul.f32 %v8503, %v8519
      %v8534 = vmul.f32 %v8504, %v8529
      %v8535 = vmul.f32 %v8505, %v8529
      %v8536 = vmul.f32 %v8506, %v8529
      %v8537 = vmul.f32 %v8507, %v8529
      %v8538 = vmul.f32 %v8530, 0.1
      %v8539 = vmul.f32 %v8531, 0.1
      %v8540 = vmul.f32 %v8532, 0.1
      %v8541 = vmul.f32 %v8533, 0.1
      %v8542 = vmul.f32 %v8534, 0.1
      %v8543 = vmul.f32 %v8535, 0.1
      %v8544 = vmul.f32 %v8536, 0.1
      %v8545 = vmul.f32 %v8537, 0.1
      %v8546 = vmax.f32 %v8530, %v8538
      %v8547 = vmax.f32 %v8531, %v8539
      %v8548 = vmax.f32 %v8532, %v8540
      %v8549 = vmax.f32 %v8533, %v8541
      %v8550 = vmax.f32 %v8534, %v8542
      %v8551 = vmax.f32 %v8535, %v8543
      %v8552 = vmax.f32 %v8536, %v8544
      %v8553 = vmax.f32 %v8537, %v8545
      %8554 = vst [vmem:[%s251] sm:$0xff] %v8546
      %8555 = vst [vmem:[%s251 + $0x8] sm:$0xff] %v8547
      %8556 = vst [vmem:[%s251 + $0x10] sm:$0xff] %v8548
      %8557 = vst [vmem:[%s251 + $0x18] sm:$0xff] %v8549
      %8558 = vst [vmem:[%s251 + $0x20] sm:$0xf] %v8550
      %8559 = vst [vmem:[%s251 + $0x28] sm:$0xf] %v8551
      %8560 = vst [vmem:[%s251 + $0x30] sm:$0xf] %v8552
      %8561 = vst [vmem:[%s251 + $0x38] sm:$0xf] %v8553
      %p8562 = scmp.lt.s32.totalorder %s17, 1
      %s8563 = scalar_select %p8562, %s17, 1
      %s8564 = smul.addr %s8563, 8
      %s8565 = smul.addr %s8564, 8
      %s8566 = scalar_lea.vmem %s6, %s8565
      // Predicated region
      $region45: #{tpu_custom_call.1} parent=43 // pred_check
        %p8567 = pneg %p166
      $region46: #{tpu_custom_call.1} parent=43 // pred_check_branch
        %8569 = sbr.rel (%p8567) target = $region48
      $region47: #{tpu_custom_call.1} parent=43 // pred_region
        _
      $region48: #{tpu_custom_call.1} parent=43 // pred_fallthru
        _
    $region44: #{tpu_custom_call.1} parent=5 // pred_fallthru
      _
    %p8570 = scmp.le.s32.totalorder 2, %s12
    // Predicated region
    $region49: #{tpu_custom_call.1} parent=5 // pred_check
      %p8571 = pneg %p8570
    $region50: #{tpu_custom_call.1} parent=5 // pred_check_branch
      %8573 = sbr.rel (%p8571) target = $region52
    $region51: #{tpu_custom_call.1} parent=5 // pred_region
      %s8574 = ssub.s32 %s12, 2
      // Predicated region
      $region53: #{tpu_custom_call.1} parent=51 // pred_check
        %p8575 = pneg %p172
      $region54: #{tpu_custom_call.1} parent=51 // pred_check_branch
        %8577 = sbr.rel (%p8575) target = $region56
      $region55: #{tpu_custom_call.1} parent=51 // pred_region
        %p8578 = scmp.lt.s32.totalorder %s18, 1
        %s8579 = scalar_select %p8578, %s18, 1
        %s8580 = smul.addr %s8579, 8
        %s8581 = smul.addr %s8580, 8
        %s8582 = scalar_lea.vmem %s6, %s8581
      $region56: #{tpu_custom_call.1} parent=51 // pred_fallthru
        _
    $region52: #{tpu_custom_call.1} parent=5 // pred_fallthru
      _
  $region6: #{tpu_custom_call.1} parent=0 // loop_footer
    %s16 = sadd.s32 1, %s12
  $region7: #{tpu_custom_call.1} parent=0 // loop_footer_branch
    %11 = sbr.rel target = $region3
  $region8: #{tpu_custom_call.1} parent=0 // loop_exit
    _

</llo_original>
